<compile_context>
chip_gen: v6e
topology: v6e:2x2x1
jax: 0.10.0
libtpu: 0.0.40
codegen_flags: <defaults>
</compile_context>

<pallas_src>
import jax
import jax.numpy as jnp
from jax import lax
from jax.experimental import pallas as pl
from jax.experimental.pallas import tpu as pltpu

_LANE = 128


def _basic_block_kernel(xp_ref, w1_ref, b1_ref, w2_ref, b2_ref, o_ref,
                        patch_ref, mid_ref):
    """One batch tile (TB images) per grid step.

    xp_ref   : (TB, H+2, W+2, Cp)   zero-padded input (spatial + channel pad)
    w1_ref   : (9*Cp, Cp)           conv1 weights, BN1 scale folded, im2col layout
    b1_ref   : (1, Cp)              BN1 shift
    w2_ref   : (9*Cp, Cp)           conv2 weights, BN2 scale folded
    b2_ref   : (1, Cp)              BN2 shift
    o_ref    : (TB, H, W, Cp)       output tile (lane-dense last dim)
    patch_ref: (TB*H*W, 9*Cp)       shared im2col scratch (conv1 & conv2)
    mid_ref  : (TB, H+2, W+2, Cp)   padded conv1 output scratch
    """
    TB, Hp, Wp, Cp = xp_ref.shape
    H, W = Hp - 2, Wp - 2
    M = TB * H * W
    mm_dtype = patch_ref.dtype

    # ---- conv1: im2col (9 aligned tap copies) + one fat MXU matmul --------
    for kh in range(3):
        for kw in range(3):
            t = kh * 3 + kw
            tap = xp_ref[:, kh:kh + H, kw:kw + W, :]        # (TB, H, W, Cp)
            patch_ref[:, t * Cp:(t + 1) * Cp] = (
                tap.reshape(M, Cp).astype(mm_dtype))
    acc1 = jnp.dot(patch_ref[...], w1_ref[...],
                   preferred_element_type=jnp.float32)       # (M, Cp)

    # bn1 shift (scale already folded into w1) + relu
    out1 = jnp.maximum(acc1 + b1_ref[0], 0.0)

    # ---- stage conv1 output into the padded scratch for conv2 -------------
    # Zero only the 1-pixel border (the interior is fully rewritten below).
    mid_ref[:, :, 0:1, :] = jnp.zeros((TB, Hp, 1, Cp), jnp.float32)
    mid_ref[:, :, W + 1:W + 2, :] = jnp.zeros((TB, Hp, 1, Cp), jnp.float32)
    mid_ref[:, 0:1, :, :] = jnp.zeros((TB, 1, Wp, Cp), jnp.float32)
    mid_ref[:, H + 1:H + 2, :, :] = jnp.zeros((TB, 1, Wp, Cp), jnp.float32)
    mid_ref[:, 1:H + 1, 1:W + 1, :] = out1.reshape(TB, H, W, Cp)

    # ---- conv2: same im2col (patch scratch reused) + one matmul ------------
    for kh in range(3):
        for kw in range(3):
            t = kh * 3 + kw
            tap = mid_ref[:, kh:kh + H, kw:kw + W, :]
            patch_ref[:, t * Cp:(t + 1) * Cp] = (
                tap.reshape(M, Cp).astype(mm_dtype))
    acc2 = jnp.dot(patch_ref[...], w2_ref[...],
                   preferred_element_type=jnp.float32)       # (M, Cp)

    # bn2 shift + identity residual + relu  (padded channels stay exactly 0)
    residual = xp_ref[:, 1:H + 1, 1:W + 1, :].reshape(M, Cp)
    out2 = jnp.maximum(acc2 + b2_ref[0] + residual, 0.0)
    o_ref[...] = out2.reshape(TB, H, W, Cp)


def basic_block_forward(x_nchw, w1, g1, be1, m1, v1, w2, g2, be2, m2, v2,
                        eps=1e-5, mm_dtype=jnp.float32):
    """BasicBlock forward (inference BN). mm_dtype=jnp.bfloat16 enables the
    ~2x MXU path on v6e/v7x (keeps f32 accumulation and f32 elementwise)."""
    N, C, H, W = x_nchw.shape
    Cout = w1.shape[-1]
    assert C == Cout, "identity residual requires Cin == Cout (downsample=None)"

    Cp = ((C + _LANE - 1) // _LANE) * _LANE   # lane-aligned channel count

    # NHWC, 1-pixel spatial zero pad, channel pad to Cp.
    x = jnp.transpose(x_nchw, (0, 2, 3, 1)).astype(jnp.float32)
    xp = jnp.pad(x, ((0, 0), (1, 1), (1, 1), (0, Cp - C)))

    # Fold BatchNorm (inference): scale into weights, shift stays separate.
    inv1 = g1 / jnp.sqrt(v1 + eps)
    inv2 = g2 / jnp.sqrt(v2 + eps)
    w1f = w1 * inv1[None, None, None, :]
    w2f = w2 * inv2[None, None, None, :]
    b1 = be1 - m1 * inv1
    b2 = be2 - m2 * inv2

    # Channel-pad + reshape HWIO weights into im2col matrices (9*Cp, Cp).
    w1p = jnp.pad(w1f, ((0, 0), (0, 0), (0, Cp - C), (0, Cp - Cout))
                  ).reshape(9 * Cp, Cp).astype(mm_dtype)
    w2p = jnp.pad(w2f, ((0, 0), (0, 0), (0, Cp - Cout), (0, Cp - Cout))
                  ).reshape(9 * Cp, Cp).astype(mm_dtype)
    b1p = jnp.pad(b1, (0, Cp - Cout)).reshape(1, Cp).astype(jnp.float32)
    b2p = jnp.pad(b2, (0, Cp - Cout)).reshape(1, Cp).astype(jnp.float32)

    # Batch tiling: largest divisor of N that is <= 8 images per grid step.
    TB = 1
    for d in range(1, min(N, 8) + 1):
        if N % d == 0:
            TB = d

    out_nhwc = pl.pallas_call(
        _basic_block_kernel,
        out_shape=jax.ShapeDtypeStruct((N, H, W, Cp), jnp.float32),
        grid_spec=pltpu.PrefetchScalarGridSpec(
            num_scalar_prefetch=0,
            grid=(N // TB,),
            in_specs=[
                pl.BlockSpec((TB, H + 2, W + 2, Cp), lambda n: (n, 0, 0, 0)),
                pl.BlockSpec((9 * Cp, Cp), lambda n: (0, 0)),
                pl.BlockSpec((1, Cp), lambda n: (0, 0)),
                pl.BlockSpec((9 * Cp, Cp), lambda n: (0, 0)),
                pl.BlockSpec((1, Cp), lambda n: (0, 0)),
            ],
            out_specs=pl.BlockSpec((TB, H, W, Cp), lambda n: (n, 0, 0, 0)),
            scratch_shapes=[
                pltpu.VMEM((TB * H * W, 9 * Cp), mm_dtype),      # im2col
                pltpu.VMEM((TB, H + 2, W + 2, Cp), jnp.float32),  # padded mid
            ],
        ),
        compiler_params=pltpu.CompilerParams(
            dimension_semantics=("parallel",),
            vmem_limit_bytes=32 * 1024 * 1024,
        ),
    )(xp, w1p, b1p, w2p, b2p)

    out_nhwc = out_nhwc[..., :Cout]                   # drop channel padding
    return jnp.transpose(out_nhwc, (0, 3, 1, 2))      # back to NCHW


def _reference(x_nchw, w1, g1, be1, m1, v1, w2, g2, be2, m2, v2, eps=1e-5):
    """Plain-JAX reference (inference-mode BN), for a correctness check."""
    x = jnp.transpose(x_nchw, (0, 2, 3, 1)).astype(jnp.float32)
    dn = ('NHWC', 'HWIO', 'NHWC')

    def bn(y, g, b, m, v):
        return (y - m) / jnp.sqrt(v + eps) * g + b

    o = lax.conv_general_dilated(x, w1, (1, 1), 'SAME', dimension_numbers=dn)
    o = jax.nn.relu(bn(o, g1, be1, m1, v1))
    o = lax.conv_general_dilated(o, w2, (1, 1), 'SAME', dimension_numbers=dn)
    o = jax.nn.relu(bn(o, g2, be2, m2, v2) + x)
    return jnp.transpose(o, (0, 3, 1, 2))


if __name__ == "__main__":
    # Small shapes consistent with BasicBlock(inplanes=4, planes=4, stride=1).
    N, C, H, W = 2, 4, 16, 16
    planes = 4

    key = jax.random.PRNGKey(0)
    ks = jax.random.split(key, 11)

    x = jax.random.normal(ks[0], (N, C, H, W), jnp.float32)

    # conv weights in HWIO layout, no bias (matches conv3x3 bias=False)
    w1 = 0.1 * jax.random.normal(ks[1], (3, 3, C, planes), jnp.float32)
    w2 = 0.1 * jax.random.normal(ks[2], (3, 3, planes, planes), jnp.float32)

    # BatchNorm parameters / running stats (deterministic, non-trivial)
    g1 = 1.0 + 0.1 * jax.random.normal(ks[3], (planes,), jnp.float32)
    be1 = 0.1 * jax.random.normal(ks[4], (planes,), jnp.float32)
    m1 = 0.1 * jax.random.normal(ks[5], (planes,), jnp.float32)
    v1 = 0.9 + 0.1 * jnp.abs(jax.random.normal(ks[6], (planes,), jnp.float32))

    g2 = 1.0 + 0.1 * jax.random.normal(ks[7], (planes,), jnp.float32)
    be2 = 0.1 * jax.random.normal(ks[8], (planes,), jnp.float32)
    m2 = 0.1 * jax.random.normal(ks[9], (planes,), jnp.float32)
    v2 = 0.9 + 0.1 * jnp.abs(jax.random.normal(ks[10], (planes,), jnp.float32))

    out = basic_block_forward(x, w1, g1, be1, m1, v1, w2, g2, be2, m2, v2)
    out = jax.block_until_ready(out)

    ref = _reference(x, w1, g1, be1, m1, v1, w2, g2, be2, m2, v2)
    assert out.shape == (N, planes, H, W)
    assert jnp.allclose(out, ref, rtol=1e-4, atol=1e-4)

    print("KERNEL_OK")
</pallas_src>

<mosaic_0001>
module attributes {stable_mosaic.version = 11 : i64} {
  func.func @_basic_block_kernel(%arg0: i32, %arg1: memref<2x18x18x128xf32, #tpu.memory_space<vmem>>, %arg2: memref<1152x128xf32, #tpu.memory_space<vmem>>, %arg3: memref<1x128xf32, #tpu.memory_space<vmem>>, %arg4: memref<1152x128xf32, #tpu.memory_space<vmem>>, %arg5: memref<1x128xf32, #tpu.memory_space<vmem>>, %arg6: memref<2x16x16x128xf32, #tpu.memory_space<vmem>>, %arg7: memref<512x1152xf32, #tpu.memory_space<vmem>>, %arg8: memref<2x18x18x128xf32, #tpu.memory_space<vmem>>) attributes {dimension_semantics = [#tpu.dimension_semantics<parallel>], iteration_bounds = array<i64: 1>, scalar_prefetch = 0 : i64, scratch_operands = 2 : i64, tpu.core_type = #tpu.core_type<tc>, window_params = [{transform_indices = @transform_0, window_bounds = array<i64: 2, 18, 18, 128>}, {pipeline_mode = #tpu.pipeline_mode<synchronous>, transform_indices = @transform_1, window_bounds = array<i64: 1152, 128>}, {pipeline_mode = #tpu.pipeline_mode<synchronous>, transform_indices = @transform_2, window_bounds = array<i64: 1, 128>}, {pipeline_mode = #tpu.pipeline_mode<synchronous>, transform_indices = @transform_3, window_bounds = array<i64: 1152, 128>}, {pipeline_mode = #tpu.pipeline_mode<synchronous>, transform_indices = @transform_4, window_bounds = array<i64: 1, 128>}, {transform_indices = @transform_5, window_bounds = array<i64: 2, 16, 16, 128>}]} {
    %c0 = arith.constant 0 : index
    %c0_0 = arith.constant 0 : index
    %c0_1 = arith.constant 0 : index
    %c0_2 = arith.constant 0 : index
    %0 = vector.load %arg1[%c0, %c0_0, %c0_1, %c0_2] : memref<2x18x18x128xf32, #tpu.memory_space<vmem>>, vector<2x16x16x128xf32>
    %1 = vector.shape_cast %0 : vector<2x16x16x128xf32> to vector<512x128xf32>
    %c0_3 = arith.constant 0 : index
    %c0_4 = arith.constant 0 : index
    %2 = vector.load %arg7[%c0_3, %c0_4] : memref<512x1152xf32, #tpu.memory_space<vmem>>, vector<512x128xf32>
    tpu.vector_store %arg7[%c0_3, %c0_4], %1 {strides = array<i32>} : memref<512x1152xf32, #tpu.memory_space<vmem>>, vector<512x128xf32>,
    %c0_5 = arith.constant 0 : index
    %c0_6 = arith.constant 0 : index
    %c1 = arith.constant 1 : index
    %c0_7 = arith.constant 0 : index
    %3 = vector.load %arg1[%c0_5, %c0_6, %c1, %c0_7] : memref<2x18x18x128xf32, #tpu.memory_space<vmem>>, vector<2x16x16x128xf32>
    %4 = vector.shape_cast %3 : vector<2x16x16x128xf32> to vector<512x128xf32>
    %c0_8 = arith.constant 0 : index
    %c128 = arith.constant 128 : index
    %5 = vector.load %arg7[%c0_8, %c128] : memref<512x1152xf32, #tpu.memory_space<vmem>>, vector<512x128xf32>
    tpu.vector_store %arg7[%c0_8, %c128], %4 {strides = array<i32>} : memref<512x1152xf32, #tpu.memory_space<vmem>>, vector<512x128xf32>,
    %c0_9 = arith.constant 0 : index
    %c0_10 = arith.constant 0 : index
    %c2 = arith.constant 2 : index
    %c0_11 = arith.constant 0 : index
    %6 = vector.load %arg1[%c0_9, %c0_10, %c2, %c0_11] : memref<2x18x18x128xf32, #tpu.memory_space<vmem>>, vector<2x16x16x128xf32>
    %7 = vector.shape_cast %6 : vector<2x16x16x128xf32> to vector<512x128xf32>
    %c0_12 = arith.constant 0 : index
    %c256 = arith.constant 256 : index
    %8 = vector.load %arg7[%c0_12, %c256] : memref<512x1152xf32, #tpu.memory_space<vmem>>, vector<512x128xf32>
    tpu.vector_store %arg7[%c0_12, %c256], %7 {strides = array<i32>} : memref<512x1152xf32, #tpu.memory_space<vmem>>, vector<512x128xf32>,
    %c0_13 = arith.constant 0 : index
    %c1_14 = arith.constant 1 : index
    %c0_15 = arith.constant 0 : index
    %c0_16 = arith.constant 0 : index
    %9 = vector.load %arg1[%c0_13, %c1_14, %c0_15, %c0_16] : memref<2x18x18x128xf32, #tpu.memory_space<vmem>>, vector<2x16x16x128xf32>
    %10 = vector.shape_cast %9 : vector<2x16x16x128xf32> to vector<512x128xf32>
    %c0_17 = arith.constant 0 : index
    %c384 = arith.constant 384 : index
    %11 = vector.load %arg7[%c0_17, %c384] : memref<512x1152xf32, #tpu.memory_space<vmem>>, vector<512x128xf32>
    tpu.vector_store %arg7[%c0_17, %c384], %10 {strides = array<i32>} : memref<512x1152xf32, #tpu.memory_space<vmem>>, vector<512x128xf32>,
    %c0_18 = arith.constant 0 : index
    %c1_19 = arith.constant 1 : index
    %c1_20 = arith.constant 1 : index
    %c0_21 = arith.constant 0 : index
    %12 = vector.load %arg1[%c0_18, %c1_19, %c1_20, %c0_21] : memref<2x18x18x128xf32, #tpu.memory_space<vmem>>, vector<2x16x16x128xf32>
    %13 = vector.shape_cast %12 : vector<2x16x16x128xf32> to vector<512x128xf32>
    %c0_22 = arith.constant 0 : index
    %c512 = arith.constant 512 : index
    %14 = vector.load %arg7[%c0_22, %c512] : memref<512x1152xf32, #tpu.memory_space<vmem>>, vector<512x128xf32>
    tpu.vector_store %arg7[%c0_22, %c512], %13 {strides = array<i32>} : memref<512x1152xf32, #tpu.memory_space<vmem>>, vector<512x128xf32>,
    %c0_23 = arith.constant 0 : index
    %c1_24 = arith.constant 1 : index
    %c2_25 = arith.constant 2 : index
    %c0_26 = arith.constant 0 : index
    %15 = vector.load %arg1[%c0_23, %c1_24, %c2_25, %c0_26] : memref<2x18x18x128xf32, #tpu.memory_space<vmem>>, vector<2x16x16x128xf32>
    %16 = vector.shape_cast %15 : vector<2x16x16x128xf32> to vector<512x128xf32>
    %c0_27 = arith.constant 0 : index
    %c640 = arith.constant 640 : index
    %17 = vector.load %arg7[%c0_27, %c640] : memref<512x1152xf32, #tpu.memory_space<vmem>>, vector<512x128xf32>
    tpu.vector_store %arg7[%c0_27, %c640], %16 {strides = array<i32>} : memref<512x1152xf32, #tpu.memory_space<vmem>>, vector<512x128xf32>,
    %c0_28 = arith.constant 0 : index
    %c2_29 = arith.constant 2 : index
    %c0_30 = arith.constant 0 : index
    %c0_31 = arith.constant 0 : index
    %18 = vector.load %arg1[%c0_28, %c2_29, %c0_30, %c0_31] : memref<2x18x18x128xf32, #tpu.memory_space<vmem>>, vector<2x16x16x128xf32>
    %19 = vector.shape_cast %18 : vector<2x16x16x128xf32> to vector<512x128xf32>
    %c0_32 = arith.constant 0 : index
    %c768 = arith.constant 768 : index
    %20 = vector.load %arg7[%c0_32, %c768] : memref<512x1152xf32, #tpu.memory_space<vmem>>, vector<512x128xf32>
    tpu.vector_store %arg7[%c0_32, %c768], %19 {strides = array<i32>} : memref<512x1152xf32, #tpu.memory_space<vmem>>, vector<512x128xf32>,
    %c0_33 = arith.constant 0 : index
    %c2_34 = arith.constant 2 : index
    %c1_35 = arith.constant 1 : index
    %c0_36 = arith.constant 0 : index
    %21 = vector.load %arg1[%c0_33, %c2_34, %c1_35, %c0_36] : memref<2x18x18x128xf32, #tpu.memory_space<vmem>>, vector<2x16x16x128xf32>
    %22 = vector.shape_cast %21 : vector<2x16x16x128xf32> to vector<512x128xf32>
    %c0_37 = arith.constant 0 : index
    %c896 = arith.constant 896 : index
    %23 = vector.load %arg7[%c0_37, %c896] : memref<512x1152xf32, #tpu.memory_space<vmem>>, vector<512x128xf32>
    tpu.vector_store %arg7[%c0_37, %c896], %22 {strides = array<i32>} : memref<512x1152xf32, #tpu.memory_space<vmem>>, vector<512x128xf32>,
    %c0_38 = arith.constant 0 : index
    %c2_39 = arith.constant 2 : index
    %c2_40 = arith.constant 2 : index
    %c0_41 = arith.constant 0 : index
    %24 = vector.load %arg1[%c0_38, %c2_39, %c2_40, %c0_41] : memref<2x18x18x128xf32, #tpu.memory_space<vmem>>, vector<2x16x16x128xf32>
    %25 = vector.shape_cast %24 : vector<2x16x16x128xf32> to vector<512x128xf32>
    %c0_42 = arith.constant 0 : index
    %c1024 = arith.constant 1024 : index
    %26 = vector.load %arg7[%c0_42, %c1024] : memref<512x1152xf32, #tpu.memory_space<vmem>>, vector<512x128xf32>
    tpu.vector_store %arg7[%c0_42, %c1024], %25 {strides = array<i32>} : memref<512x1152xf32, #tpu.memory_space<vmem>>, vector<512x128xf32>,
    %c0_43 = arith.constant 0 : index
    %c0_44 = arith.constant 0 : index
    %27 = vector.load %arg7[%c0_43, %c0_44] : memref<512x1152xf32, #tpu.memory_space<vmem>>, vector<512x1152xf32>
    %c0_45 = arith.constant 0 : index
    %c0_46 = arith.constant 0 : index
    %28 = vector.load %arg2[%c0_45, %c0_46] : memref<1152x128xf32, #tpu.memory_space<vmem>>, vector<1152x128xf32>
    %cst = arith.constant dense<0.000000e+00> : vector<512x128xf32>
    %29 = tpu.matmul %27, %28, %cst {dimension_numbers = #tpu.dot_dimension_numbers<[1], [0], [0], [1], [0, 0, 1, 1], [], []>} : vector<512x1152xf32>, vector<1152x128xf32>, vector<512x128xf32> -> vector<512x128xf32>
    %c0_47 = arith.constant 0 : index
    %c0_48 = arith.constant 0 : index
    %30 = vector.load %arg3[%c0_47, %c0_48] : memref<1x128xf32, #tpu.memory_space<vmem>>, vector<1x128xf32>
    %31 = vector.shape_cast %30 : vector<1x128xf32> to vector<128xf32>
    %32 = vector.shape_cast %31 : vector<128xf32> to vector<1x128xf32>
    %33 = vector.broadcast %32 : vector<1x128xf32> to vector<512x128xf32>
    %34 = arith.addf %29, %33 : vector<512x128xf32>
    %cst_49 = arith.constant 0.000000e+00 : f32
    %35 = vector.broadcast %cst_49 : f32 to vector<512x128xf32>
    %36 = arith.maximumf %34, %35 : vector<512x128xf32>
    %cst_50 = arith.constant 0.000000e+00 : f32
    %37 = vector.broadcast %cst_50 : f32 to vector<2x18x1x128xf32>
    %c0_51 = arith.constant 0 : index
    %c0_52 = arith.constant 0 : index
    %c0_53 = arith.constant 0 : index
    %c0_54 = arith.constant 0 : index
    %38 = vector.load %arg8[%c0_51, %c0_52, %c0_53, %c0_54] : memref<2x18x18x128xf32, #tpu.memory_space<vmem>>, vector<2x18x1x128xf32>
    tpu.vector_store %arg8[%c0_51, %c0_52, %c0_53, %c0_54], %37 {strides = array<i32>} : memref<2x18x18x128xf32, #tpu.memory_space<vmem>>, vector<2x18x1x128xf32>,
    %cst_55 = arith.constant 0.000000e+00 : f32
    %39 = vector.broadcast %cst_55 : f32 to vector<2x18x1x128xf32>
    %c0_56 = arith.constant 0 : index
    %c0_57 = arith.constant 0 : index
    %c17 = arith.constant 17 : index
    %c0_58 = arith.constant 0 : index
    %40 = vector.load %arg8[%c0_56, %c0_57, %c17, %c0_58] : memref<2x18x18x128xf32, #tpu.memory_space<vmem>>, vector<2x18x1x128xf32>
    tpu.vector_store %arg8[%c0_56, %c0_57, %c17, %c0_58], %39 {strides = array<i32>} : memref<2x18x18x128xf32, #tpu.memory_space<vmem>>, vector<2x18x1x128xf32>,
    %cst_59 = arith.constant 0.000000e+00 : f32
    %41 = vector.broadcast %cst_59 : f32 to vector<2x1x18x128xf32>
    %c0_60 = arith.constant 0 : index
    %c0_61 = arith.constant 0 : index
    %c0_62 = arith.constant 0 : index
    %c0_63 = arith.constant 0 : index
    %42 = vector.load %arg8[%c0_60, %c0_61, %c0_62, %c0_63] : memref<2x18x18x128xf32, #tpu.memory_space<vmem>>, vector<2x1x18x128xf32>
    tpu.vector_store %arg8[%c0_60, %c0_61, %c0_62, %c0_63], %41 {strides = array<i32>} : memref<2x18x18x128xf32, #tpu.memory_space<vmem>>, vector<2x1x18x128xf32>,
    %cst_64 = arith.constant 0.000000e+00 : f32
    %43 = vector.broadcast %cst_64 : f32 to vector<2x1x18x128xf32>
    %c0_65 = arith.constant 0 : index
    %c17_66 = arith.constant 17 : index
    %c0_67 = arith.constant 0 : index
    %c0_68 = arith.constant 0 : index
    %44 = vector.load %arg8[%c0_65, %c17_66, %c0_67, %c0_68] : memref<2x18x18x128xf32, #tpu.memory_space<vmem>>, vector<2x1x18x128xf32>
    tpu.vector_store %arg8[%c0_65, %c17_66, %c0_67, %c0_68], %43 {strides = array<i32>} : memref<2x18x18x128xf32, #tpu.memory_space<vmem>>, vector<2x1x18x128xf32>,
    %45 = vector.shape_cast %36 : vector<512x128xf32> to vector<2x16x16x128xf32>
    %c0_69 = arith.constant 0 : index
    %c1_70 = arith.constant 1 : index
    %c1_71 = arith.constant 1 : index
    %c0_72 = arith.constant 0 : index
    %46 = vector.load %arg8[%c0_69, %c1_70, %c1_71, %c0_72] : memref<2x18x18x128xf32, #tpu.memory_space<vmem>>, vector<2x16x16x128xf32>
    tpu.vector_store %arg8[%c0_69, %c1_70, %c1_71, %c0_72], %45 {strides = array<i32>} : memref<2x18x18x128xf32, #tpu.memory_space<vmem>>, vector<2x16x16x128xf32>,
    %c0_73 = arith.constant 0 : index
    %c0_74 = arith.constant 0 : index
    %c0_75 = arith.constant 0 : index
    %c0_76 = arith.constant 0 : index
    %47 = vector.load %arg8[%c0_73, %c0_74, %c0_75, %c0_76] : memref<2x18x18x128xf32, #tpu.memory_space<vmem>>, vector<2x16x16x128xf32>
    %48 = vector.shape_cast %47 : vector<2x16x16x128xf32> to vector<512x128xf32>
    %c0_77 = arith.constant 0 : index
    %c0_78 = arith.constant 0 : index
    %49 = vector.load %arg7[%c0_77, %c0_78] : memref<512x1152xf32, #tpu.memory_space<vmem>>, vector<512x128xf32>
    tpu.vector_store %arg7[%c0_77, %c0_78], %48 {strides = array<i32>} : memref<512x1152xf32, #tpu.memory_space<vmem>>, vector<512x128xf32>,
    %c0_79 = arith.constant 0 : index
    %c0_80 = arith.constant 0 : index
    %c1_81 = arith.constant 1 : index
    %c0_82 = arith.constant 0 : index
    %50 = vector.load %arg8[%c0_79, %c0_80, %c1_81, %c0_82] : memref<2x18x18x128xf32, #tpu.memory_space<vmem>>, vector<2x16x16x128xf32>
    %51 = vector.shape_cast %50 : vector<2x16x16x128xf32> to vector<512x128xf32>
    %c0_83 = arith.constant 0 : index
    %c128_84 = arith.constant 128 : index
    %52 = vector.load %arg7[%c0_83, %c128_84] : memref<512x1152xf32, #tpu.memory_space<vmem>>, vector<512x128xf32>
    tpu.vector_store %arg7[%c0_83, %c128_84], %51 {strides = array<i32>} : memref<512x1152xf32, #tpu.memory_space<vmem>>, vector<512x128xf32>,
    %c0_85 = arith.constant 0 : index
    %c0_86 = arith.constant 0 : index
    %c2_87 = arith.constant 2 : index
    %c0_88 = arith.constant 0 : index
    %53 = vector.load %arg8[%c0_85, %c0_86, %c2_87, %c0_88] : memref<2x18x18x128xf32, #tpu.memory_space<vmem>>, vector<2x16x16x128xf32>
    %54 = vector.shape_cast %53 : vector<2x16x16x128xf32> to vector<512x128xf32>
    %c0_89 = arith.constant 0 : index
    %c256_90 = arith.constant 256 : index
    %55 = vector.load %arg7[%c0_89, %c256_90] : memref<512x1152xf32, #tpu.memory_space<vmem>>, vector<512x128xf32>
    tpu.vector_store %arg7[%c0_89, %c256_90], %54 {strides = array<i32>} : memref<512x1152xf32, #tpu.memory_space<vmem>>, vector<512x128xf32>,
    %c0_91 = arith.constant 0 : index
    %c1_92 = arith.constant 1 : index
    %c0_93 = arith.constant 0 : index
    %c0_94 = arith.constant 0 : index
    %56 = vector.load %arg8[%c0_91, %c1_92, %c0_93, %c0_94] : memref<2x18x18x128xf32, #tpu.memory_space<vmem>>, vector<2x16x16x128xf32>
    %57 = vector.shape_cast %56 : vector<2x16x16x128xf32> to vector<512x128xf32>
    %c0_95 = arith.constant 0 : index
    %c384_96 = arith.constant 384 : index
    %58 = vector.load %arg7[%c0_95, %c384_96] : memref<512x1152xf32, #tpu.memory_space<vmem>>, vector<512x128xf32>
    tpu.vector_store %arg7[%c0_95, %c384_96], %57 {strides = array<i32>} : memref<512x1152xf32, #tpu.memory_space<vmem>>, vector<512x128xf32>,
    %c0_97 = arith.constant 0 : index
    %c1_98 = arith.constant 1 : index
    %c1_99 = arith.constant 1 : index
    %c0_100 = arith.constant 0 : index
    %59 = vector.load %arg8[%c0_97, %c1_98, %c1_99, %c0_100] : memref<2x18x18x128xf32, #tpu.memory_space<vmem>>, vector<2x16x16x128xf32>
    %60 = vector.shape_cast %59 : vector<2x16x16x128xf32> to vector<512x128xf32>
    %c0_101 = arith.constant 0 : index
    %c512_102 = arith.constant 512 : index
    %61 = vector.load %arg7[%c0_101, %c512_102] : memref<512x1152xf32, #tpu.memory_space<vmem>>, vector<512x128xf32>
    tpu.vector_store %arg7[%c0_101, %c512_102], %60 {strides = array<i32>} : memref<512x1152xf32, #tpu.memory_space<vmem>>, vector<512x128xf32>,
    %c0_103 = arith.constant 0 : index
    %c1_104 = arith.constant 1 : index
    %c2_105 = arith.constant 2 : index
    %c0_106 = arith.constant 0 : index
    %62 = vector.load %arg8[%c0_103, %c1_104, %c2_105, %c0_106] : memref<2x18x18x128xf32, #tpu.memory_space<vmem>>, vector<2x16x16x128xf32>
    %63 = vector.shape_cast %62 : vector<2x16x16x128xf32> to vector<512x128xf32>
    %c0_107 = arith.constant 0 : index
    %c640_108 = arith.constant 640 : index
    %64 = vector.load %arg7[%c0_107, %c640_108] : memref<512x1152xf32, #tpu.memory_space<vmem>>, vector<512x128xf32>
    tpu.vector_store %arg7[%c0_107, %c640_108], %63 {strides = array<i32>} : memref<512x1152xf32, #tpu.memory_space<vmem>>, vector<512x128xf32>,
    %c0_109 = arith.constant 0 : index
    %c2_110 = arith.constant 2 : index
    %c0_111 = arith.constant 0 : index
    %c0_112 = arith.constant 0 : index
    %65 = vector.load %arg8[%c0_109, %c2_110, %c0_111, %c0_112] : memref<2x18x18x128xf32, #tpu.memory_space<vmem>>, vector<2x16x16x128xf32>
    %66 = vector.shape_cast %65 : vector<2x16x16x128xf32> to vector<512x128xf32>
    %c0_113 = arith.constant 0 : index
    %c768_114 = arith.constant 768 : index
    %67 = vector.load %arg7[%c0_113, %c768_114] : memref<512x1152xf32, #tpu.memory_space<vmem>>, vector<512x128xf32>
    tpu.vector_store %arg7[%c0_113, %c768_114], %66 {strides = array<i32>} : memref<512x1152xf32, #tpu.memory_space<vmem>>, vector<512x128xf32>,
    %c0_115 = arith.constant 0 : index
    %c2_116 = arith.constant 2 : index
    %c1_117 = arith.constant 1 : index
    %c0_118 = arith.constant 0 : index
    %68 = vector.load %arg8[%c0_115, %c2_116, %c1_117, %c0_118] : memref<2x18x18x128xf32, #tpu.memory_space<vmem>>, vector<2x16x16x128xf32>
    %69 = vector.shape_cast %68 : vector<2x16x16x128xf32> to vector<512x128xf32>
    %c0_119 = arith.constant 0 : index
    %c896_120 = arith.constant 896 : index
    %70 = vector.load %arg7[%c0_119, %c896_120] : memref<512x1152xf32, #tpu.memory_space<vmem>>, vector<512x128xf32>
    tpu.vector_store %arg7[%c0_119, %c896_120], %69 {strides = array<i32>} : memref<512x1152xf32, #tpu.memory_space<vmem>>, vector<512x128xf32>,
    %c0_121 = arith.constant 0 : index
    %c2_122 = arith.constant 2 : index
    %c2_123 = arith.constant 2 : index
    %c0_124 = arith.constant 0 : index
    %71 = vector.load %arg8[%c0_121, %c2_122, %c2_123, %c0_124] : memref<2x18x18x128xf32, #tpu.memory_space<vmem>>, vector<2x16x16x128xf32>
    %72 = vector.shape_cast %71 : vector<2x16x16x128xf32> to vector<512x128xf32>
    %c0_125 = arith.constant 0 : index
    %c1024_126 = arith.constant 1024 : index
    %73 = vector.load %arg7[%c0_125, %c1024_126] : memref<512x1152xf32, #tpu.memory_space<vmem>>, vector<512x128xf32>
    tpu.vector_store %arg7[%c0_125, %c1024_126], %72 {strides = array<i32>} : memref<512x1152xf32, #tpu.memory_space<vmem>>, vector<512x128xf32>,
    %c0_127 = arith.constant 0 : index
    %c0_128 = arith.constant 0 : index
    %74 = vector.load %arg7[%c0_127, %c0_128] : memref<512x1152xf32, #tpu.memory_space<vmem>>, vector<512x1152xf32>
    %c0_129 = arith.constant 0 : index
    %c0_130 = arith.constant 0 : index
    %75 = vector.load %arg4[%c0_129, %c0_130] : memref<1152x128xf32, #tpu.memory_space<vmem>>, vector<1152x128xf32>
    %cst_131 = arith.constant dense<0.000000e+00> : vector<512x128xf32>
    %76 = tpu.matmul %74, %75, %cst_131 {dimension_numbers = #tpu.dot_dimension_numbers<[1], [0], [0], [1], [0, 0, 1, 1], [], []>} : vector<512x1152xf32>, vector<1152x128xf32>, vector<512x128xf32> -> vector<512x128xf32>
    %c0_132 = arith.constant 0 : index
    %c1_133 = arith.constant 1 : index
    %c1_134 = arith.constant 1 : index
    %c0_135 = arith.constant 0 : index
    %77 = vector.load %arg1[%c0_132, %c1_133, %c1_134, %c0_135] : memref<2x18x18x128xf32, #tpu.memory_space<vmem>>, vector<2x16x16x128xf32>
    %78 = vector.shape_cast %77 : vector<2x16x16x128xf32> to vector<512x128xf32>
    %c0_136 = arith.constant 0 : index
    %c0_137 = arith.constant 0 : index
    %79 = vector.load %arg5[%c0_136, %c0_137] : memref<1x128xf32, #tpu.memory_space<vmem>>, vector<1x128xf32>
    %80 = vector.shape_cast %79 : vector<1x128xf32> to vector<128xf32>
    %81 = vector.shape_cast %80 : vector<128xf32> to vector<1x128xf32>
    %82 = vector.broadcast %81 : vector<1x128xf32> to vector<512x128xf32>
    %83 = arith.addf %76, %82 : vector<512x128xf32>
    %84 = arith.addf %83, %78 : vector<512x128xf32>
    %cst_138 = arith.constant 0.000000e+00 : f32
    %85 = vector.broadcast %cst_138 : f32 to vector<512x128xf32>
    %86 = arith.maximumf %84, %85 : vector<512x128xf32>
    %87 = vector.shape_cast %86 : vector<512x128xf32> to vector<2x16x16x128xf32>
    %c0_139 = arith.constant 0 : index
    %c0_140 = arith.constant 0 : index
    %c0_141 = arith.constant 0 : index
    %c0_142 = arith.constant 0 : index
    %88 = vector.load %arg6[%c0_139, %c0_140, %c0_141, %c0_142] : memref<2x16x16x128xf32, #tpu.memory_space<vmem>>, vector<2x16x16x128xf32>
    tpu.vector_store %arg6[%c0_139, %c0_140, %c0_141, %c0_142], %87 {strides = array<i32>} : memref<2x16x16x128xf32, #tpu.memory_space<vmem>>, vector<2x16x16x128xf32>,
    return
  }
  func.func @transform_0(%arg0: i32) -> (i32, i32, i32, i32) {
    %c0_i32 = arith.constant 0 : i32
    %c0_i32_0 = arith.constant 0 : i32
    %c0_i32_1 = arith.constant 0 : i32
    %c0_i32_2 = arith.constant 0 : i32
    return %arg0, %c0_i32, %c0_i32_0, %c0_i32_1 : i32, i32, i32, i32
  }
  func.func @transform_1(%arg0: i32) -> (i32, i32) {
    %c0_i32 = arith.constant 0 : i32
    %c0_i32_0 = arith.constant 0 : i32
    %c0_i32_1 = arith.constant 0 : i32
    return %c0_i32, %c0_i32_0 : i32, i32
  }
  func.func @transform_2(%arg0: i32) -> (i32, i32) {
    %c0_i32 = arith.constant 0 : i32
    %c0_i32_0 = arith.constant 0 : i32
    %c0_i32_1 = arith.constant 0 : i32
    return %c0_i32, %c0_i32_0 : i32, i32
  }
  func.func @transform_3(%arg0: i32) -> (i32, i32) {
    %c0_i32 = arith.constant 0 : i32
    %c0_i32_0 = arith.constant 0 : i32
    %c0_i32_1 = arith.constant 0 : i32
    return %c0_i32, %c0_i32_0 : i32, i32
  }
  func.func @transform_4(%arg0: i32) -> (i32, i32) {
    %c0_i32 = arith.constant 0 : i32
    %c0_i32_0 = arith.constant 0 : i32
    %c0_i32_1 = arith.constant 0 : i32
    return %c0_i32, %c0_i32_0 : i32, i32
  }
  func.func @transform_5(%arg0: i32) -> (i32, i32, i32, i32) {
    %c0_i32 = arith.constant 0 : i32
    %c0_i32_0 = arith.constant 0 : i32
    %c0_i32_1 = arith.constant 0 : i32
    %c0_i32_2 = arith.constant 0 : i32
    return %arg0, %c0_i32, %c0_i32_0, %c0_i32_1 : i32, i32, i32, i32
  }
}

</mosaic_0001>

<llo_original>
// kernel: tpu_custom_call.1
$region0: #{tpu_custom_call.1}
  #allocation0 [shape = 'u32[]', space=smem, size = 0x4, offset = 0x4, fixed_abs, tag = 'smem constant byte address 0x4 - core index']
  #allocation1 [shape = 'u32[144,128]{1,0:T(1,128)}', space=vmem, size = 0x12000, scoped, tag = 'internal scratch']
  #allocation2 [shape = 'f32[512,1152]{1,0:T(8,128)}', space=vmem, size = 0x240000, scoped, tag = 'scratch operand']
  #allocation3 [shape = 'f32[2,18,18,128]{3,2,1,0:T(8,128)}', space=vmem, size = 0x6c000, scoped, tag = 'scratch operand']
  %s0 = inlined_call_operand.vmem [shape: f32[2,18,18,128], index: 0, kind: input, shape index: {}]
  %s1 = inlined_call_operand.vmem [shape: f32[1152,128], index: 1, kind: input, shape index: {}]
  %s2 = inlined_call_operand.vmem [shape: f32[1,128], index: 2, kind: input, shape index: {}]
  %s3 = inlined_call_operand.hbm [shape: f32[1152,128], index: 3, kind: input, shape index: {}]
  %s4 = inlined_call_operand.vmem [shape: f32[1,128], index: 4, kind: input, shape index: {}]
  %s5 = inlined_call_operand.hbm [shape: f32[2,16,16,128], index: 5, kind: output, shape index: {}]
  %s6 = sld [smem:[#allocation0]]
  $region34: #{tpu_custom_call.1} parent=0
    _
  %s8 = ssub.s32 1, %s6
  %s9 = scalar_select 0, %s8, %s6
  $region1: #{tpu_custom_call.1} parent=0
    #allocation4 [shape = 'u8[589824]{0}', space=vmem, size = 0x90000, scoped, tag = 'input window, operand 3, single buffered']
    #allocation5 [shape = 's32[1]{0}', space=sflag, size = 0x4, scoped, tag = 'scoped memory for tpu_custom_call.1']
    #allocation6 [shape = 's32[1]{0}', space=sflag, size = 0x4, scoped, tag = 'scoped memory for tpu_custom_call.1']
    #allocation7 [shape = 'u8[262144]{0}', space=vmem, size = 0x40000, scoped, tag = 'output window, operand 0, single buffered']
    %10 = vsyncpa [#allocation5], 0
    %11 = vsyncpa [#allocation6], 0
    // Predicated region
    $region2: #{tpu_custom_call.1} parent=1 // pred_check
      _
    $region3: #{tpu_custom_call.1} parent=1 // pred_check_branch
      %13 = sbr.rel (0) target = $region5
    $region4: #{tpu_custom_call.1} parent=1 // pred_region
      _
    $region5: #{tpu_custom_call.1} parent=1 // pred_fallthru
      _
    // Predicated region
    $region6: #{tpu_custom_call.1} parent=1 // pred_check
      _
    $region7: #{tpu_custom_call.1} parent=1 // pred_check_branch
      %15 = sbr.rel (0) target = $region9
    $region8: #{tpu_custom_call.1} parent=1 // pred_region
      _
    $region9: #{tpu_custom_call.1} parent=1 // pred_fallthru
      _
    // Predicated region
    $region10: #{tpu_custom_call.1} parent=1 // pred_check
      _
    $region11: #{tpu_custom_call.1} parent=1 // pred_check_branch
      %17 = sbr.rel (0) target = $region13
    $region12: #{tpu_custom_call.1} parent=1 // pred_region
      _
    $region13: #{tpu_custom_call.1} parent=1 // pred_fallthru
      _
    // Predicated region
    $region14: #{tpu_custom_call.1} parent=1 // pred_check
      _
    $region15: #{tpu_custom_call.1} parent=1 // pred_check_branch
      %19 = sbr.rel (0) target = $region17
    $region16: #{tpu_custom_call.1} parent=1 // pred_region
      %s21 = ssub.s32 18432, 18432
      %22 = vsyncadd [#allocation5], %s21
      %s23 = sshll.u32 [#allocation4], 4
      %s24 = int_to_ptr.vmem [resolvable:$true] %s23
      %29 = dma.hbm_to_vmem [thread:$0]  %s3, 18432, %s24, [#allocation5], 128, 128, 8
    $region17: #{tpu_custom_call.1} parent=1 // pred_fallthru
      _
    // Predicated region
    $region18: #{tpu_custom_call.1} parent=1 // pred_check
      _
    $region19: #{tpu_custom_call.1} parent=1 // pred_check_branch
      %31 = sbr.rel (0) target = $region21
    $region20: #{tpu_custom_call.1} parent=1 // pred_region
      _
    $region21: #{tpu_custom_call.1} parent=1 // pred_fallthru
      _
    // Predicated region
    $region22: #{tpu_custom_call.1} parent=1 // pred_check
      _
    $region23: #{tpu_custom_call.1} parent=1 // pred_check_branch
      %33 = sbr.rel (0) target = $region25
    $region24: #{tpu_custom_call.1} parent=1 // pred_region
      %34 = dma.done [#allocation5], 18432
    $region25: #{tpu_custom_call.1} parent=1 // pred_fallthru
      _
    %v35 = vld [vmem:[%s0] sm:$0xff]
    %v36 = vld [vmem:[%s0 + $0x8] sm:$0xff]
    %v37 = vld [vmem:[%s0 + $0x18] sm:$0xff]
    %v38 = vld [vmem:[%s0 + $0x20] sm:$0xff]
    %v39 = vld [vmem:[%s0 + $0x30] sm:$0xff]
    %v40 = vld [vmem:[%s0 + $0x38] sm:$0xff]
    %v41 = vld [vmem:[%s0 + $0x48] sm:$0xff]
    %v42 = vld [vmem:[%s0 + $0x50] sm:$0xff]
    %v43 = vld [vmem:[%s0 + $0x60] sm:$0xff]
    %v44 = vld [vmem:[%s0 + $0x68] sm:$0xff]
    %v45 = vld [vmem:[%s0 + $0x78] sm:$0xff]
    %v46 = vld [vmem:[%s0 + $0x80] sm:$0xff]
    %v47 = vld [vmem:[%s0 + $0x90] sm:$0xff]
    %v48 = vld [vmem:[%s0 + $0x98] sm:$0xff]
    %v49 = vld [vmem:[%s0 + $0xa8] sm:$0xff]
    %v50 = vld [vmem:[%s0 + $0xb0] sm:$0xff]
    %v51 = vld [vmem:[%s0 + $0xc0] sm:$0xff]
    %v52 = vld [vmem:[%s0 + $0xc8] sm:$0xff]
    %v53 = vld [vmem:[%s0 + $0xd8] sm:$0xff]
    %v54 = vld [vmem:[%s0 + $0xe0] sm:$0xff]
    %v55 = vld [vmem:[%s0 + $0xf0] sm:$0xff]
    %v56 = vld [vmem:[%s0 + $0xf8] sm:$0xff]
    %v57 = vld [vmem:[%s0 + $0x108] sm:$0xff]
    %v58 = vld [vmem:[%s0 + $0x110] sm:$0xff]
    %v59 = vld [vmem:[%s0 + $0x120] sm:$0xff]
    %v60 = vld [vmem:[%s0 + $0x128] sm:$0xff]
    %v61 = vld [vmem:[%s0 + $0x138] sm:$0xff]
    %v62 = vld [vmem:[%s0 + $0x140] sm:$0xff]
    %v63 = vld [vmem:[%s0 + $0x150] sm:$0xff]
    %v64 = vld [vmem:[%s0 + $0x158] sm:$0xff]
    %v65 = vld [vmem:[%s0 + $0x168] sm:$0xff]
    %v66 = vld [vmem:[%s0 + $0x170] sm:$0xff]
    %v67 = vld [vmem:[%s0 + $0x1b0] sm:$0xff]
    %v68 = vld [vmem:[%s0 + $0x1b8] sm:$0xff]
    %v69 = vld [vmem:[%s0 + $0x1c8] sm:$0xff]
    %v70 = vld [vmem:[%s0 + $0x1d0] sm:$0xff]
    %v71 = vld [vmem:[%s0 + $0x1e0] sm:$0xff]
    %v72 = vld [vmem:[%s0 + $0x1e8] sm:$0xff]
    %v73 = vld [vmem:[%s0 + $0x1f8] sm:$0xff]
    %v74 = vld [vmem:[%s0 + $0x200] sm:$0xff]
    %v75 = vld [vmem:[%s0 + $0x210] sm:$0xff]
    %v76 = vld [vmem:[%s0 + $0x218] sm:$0xff]
    %v77 = vld [vmem:[%s0 + $0x228] sm:$0xff]
    %v78 = vld [vmem:[%s0 + $0x230] sm:$0xff]
    %v79 = vld [vmem:[%s0 + $0x240] sm:$0xff]
    %v80 = vld [vmem:[%s0 + $0x248] sm:$0xff]
    %v81 = vld [vmem:[%s0 + $0x258] sm:$0xff]
    %v82 = vld [vmem:[%s0 + $0x260] sm:$0xff]
    %v83 = vld [vmem:[%s0 + $0x270] sm:$0xff]
    %v84 = vld [vmem:[%s0 + $0x278] sm:$0xff]
    %v85 = vld [vmem:[%s0 + $0x288] sm:$0xff]
    %v86 = vld [vmem:[%s0 + $0x290] sm:$0xff]
    %v87 = vld [vmem:[%s0 + $0x2a0] sm:$0xff]
    %v88 = vld [vmem:[%s0 + $0x2a8] sm:$0xff]
    %v89 = vld [vmem:[%s0 + $0x2b8] sm:$0xff]
    %v90 = vld [vmem:[%s0 + $0x2c0] sm:$0xff]
    %v91 = vld [vmem:[%s0 + $0x2d0] sm:$0xff]
    %v92 = vld [vmem:[%s0 + $0x2d8] sm:$0xff]
    %v93 = vld [vmem:[%s0 + $0x2e8] sm:$0xff]
    %v94 = vld [vmem:[%s0 + $0x2f0] sm:$0xff]
    %v95 = vld [vmem:[%s0 + $0x300] sm:$0xff]
    %v96 = vld [vmem:[%s0 + $0x308] sm:$0xff]
    %v97 = vld [vmem:[%s0 + $0x318] sm:$0xff]
    %v98 = vld [vmem:[%s0 + $0x320] sm:$0xff]
    %99 = vst [vmem:[#allocation2] sm:$0xff] %v35
    %100 = vst [vmem:[#allocation2 + $0x48] sm:$0xff] %v36
    %101 = vst [vmem:[#allocation2 + $0x90] sm:$0xff] %v37
    %102 = vst [vmem:[#allocation2 + $0xd8] sm:$0xff] %v38
    %103 = vst [vmem:[#allocation2 + $0x120] sm:$0xff] %v39
    %104 = vst [vmem:[#allocation2 + $0x168] sm:$0xff] %v40
    %105 = vst [vmem:[#allocation2 + $0x1b0] sm:$0xff] %v41
    %106 = vst [vmem:[#allocation2 + $0x1f8] sm:$0xff] %v42
    %107 = vst [vmem:[#allocation2 + $0x240] sm:$0xff] %v43
    %108 = vst [vmem:[#allocation2 + $0x288] sm:$0xff] %v44
    %109 = vst [vmem:[#allocation2 + $0x2d0] sm:$0xff] %v45
    %110 = vst [vmem:[#allocation2 + $0x318] sm:$0xff] %v46
    %111 = vst [vmem:[#allocation2 + $0x360] sm:$0xff] %v47
    %112 = vst [vmem:[#allocation2 + $0x3a8] sm:$0xff] %v48
    %113 = vst [vmem:[#allocation2 + $0x3f0] sm:$0xff] %v49
    %114 = vst [vmem:[#allocation2 + $0x438] sm:$0xff] %v50
    %115 = vst [vmem:[#allocation2 + $0x480] sm:$0xff] %v51
    %116 = vst [vmem:[#allocation2 + $0x4c8] sm:$0xff] %v52
    %117 = vst [vmem:[#allocation2 + $0x510] sm:$0xff] %v53
    %118 = vst [vmem:[#allocation2 + $0x558] sm:$0xff] %v54
    %119 = vst [vmem:[#allocation2 + $0x5a0] sm:$0xff] %v55
    %120 = vst [vmem:[#allocation2 + $0x5e8] sm:$0xff] %v56
    %121 = vst [vmem:[#allocation2 + $0x630] sm:$0xff] %v57
    %122 = vst [vmem:[#allocation2 + $0x678] sm:$0xff] %v58
    %123 = vst [vmem:[#allocation2 + $0x6c0] sm:$0xff] %v59
    %124 = vst [vmem:[#allocation2 + $0x708] sm:$0xff] %v60
    %125 = vst [vmem:[#allocation2 + $0x750] sm:$0xff] %v61
    %126 = vst [vmem:[#allocation2 + $0x798] sm:$0xff] %v62
    %127 = vst [vmem:[#allocation2 + $0x7e0] sm:$0xff] %v63
    %128 = vst [vmem:[#allocation2 + $0x828] sm:$0xff] %v64
    %129 = vst [vmem:[#allocation2 + $0x870] sm:$0xff] %v65
    %130 = vst [vmem:[#allocation2 + $0x8b8] sm:$0xff] %v66
    %131 = vst [vmem:[#allocation2 + $0x900] sm:$0xff] %v67
    %132 = vst [vmem:[#allocation2 + $0x948] sm:$0xff] %v68
    %133 = vst [vmem:[#allocation2 + $0x990] sm:$0xff] %v69
    %134 = vst [vmem:[#allocation2 + $0x9d8] sm:$0xff] %v70
    %135 = vst [vmem:[#allocation2 + $0xa20] sm:$0xff] %v71
    %136 = vst [vmem:[#allocation2 + $0xa68] sm:$0xff] %v72
    %137 = vst [vmem:[#allocation2 + $0xab0] sm:$0xff] %v73
    %138 = vst [vmem:[#allocation2 + $0xaf8] sm:$0xff] %v74
    %139 = vst [vmem:[#allocation2 + $0xb40] sm:$0xff] %v75
    %140 = vst [vmem:[#allocation2 + $0xb88] sm:$0xff] %v76
    %141 = vst [vmem:[#allocation2 + $0xbd0] sm:$0xff] %v77
    %142 = vst [vmem:[#allocation2 + $0xc18] sm:$0xff] %v78
    %143 = vst [vmem:[#allocation2 + $0xc60] sm:$0xff] %v79
    %144 = vst [vmem:[#allocation2 + $0xca8] sm:$0xff] %v80
    %145 = vst [vmem:[#allocation2 + $0xcf0] sm:$0xff] %v81
    %146 = vst [vmem:[#allocation2 + $0xd38] sm:$0xff] %v82
    %147 = vst [vmem:[#allocation2 + $0xd80] sm:$0xff] %v83
    %148 = vst [vmem:[#allocation2 + $0xdc8] sm:$0xff] %v84
    %149 = vst [vmem:[#allocation2 + $0xe10] sm:$0xff] %v85
    %150 = vst [vmem:[#allocation2 + $0xe58] sm:$0xff] %v86
    %151 = vst [vmem:[#allocation2 + $0xea0] sm:$0xff] %v87
    %152 = vst [vmem:[#allocation2 + $0xee8] sm:$0xff] %v88
    %153 = vst [vmem:[#allocation2 + $0xf30] sm:$0xff] %v89
    %154 = vst [vmem:[#allocation2 + $0xf78] sm:$0xff] %v90
    %155 = vst [vmem:[#allocation2 + $0xfc0] sm:$0xff] %v91
    %156 = vst [vmem:[#allocation2 + $0x1008] sm:$0xff] %v92
    %157 = vst [vmem:[#allocation2 + $0x1050] sm:$0xff] %v93
    %158 = vst [vmem:[#allocation2 + $0x1098] sm:$0xff] %v94
    %159 = vst [vmem:[#allocation2 + $0x10e0] sm:$0xff] %v95
    %160 = vst [vmem:[#allocation2 + $0x1128] sm:$0xff] %v96
    %161 = vst [vmem:[#allocation2 + $0x1170] sm:$0xff] %v97
    %162 = vst [vmem:[#allocation2 + $0x11b8] sm:$0xff] %v98
    %v163 = vld [vmem:[%s0 + $0x1] sm:$0xff]
    %v164 = vld [vmem:[%s0 + $0x9] sm:$0xff]
    %v165 = vld [vmem:[%s0 + $0x19] sm:$0xff]
    %v166 = vld [vmem:[%s0 + $0x21] sm:$0xff]
    %v167 = vld [vmem:[%s0 + $0x31] sm:$0xff]
    %v168 = vld [vmem:[%s0 + $0x39] sm:$0xff]
    %v169 = vld [vmem:[%s0 + $0x49] sm:$0xff]
    %v170 = vld [vmem:[%s0 + $0x51] sm:$0xff]
    %v171 = vld [vmem:[%s0 + $0x61] sm:$0xff]
    %v172 = vld [vmem:[%s0 + $0x69] sm:$0xff]
    %v173 = vld [vmem:[%s0 + $0x79] sm:$0xff]
    %v174 = vld [vmem:[%s0 + $0x81] sm:$0xff]
    %v175 = vld [vmem:[%s0 + $0x91] sm:$0xff]
    %v176 = vld [vmem:[%s0 + $0x99] sm:$0xff]
    %v177 = vld [vmem:[%s0 + $0xa9] sm:$0xff]
    %v178 = vld [vmem:[%s0 + $0xb1] sm:$0xff]
    %v179 = vld [vmem:[%s0 + $0xc1] sm:$0xff]
    %v180 = vld [vmem:[%s0 + $0xc9] sm:$0xff]
    %v181 = vld [vmem:[%s0 + $0xd9] sm:$0xff]
    %v182 = vld [vmem:[%s0 + $0xe1] sm:$0xff]
    %v183 = vld [vmem:[%s0 + $0xf1] sm:$0xff]
    %v184 = vld [vmem:[%s0 + $0xf9] sm:$0xff]
    %v185 = vld [vmem:[%s0 + $0x109] sm:$0xff]
    %v186 = vld [vmem:[%s0 + $0x111] sm:$0xff]
    %v187 = vld [vmem:[%s0 + $0x121] sm:$0xff]
    %v188 = vld [vmem:[%s0 + $0x129] sm:$0xff]
    %v189 = vld [vmem:[%s0 + $0x139] sm:$0xff]
    %v190 = vld [vmem:[%s0 + $0x141] sm:$0xff]
    %v191 = vld [vmem:[%s0 + $0x151] sm:$0xff]
    %v192 = vld [vmem:[%s0 + $0x159] sm:$0xff]
    %v193 = vld [vmem:[%s0 + $0x169] sm:$0xff]
    %v194 = vld [vmem:[%s0 + $0x171] sm:$0xff]
    %v195 = vld [vmem:[%s0 + $0x1b1] sm:$0xff]
    %v196 = vld [vmem:[%s0 + $0x1b9] sm:$0xff]
    %v197 = vld [vmem:[%s0 + $0x1c9] sm:$0xff]
    %v198 = vld [vmem:[%s0 + $0x1d1] sm:$0xff]
    %v199 = vld [vmem:[%s0 + $0x1e1] sm:$0xff]
    %v200 = vld [vmem:[%s0 + $0x1e9] sm:$0xff]
    %v201 = vld [vmem:[%s0 + $0x1f9] sm:$0xff]
    %v202 = vld [vmem:[%s0 + $0x201] sm:$0xff]
    %v203 = vld [vmem:[%s0 + $0x211] sm:$0xff]
    %v204 = vld [vmem:[%s0 + $0x219] sm:$0xff]
    %v205 = vld [vmem:[%s0 + $0x229] sm:$0xff]
    %v206 = vld [vmem:[%s0 + $0x231] sm:$0xff]
    %v207 = vld [vmem:[%s0 + $0x241] sm:$0xff]
    %v208 = vld [vmem:[%s0 + $0x249] sm:$0xff]
    %v209 = vld [vmem:[%s0 + $0x259] sm:$0xff]
    %v210 = vld [vmem:[%s0 + $0x261] sm:$0xff]
    %v211 = vld [vmem:[%s0 + $0x271] sm:$0xff]
    %v212 = vld [vmem:[%s0 + $0x279] sm:$0xff]
    %v213 = vld [vmem:[%s0 + $0x289] sm:$0xff]
    %v214 = vld [vmem:[%s0 + $0x291] sm:$0xff]
    %v215 = vld [vmem:[%s0 + $0x2a1] sm:$0xff]
    %v216 = vld [vmem:[%s0 + $0x2a9] sm:$0xff]
    %v217 = vld [vmem:[%s0 + $0x2b9] sm:$0xff]
    %v218 = vld [vmem:[%s0 + $0x2c1] sm:$0xff]
    %v219 = vld [vmem:[%s0 + $0x2d1] sm:$0xff]
    %v220 = vld [vmem:[%s0 + $0x2d9] sm:$0xff]
    %v221 = vld [vmem:[%s0 + $0x2e9] sm:$0xff]
    %v222 = vld [vmem:[%s0 + $0x2f1] sm:$0xff]
    %v223 = vld [vmem:[%s0 + $0x301] sm:$0xff]
    %v224 = vld [vmem:[%s0 + $0x309] sm:$0xff]
    %v225 = vld [vmem:[%s0 + $0x319] sm:$0xff]
    %v226 = vld [vmem:[%s0 + $0x321] sm:$0xff]
    %227 = vst [vmem:[#allocation2 + $0x8] sm:$0xff] %v163
    %228 = vst [vmem:[#allocation2 + $0x50] sm:$0xff] %v164
    %229 = vst [vmem:[#allocation2 + $0x98] sm:$0xff] %v165
    %230 = vst [vmem:[#allocation2 + $0xe0] sm:$0xff] %v166
    %231 = vst [vmem:[#allocation2 + $0x128] sm:$0xff] %v167
    %232 = vst [vmem:[#allocation2 + $0x170] sm:$0xff] %v168
    %233 = vst [vmem:[#allocation2 + $0x1b8] sm:$0xff] %v169
    %234 = vst [vmem:[#allocation2 + $0x200] sm:$0xff] %v170
    %235 = vst [vmem:[#allocation2 + $0x248] sm:$0xff] %v171
    %236 = vst [vmem:[#allocation2 + $0x290] sm:$0xff] %v172
    %237 = vst [vmem:[#allocation2 + $0x2d8] sm:$0xff] %v173
    %238 = vst [vmem:[#allocation2 + $0x320] sm:$0xff] %v174
    %239 = vst [vmem:[#allocation2 + $0x368] sm:$0xff] %v175
    %240 = vst [vmem:[#allocation2 + $0x3b0] sm:$0xff] %v176
    %241 = vst [vmem:[#allocation2 + $0x3f8] sm:$0xff] %v177
    %242 = vst [vmem:[#allocation2 + $0x440] sm:$0xff] %v178
    %243 = vst [vmem:[#allocation2 + $0x488] sm:$0xff] %v179
    %244 = vst [vmem:[#allocation2 + $0x4d0] sm:$0xff] %v180
    %245 = vst [vmem:[#allocation2 + $0x518] sm:$0xff] %v181
    %246 = vst [vmem:[#allocation2 + $0x560] sm:$0xff] %v182
    %247 = vst [vmem:[#allocation2 + $0x5a8] sm:$0xff] %v183
    %248 = vst [vmem:[#allocation2 + $0x5f0] sm:$0xff] %v184
    %249 = vst [vmem:[#allocation2 + $0x638] sm:$0xff] %v185
    %250 = vst [vmem:[#allocation2 + $0x680] sm:$0xff] %v186
    %251 = vst [vmem:[#allocation2 + $0x6c8] sm:$0xff] %v187
    %252 = vst [vmem:[#allocation2 + $0x710] sm:$0xff] %v188
    %253 = vst [vmem:[#allocation2 + $0x758] sm:$0xff] %v189
    %254 = vst [vmem:[#allocation2 + $0x7a0] sm:$0xff] %v190
    %255 = vst [vmem:[#allocation2 + $0x7e8] sm:$0xff] %v191
    %256 = vst [vmem:[#allocation2 + $0x830] sm:$0xff] %v192
    %257 = vst [vmem:[#allocation2 + $0x878] sm:$0xff] %v193
    %258 = vst [vmem:[#allocation2 + $0x8c0] sm:$0xff] %v194
    %259 = vst [vmem:[#allocation2 + $0x908] sm:$0xff] %v195
    %260 = vst [vmem:[#allocation2 + $0x950] sm:$0xff] %v196
    %261 = vst [vmem:[#allocation2 + $0x998] sm:$0xff] %v197
    %262 = vst [vmem:[#allocation2 + $0x9e0] sm:$0xff] %v198
    %263 = vst [vmem:[#allocation2 + $0xa28] sm:$0xff] %v199
    %264 = vst [vmem:[#allocation2 + $0xa70] sm:$0xff] %v200
    %265 = vst [vmem:[#allocation2 + $0xab8] sm:$0xff] %v201
    %266 = vst [vmem:[#allocation2 + $0xb00] sm:$0xff] %v202
    %267 = vst [vmem:[#allocation2 + $0xb48] sm:$0xff] %v203
    %268 = vst [vmem:[#allocation2 + $0xb90] sm:$0xff] %v204
    %269 = vst [vmem:[#allocation2 + $0xbd8] sm:$0xff] %v205
    %270 = vst [vmem:[#allocation2 + $0xc20] sm:$0xff] %v206
    %271 = vst [vmem:[#allocation2 + $0xc68] sm:$0xff] %v207
    %272 = vst [vmem:[#allocation2 + $0xcb0] sm:$0xff] %v208
    %273 = vst [vmem:[#allocation2 + $0xcf8] sm:$0xff] %v209
    %274 = vst [vmem:[#allocation2 + $0xd40] sm:$0xff] %v210
    %275 = vst [vmem:[#allocation2 + $0xd88] sm:$0xff] %v211
    %276 = vst [vmem:[#allocation2 + $0xdd0] sm:$0xff] %v212
    %277 = vst [vmem:[#allocation2 + $0xe18] sm:$0xff] %v213
    %278 = vst [vmem:[#allocation2 + $0xe60] sm:$0xff] %v214
    %279 = vst [vmem:[#allocation2 + $0xea8] sm:$0xff] %v215
    %280 = vst [vmem:[#allocation2 + $0xef0] sm:$0xff] %v216
    %281 = vst [vmem:[#allocation2 + $0xf38] sm:$0xff] %v217
    %282 = vst [vmem:[#allocation2 + $0xf80] sm:$0xff] %v218
    %283 = vst [vmem:[#allocation2 + $0xfc8] sm:$0xff] %v219
    %284 = vst [vmem:[#allocation2 + $0x1010] sm:$0xff] %v220
    %285 = vst [vmem:[#allocation2 + $0x1058] sm:$0xff] %v221
    %286 = vst [vmem:[#allocation2 + $0x10a0] sm:$0xff] %v222
    %287 = vst [vmem:[#allocation2 + $0x10e8] sm:$0xff] %v223
    %288 = vst [vmem:[#allocation2 + $0x1130] sm:$0xff] %v224
    %289 = vst [vmem:[#allocation2 + $0x1178] sm:$0xff] %v225
    %290 = vst [vmem:[#allocation2 + $0x11c0] sm:$0xff] %v226
    %v291 = vld [vmem:[%s0 + $0x2] sm:$0xff]
    %v292 = vld [vmem:[%s0 + $0xa] sm:$0xff]
    %v293 = vld [vmem:[%s0 + $0x1a] sm:$0xff]
    %v294 = vld [vmem:[%s0 + $0x22] sm:$0xff]
    %v295 = vld [vmem:[%s0 + $0x32] sm:$0xff]
    %v296 = vld [vmem:[%s0 + $0x3a] sm:$0xff]
    %v297 = vld [vmem:[%s0 + $0x4a] sm:$0xff]
    %v298 = vld [vmem:[%s0 + $0x52] sm:$0xff]
    %v299 = vld [vmem:[%s0 + $0x62] sm:$0xff]
    %v300 = vld [vmem:[%s0 + $0x6a] sm:$0xff]
    %v301 = vld [vmem:[%s0 + $0x7a] sm:$0xff]
    %v302 = vld [vmem:[%s0 + $0x82] sm:$0xff]
    %v303 = vld [vmem:[%s0 + $0x92] sm:$0xff]
    %v304 = vld [vmem:[%s0 + $0x9a] sm:$0xff]
    %v305 = vld [vmem:[%s0 + $0xaa] sm:$0xff]
    %v306 = vld [vmem:[%s0 + $0xb2] sm:$0xff]
    %v307 = vld [vmem:[%s0 + $0xc2] sm:$0xff]
    %v308 = vld [vmem:[%s0 + $0xca] sm:$0xff]
    %v309 = vld [vmem:[%s0 + $0xda] sm:$0xff]
    %v310 = vld [vmem:[%s0 + $0xe2] sm:$0xff]
    %v311 = vld [vmem:[%s0 + $0xf2] sm:$0xff]
    %v312 = vld [vmem:[%s0 + $0xfa] sm:$0xff]
    %v313 = vld [vmem:[%s0 + $0x10a] sm:$0xff]
    %v314 = vld [vmem:[%s0 + $0x112] sm:$0xff]
    %v315 = vld [vmem:[%s0 + $0x122] sm:$0xff]
    %v316 = vld [vmem:[%s0 + $0x12a] sm:$0xff]
    %v317 = vld [vmem:[%s0 + $0x13a] sm:$0xff]
    %v318 = vld [vmem:[%s0 + $0x142] sm:$0xff]
    %v319 = vld [vmem:[%s0 + $0x152] sm:$0xff]
    %v320 = vld [vmem:[%s0 + $0x15a] sm:$0xff]
    %v321 = vld [vmem:[%s0 + $0x16a] sm:$0xff]
    %v322 = vld [vmem:[%s0 + $0x172] sm:$0xff]
    %v323 = vld [vmem:[%s0 + $0x1b2] sm:$0xff]
    %v324 = vld [vmem:[%s0 + $0x1ba] sm:$0xff]
    %v325 = vld [vmem:[%s0 + $0x1ca] sm:$0xff]
    %v326 = vld [vmem:[%s0 + $0x1d2] sm:$0xff]
    %v327 = vld [vmem:[%s0 + $0x1e2] sm:$0xff]
    %v328 = vld [vmem:[%s0 + $0x1ea] sm:$0xff]
    %v329 = vld [vmem:[%s0 + $0x1fa] sm:$0xff]
    %v330 = vld [vmem:[%s0 + $0x202] sm:$0xff]
    %v331 = vld [vmem:[%s0 + $0x212] sm:$0xff]
    %v332 = vld [vmem:[%s0 + $0x21a] sm:$0xff]
    %v333 = vld [vmem:[%s0 + $0x22a] sm:$0xff]
    %v334 = vld [vmem:[%s0 + $0x232] sm:$0xff]
    %v335 = vld [vmem:[%s0 + $0x242] sm:$0xff]
    %v336 = vld [vmem:[%s0 + $0x24a] sm:$0xff]
    %v337 = vld [vmem:[%s0 + $0x25a] sm:$0xff]
    %v338 = vld [vmem:[%s0 + $0x262] sm:$0xff]
    %v339 = vld [vmem:[%s0 + $0x272] sm:$0xff]
    %v340 = vld [vmem:[%s0 + $0x27a] sm:$0xff]
    %v341 = vld [vmem:[%s0 + $0x28a] sm:$0xff]
    %v342 = vld [vmem:[%s0 + $0x292] sm:$0xff]
    %v343 = vld [vmem:[%s0 + $0x2a2] sm:$0xff]
    %v344 = vld [vmem:[%s0 + $0x2aa] sm:$0xff]
    %v345 = vld [vmem:[%s0 + $0x2ba] sm:$0xff]
    %v346 = vld [vmem:[%s0 + $0x2c2] sm:$0xff]
    %v347 = vld [vmem:[%s0 + $0x2d2] sm:$0xff]
    %v348 = vld [vmem:[%s0 + $0x2da] sm:$0xff]
    %v349 = vld [vmem:[%s0 + $0x2ea] sm:$0xff]
    %v350 = vld [vmem:[%s0 + $0x2f2] sm:$0xff]
    %v351 = vld [vmem:[%s0 + $0x302] sm:$0xff]
    %v352 = vld [vmem:[%s0 + $0x30a] sm:$0xff]
    %v353 = vld [vmem:[%s0 + $0x31a] sm:$0xff]
    %v354 = vld [vmem:[%s0 + $0x322] sm:$0xff]
    %355 = vst [vmem:[#allocation2 + $0x10] sm:$0xff] %v291
    %356 = vst [vmem:[#allocation2 + $0x58] sm:$0xff] %v292
    %357 = vst [vmem:[#allocation2 + $0xa0] sm:$0xff] %v293
    %358 = vst [vmem:[#allocation2 + $0xe8] sm:$0xff] %v294
    %359 = vst [vmem:[#allocation2 + $0x130] sm:$0xff] %v295
    %360 = vst [vmem:[#allocation2 + $0x178] sm:$0xff] %v296
    %361 = vst [vmem:[#allocation2 + $0x1c0] sm:$0xff] %v297
    %362 = vst [vmem:[#allocation2 + $0x208] sm:$0xff] %v298
    %363 = vst [vmem:[#allocation2 + $0x250] sm:$0xff] %v299
    %364 = vst [vmem:[#allocation2 + $0x298] sm:$0xff] %v300
    %365 = vst [vmem:[#allocation2 + $0x2e0] sm:$0xff] %v301
    %366 = vst [vmem:[#allocation2 + $0x328] sm:$0xff] %v302
    %367 = vst [vmem:[#allocation2 + $0x370] sm:$0xff] %v303
    %368 = vst [vmem:[#allocation2 + $0x3b8] sm:$0xff] %v304
    %369 = vst [vmem:[#allocation2 + $0x400] sm:$0xff] %v305
    %370 = vst [vmem:[#allocation2 + $0x448] sm:$0xff] %v306
    %371 = vst [vmem:[#allocation2 + $0x490] sm:$0xff] %v307
    %372 = vst [vmem:[#allocation2 + $0x4d8] sm:$0xff] %v308
    %373 = vst [vmem:[#allocation2 + $0x520] sm:$0xff] %v309
    %374 = vst [vmem:[#allocation2 + $0x568] sm:$0xff] %v310
    %375 = vst [vmem:[#allocation2 + $0x5b0] sm:$0xff] %v311
    %376 = vst [vmem:[#allocation2 + $0x5f8] sm:$0xff] %v312
    %377 = vst [vmem:[#allocation2 + $0x640] sm:$0xff] %v313
    %378 = vst [vmem:[#allocation2 + $0x688] sm:$0xff] %v314
    %379 = vst [vmem:[#allocation2 + $0x6d0] sm:$0xff] %v315
    %380 = vst [vmem:[#allocation2 + $0x718] sm:$0xff] %v316
    %381 = vst [vmem:[#allocation2 + $0x760] sm:$0xff] %v317
    %382 = vst [vmem:[#allocation2 + $0x7a8] sm:$0xff] %v318
    %383 = vst [vmem:[#allocation2 + $0x7f0] sm:$0xff] %v319
    %384 = vst [vmem:[#allocation2 + $0x838] sm:$0xff] %v320
    %385 = vst [vmem:[#allocation2 + $0x880] sm:$0xff] %v321
    %386 = vst [vmem:[#allocation2 + $0x8c8] sm:$0xff] %v322
    %387 = vst [vmem:[#allocation2 + $0x910] sm:$0xff] %v323
    %388 = vst [vmem:[#allocation2 + $0x958] sm:$0xff] %v324
    %389 = vst [vmem:[#allocation2 + $0x9a0] sm:$0xff] %v325
    %390 = vst [vmem:[#allocation2 + $0x9e8] sm:$0xff] %v326
    %391 = vst [vmem:[#allocation2 + $0xa30] sm:$0xff] %v327
    %392 = vst [vmem:[#allocation2 + $0xa78] sm:$0xff] %v328
    %393 = vst [vmem:[#allocation2 + $0xac0] sm:$0xff] %v329
    %394 = vst [vmem:[#allocation2 + $0xb08] sm:$0xff] %v330
    %395 = vst [vmem:[#allocation2 + $0xb50] sm:$0xff] %v331
    %396 = vst [vmem:[#allocation2 + $0xb98] sm:$0xff] %v332
    %397 = vst [vmem:[#allocation2 + $0xbe0] sm:$0xff] %v333
    %398 = vst [vmem:[#allocation2 + $0xc28] sm:$0xff] %v334
    %399 = vst [vmem:[#allocation2 + $0xc70] sm:$0xff] %v335
    %400 = vst [vmem:[#allocation2 + $0xcb8] sm:$0xff] %v336
    %401 = vst [vmem:[#allocation2 + $0xd00] sm:$0xff] %v337
    %402 = vst [vmem:[#allocation2 + $0xd48] sm:$0xff] %v338
    %403 = vst [vmem:[#allocation2 + $0xd90] sm:$0xff] %v339
    %404 = vst [vmem:[#allocation2 + $0xdd8] sm:$0xff] %v340
    %405 = vst [vmem:[#allocation2 + $0xe20] sm:$0xff] %v341
    %406 = vst [vmem:[#allocation2 + $0xe68] sm:$0xff] %v342
    %407 = vst [vmem:[#allocation2 + $0xeb0] sm:$0xff] %v343
    %408 = vst [vmem:[#allocation2 + $0xef8] sm:$0xff] %v344
    %409 = vst [vmem:[#allocation2 + $0xf40] sm:$0xff] %v345
    %410 = vst [vmem:[#allocation2 + $0xf88] sm:$0xff] %v346
    %411 = vst [vmem:[#allocation2 + $0xfd0] sm:$0xff] %v347
    %412 = vst [vmem:[#allocation2 + $0x1018] sm:$0xff] %v348
    %413 = vst [vmem:[#allocation2 + $0x1060] sm:$0xff] %v349
    %414 = vst [vmem:[#allocation2 + $0x10a8] sm:$0xff] %v350
    %415 = vst [vmem:[#allocation2 + $0x10f0] sm:$0xff] %v351
    %416 = vst [vmem:[#allocation2 + $0x1138] sm:$0xff] %v352
    %417 = vst [vmem:[#allocation2 + $0x1180] sm:$0xff] %v353
    %418 = vst [vmem:[#allocation2 + $0x11c8] sm:$0xff] %v354
    %s419 = scalar_lea.vmem %s0, 24
    %v420 = vld [vmem:[%s419] sm:$0xff]
    %v421 = vld [vmem:[%s419 + $0x8] sm:$0xff]
    %v422 = vld [vmem:[%s419 + $0x18] sm:$0xff]
    %v423 = vld [vmem:[%s419 + $0x20] sm:$0xff]
    %v424 = vld [vmem:[%s419 + $0x30] sm:$0xff]
    %v425 = vld [vmem:[%s419 + $0x38] sm:$0xff]
    %v426 = vld [vmem:[%s419 + $0x48] sm:$0xff]
    %v427 = vld [vmem:[%s419 + $0x50] sm:$0xff]
    %v428 = vld [vmem:[%s419 + $0x60] sm:$0xff]
    %v429 = vld [vmem:[%s419 + $0x68] sm:$0xff]
    %v430 = vld [vmem:[%s419 + $0x78] sm:$0xff]
    %v431 = vld [vmem:[%s419 + $0x80] sm:$0xff]
    %v432 = vld [vmem:[%s419 + $0x90] sm:$0xff]
    %v433 = vld [vmem:[%s419 + $0x98] sm:$0xff]
    %v434 = vld [vmem:[%s419 + $0xa8] sm:$0xff]
    %v435 = vld [vmem:[%s419 + $0xb0] sm:$0xff]
    %v436 = vld [vmem:[%s419 + $0xc0] sm:$0xff]
    %v437 = vld [vmem:[%s419 + $0xc8] sm:$0xff]
    %v438 = vld [vmem:[%s419 + $0xd8] sm:$0xff]
    %v439 = vld [vmem:[%s419 + $0xe0] sm:$0xff]
    %v440 = vld [vmem:[%s419 + $0xf0] sm:$0xff]
    %v441 = vld [vmem:[%s419 + $0xf8] sm:$0xff]
    %v442 = vld [vmem:[%s419 + $0x108] sm:$0xff]
    %v443 = vld [vmem:[%s419 + $0x110] sm:$0xff]
    %v444 = vld [vmem:[%s419 + $0x120] sm:$0xff]
    %v445 = vld [vmem:[%s419 + $0x128] sm:$0xff]
    %v446 = vld [vmem:[%s419 + $0x138] sm:$0xff]
    %v447 = vld [vmem:[%s419 + $0x140] sm:$0xff]
    %v448 = vld [vmem:[%s419 + $0x150] sm:$0xff]
    %v449 = vld [vmem:[%s419 + $0x158] sm:$0xff]
    %v450 = vld [vmem:[%s419 + $0x168] sm:$0xff]
    %v451 = vld [vmem:[%s419 + $0x170] sm:$0xff]
    %v452 = vld [vmem:[%s419 + $0x1b0] sm:$0xff]
    %v453 = vld [vmem:[%s419 + $0x1b8] sm:$0xff]
    %v454 = vld [vmem:[%s419 + $0x1c8] sm:$0xff]
    %v455 = vld [vmem:[%s419 + $0x1d0] sm:$0xff]
    %v456 = vld [vmem:[%s419 + $0x1e0] sm:$0xff]
    %v457 = vld [vmem:[%s419 + $0x1e8] sm:$0xff]
    %v458 = vld [vmem:[%s419 + $0x1f8] sm:$0xff]
    %v459 = vld [vmem:[%s419 + $0x200] sm:$0xff]
    %v460 = vld [vmem:[%s419 + $0x210] sm:$0xff]
    %v461 = vld [vmem:[%s419 + $0x218] sm:$0xff]
    %v462 = vld [vmem:[%s419 + $0x228] sm:$0xff]
    %v463 = vld [vmem:[%s419 + $0x230] sm:$0xff]
    %v464 = vld [vmem:[%s419 + $0x240] sm:$0xff]
    %v465 = vld [vmem:[%s419 + $0x248] sm:$0xff]
    %v466 = vld [vmem:[%s419 + $0x258] sm:$0xff]
    %v467 = vld [vmem:[%s419 + $0x260] sm:$0xff]
    %v468 = vld [vmem:[%s419 + $0x270] sm:$0xff]
    %v469 = vld [vmem:[%s419 + $0x278] sm:$0xff]
    %v470 = vld [vmem:[%s419 + $0x288] sm:$0xff]
    %v471 = vld [vmem:[%s419 + $0x290] sm:$0xff]
    %v472 = vld [vmem:[%s419 + $0x2a0] sm:$0xff]
    %v473 = vld [vmem:[%s419 + $0x2a8] sm:$0xff]
    %v474 = vld [vmem:[%s419 + $0x2b8] sm:$0xff]
    %v475 = vld [vmem:[%s419 + $0x2c0] sm:$0xff]
    %v476 = vld [vmem:[%s419 + $0x2d0] sm:$0xff]
    %v477 = vld [vmem:[%s419 + $0x2d8] sm:$0xff]
    %v478 = vld [vmem:[%s419 + $0x2e8] sm:$0xff]
    %v479 = vld [vmem:[%s419 + $0x2f0] sm:$0xff]
    %v480 = vld [vmem:[%s419 + $0x300] sm:$0xff]
    %v481 = vld [vmem:[%s419 + $0x308] sm:$0xff]
    %v482 = vld [vmem:[%s419 + $0x318] sm:$0xff]
    %v483 = vld [vmem:[%s419 + $0x320] sm:$0xff]
    %484 = vst [vmem:[#allocation2 + $0x18] sm:$0xff] %v420
    %485 = vst [vmem:[#allocation2 + $0x60] sm:$0xff] %v421
    %486 = vst [vmem:[#allocation2 + $0xa8] sm:$0xff] %v422
    %487 = vst [vmem:[#allocation2 + $0xf0] sm:$0xff] %v423
    %488 = vst [vmem:[#allocation2 + $0x138] sm:$0xff] %v424
    %489 = vst [vmem:[#allocation2 + $0x180] sm:$0xff] %v425
    %490 = vst [vmem:[#allocation2 + $0x1c8] sm:$0xff] %v426
    %491 = vst [vmem:[#allocation2 + $0x210] sm:$0xff] %v427
    %492 = vst [vmem:[#allocation2 + $0x258] sm:$0xff] %v428
    %493 = vst [vmem:[#allocation2 + $0x2a0] sm:$0xff] %v429
    %494 = vst [vmem:[#allocation2 + $0x2e8] sm:$0xff] %v430
    %495 = vst [vmem:[#allocation2 + $0x330] sm:$0xff] %v431
    %496 = vst [vmem:[#allocation2 + $0x378] sm:$0xff] %v432
    %497 = vst [vmem:[#allocation2 + $0x3c0] sm:$0xff] %v433
    %498 = vst [vmem:[#allocation2 + $0x408] sm:$0xff] %v434
    %499 = vst [vmem:[#allocation2 + $0x450] sm:$0xff] %v435
    %500 = vst [vmem:[#allocation2 + $0x498] sm:$0xff] %v436
    %501 = vst [vmem:[#allocation2 + $0x4e0] sm:$0xff] %v437
    %502 = vst [vmem:[#allocation2 + $0x528] sm:$0xff] %v438
    %503 = vst [vmem:[#allocation2 + $0x570] sm:$0xff] %v439
    %504 = vst [vmem:[#allocation2 + $0x5b8] sm:$0xff] %v440
    %505 = vst [vmem:[#allocation2 + $0x600] sm:$0xff] %v441
    %506 = vst [vmem:[#allocation2 + $0x648] sm:$0xff] %v442
    %507 = vst [vmem:[#allocation2 + $0x690] sm:$0xff] %v443
    %508 = vst [vmem:[#allocation2 + $0x6d8] sm:$0xff] %v444
    %509 = vst [vmem:[#allocation2 + $0x720] sm:$0xff] %v445
    %510 = vst [vmem:[#allocation2 + $0x768] sm:$0xff] %v446
    %511 = vst [vmem:[#allocation2 + $0x7b0] sm:$0xff] %v447
    %512 = vst [vmem:[#allocation2 + $0x7f8] sm:$0xff] %v448
    %513 = vst [vmem:[#allocation2 + $0x840] sm:$0xff] %v449
    %514 = vst [vmem:[#allocation2 + $0x888] sm:$0xff] %v450
    %515 = vst [vmem:[#allocation2 + $0x8d0] sm:$0xff] %v451
    %516 = vst [vmem:[#allocation2 + $0x918] sm:$0xff] %v452
    %517 = vst [vmem:[#allocation2 + $0x960] sm:$0xff] %v453
    %518 = vst [vmem:[#allocation2 + $0x9a8] sm:$0xff] %v454
    %519 = vst [vmem:[#allocation2 + $0x9f0] sm:$0xff] %v455
    %520 = vst [vmem:[#allocation2 + $0xa38] sm:$0xff] %v456
    %521 = vst [vmem:[#allocation2 + $0xa80] sm:$0xff] %v457
    %522 = vst [vmem:[#allocation2 + $0xac8] sm:$0xff] %v458
    %523 = vst [vmem:[#allocation2 + $0xb10] sm:$0xff] %v459
    %524 = vst [vmem:[#allocation2 + $0xb58] sm:$0xff] %v460
    %525 = vst [vmem:[#allocation2 + $0xba0] sm:$0xff] %v461
    %526 = vst [vmem:[#allocation2 + $0xbe8] sm:$0xff] %v462
    %527 = vst [vmem:[#allocation2 + $0xc30] sm:$0xff] %v463
    %528 = vst [vmem:[#allocation2 + $0xc78] sm:$0xff] %v464
    %529 = vst [vmem:[#allocation2 + $0xcc0] sm:$0xff] %v465
    %530 = vst [vmem:[#allocation2 + $0xd08] sm:$0xff] %v466
    %531 = vst [vmem:[#allocation2 + $0xd50] sm:$0xff] %v467
    %532 = vst [vmem:[#allocation2 + $0xd98] sm:$0xff] %v468
    %533 = vst [vmem:[#allocation2 + $0xde0] sm:$0xff] %v469
    %534 = vst [vmem:[#allocation2 + $0xe28] sm:$0xff] %v470
    %535 = vst [vmem:[#allocation2 + $0xe70] sm:$0xff] %v471
    %536 = vst [vmem:[#allocation2 + $0xeb8] sm:$0xff] %v472
    %537 = vst [vmem:[#allocation2 + $0xf00] sm:$0xff] %v473
    %538 = vst [vmem:[#allocation2 + $0xf48] sm:$0xff] %v474
    %539 = vst [vmem:[#allocation2 + $0xf90] sm:$0xff] %v475
    %540 = vst [vmem:[#allocation2 + $0xfd8] sm:$0xff] %v476
    %541 = vst [vmem:[#allocation2 + $0x1020] sm:$0xff] %v477
    %542 = vst [vmem:[#allocation2 + $0x1068] sm:$0xff] %v478
    %543 = vst [vmem:[#allocation2 + $0x10b0] sm:$0xff] %v479
    %544 = vst [vmem:[#allocation2 + $0x10f8] sm:$0xff] %v480
    %545 = vst [vmem:[#allocation2 + $0x1140] sm:$0xff] %v481
    %546 = vst [vmem:[#allocation2 + $0x1188] sm:$0xff] %v482
    %547 = vst [vmem:[#allocation2 + $0x11d0] sm:$0xff] %v483
    %v548 = vld [vmem:[%s419 + $0x1] sm:$0xff]
    %v549 = vld [vmem:[%s419 + $0x9] sm:$0xff]
    %v550 = vld [vmem:[%s419 + $0x19] sm:$0xff]
    %v551 = vld [vmem:[%s419 + $0x21] sm:$0xff]
    %v552 = vld [vmem:[%s419 + $0x31] sm:$0xff]
    %v553 = vld [vmem:[%s419 + $0x39] sm:$0xff]
    %v554 = vld [vmem:[%s419 + $0x49] sm:$0xff]
    %v555 = vld [vmem:[%s419 + $0x51] sm:$0xff]
    %v556 = vld [vmem:[%s419 + $0x61] sm:$0xff]
    %v557 = vld [vmem:[%s419 + $0x69] sm:$0xff]
    %v558 = vld [vmem:[%s419 + $0x79] sm:$0xff]
    %v559 = vld [vmem:[%s419 + $0x81] sm:$0xff]
    %v560 = vld [vmem:[%s419 + $0x91] sm:$0xff]
    %v561 = vld [vmem:[%s419 + $0x99] sm:$0xff]
    %v562 = vld [vmem:[%s419 + $0xa9] sm:$0xff]
    %v563 = vld [vmem:[%s419 + $0xb1] sm:$0xff]
    %v564 = vld [vmem:[%s419 + $0xc1] sm:$0xff]
    %v565 = vld [vmem:[%s419 + $0xc9] sm:$0xff]
    %v566 = vld [vmem:[%s419 + $0xd9] sm:$0xff]
    %v567 = vld [vmem:[%s419 + $0xe1] sm:$0xff]
    %v568 = vld [vmem:[%s419 + $0xf1] sm:$0xff]
    %v569 = vld [vmem:[%s419 + $0xf9] sm:$0xff]
    %v570 = vld [vmem:[%s419 + $0x109] sm:$0xff]
    %v571 = vld [vmem:[%s419 + $0x111] sm:$0xff]
    %v572 = vld [vmem:[%s419 + $0x121] sm:$0xff]
    %v573 = vld [vmem:[%s419 + $0x129] sm:$0xff]
    %v574 = vld [vmem:[%s419 + $0x139] sm:$0xff]
    %v575 = vld [vmem:[%s419 + $0x141] sm:$0xff]
    %v576 = vld [vmem:[%s419 + $0x151] sm:$0xff]
    %v577 = vld [vmem:[%s419 + $0x159] sm:$0xff]
    %v578 = vld [vmem:[%s419 + $0x169] sm:$0xff]
    %v579 = vld [vmem:[%s419 + $0x171] sm:$0xff]
    %v580 = vld [vmem:[%s419 + $0x1b1] sm:$0xff]
    %v581 = vld [vmem:[%s419 + $0x1b9] sm:$0xff]
    %v582 = vld [vmem:[%s419 + $0x1c9] sm:$0xff]
    %v583 = vld [vmem:[%s419 + $0x1d1] sm:$0xff]
    %v584 = vld [vmem:[%s419 + $0x1e1] sm:$0xff]
    %v585 = vld [vmem:[%s419 + $0x1e9] sm:$0xff]
    %v586 = vld [vmem:[%s419 + $0x1f9] sm:$0xff]
    %v587 = vld [vmem:[%s419 + $0x201] sm:$0xff]
    %v588 = vld [vmem:[%s419 + $0x211] sm:$0xff]
    %v589 = vld [vmem:[%s419 + $0x219] sm:$0xff]
    %v590 = vld [vmem:[%s419 + $0x229] sm:$0xff]
    %v591 = vld [vmem:[%s419 + $0x231] sm:$0xff]
    %v592 = vld [vmem:[%s419 + $0x241] sm:$0xff]
    %v593 = vld [vmem:[%s419 + $0x249] sm:$0xff]
    %v594 = vld [vmem:[%s419 + $0x259] sm:$0xff]
    %v595 = vld [vmem:[%s419 + $0x261] sm:$0xff]
    %v596 = vld [vmem:[%s419 + $0x271] sm:$0xff]
    %v597 = vld [vmem:[%s419 + $0x279] sm:$0xff]
    %v598 = vld [vmem:[%s419 + $0x289] sm:$0xff]
    %v599 = vld [vmem:[%s419 + $0x291] sm:$0xff]
    %v600 = vld [vmem:[%s419 + $0x2a1] sm:$0xff]
    %v601 = vld [vmem:[%s419 + $0x2a9] sm:$0xff]
    %v602 = vld [vmem:[%s419 + $0x2b9] sm:$0xff]
    %v603 = vld [vmem:[%s419 + $0x2c1] sm:$0xff]
    %v604 = vld [vmem:[%s419 + $0x2d1] sm:$0xff]
    %v605 = vld [vmem:[%s419 + $0x2d9] sm:$0xff]
    %v606 = vld [vmem:[%s419 + $0x2e9] sm:$0xff]
    %v607 = vld [vmem:[%s419 + $0x2f1] sm:$0xff]
    %v608 = vld [vmem:[%s419 + $0x301] sm:$0xff]
    %v609 = vld [vmem:[%s419 + $0x309] sm:$0xff]
    %v610 = vld [vmem:[%s419 + $0x319] sm:$0xff]
    %v611 = vld [vmem:[%s419 + $0x321] sm:$0xff]
    %612 = vst [vmem:[#allocation2 + $0x20] sm:$0xff] %v548
    %613 = vst [vmem:[#allocation2 + $0x68] sm:$0xff] %v549
    %614 = vst [vmem:[#allocation2 + $0xb0] sm:$0xff] %v550
    %615 = vst [vmem:[#allocation2 + $0xf8] sm:$0xff] %v551
    %616 = vst [vmem:[#allocation2 + $0x140] sm:$0xff] %v552
    %617 = vst [vmem:[#allocation2 + $0x188] sm:$0xff] %v553
    %618 = vst [vmem:[#allocation2 + $0x1d0] sm:$0xff] %v554
    %619 = vst [vmem:[#allocation2 + $0x218] sm:$0xff] %v555
    %620 = vst [vmem:[#allocation2 + $0x260] sm:$0xff] %v556
    %621 = vst [vmem:[#allocation2 + $0x2a8] sm:$0xff] %v557
    %622 = vst [vmem:[#allocation2 + $0x2f0] sm:$0xff] %v558
    %623 = vst [vmem:[#allocation2 + $0x338] sm:$0xff] %v559
    %624 = vst [vmem:[#allocation2 + $0x380] sm:$0xff] %v560
    %625 = vst [vmem:[#allocation2 + $0x3c8] sm:$0xff] %v561
    %626 = vst [vmem:[#allocation2 + $0x410] sm:$0xff] %v562
    %627 = vst [vmem:[#allocation2 + $0x458] sm:$0xff] %v563
    %628 = vst [vmem:[#allocation2 + $0x4a0] sm:$0xff] %v564
    %629 = vst [vmem:[#allocation2 + $0x4e8] sm:$0xff] %v565
    %630 = vst [vmem:[#allocation2 + $0x530] sm:$0xff] %v566
    %631 = vst [vmem:[#allocation2 + $0x578] sm:$0xff] %v567
    %632 = vst [vmem:[#allocation2 + $0x5c0] sm:$0xff] %v568
    %633 = vst [vmem:[#allocation2 + $0x608] sm:$0xff] %v569
    %634 = vst [vmem:[#allocation2 + $0x650] sm:$0xff] %v570
    %635 = vst [vmem:[#allocation2 + $0x698] sm:$0xff] %v571
    %636 = vst [vmem:[#allocation2 + $0x6e0] sm:$0xff] %v572
    %637 = vst [vmem:[#allocation2 + $0x728] sm:$0xff] %v573
    %638 = vst [vmem:[#allocation2 + $0x770] sm:$0xff] %v574
    %639 = vst [vmem:[#allocation2 + $0x7b8] sm:$0xff] %v575
    %640 = vst [vmem:[#allocation2 + $0x800] sm:$0xff] %v576
    %641 = vst [vmem:[#allocation2 + $0x848] sm:$0xff] %v577
    %642 = vst [vmem:[#allocation2 + $0x890] sm:$0xff] %v578
    %643 = vst [vmem:[#allocation2 + $0x8d8] sm:$0xff] %v579
    %644 = vst [vmem:[#allocation2 + $0x920] sm:$0xff] %v580
    %645 = vst [vmem:[#allocation2 + $0x968] sm:$0xff] %v581
    %646 = vst [vmem:[#allocation2 + $0x9b0] sm:$0xff] %v582
    %647 = vst [vmem:[#allocation2 + $0x9f8] sm:$0xff] %v583
    %648 = vst [vmem:[#allocation2 + $0xa40] sm:$0xff] %v584
    %649 = vst [vmem:[#allocation2 + $0xa88] sm:$0xff] %v585
    %650 = vst [vmem:[#allocation2 + $0xad0] sm:$0xff] %v586
    %651 = vst [vmem:[#allocation2 + $0xb18] sm:$0xff] %v587
    %652 = vst [vmem:[#allocation2 + $0xb60] sm:$0xff] %v588
    %653 = vst [vmem:[#allocation2 + $0xba8] sm:$0xff] %v589
    %654 = vst [vmem:[#allocation2 + $0xbf0] sm:$0xff] %v590
    %655 = vst [vmem:[#allocation2 + $0xc38] sm:$0xff] %v591
    %656 = vst [vmem:[#allocation2 + $0xc80] sm:$0xff] %v592
    %657 = vst [vmem:[#allocation2 + $0xcc8] sm:$0xff] %v593
    %658 = vst [vmem:[#allocation2 + $0xd10] sm:$0xff] %v594
    %659 = vst [vmem:[#allocation2 + $0xd58] sm:$0xff] %v595
    %660 = vst [vmem:[#allocation2 + $0xda0] sm:$0xff] %v596
    %661 = vst [vmem:[#allocation2 + $0xde8] sm:$0xff] %v597
    %662 = vst [vmem:[#allocation2 + $0xe30] sm:$0xff] %v598
    %663 = vst [vmem:[#allocation2 + $0xe78] sm:$0xff] %v599
    %664 = vst [vmem:[#allocation2 + $0xec0] sm:$0xff] %v600
    %665 = vst [vmem:[#allocation2 + $0xf08] sm:$0xff] %v601
    %666 = vst [vmem:[#allocation2 + $0xf50] sm:$0xff] %v602
    %667 = vst [vmem:[#allocation2 + $0xf98] sm:$0xff] %v603
    %668 = vst [vmem:[#allocation2 + $0xfe0] sm:$0xff] %v604
    %669 = vst [vmem:[#allocation2 + $0x1028] sm:$0xff] %v605
    %670 = vst [vmem:[#allocation2 + $0x1070] sm:$0xff] %v606
    %671 = vst [vmem:[#allocation2 + $0x10b8] sm:$0xff] %v607
    %672 = vst [vmem:[#allocation2 + $0x1100] sm:$0xff] %v608
    %673 = vst [vmem:[#allocation2 + $0x1148] sm:$0xff] %v609
    %674 = vst [vmem:[#allocation2 + $0x1190] sm:$0xff] %v610
    %675 = vst [vmem:[#allocation2 + $0x11d8] sm:$0xff] %v611
    %v676 = vld [vmem:[%s419 + $0x2] sm:$0xff]
    %v677 = vld [vmem:[%s419 + $0xa] sm:$0xff]
    %v678 = vld [vmem:[%s419 + $0x1a] sm:$0xff]
    %v679 = vld [vmem:[%s419 + $0x22] sm:$0xff]
    %v680 = vld [vmem:[%s419 + $0x32] sm:$0xff]
    %v681 = vld [vmem:[%s419 + $0x3a] sm:$0xff]
    %v682 = vld [vmem:[%s419 + $0x4a] sm:$0xff]
    %v683 = vld [vmem:[%s419 + $0x52] sm:$0xff]
    %v684 = vld [vmem:[%s419 + $0x62] sm:$0xff]
    %v685 = vld [vmem:[%s419 + $0x6a] sm:$0xff]
    %v686 = vld [vmem:[%s419 + $0x7a] sm:$0xff]
    %v687 = vld [vmem:[%s419 + $0x82] sm:$0xff]
    %v688 = vld [vmem:[%s419 + $0x92] sm:$0xff]
    %v689 = vld [vmem:[%s419 + $0x9a] sm:$0xff]
    %v690 = vld [vmem:[%s419 + $0xaa] sm:$0xff]
    %v691 = vld [vmem:[%s419 + $0xb2] sm:$0xff]
    %v692 = vld [vmem:[%s419 + $0xc2] sm:$0xff]
    %v693 = vld [vmem:[%s419 + $0xca] sm:$0xff]
    %v694 = vld [vmem:[%s419 + $0xda] sm:$0xff]
    %v695 = vld [vmem:[%s419 + $0xe2] sm:$0xff]
    %v696 = vld [vmem:[%s419 + $0xf2] sm:$0xff]
    %v697 = vld [vmem:[%s419 + $0xfa] sm:$0xff]
    %v698 = vld [vmem:[%s419 + $0x10a] sm:$0xff]
    %v699 = vld [vmem:[%s419 + $0x112] sm:$0xff]
    %v700 = vld [vmem:[%s419 + $0x122] sm:$0xff]
    %v701 = vld [vmem:[%s419 + $0x12a] sm:$0xff]
    %v702 = vld [vmem:[%s419 + $0x13a] sm:$0xff]
    %v703 = vld [vmem:[%s419 + $0x142] sm:$0xff]
    %v704 = vld [vmem:[%s419 + $0x152] sm:$0xff]
    %v705 = vld [vmem:[%s419 + $0x15a] sm:$0xff]
    %v706 = vld [vmem:[%s419 + $0x16a] sm:$0xff]
    %v707 = vld [vmem:[%s419 + $0x172] sm:$0xff]
    %v708 = vld [vmem:[%s419 + $0x1b2] sm:$0xff]
    %v709 = vld [vmem:[%s419 + $0x1ba] sm:$0xff]
    %v710 = vld [vmem:[%s419 + $0x1ca] sm:$0xff]
    %v711 = vld [vmem:[%s419 + $0x1d2] sm:$0xff]
    %v712 = vld [vmem:[%s419 + $0x1e2] sm:$0xff]
    %v713 = vld [vmem:[%s419 + $0x1ea] sm:$0xff]
    %v714 = vld [vmem:[%s419 + $0x1fa] sm:$0xff]
    %v715 = vld [vmem:[%s419 + $0x202] sm:$0xff]
    %v716 = vld [vmem:[%s419 + $0x212] sm:$0xff]
    %v717 = vld [vmem:[%s419 + $0x21a] sm:$0xff]
    %v718 = vld [vmem:[%s419 + $0x22a] sm:$0xff]
    %v719 = vld [vmem:[%s419 + $0x232] sm:$0xff]
    %v720 = vld [vmem:[%s419 + $0x242] sm:$0xff]
    %v721 = vld [vmem:[%s419 + $0x24a] sm:$0xff]
    %v722 = vld [vmem:[%s419 + $0x25a] sm:$0xff]
    %v723 = vld [vmem:[%s419 + $0x262] sm:$0xff]
    %v724 = vld [vmem:[%s419 + $0x272] sm:$0xff]
    %v725 = vld [vmem:[%s419 + $0x27a] sm:$0xff]
    %v726 = vld [vmem:[%s419 + $0x28a] sm:$0xff]
    %v727 = vld [vmem:[%s419 + $0x292] sm:$0xff]
    %v728 = vld [vmem:[%s419 + $0x2a2] sm:$0xff]
    %v729 = vld [vmem:[%s419 + $0x2aa] sm:$0xff]
    %v730 = vld [vmem:[%s419 + $0x2ba] sm:$0xff]
    %v731 = vld [vmem:[%s419 + $0x2c2] sm:$0xff]
    %v732 = vld [vmem:[%s419 + $0x2d2] sm:$0xff]
    %v733 = vld [vmem:[%s419 + $0x2da] sm:$0xff]
    %v734 = vld [vmem:[%s419 + $0x2ea] sm:$0xff]
    %v735 = vld [vmem:[%s419 + $0x2f2] sm:$0xff]
    %v736 = vld [vmem:[%s419 + $0x302] sm:$0xff]
    %v737 = vld [vmem:[%s419 + $0x30a] sm:$0xff]
    %v738 = vld [vmem:[%s419 + $0x31a] sm:$0xff]
    %v739 = vld [vmem:[%s419 + $0x322] sm:$0xff]
    %740 = vst [vmem:[#allocation2 + $0x28] sm:$0xff] %v676
    %741 = vst [vmem:[#allocation2 + $0x70] sm:$0xff] %v677
    %742 = vst [vmem:[#allocation2 + $0xb8] sm:$0xff] %v678
    %743 = vst [vmem:[#allocation2 + $0x100] sm:$0xff] %v679
    %744 = vst [vmem:[#allocation2 + $0x148] sm:$0xff] %v680
    %745 = vst [vmem:[#allocation2 + $0x190] sm:$0xff] %v681
    %746 = vst [vmem:[#allocation2 + $0x1d8] sm:$0xff] %v682
    %747 = vst [vmem:[#allocation2 + $0x220] sm:$0xff] %v683
    %748 = vst [vmem:[#allocation2 + $0x268] sm:$0xff] %v684
    %749 = vst [vmem:[#allocation2 + $0x2b0] sm:$0xff] %v685
    %750 = vst [vmem:[#allocation2 + $0x2f8] sm:$0xff] %v686
    %751 = vst [vmem:[#allocation2 + $0x340] sm:$0xff] %v687
    %752 = vst [vmem:[#allocation2 + $0x388] sm:$0xff] %v688
    %753 = vst [vmem:[#allocation2 + $0x3d0] sm:$0xff] %v689
    %754 = vst [vmem:[#allocation2 + $0x418] sm:$0xff] %v690
    %755 = vst [vmem:[#allocation2 + $0x460] sm:$0xff] %v691
    %756 = vst [vmem:[#allocation2 + $0x4a8] sm:$0xff] %v692
    %757 = vst [vmem:[#allocation2 + $0x4f0] sm:$0xff] %v693
    %758 = vst [vmem:[#allocation2 + $0x538] sm:$0xff] %v694
    %759 = vst [vmem:[#allocation2 + $0x580] sm:$0xff] %v695
    %760 = vst [vmem:[#allocation2 + $0x5c8] sm:$0xff] %v696
    %761 = vst [vmem:[#allocation2 + $0x610] sm:$0xff] %v697
    %762 = vst [vmem:[#allocation2 + $0x658] sm:$0xff] %v698
    %763 = vst [vmem:[#allocation2 + $0x6a0] sm:$0xff] %v699
    %764 = vst [vmem:[#allocation2 + $0x6e8] sm:$0xff] %v700
    %765 = vst [vmem:[#allocation2 + $0x730] sm:$0xff] %v701
    %766 = vst [vmem:[#allocation2 + $0x778] sm:$0xff] %v702
    %767 = vst [vmem:[#allocation2 + $0x7c0] sm:$0xff] %v703
    %768 = vst [vmem:[#allocation2 + $0x808] sm:$0xff] %v704
    %769 = vst [vmem:[#allocation2 + $0x850] sm:$0xff] %v705
    %770 = vst [vmem:[#allocation2 + $0x898] sm:$0xff] %v706
    %771 = vst [vmem:[#allocation2 + $0x8e0] sm:$0xff] %v707
    %772 = vst [vmem:[#allocation2 + $0x928] sm:$0xff] %v708
    %773 = vst [vmem:[#allocation2 + $0x970] sm:$0xff] %v709
    %774 = vst [vmem:[#allocation2 + $0x9b8] sm:$0xff] %v710
    %775 = vst [vmem:[#allocation2 + $0xa00] sm:$0xff] %v711
    %776 = vst [vmem:[#allocation2 + $0xa48] sm:$0xff] %v712
    %777 = vst [vmem:[#allocation2 + $0xa90] sm:$0xff] %v713
    %778 = vst [vmem:[#allocation2 + $0xad8] sm:$0xff] %v714
    %779 = vst [vmem:[#allocation2 + $0xb20] sm:$0xff] %v715
    %780 = vst [vmem:[#allocation2 + $0xb68] sm:$0xff] %v716
    %781 = vst [vmem:[#allocation2 + $0xbb0] sm:$0xff] %v717
    %782 = vst [vmem:[#allocation2 + $0xbf8] sm:$0xff] %v718
    %783 = vst [vmem:[#allocation2 + $0xc40] sm:$0xff] %v719
    %784 = vst [vmem:[#allocation2 + $0xc88] sm:$0xff] %v720
    %785 = vst [vmem:[#allocation2 + $0xcd0] sm:$0xff] %v721
    %786 = vst [vmem:[#allocation2 + $0xd18] sm:$0xff] %v722
    %787 = vst [vmem:[#allocation2 + $0xd60] sm:$0xff] %v723
    %788 = vst [vmem:[#allocation2 + $0xda8] sm:$0xff] %v724
    %789 = vst [vmem:[#allocation2 + $0xdf0] sm:$0xff] %v725
    %790 = vst [vmem:[#allocation2 + $0xe38] sm:$0xff] %v726
    %791 = vst [vmem:[#allocation2 + $0xe80] sm:$0xff] %v727
    %792 = vst [vmem:[#allocation2 + $0xec8] sm:$0xff] %v728
    %793 = vst [vmem:[#allocation2 + $0xf10] sm:$0xff] %v729
    %794 = vst [vmem:[#allocation2 + $0xf58] sm:$0xff] %v730
    %795 = vst [vmem:[#allocation2 + $0xfa0] sm:$0xff] %v731
    %796 = vst [vmem:[#allocation2 + $0xfe8] sm:$0xff] %v732
    %797 = vst [vmem:[#allocation2 + $0x1030] sm:$0xff] %v733
    %798 = vst [vmem:[#allocation2 + $0x1078] sm:$0xff] %v734
    %799 = vst [vmem:[#allocation2 + $0x10c0] sm:$0xff] %v735
    %800 = vst [vmem:[#allocation2 + $0x1108] sm:$0xff] %v736
    %801 = vst [vmem:[#allocation2 + $0x1150] sm:$0xff] %v737
    %802 = vst [vmem:[#allocation2 + $0x1198] sm:$0xff] %v738
    %803 = vst [vmem:[#allocation2 + $0x11e0] sm:$0xff] %v739
    %s804 = scalar_lea.vmem %s0, 48
    %v805 = vld [vmem:[%s804] sm:$0xff]
    %v806 = vld [vmem:[%s804 + $0x8] sm:$0xff]
    %v807 = vld [vmem:[%s804 + $0x18] sm:$0xff]
    %v808 = vld [vmem:[%s804 + $0x20] sm:$0xff]
    %v809 = vld [vmem:[%s804 + $0x30] sm:$0xff]
    %v810 = vld [vmem:[%s804 + $0x38] sm:$0xff]
    %v811 = vld [vmem:[%s804 + $0x48] sm:$0xff]
    %v812 = vld [vmem:[%s804 + $0x50] sm:$0xff]
    %v813 = vld [vmem:[%s804 + $0x60] sm:$0xff]
    %v814 = vld [vmem:[%s804 + $0x68] sm:$0xff]
    %v815 = vld [vmem:[%s804 + $0x78] sm:$0xff]
    %v816 = vld [vmem:[%s804 + $0x80] sm:$0xff]
    %v817 = vld [vmem:[%s804 + $0x90] sm:$0xff]
    %v818 = vld [vmem:[%s804 + $0x98] sm:$0xff]
    %v819 = vld [vmem:[%s804 + $0xa8] sm:$0xff]
    %v820 = vld [vmem:[%s804 + $0xb0] sm:$0xff]
    %v821 = vld [vmem:[%s804 + $0xc0] sm:$0xff]
    %v822 = vld [vmem:[%s804 + $0xc8] sm:$0xff]
    %v823 = vld [vmem:[%s804 + $0xd8] sm:$0xff]
    %v824 = vld [vmem:[%s804 + $0xe0] sm:$0xff]
    %v825 = vld [vmem:[%s804 + $0xf0] sm:$0xff]
    %v826 = vld [vmem:[%s804 + $0xf8] sm:$0xff]
    %v827 = vld [vmem:[%s804 + $0x108] sm:$0xff]
    %v828 = vld [vmem:[%s804 + $0x110] sm:$0xff]
    %v829 = vld [vmem:[%s804 + $0x120] sm:$0xff]
    %v830 = vld [vmem:[%s804 + $0x128] sm:$0xff]
    %v831 = vld [vmem:[%s804 + $0x138] sm:$0xff]
    %v832 = vld [vmem:[%s804 + $0x140] sm:$0xff]
    %v833 = vld [vmem:[%s804 + $0x150] sm:$0xff]
    %v834 = vld [vmem:[%s804 + $0x158] sm:$0xff]
    %v835 = vld [vmem:[%s804 + $0x168] sm:$0xff]
    %v836 = vld [vmem:[%s804 + $0x170] sm:$0xff]
    %v837 = vld [vmem:[%s804 + $0x1b0] sm:$0xff]
    %v838 = vld [vmem:[%s804 + $0x1b8] sm:$0xff]
    %v839 = vld [vmem:[%s804 + $0x1c8] sm:$0xff]
    %v840 = vld [vmem:[%s804 + $0x1d0] sm:$0xff]
    %v841 = vld [vmem:[%s804 + $0x1e0] sm:$0xff]
    %v842 = vld [vmem:[%s804 + $0x1e8] sm:$0xff]
    %v843 = vld [vmem:[%s804 + $0x1f8] sm:$0xff]
    %v844 = vld [vmem:[%s804 + $0x200] sm:$0xff]
    %v845 = vld [vmem:[%s804 + $0x210] sm:$0xff]
    %v846 = vld [vmem:[%s804 + $0x218] sm:$0xff]
    %v847 = vld [vmem:[%s804 + $0x228] sm:$0xff]
    %v848 = vld [vmem:[%s804 + $0x230] sm:$0xff]
    %v849 = vld [vmem:[%s804 + $0x240] sm:$0xff]
    %v850 = vld [vmem:[%s804 + $0x248] sm:$0xff]
    %v851 = vld [vmem:[%s804 + $0x258] sm:$0xff]
    %v852 = vld [vmem:[%s804 + $0x260] sm:$0xff]
    %v853 = vld [vmem:[%s804 + $0x270] sm:$0xff]
    %v854 = vld [vmem:[%s804 + $0x278] sm:$0xff]
    %v855 = vld [vmem:[%s804 + $0x288] sm:$0xff]
    %v856 = vld [vmem:[%s804 + $0x290] sm:$0xff]
    %v857 = vld [vmem:[%s804 + $0x2a0] sm:$0xff]
    %v858 = vld [vmem:[%s804 + $0x2a8] sm:$0xff]
    %v859 = vld [vmem:[%s804 + $0x2b8] sm:$0xff]
    %v860 = vld [vmem:[%s804 + $0x2c0] sm:$0xff]
    %v861 = vld [vmem:[%s804 + $0x2d0] sm:$0xff]
    %v862 = vld [vmem:[%s804 + $0x2d8] sm:$0xff]
    %v863 = vld [vmem:[%s804 + $0x2e8] sm:$0xff]
    %v864 = vld [vmem:[%s804 + $0x2f0] sm:$0xff]
    %v865 = vld [vmem:[%s804 + $0x300] sm:$0xff]
    %v866 = vld [vmem:[%s804 + $0x308] sm:$0xff]
    %v867 = vld [vmem:[%s804 + $0x318] sm:$0xff]
    %v868 = vld [vmem:[%s804 + $0x320] sm:$0xff]
    %869 = vst [vmem:[#allocation2 + $0x30] sm:$0xff] %v805
    %870 = vst [vmem:[#allocation2 + $0x78] sm:$0xff] %v806
    %871 = vst [vmem:[#allocation2 + $0xc0] sm:$0xff] %v807
    %872 = vst [vmem:[#allocation2 + $0x108] sm:$0xff] %v808
    %873 = vst [vmem:[#allocation2 + $0x150] sm:$0xff] %v809
    %874 = vst [vmem:[#allocation2 + $0x198] sm:$0xff] %v810
    %875 = vst [vmem:[#allocation2 + $0x1e0] sm:$0xff] %v811
    %876 = vst [vmem:[#allocation2 + $0x228] sm:$0xff] %v812
    %877 = vst [vmem:[#allocation2 + $0x270] sm:$0xff] %v813
    %878 = vst [vmem:[#allocation2 + $0x2b8] sm:$0xff] %v814
    %879 = vst [vmem:[#allocation2 + $0x300] sm:$0xff] %v815
    %880 = vst [vmem:[#allocation2 + $0x348] sm:$0xff] %v816
    %881 = vst [vmem:[#allocation2 + $0x390] sm:$0xff] %v817
    %882 = vst [vmem:[#allocation2 + $0x3d8] sm:$0xff] %v818
    %883 = vst [vmem:[#allocation2 + $0x420] sm:$0xff] %v819
    %884 = vst [vmem:[#allocation2 + $0x468] sm:$0xff] %v820
    %885 = vst [vmem:[#allocation2 + $0x4b0] sm:$0xff] %v821
    %886 = vst [vmem:[#allocation2 + $0x4f8] sm:$0xff] %v822
    %887 = vst [vmem:[#allocation2 + $0x540] sm:$0xff] %v823
    %888 = vst [vmem:[#allocation2 + $0x588] sm:$0xff] %v824
    %889 = vst [vmem:[#allocation2 + $0x5d0] sm:$0xff] %v825
    %890 = vst [vmem:[#allocation2 + $0x618] sm:$0xff] %v826
    %891 = vst [vmem:[#allocation2 + $0x660] sm:$0xff] %v827
    %892 = vst [vmem:[#allocation2 + $0x6a8] sm:$0xff] %v828
    %893 = vst [vmem:[#allocation2 + $0x6f0] sm:$0xff] %v829
    %894 = vst [vmem:[#allocation2 + $0x738] sm:$0xff] %v830
    %895 = vst [vmem:[#allocation2 + $0x780] sm:$0xff] %v831
    %896 = vst [vmem:[#allocation2 + $0x7c8] sm:$0xff] %v832
    %897 = vst [vmem:[#allocation2 + $0x810] sm:$0xff] %v833
    %898 = vst [vmem:[#allocation2 + $0x858] sm:$0xff] %v834
    %899 = vst [vmem:[#allocation2 + $0x8a0] sm:$0xff] %v835
    %900 = vst [vmem:[#allocation2 + $0x8e8] sm:$0xff] %v836
    %901 = vst [vmem:[#allocation2 + $0x930] sm:$0xff] %v837
    %902 = vst [vmem:[#allocation2 + $0x978] sm:$0xff] %v838
    %903 = vst [vmem:[#allocation2 + $0x9c0] sm:$0xff] %v839
    %904 = vst [vmem:[#allocation2 + $0xa08] sm:$0xff] %v840
    %905 = vst [vmem:[#allocation2 + $0xa50] sm:$0xff] %v841
    %906 = vst [vmem:[#allocation2 + $0xa98] sm:$0xff] %v842
    %907 = vst [vmem:[#allocation2 + $0xae0] sm:$0xff] %v843
    %908 = vst [vmem:[#allocation2 + $0xb28] sm:$0xff] %v844
    %909 = vst [vmem:[#allocation2 + $0xb70] sm:$0xff] %v845
    %910 = vst [vmem:[#allocation2 + $0xbb8] sm:$0xff] %v846
    %911 = vst [vmem:[#allocation2 + $0xc00] sm:$0xff] %v847
    %912 = vst [vmem:[#allocation2 + $0xc48] sm:$0xff] %v848
    %913 = vst [vmem:[#allocation2 + $0xc90] sm:$0xff] %v849
    %914 = vst [vmem:[#allocation2 + $0xcd8] sm:$0xff] %v850
    %915 = vst [vmem:[#allocation2 + $0xd20] sm:$0xff] %v851
    %916 = vst [vmem:[#allocation2 + $0xd68] sm:$0xff] %v852
    %917 = vst [vmem:[#allocation2 + $0xdb0] sm:$0xff] %v853
    %918 = vst [vmem:[#allocation2 + $0xdf8] sm:$0xff] %v854
    %919 = vst [vmem:[#allocation2 + $0xe40] sm:$0xff] %v855
    %920 = vst [vmem:[#allocation2 + $0xe88] sm:$0xff] %v856
    %921 = vst [vmem:[#allocation2 + $0xed0] sm:$0xff] %v857
    %922 = vst [vmem:[#allocation2 + $0xf18] sm:$0xff] %v858
    %923 = vst [vmem:[#allocation2 + $0xf60] sm:$0xff] %v859
    %924 = vst [vmem:[#allocation2 + $0xfa8] sm:$0xff] %v860
    %925 = vst [vmem:[#allocation2 + $0xff0] sm:$0xff] %v861
    %926 = vst [vmem:[#allocation2 + $0x1038] sm:$0xff] %v862
    %927 = vst [vmem:[#allocation2 + $0x1080] sm:$0xff] %v863
    %928 = vst [vmem:[#allocation2 + $0x10c8] sm:$0xff] %v864
    %929 = vst [vmem:[#allocation2 + $0x1110] sm:$0xff] %v865
    %930 = vst [vmem:[#allocation2 + $0x1158] sm:$0xff] %v866
    %931 = vst [vmem:[#allocation2 + $0x11a0] sm:$0xff] %v867
    %932 = vst [vmem:[#allocation2 + $0x11e8] sm:$0xff] %v868
    %v933 = vld [vmem:[%s804 + $0x1] sm:$0xff]
    %v934 = vld [vmem:[%s804 + $0x9] sm:$0xff]
    %v935 = vld [vmem:[%s804 + $0x19] sm:$0xff]
    %v936 = vld [vmem:[%s804 + $0x21] sm:$0xff]
    %v937 = vld [vmem:[%s804 + $0x31] sm:$0xff]
    %v938 = vld [vmem:[%s804 + $0x39] sm:$0xff]
    %v939 = vld [vmem:[%s804 + $0x49] sm:$0xff]
    %v940 = vld [vmem:[%s804 + $0x51] sm:$0xff]
    %v941 = vld [vmem:[%s804 + $0x61] sm:$0xff]
    %v942 = vld [vmem:[%s804 + $0x69] sm:$0xff]
    %v943 = vld [vmem:[%s804 + $0x79] sm:$0xff]
    %v944 = vld [vmem:[%s804 + $0x81] sm:$0xff]
    %v945 = vld [vmem:[%s804 + $0x91] sm:$0xff]
    %v946 = vld [vmem:[%s804 + $0x99] sm:$0xff]
    %v947 = vld [vmem:[%s804 + $0xa9] sm:$0xff]
    %v948 = vld [vmem:[%s804 + $0xb1] sm:$0xff]
    %v949 = vld [vmem:[%s804 + $0xc1] sm:$0xff]
    %v950 = vld [vmem:[%s804 + $0xc9] sm:$0xff]
    %v951 = vld [vmem:[%s804 + $0xd9] sm:$0xff]
    %v952 = vld [vmem:[%s804 + $0xe1] sm:$0xff]
    %v953 = vld [vmem:[%s804 + $0xf1] sm:$0xff]
    %v954 = vld [vmem:[%s804 + $0xf9] sm:$0xff]
    %v955 = vld [vmem:[%s804 + $0x109] sm:$0xff]
    %v956 = vld [vmem:[%s804 + $0x111] sm:$0xff]
    %v957 = vld [vmem:[%s804 + $0x121] sm:$0xff]
    %v958 = vld [vmem:[%s804 + $0x129] sm:$0xff]
    %v959 = vld [vmem:[%s804 + $0x139] sm:$0xff]
    %v960 = vld [vmem:[%s804 + $0x141] sm:$0xff]
    %v961 = vld [vmem:[%s804 + $0x151] sm:$0xff]
    %v962 = vld [vmem:[%s804 + $0x159] sm:$0xff]
    %v963 = vld [vmem:[%s804 + $0x169] sm:$0xff]
    %v964 = vld [vmem:[%s804 + $0x171] sm:$0xff]
    %v965 = vld [vmem:[%s804 + $0x1b1] sm:$0xff]
    %v966 = vld [vmem:[%s804 + $0x1b9] sm:$0xff]
    %v967 = vld [vmem:[%s804 + $0x1c9] sm:$0xff]
    %v968 = vld [vmem:[%s804 + $0x1d1] sm:$0xff]
    %v969 = vld [vmem:[%s804 + $0x1e1] sm:$0xff]
    %v970 = vld [vmem:[%s804 + $0x1e9] sm:$0xff]
    %v971 = vld [vmem:[%s804 + $0x1f9] sm:$0xff]
    %v972 = vld [vmem:[%s804 + $0x201] sm:$0xff]
    %v973 = vld [vmem:[%s804 + $0x211] sm:$0xff]
    %v974 = vld [vmem:[%s804 + $0x219] sm:$0xff]
    %v975 = vld [vmem:[%s804 + $0x229] sm:$0xff]
    %v976 = vld [vmem:[%s804 + $0x231] sm:$0xff]
    %v977 = vld [vmem:[%s804 + $0x241] sm:$0xff]
    %v978 = vld [vmem:[%s804 + $0x249] sm:$0xff]
    %v979 = vld [vmem:[%s804 + $0x259] sm:$0xff]
    %v980 = vld [vmem:[%s804 + $0x261] sm:$0xff]
    %v981 = vld [vmem:[%s804 + $0x271] sm:$0xff]
    %v982 = vld [vmem:[%s804 + $0x279] sm:$0xff]
    %v983 = vld [vmem:[%s804 + $0x289] sm:$0xff]
    %v984 = vld [vmem:[%s804 + $0x291] sm:$0xff]
    %v985 = vld [vmem:[%s804 + $0x2a1] sm:$0xff]
    %v986 = vld [vmem:[%s804 + $0x2a9] sm:$0xff]
    %v987 = vld [vmem:[%s804 + $0x2b9] sm:$0xff]
    %v988 = vld [vmem:[%s804 + $0x2c1] sm:$0xff]
    %v989 = vld [vmem:[%s804 + $0x2d1] sm:$0xff]
    %v990 = vld [vmem:[%s804 + $0x2d9] sm:$0xff]
    %v991 = vld [vmem:[%s804 + $0x2e9] sm:$0xff]
    %v992 = vld [vmem:[%s804 + $0x2f1] sm:$0xff]
    %v993 = vld [vmem:[%s804 + $0x301] sm:$0xff]
    %v994 = vld [vmem:[%s804 + $0x309] sm:$0xff]
    %v995 = vld [vmem:[%s804 + $0x319] sm:$0xff]
    %v996 = vld [vmem:[%s804 + $0x321] sm:$0xff]
    %997 = vst [vmem:[#allocation2 + $0x38] sm:$0xff] %v933
    %998 = vst [vmem:[#allocation2 + $0x80] sm:$0xff] %v934
    %999 = vst [vmem:[#allocation2 + $0xc8] sm:$0xff] %v935
    %1000 = vst [vmem:[#allocation2 + $0x110] sm:$0xff] %v936
    %1001 = vst [vmem:[#allocation2 + $0x158] sm:$0xff] %v937
    %1002 = vst [vmem:[#allocation2 + $0x1a0] sm:$0xff] %v938
    %1003 = vst [vmem:[#allocation2 + $0x1e8] sm:$0xff] %v939
    %1004 = vst [vmem:[#allocation2 + $0x230] sm:$0xff] %v940
    %1005 = vst [vmem:[#allocation2 + $0x278] sm:$0xff] %v941
    %1006 = vst [vmem:[#allocation2 + $0x2c0] sm:$0xff] %v942
    %1007 = vst [vmem:[#allocation2 + $0x308] sm:$0xff] %v943
    %1008 = vst [vmem:[#allocation2 + $0x350] sm:$0xff] %v944
    %1009 = vst [vmem:[#allocation2 + $0x398] sm:$0xff] %v945
    %1010 = vst [vmem:[#allocation2 + $0x3e0] sm:$0xff] %v946
    %1011 = vst [vmem:[#allocation2 + $0x428] sm:$0xff] %v947
    %1012 = vst [vmem:[#allocation2 + $0x470] sm:$0xff] %v948
    %1013 = vst [vmem:[#allocation2 + $0x4b8] sm:$0xff] %v949
    %1014 = vst [vmem:[#allocation2 + $0x500] sm:$0xff] %v950
    %1015 = vst [vmem:[#allocation2 + $0x548] sm:$0xff] %v951
    %1016 = vst [vmem:[#allocation2 + $0x590] sm:$0xff] %v952
    %1017 = vst [vmem:[#allocation2 + $0x5d8] sm:$0xff] %v953
    %1018 = vst [vmem:[#allocation2 + $0x620] sm:$0xff] %v954
    %1019 = vst [vmem:[#allocation2 + $0x668] sm:$0xff] %v955
    %1020 = vst [vmem:[#allocation2 + $0x6b0] sm:$0xff] %v956
    %1021 = vst [vmem:[#allocation2 + $0x6f8] sm:$0xff] %v957
    %1022 = vst [vmem:[#allocation2 + $0x740] sm:$0xff] %v958
    %1023 = vst [vmem:[#allocation2 + $0x788] sm:$0xff] %v959
    %1024 = vst [vmem:[#allocation2 + $0x7d0] sm:$0xff] %v960
    %1025 = vst [vmem:[#allocation2 + $0x818] sm:$0xff] %v961
    %1026 = vst [vmem:[#allocation2 + $0x860] sm:$0xff] %v962
    %1027 = vst [vmem:[#allocation2 + $0x8a8] sm:$0xff] %v963
    %1028 = vst [vmem:[#allocation2 + $0x8f0] sm:$0xff] %v964
    %1029 = vst [vmem:[#allocation2 + $0x938] sm:$0xff] %v965
    %1030 = vst [vmem:[#allocation2 + $0x980] sm:$0xff] %v966
    %1031 = vst [vmem:[#allocation2 + $0x9c8] sm:$0xff] %v967
    %1032 = vst [vmem:[#allocation2 + $0xa10] sm:$0xff] %v968
    %1033 = vst [vmem:[#allocation2 + $0xa58] sm:$0xff] %v969
    %1034 = vst [vmem:[#allocation2 + $0xaa0] sm:$0xff] %v970
    %1035 = vst [vmem:[#allocation2 + $0xae8] sm:$0xff] %v971
    %1036 = vst [vmem:[#allocation2 + $0xb30] sm:$0xff] %v972
    %1037 = vst [vmem:[#allocation2 + $0xb78] sm:$0xff] %v973
    %1038 = vst [vmem:[#allocation2 + $0xbc0] sm:$0xff] %v974
    %1039 = vst [vmem:[#allocation2 + $0xc08] sm:$0xff] %v975
    %1040 = vst [vmem:[#allocation2 + $0xc50] sm:$0xff] %v976
    %1041 = vst [vmem:[#allocation2 + $0xc98] sm:$0xff] %v977
    %1042 = vst [vmem:[#allocation2 + $0xce0] sm:$0xff] %v978
    %1043 = vst [vmem:[#allocation2 + $0xd28] sm:$0xff] %v979
    %1044 = vst [vmem:[#allocation2 + $0xd70] sm:$0xff] %v980
    %1045 = vst [vmem:[#allocation2 + $0xdb8] sm:$0xff] %v981
    %1046 = vst [vmem:[#allocation2 + $0xe00] sm:$0xff] %v982
    %1047 = vst [vmem:[#allocation2 + $0xe48] sm:$0xff] %v983
    %1048 = vst [vmem:[#allocation2 + $0xe90] sm:$0xff] %v984
    %1049 = vst [vmem:[#allocation2 + $0xed8] sm:$0xff] %v985
    %1050 = vst [vmem:[#allocation2 + $0xf20] sm:$0xff] %v986
    %1051 = vst [vmem:[#allocation2 + $0xf68] sm:$0xff] %v987
    %1052 = vst [vmem:[#allocation2 + $0xfb0] sm:$0xff] %v988
    %1053 = vst [vmem:[#allocation2 + $0xff8] sm:$0xff] %v989
    %1054 = vst [vmem:[#allocation2 + $0x1040] sm:$0xff] %v990
    %1055 = vst [vmem:[#allocation2 + $0x1088] sm:$0xff] %v991
    %1056 = vst [vmem:[#allocation2 + $0x10d0] sm:$0xff] %v992
    %1057 = vst [vmem:[#allocation2 + $0x1118] sm:$0xff] %v993
    %1058 = vst [vmem:[#allocation2 + $0x1160] sm:$0xff] %v994
    %1059 = vst [vmem:[#allocation2 + $0x11a8] sm:$0xff] %v995
    %1060 = vst [vmem:[#allocation2 + $0x11f0] sm:$0xff] %v996
    %v1061 = vld [vmem:[%s804 + $0x2] sm:$0xff]
    %v1062 = vld [vmem:[%s804 + $0xa] sm:$0xff]
    %v1063 = vld [vmem:[%s804 + $0x1a] sm:$0xff]
    %v1064 = vld [vmem:[%s804 + $0x22] sm:$0xff]
    %v1065 = vld [vmem:[%s804 + $0x32] sm:$0xff]
    %v1066 = vld [vmem:[%s804 + $0x3a] sm:$0xff]
    %v1067 = vld [vmem:[%s804 + $0x4a] sm:$0xff]
    %v1068 = vld [vmem:[%s804 + $0x52] sm:$0xff]
    %v1069 = vld [vmem:[%s804 + $0x62] sm:$0xff]
    %v1070 = vld [vmem:[%s804 + $0x6a] sm:$0xff]
    %v1071 = vld [vmem:[%s804 + $0x7a] sm:$0xff]
    %v1072 = vld [vmem:[%s804 + $0x82] sm:$0xff]
    %v1073 = vld [vmem:[%s804 + $0x92] sm:$0xff]
    %v1074 = vld [vmem:[%s804 + $0x9a] sm:$0xff]
    %v1075 = vld [vmem:[%s804 + $0xaa] sm:$0xff]
    %v1076 = vld [vmem:[%s804 + $0xb2] sm:$0xff]
    %v1077 = vld [vmem:[%s804 + $0xc2] sm:$0xff]
    %v1078 = vld [vmem:[%s804 + $0xca] sm:$0xff]
    %v1079 = vld [vmem:[%s804 + $0xda] sm:$0xff]
    %v1080 = vld [vmem:[%s804 + $0xe2] sm:$0xff]
    %v1081 = vld [vmem:[%s804 + $0xf2] sm:$0xff]
    %v1082 = vld [vmem:[%s804 + $0xfa] sm:$0xff]
    %v1083 = vld [vmem:[%s804 + $0x10a] sm:$0xff]
    %v1084 = vld [vmem:[%s804 + $0x112] sm:$0xff]
    %v1085 = vld [vmem:[%s804 + $0x122] sm:$0xff]
    %v1086 = vld [vmem:[%s804 + $0x12a] sm:$0xff]
    %v1087 = vld [vmem:[%s804 + $0x13a] sm:$0xff]
    %v1088 = vld [vmem:[%s804 + $0x142] sm:$0xff]
    %v1089 = vld [vmem:[%s804 + $0x152] sm:$0xff]
    %v1090 = vld [vmem:[%s804 + $0x15a] sm:$0xff]
    %v1091 = vld [vmem:[%s804 + $0x16a] sm:$0xff]
    %v1092 = vld [vmem:[%s804 + $0x172] sm:$0xff]
    %v1093 = vld [vmem:[%s804 + $0x1b2] sm:$0xff]
    %v1094 = vld [vmem:[%s804 + $0x1ba] sm:$0xff]
    %v1095 = vld [vmem:[%s804 + $0x1ca] sm:$0xff]
    %v1096 = vld [vmem:[%s804 + $0x1d2] sm:$0xff]
    %v1097 = vld [vmem:[%s804 + $0x1e2] sm:$0xff]
    %v1098 = vld [vmem:[%s804 + $0x1ea] sm:$0xff]
    %v1099 = vld [vmem:[%s804 + $0x1fa] sm:$0xff]
    %v1100 = vld [vmem:[%s804 + $0x202] sm:$0xff]
    %v1101 = vld [vmem:[%s804 + $0x212] sm:$0xff]
    %v1102 = vld [vmem:[%s804 + $0x21a] sm:$0xff]
    %v1103 = vld [vmem:[%s804 + $0x22a] sm:$0xff]
    %v1104 = vld [vmem:[%s804 + $0x232] sm:$0xff]
    %v1105 = vld [vmem:[%s804 + $0x242] sm:$0xff]
    %v1106 = vld [vmem:[%s804 + $0x24a] sm:$0xff]
    %v1107 = vld [vmem:[%s804 + $0x25a] sm:$0xff]
    %v1108 = vld [vmem:[%s804 + $0x262] sm:$0xff]
    %v1109 = vld [vmem:[%s804 + $0x272] sm:$0xff]
    %v1110 = vld [vmem:[%s804 + $0x27a] sm:$0xff]
    %v1111 = vld [vmem:[%s804 + $0x28a] sm:$0xff]
    %v1112 = vld [vmem:[%s804 + $0x292] sm:$0xff]
    %v1113 = vld [vmem:[%s804 + $0x2a2] sm:$0xff]
    %v1114 = vld [vmem:[%s804 + $0x2aa] sm:$0xff]
    %v1115 = vld [vmem:[%s804 + $0x2ba] sm:$0xff]
    %v1116 = vld [vmem:[%s804 + $0x2c2] sm:$0xff]
    %v1117 = vld [vmem:[%s804 + $0x2d2] sm:$0xff]
    %v1118 = vld [vmem:[%s804 + $0x2da] sm:$0xff]
    %v1119 = vld [vmem:[%s804 + $0x2ea] sm:$0xff]
    %v1120 = vld [vmem:[%s804 + $0x2f2] sm:$0xff]
    %v1121 = vld [vmem:[%s804 + $0x302] sm:$0xff]
    %v1122 = vld [vmem:[%s804 + $0x30a] sm:$0xff]
    %v1123 = vld [vmem:[%s804 + $0x31a] sm:$0xff]
    %v1124 = vld [vmem:[%s804 + $0x322] sm:$0xff]
    %1125 = vst [vmem:[#allocation2 + $0x40] sm:$0xff] %v1061
    %1126 = vst [vmem:[#allocation2 + $0x88] sm:$0xff] %v1062
    %1127 = vst [vmem:[#allocation2 + $0xd0] sm:$0xff] %v1063
    %1128 = vst [vmem:[#allocation2 + $0x118] sm:$0xff] %v1064
    %1129 = vst [vmem:[#allocation2 + $0x160] sm:$0xff] %v1065
    %1130 = vst [vmem:[#allocation2 + $0x1a8] sm:$0xff] %v1066
    %1131 = vst [vmem:[#allocation2 + $0x1f0] sm:$0xff] %v1067
    %1132 = vst [vmem:[#allocation2 + $0x238] sm:$0xff] %v1068
    %1133 = vst [vmem:[#allocation2 + $0x280] sm:$0xff] %v1069
    %1134 = vst [vmem:[#allocation2 + $0x2c8] sm:$0xff] %v1070
    %1135 = vst [vmem:[#allocation2 + $0x310] sm:$0xff] %v1071
    %1136 = vst [vmem:[#allocation2 + $0x358] sm:$0xff] %v1072
    %1137 = vst [vmem:[#allocation2 + $0x3a0] sm:$0xff] %v1073
    %1138 = vst [vmem:[#allocation2 + $0x3e8] sm:$0xff] %v1074
    %1139 = vst [vmem:[#allocation2 + $0x430] sm:$0xff] %v1075
    %1140 = vst [vmem:[#allocation2 + $0x478] sm:$0xff] %v1076
    %1141 = vst [vmem:[#allocation2 + $0x4c0] sm:$0xff] %v1077
    %1142 = vst [vmem:[#allocation2 + $0x508] sm:$0xff] %v1078
    %1143 = vst [vmem:[#allocation2 + $0x550] sm:$0xff] %v1079
    %1144 = vst [vmem:[#allocation2 + $0x598] sm:$0xff] %v1080
    %1145 = vst [vmem:[#allocation2 + $0x5e0] sm:$0xff] %v1081
    %1146 = vst [vmem:[#allocation2 + $0x628] sm:$0xff] %v1082
    %1147 = vst [vmem:[#allocation2 + $0x670] sm:$0xff] %v1083
    %1148 = vst [vmem:[#allocation2 + $0x6b8] sm:$0xff] %v1084
    %1149 = vst [vmem:[#allocation2 + $0x700] sm:$0xff] %v1085
    %1150 = vst [vmem:[#allocation2 + $0x748] sm:$0xff] %v1086
    %1151 = vst [vmem:[#allocation2 + $0x790] sm:$0xff] %v1087
    %1152 = vst [vmem:[#allocation2 + $0x7d8] sm:$0xff] %v1088
    %1153 = vst [vmem:[#allocation2 + $0x820] sm:$0xff] %v1089
    %1154 = vst [vmem:[#allocation2 + $0x868] sm:$0xff] %v1090
    %1155 = vst [vmem:[#allocation2 + $0x8b0] sm:$0xff] %v1091
    %1156 = vst [vmem:[#allocation2 + $0x8f8] sm:$0xff] %v1092
    %1157 = vst [vmem:[#allocation2 + $0x940] sm:$0xff] %v1093
    %1158 = vst [vmem:[#allocation2 + $0x988] sm:$0xff] %v1094
    %1159 = vst [vmem:[#allocation2 + $0x9d0] sm:$0xff] %v1095
    %1160 = vst [vmem:[#allocation2 + $0xa18] sm:$0xff] %v1096
    %1161 = vst [vmem:[#allocation2 + $0xa60] sm:$0xff] %v1097
    %1162 = vst [vmem:[#allocation2 + $0xaa8] sm:$0xff] %v1098
    %1163 = vst [vmem:[#allocation2 + $0xaf0] sm:$0xff] %v1099
    %1164 = vst [vmem:[#allocation2 + $0xb38] sm:$0xff] %v1100
    %1165 = vst [vmem:[#allocation2 + $0xb80] sm:$0xff] %v1101
    %1166 = vst [vmem:[#allocation2 + $0xbc8] sm:$0xff] %v1102
    %1167 = vst [vmem:[#allocation2 + $0xc10] sm:$0xff] %v1103
    %1168 = vst [vmem:[#allocation2 + $0xc58] sm:$0xff] %v1104
    %1169 = vst [vmem:[#allocation2 + $0xca0] sm:$0xff] %v1105
    %1170 = vst [vmem:[#allocation2 + $0xce8] sm:$0xff] %v1106
    %1171 = vst [vmem:[#allocation2 + $0xd30] sm:$0xff] %v1107
    %1172 = vst [vmem:[#allocation2 + $0xd78] sm:$0xff] %v1108
    %1173 = vst [vmem:[#allocation2 + $0xdc0] sm:$0xff] %v1109
    %1174 = vst [vmem:[#allocation2 + $0xe08] sm:$0xff] %v1110
    %1175 = vst [vmem:[#allocation2 + $0xe50] sm:$0xff] %v1111
    %1176 = vst [vmem:[#allocation2 + $0xe98] sm:$0xff] %v1112
    %1177 = vst [vmem:[#allocation2 + $0xee0] sm:$0xff] %v1113
    %1178 = vst [vmem:[#allocation2 + $0xf28] sm:$0xff] %v1114
    %1179 = vst [vmem:[#allocation2 + $0xf70] sm:$0xff] %v1115
    %1180 = vst [vmem:[#allocation2 + $0xfb8] sm:$0xff] %v1116
    %1181 = vst [vmem:[#allocation2 + $0x1000] sm:$0xff] %v1117
    %1182 = vst [vmem:[#allocation2 + $0x1048] sm:$0xff] %v1118
    %1183 = vst [vmem:[#allocation2 + $0x1090] sm:$0xff] %v1119
    %1184 = vst [vmem:[#allocation2 + $0x10d8] sm:$0xff] %v1120
    %1185 = vst [vmem:[#allocation2 + $0x1120] sm:$0xff] %v1121
    %1186 = vst [vmem:[#allocation2 + $0x1168] sm:$0xff] %v1122
    %1187 = vst [vmem:[#allocation2 + $0x11b0] sm:$0xff] %v1123
    %1188 = vst [vmem:[#allocation2 + $0x11f8] sm:$0xff] %v1124
    %v1189 = vld [vmem:[#allocation2] sm:$0xff]
    %v1190 = vld [vmem:[#allocation2 + $0x8] sm:$0xff]
    %v1191 = vld [vmem:[#allocation2 + $0x10] sm:$0xff]
    %v1192 = vld [vmem:[#allocation2 + $0x18] sm:$0xff]
    %v1193 = vld [vmem:[#allocation2 + $0x20] sm:$0xff]
    %v1194 = vld [vmem:[#allocation2 + $0x28] sm:$0xff]
    %v1195 = vld [vmem:[#allocation2 + $0x30] sm:$0xff]
    %v1196 = vld [vmem:[#allocation2 + $0x38] sm:$0xff]
    %v1197 = vld [vmem:[#allocation2 + $0x40] sm:$0xff]
    %v1198 = vld [vmem:[#allocation2 + $0x48] sm:$0xff]
    %v1199 = vld [vmem:[#allocation2 + $0x50] sm:$0xff]
    %v1200 = vld [vmem:[#allocation2 + $0x58] sm:$0xff]
    %v1201 = vld [vmem:[#allocation2 + $0x60] sm:$0xff]
    %v1202 = vld [vmem:[#allocation2 + $0x68] sm:$0xff]
    %v1203 = vld [vmem:[#allocation2 + $0x70] sm:$0xff]
    %v1204 = vld [vmem:[#allocation2 + $0x78] sm:$0xff]
    %v1205 = vld [vmem:[#allocation2 + $0x80] sm:$0xff]
    %v1206 = vld [vmem:[#allocation2 + $0x88] sm:$0xff]
    %v1207 = vld [vmem:[#allocation2 + $0x90] sm:$0xff]
    %v1208 = vld [vmem:[#allocation2 + $0x98] sm:$0xff]
    %v1209 = vld [vmem:[#allocation2 + $0xa0] sm:$0xff]
    %v1210 = vld [vmem:[#allocation2 + $0xa8] sm:$0xff]
    %v1211 = vld [vmem:[#allocation2 + $0xb0] sm:$0xff]
    %v1212 = vld [vmem:[#allocation2 + $0xb8] sm:$0xff]
    %v1213 = vld [vmem:[#allocation2 + $0xc0] sm:$0xff]
    %v1214 = vld [vmem:[#allocation2 + $0xc8] sm:$0xff]
    %v1215 = vld [vmem:[#allocation2 + $0xd0] sm:$0xff]
    %v1216 = vld [vmem:[#allocation2 + $0xd8] sm:$0xff]
    %v1217 = vld [vmem:[#allocation2 + $0xe0] sm:$0xff]
    %v1218 = vld [vmem:[#allocation2 + $0xe8] sm:$0xff]
    %v1219 = vld [vmem:[#allocation2 + $0xf0] sm:$0xff]
    %v1220 = vld [vmem:[#allocation2 + $0xf8] sm:$0xff]
    %v1221 = vld [vmem:[#allocation2 + $0x100] sm:$0xff]
    %v1222 = vld [vmem:[#allocation2 + $0x108] sm:$0xff]
    %v1223 = vld [vmem:[#allocation2 + $0x110] sm:$0xff]
    %v1224 = vld [vmem:[#allocation2 + $0x118] sm:$0xff]
    %v1225 = vld [vmem:[#allocation2 + $0x120] sm:$0xff]
    %v1226 = vld [vmem:[#allocation2 + $0x128] sm:$0xff]
    %v1227 = vld [vmem:[#allocation2 + $0x130] sm:$0xff]
    %v1228 = vld [vmem:[#allocation2 + $0x138] sm:$0xff]
    %v1229 = vld [vmem:[#allocation2 + $0x140] sm:$0xff]
    %v1230 = vld [vmem:[#allocation2 + $0x148] sm:$0xff]
    %v1231 = vld [vmem:[#allocation2 + $0x150] sm:$0xff]
    %v1232 = vld [vmem:[#allocation2 + $0x158] sm:$0xff]
    %v1233 = vld [vmem:[#allocation2 + $0x160] sm:$0xff]
    %v1234 = vld [vmem:[#allocation2 + $0x168] sm:$0xff]
    %v1235 = vld [vmem:[#allocation2 + $0x170] sm:$0xff]
    %v1236 = vld [vmem:[#allocation2 + $0x178] sm:$0xff]
    %v1237 = vld [vmem:[#allocation2 + $0x180] sm:$0xff]
    %v1238 = vld [vmem:[#allocation2 + $0x188] sm:$0xff]
    %v1239 = vld [vmem:[#allocation2 + $0x190] sm:$0xff]
    %v1240 = vld [vmem:[#allocation2 + $0x198] sm:$0xff]
    %v1241 = vld [vmem:[#allocation2 + $0x1a0] sm:$0xff]
    %v1242 = vld [vmem:[#allocation2 + $0x1a8] sm:$0xff]
    %v1243 = vld [vmem:[#allocation2 + $0x1b0] sm:$0xff]
    %v1244 = vld [vmem:[#allocation2 + $0x1b8] sm:$0xff]
    %v1245 = vld [vmem:[#allocation2 + $0x1c0] sm:$0xff]
    %v1246 = vld [vmem:[#allocation2 + $0x1c8] sm:$0xff]
    %v1247 = vld [vmem:[#allocation2 + $0x1d0] sm:$0xff]
    %v1248 = vld [vmem:[#allocation2 + $0x1d8] sm:$0xff]
    %v1249 = vld [vmem:[#allocation2 + $0x1e0] sm:$0xff]
    %v1250 = vld [vmem:[#allocation2 + $0x1e8] sm:$0xff]
    %v1251 = vld [vmem:[#allocation2 + $0x1f0] sm:$0xff]
    %v1252 = vld [vmem:[#allocation2 + $0x1f8] sm:$0xff]
    %v1253 = vld [vmem:[#allocation2 + $0x200] sm:$0xff]
    %v1254 = vld [vmem:[#allocation2 + $0x208] sm:$0xff]
    %v1255 = vld [vmem:[#allocation2 + $0x210] sm:$0xff]
    %v1256 = vld [vmem:[#allocation2 + $0x218] sm:$0xff]
    %v1257 = vld [vmem:[#allocation2 + $0x220] sm:$0xff]
    %v1258 = vld [vmem:[#allocation2 + $0x228] sm:$0xff]
    %v1259 = vld [vmem:[#allocation2 + $0x230] sm:$0xff]
    %v1260 = vld [vmem:[#allocation2 + $0x238] sm:$0xff]
    %v1261 = vld [vmem:[#allocation2 + $0x240] sm:$0xff]
    %v1262 = vld [vmem:[#allocation2 + $0x248] sm:$0xff]
    %v1263 = vld [vmem:[#allocation2 + $0x250] sm:$0xff]
    %v1264 = vld [vmem:[#allocation2 + $0x258] sm:$0xff]
    %v1265 = vld [vmem:[#allocation2 + $0x260] sm:$0xff]
    %v1266 = vld [vmem:[#allocation2 + $0x268] sm:$0xff]
    %v1267 = vld [vmem:[#allocation2 + $0x270] sm:$0xff]
    %v1268 = vld [vmem:[#allocation2 + $0x278] sm:$0xff]
    %v1269 = vld [vmem:[#allocation2 + $0x280] sm:$0xff]
    %v1270 = vld [vmem:[#allocation2 + $0x288] sm:$0xff]
    %v1271 = vld [vmem:[#allocation2 + $0x290] sm:$0xff]
    %v1272 = vld [vmem:[#allocation2 + $0x298] sm:$0xff]
    %v1273 = vld [vmem:[#allocation2 + $0x2a0] sm:$0xff]
    %v1274 = vld [vmem:[#allocation2 + $0x2a8] sm:$0xff]
    %v1275 = vld [vmem:[#allocation2 + $0x2b0] sm:$0xff]
    %v1276 = vld [vmem:[#allocation2 + $0x2b8] sm:$0xff]
    %v1277 = vld [vmem:[#allocation2 + $0x2c0] sm:$0xff]
    %v1278 = vld [vmem:[#allocation2 + $0x2c8] sm:$0xff]
    %v1279 = vld [vmem:[#allocation2 + $0x2d0] sm:$0xff]
    %v1280 = vld [vmem:[#allocation2 + $0x2d8] sm:$0xff]
    %v1281 = vld [vmem:[#allocation2 + $0x2e0] sm:$0xff]
    %v1282 = vld [vmem:[#allocation2 + $0x2e8] sm:$0xff]
    %v1283 = vld [vmem:[#allocation2 + $0x2f0] sm:$0xff]
    %v1284 = vld [vmem:[#allocation2 + $0x2f8] sm:$0xff]
    %v1285 = vld [vmem:[#allocation2 + $0x300] sm:$0xff]
    %v1286 = vld [vmem:[#allocation2 + $0x308] sm:$0xff]
    %v1287 = vld [vmem:[#allocation2 + $0x310] sm:$0xff]
    %v1288 = vld [vmem:[#allocation2 + $0x318] sm:$0xff]
    %v1289 = vld [vmem:[#allocation2 + $0x320] sm:$0xff]
    %v1290 = vld [vmem:[#allocation2 + $0x328] sm:$0xff]
    %v1291 = vld [vmem:[#allocation2 + $0x330] sm:$0xff]
    %v1292 = vld [vmem:[#allocation2 + $0x338] sm:$0xff]
    %v1293 = vld [vmem:[#allocation2 + $0x340] sm:$0xff]
    %v1294 = vld [vmem:[#allocation2 + $0x348] sm:$0xff]
    %v1295 = vld [vmem:[#allocation2 + $0x350] sm:$0xff]
    %v1296 = vld [vmem:[#allocation2 + $0x358] sm:$0xff]
    %v1297 = vld [vmem:[#allocation2 + $0x360] sm:$0xff]
    %v1298 = vld [vmem:[#allocation2 + $0x368] sm:$0xff]
    %v1299 = vld [vmem:[#allocation2 + $0x370] sm:$0xff]
    %v1300 = vld [vmem:[#allocation2 + $0x378] sm:$0xff]
    %v1301 = vld [vmem:[#allocation2 + $0x380] sm:$0xff]
    %v1302 = vld [vmem:[#allocation2 + $0x388] sm:$0xff]
    %v1303 = vld [vmem:[#allocation2 + $0x390] sm:$0xff]
    %v1304 = vld [vmem:[#allocation2 + $0x398] sm:$0xff]
    %v1305 = vld [vmem:[#allocation2 + $0x3a0] sm:$0xff]
    %v1306 = vld [vmem:[#allocation2 + $0x3a8] sm:$0xff]
    %v1307 = vld [vmem:[#allocation2 + $0x3b0] sm:$0xff]
    %v1308 = vld [vmem:[#allocation2 + $0x3b8] sm:$0xff]
    %v1309 = vld [vmem:[#allocation2 + $0x3c0] sm:$0xff]
    %v1310 = vld [vmem:[#allocation2 + $0x3c8] sm:$0xff]
    %v1311 = vld [vmem:[#allocation2 + $0x3d0] sm:$0xff]
    %v1312 = vld [vmem:[#allocation2 + $0x3d8] sm:$0xff]
    %v1313 = vld [vmem:[#allocation2 + $0x3e0] sm:$0xff]
    %v1314 = vld [vmem:[#allocation2 + $0x3e8] sm:$0xff]
    %v1315 = vld [vmem:[#allocation2 + $0x3f0] sm:$0xff]
    %v1316 = vld [vmem:[#allocation2 + $0x3f8] sm:$0xff]
    %v1317 = vld [vmem:[#allocation2 + $0x400] sm:$0xff]
    %v1318 = vld [vmem:[#allocation2 + $0x408] sm:$0xff]
    %v1319 = vld [vmem:[#allocation2 + $0x410] sm:$0xff]
    %v1320 = vld [vmem:[#allocation2 + $0x418] sm:$0xff]
    %v1321 = vld [vmem:[#allocation2 + $0x420] sm:$0xff]
    %v1322 = vld [vmem:[#allocation2 + $0x428] sm:$0xff]
    %v1323 = vld [vmem:[#allocation2 + $0x430] sm:$0xff]
    %v1324 = vld [vmem:[#allocation2 + $0x438] sm:$0xff]
    %v1325 = vld [vmem:[#allocation2 + $0x440] sm:$0xff]
    %v1326 = vld [vmem:[#allocation2 + $0x448] sm:$0xff]
    %v1327 = vld [vmem:[#allocation2 + $0x450] sm:$0xff]
    %v1328 = vld [vmem:[#allocation2 + $0x458] sm:$0xff]
    %v1329 = vld [vmem:[#allocation2 + $0x460] sm:$0xff]
    %v1330 = vld [vmem:[#allocation2 + $0x468] sm:$0xff]
    %v1331 = vld [vmem:[#allocation2 + $0x470] sm:$0xff]
    %v1332 = vld [vmem:[#allocation2 + $0x478] sm:$0xff]
    %v1333 = vld [vmem:[#allocation2 + $0x480] sm:$0xff]
    %v1334 = vld [vmem:[#allocation2 + $0x488] sm:$0xff]
    %v1335 = vld [vmem:[#allocation2 + $0x490] sm:$0xff]
    %v1336 = vld [vmem:[#allocation2 + $0x498] sm:$0xff]
    %v1337 = vld [vmem:[#allocation2 + $0x4a0] sm:$0xff]
    %v1338 = vld [vmem:[#allocation2 + $0x4a8] sm:$0xff]
    %v1339 = vld [vmem:[#allocation2 + $0x4b0] sm:$0xff]
    %v1340 = vld [vmem:[#allocation2 + $0x4b8] sm:$0xff]
    %v1341 = vld [vmem:[#allocation2 + $0x4c0] sm:$0xff]
    %v1342 = vld [vmem:[#allocation2 + $0x4c8] sm:$0xff]
    %v1343 = vld [vmem:[#allocation2 + $0x4d0] sm:$0xff]
    %v1344 = vld [vmem:[#allocation2 + $0x4d8] sm:$0xff]
    %v1345 = vld [vmem:[#allocation2 + $0x4e0] sm:$0xff]
    %v1346 = vld [vmem:[#allocation2 + $0x4e8] sm:$0xff]
    %v1347 = vld [vmem:[#allocation2 + $0x4f0] sm:$0xff]
    %v1348 = vld [vmem:[#allocation2 + $0x4f8] sm:$0xff]
    %v1349 = vld [vmem:[#allocation2 + $0x500] sm:$0xff]
    %v1350 = vld [vmem:[#allocation2 + $0x508] sm:$0xff]
    %v1351 = vld [vmem:[#allocation2 + $0x510] sm:$0xff]
    %v1352 = vld [vmem:[#allocation2 + $0x518] sm:$0xff]
    %v1353 = vld [vmem:[#allocation2 + $0x520] sm:$0xff]
    %v1354 = vld [vmem:[#allocation2 + $0x528] sm:$0xff]
    %v1355 = vld [vmem:[#allocation2 + $0x530] sm:$0xff]
    %v1356 = vld [vmem:[#allocation2 + $0x538] sm:$0xff]
    %v1357 = vld [vmem:[#allocation2 + $0x540] sm:$0xff]
    %v1358 = vld [vmem:[#allocation2 + $0x548] sm:$0xff]
    %v1359 = vld [vmem:[#allocation2 + $0x550] sm:$0xff]
    %v1360 = vld [vmem:[#allocation2 + $0x558] sm:$0xff]
    %v1361 = vld [vmem:[#allocation2 + $0x560] sm:$0xff]
    %v1362 = vld [vmem:[#allocation2 + $0x568] sm:$0xff]
    %v1363 = vld [vmem:[#allocation2 + $0x570] sm:$0xff]
    %v1364 = vld [vmem:[#allocation2 + $0x578] sm:$0xff]
    %v1365 = vld [vmem:[#allocation2 + $0x580] sm:$0xff]
    %v1366 = vld [vmem:[#allocation2 + $0x588] sm:$0xff]
    %v1367 = vld [vmem:[#allocation2 + $0x590] sm:$0xff]
    %v1368 = vld [vmem:[#allocation2 + $0x598] sm:$0xff]
    %v1369 = vld [vmem:[#allocation2 + $0x5a0] sm:$0xff]
    %v1370 = vld [vmem:[#allocation2 + $0x5a8] sm:$0xff]
    %v1371 = vld [vmem:[#allocation2 + $0x5b0] sm:$0xff]
    %v1372 = vld [vmem:[#allocation2 + $0x5b8] sm:$0xff]
    %v1373 = vld [vmem:[#allocation2 + $0x5c0] sm:$0xff]
    %v1374 = vld [vmem:[#allocation2 + $0x5c8] sm:$0xff]
    %v1375 = vld [vmem:[#allocation2 + $0x5d0] sm:$0xff]
    %v1376 = vld [vmem:[#allocation2 + $0x5d8] sm:$0xff]
    %v1377 = vld [vmem:[#allocation2 + $0x5e0] sm:$0xff]
    %v1378 = vld [vmem:[#allocation2 + $0x5e8] sm:$0xff]
    %v1379 = vld [vmem:[#allocation2 + $0x5f0] sm:$0xff]
    %v1380 = vld [vmem:[#allocation2 + $0x5f8] sm:$0xff]
    %v1381 = vld [vmem:[#allocation2 + $0x600] sm:$0xff]
    %v1382 = vld [vmem:[#allocation2 + $0x608] sm:$0xff]
    %v1383 = vld [vmem:[#allocation2 + $0x610] sm:$0xff]
    %v1384 = vld [vmem:[#allocation2 + $0x618] sm:$0xff]
    %v1385 = vld [vmem:[#allocation2 + $0x620] sm:$0xff]
    %v1386 = vld [vmem:[#allocation2 + $0x628] sm:$0xff]
    %v1387 = vld [vmem:[#allocation2 + $0x630] sm:$0xff]
    %v1388 = vld [vmem:[#allocation2 + $0x638] sm:$0xff]
    %v1389 = vld [vmem:[#allocation2 + $0x640] sm:$0xff]
    %v1390 = vld [vmem:[#allocation2 + $0x648] sm:$0xff]
    %v1391 = vld [vmem:[#allocation2 + $0x650] sm:$0xff]
    %v1392 = vld [vmem:[#allocation2 + $0x658] sm:$0xff]
    %v1393 = vld [vmem:[#allocation2 + $0x660] sm:$0xff]
    %v1394 = vld [vmem:[#allocation2 + $0x668] sm:$0xff]
    %v1395 = vld [vmem:[#allocation2 + $0x670] sm:$0xff]
    %v1396 = vld [vmem:[#allocation2 + $0x678] sm:$0xff]
    %v1397 = vld [vmem:[#allocation2 + $0x680] sm:$0xff]
    %v1398 = vld [vmem:[#allocation2 + $0x688] sm:$0xff]
    %v1399 = vld [vmem:[#allocation2 + $0x690] sm:$0xff]
    %v1400 = vld [vmem:[#allocation2 + $0x698] sm:$0xff]
    %v1401 = vld [vmem:[#allocation2 + $0x6a0] sm:$0xff]
    %v1402 = vld [vmem:[#allocation2 + $0x6a8] sm:$0xff]
    %v1403 = vld [vmem:[#allocation2 + $0x6b0] sm:$0xff]
    %v1404 = vld [vmem:[#allocation2 + $0x6b8] sm:$0xff]
    %v1405 = vld [vmem:[#allocation2 + $0x6c0] sm:$0xff]
    %v1406 = vld [vmem:[#allocation2 + $0x6c8] sm:$0xff]
    %v1407 = vld [vmem:[#allocation2 + $0x6d0] sm:$0xff]
    %v1408 = vld [vmem:[#allocation2 + $0x6d8] sm:$0xff]
    %v1409 = vld [vmem:[#allocation2 + $0x6e0] sm:$0xff]
    %v1410 = vld [vmem:[#allocation2 + $0x6e8] sm:$0xff]
    %v1411 = vld [vmem:[#allocation2 + $0x6f0] sm:$0xff]
    %v1412 = vld [vmem:[#allocation2 + $0x6f8] sm:$0xff]
    %v1413 = vld [vmem:[#allocation2 + $0x700] sm:$0xff]
    %v1414 = vld [vmem:[#allocation2 + $0x708] sm:$0xff]
    %v1415 = vld [vmem:[#allocation2 + $0x710] sm:$0xff]
    %v1416 = vld [vmem:[#allocation2 + $0x718] sm:$0xff]
    %v1417 = vld [vmem:[#allocation2 + $0x720] sm:$0xff]
    %v1418 = vld [vmem:[#allocation2 + $0x728] sm:$0xff]
    %v1419 = vld [vmem:[#allocation2 + $0x730] sm:$0xff]
    %v1420 = vld [vmem:[#allocation2 + $0x738] sm:$0xff]
    %v1421 = vld [vmem:[#allocation2 + $0x740] sm:$0xff]
    %v1422 = vld [vmem:[#allocation2 + $0x748] sm:$0xff]
    %v1423 = vld [vmem:[#allocation2 + $0x750] sm:$0xff]
    %v1424 = vld [vmem:[#allocation2 + $0x758] sm:$0xff]
    %v1425 = vld [vmem:[#allocation2 + $0x760] sm:$0xff]
    %v1426 = vld [vmem:[#allocation2 + $0x768] sm:$0xff]
    %v1427 = vld [vmem:[#allocation2 + $0x770] sm:$0xff]
    %v1428 = vld [vmem:[#allocation2 + $0x778] sm:$0xff]
    %v1429 = vld [vmem:[#allocation2 + $0x780] sm:$0xff]
    %v1430 = vld [vmem:[#allocation2 + $0x788] sm:$0xff]
    %v1431 = vld [vmem:[#allocation2 + $0x790] sm:$0xff]
    %v1432 = vld [vmem:[#allocation2 + $0x798] sm:$0xff]
    %v1433 = vld [vmem:[#allocation2 + $0x7a0] sm:$0xff]
    %v1434 = vld [vmem:[#allocation2 + $0x7a8] sm:$0xff]
    %v1435 = vld [vmem:[#allocation2 + $0x7b0] sm:$0xff]
    %v1436 = vld [vmem:[#allocation2 + $0x7b8] sm:$0xff]
    %v1437 = vld [vmem:[#allocation2 + $0x7c0] sm:$0xff]
    %v1438 = vld [vmem:[#allocation2 + $0x7c8] sm:$0xff]
    %v1439 = vld [vmem:[#allocation2 + $0x7d0] sm:$0xff]
    %v1440 = vld [vmem:[#allocation2 + $0x7d8] sm:$0xff]
    %v1441 = vld [vmem:[#allocation2 + $0x7e0] sm:$0xff]
    %v1442 = vld [vmem:[#allocation2 + $0x7e8] sm:$0xff]
    %v1443 = vld [vmem:[#allocation2 + $0x7f0] sm:$0xff]
    %v1444 = vld [vmem:[#allocation2 + $0x7f8] sm:$0xff]
    %v1445 = vld [vmem:[#allocation2 + $0x800] sm:$0xff]
    %v1446 = vld [vmem:[#allocation2 + $0x808] sm:$0xff]
    %v1447 = vld [vmem:[#allocation2 + $0x810] sm:$0xff]
    %v1448 = vld [vmem:[#allocation2 + $0x818] sm:$0xff]
    %v1449 = vld [vmem:[#allocation2 + $0x820] sm:$0xff]
    %v1450 = vld [vmem:[#allocation2 + $0x828] sm:$0xff]
    %v1451 = vld [vmem:[#allocation2 + $0x830] sm:$0xff]
    %v1452 = vld [vmem:[#allocation2 + $0x838] sm:$0xff]
    %v1453 = vld [vmem:[#allocation2 + $0x840] sm:$0xff]
    %v1454 = vld [vmem:[#allocation2 + $0x848] sm:$0xff]
    %v1455 = vld [vmem:[#allocation2 + $0x850] sm:$0xff]
    %v1456 = vld [vmem:[#allocation2 + $0x858] sm:$0xff]
    %v1457 = vld [vmem:[#allocation2 + $0x860] sm:$0xff]
    %v1458 = vld [vmem:[#allocation2 + $0x868] sm:$0xff]
    %v1459 = vld [vmem:[#allocation2 + $0x870] sm:$0xff]
    %v1460 = vld [vmem:[#allocation2 + $0x878] sm:$0xff]
    %v1461 = vld [vmem:[#allocation2 + $0x880] sm:$0xff]
    %v1462 = vld [vmem:[#allocation2 + $0x888] sm:$0xff]
    %v1463 = vld [vmem:[#allocation2 + $0x890] sm:$0xff]
    %v1464 = vld [vmem:[#allocation2 + $0x898] sm:$0xff]
    %v1465 = vld [vmem:[#allocation2 + $0x8a0] sm:$0xff]
    %v1466 = vld [vmem:[#allocation2 + $0x8a8] sm:$0xff]
    %v1467 = vld [vmem:[#allocation2 + $0x8b0] sm:$0xff]
    %v1468 = vld [vmem:[#allocation2 + $0x8b8] sm:$0xff]
    %v1469 = vld [vmem:[#allocation2 + $0x8c0] sm:$0xff]
    %v1470 = vld [vmem:[#allocation2 + $0x8c8] sm:$0xff]
    %v1471 = vld [vmem:[#allocation2 + $0x8d0] sm:$0xff]
    %v1472 = vld [vmem:[#allocation2 + $0x8d8] sm:$0xff]
    %v1473 = vld [vmem:[#allocation2 + $0x8e0] sm:$0xff]
    %v1474 = vld [vmem:[#allocation2 + $0x8e8] sm:$0xff]
    %v1475 = vld [vmem:[#allocation2 + $0x8f0] sm:$0xff]
    %v1476 = vld [vmem:[#allocation2 + $0x8f8] sm:$0xff]
    %v1477 = vld [vmem:[#allocation2 + $0x900] sm:$0xff]
    %v1478 = vld [vmem:[#allocation2 + $0x908] sm:$0xff]
    %v1479 = vld [vmem:[#allocation2 + $0x910] sm:$0xff]
    %v1480 = vld [vmem:[#allocation2 + $0x918] sm:$0xff]
    %v1481 = vld [vmem:[#allocation2 + $0x920] sm:$0xff]
    %v1482 = vld [vmem:[#allocation2 + $0x928] sm:$0xff]
    %v1483 = vld [vmem:[#allocation2 + $0x930] sm:$0xff]
    %v1484 = vld [vmem:[#allocation2 + $0x938] sm:$0xff]
    %v1485 = vld [vmem:[#allocation2 + $0x940] sm:$0xff]
    %v1486 = vld [vmem:[#allocation2 + $0x948] sm:$0xff]
    %v1487 = vld [vmem:[#allocation2 + $0x950] sm:$0xff]
    %v1488 = vld [vmem:[#allocation2 + $0x958] sm:$0xff]
    %v1489 = vld [vmem:[#allocation2 + $0x960] sm:$0xff]
    %v1490 = vld [vmem:[#allocation2 + $0x968] sm:$0xff]
    %v1491 = vld [vmem:[#allocation2 + $0x970] sm:$0xff]
    %v1492 = vld [vmem:[#allocation2 + $0x978] sm:$0xff]
    %v1493 = vld [vmem:[#allocation2 + $0x980] sm:$0xff]
    %v1494 = vld [vmem:[#allocation2 + $0x988] sm:$0xff]
    %v1495 = vld [vmem:[#allocation2 + $0x990] sm:$0xff]
    %v1496 = vld [vmem:[#allocation2 + $0x998] sm:$0xff]
    %v1497 = vld [vmem:[#allocation2 + $0x9a0] sm:$0xff]
    %v1498 = vld [vmem:[#allocation2 + $0x9a8] sm:$0xff]
    %v1499 = vld [vmem:[#allocation2 + $0x9b0] sm:$0xff]
    %v1500 = vld [vmem:[#allocation2 + $0x9b8] sm:$0xff]
    %v1501 = vld [vmem:[#allocation2 + $0x9c0] sm:$0xff]
    %v1502 = vld [vmem:[#allocation2 + $0x9c8] sm:$0xff]
    %v1503 = vld [vmem:[#allocation2 + $0x9d0] sm:$0xff]
    %v1504 = vld [vmem:[#allocation2 + $0x9d8] sm:$0xff]
    %v1505 = vld [vmem:[#allocation2 + $0x9e0] sm:$0xff]
    %v1506 = vld [vmem:[#allocation2 + $0x9e8] sm:$0xff]
    %v1507 = vld [vmem:[#allocation2 + $0x9f0] sm:$0xff]
    %v1508 = vld [vmem:[#allocation2 + $0x9f8] sm:$0xff]
    %v1509 = vld [vmem:[#allocation2 + $0xa00] sm:$0xff]
    %v1510 = vld [vmem:[#allocation2 + $0xa08] sm:$0xff]
    %v1511 = vld [vmem:[#allocation2 + $0xa10] sm:$0xff]
    %v1512 = vld [vmem:[#allocation2 + $0xa18] sm:$0xff]
    %v1513 = vld [vmem:[#allocation2 + $0xa20] sm:$0xff]
    %v1514 = vld [vmem:[#allocation2 + $0xa28] sm:$0xff]
    %v1515 = vld [vmem:[#allocation2 + $0xa30] sm:$0xff]
    %v1516 = vld [vmem:[#allocation2 + $0xa38] sm:$0xff]
    %v1517 = vld [vmem:[#allocation2 + $0xa40] sm:$0xff]
    %v1518 = vld [vmem:[#allocation2 + $0xa48] sm:$0xff]
    %v1519 = vld [vmem:[#allocation2 + $0xa50] sm:$0xff]
    %v1520 = vld [vmem:[#allocation2 + $0xa58] sm:$0xff]
    %v1521 = vld [vmem:[#allocation2 + $0xa60] sm:$0xff]
    %v1522 = vld [vmem:[#allocation2 + $0xa68] sm:$0xff]
    %v1523 = vld [vmem:[#allocation2 + $0xa70] sm:$0xff]
    %v1524 = vld [vmem:[#allocation2 + $0xa78] sm:$0xff]
    %v1525 = vld [vmem:[#allocation2 + $0xa80] sm:$0xff]
    %v1526 = vld [vmem:[#allocation2 + $0xa88] sm:$0xff]
    %v1527 = vld [vmem:[#allocation2 + $0xa90] sm:$0xff]
    %v1528 = vld [vmem:[#allocation2 + $0xa98] sm:$0xff]
    %v1529 = vld [vmem:[#allocation2 + $0xaa0] sm:$0xff]
    %v1530 = vld [vmem:[#allocation2 + $0xaa8] sm:$0xff]
    %v1531 = vld [vmem:[#allocation2 + $0xab0] sm:$0xff]
    %v1532 = vld [vmem:[#allocation2 + $0xab8] sm:$0xff]
    %v1533 = vld [vmem:[#allocation2 + $0xac0] sm:$0xff]
    %v1534 = vld [vmem:[#allocation2 + $0xac8] sm:$0xff]
    %v1535 = vld [vmem:[#allocation2 + $0xad0] sm:$0xff]
    %v1536 = vld [vmem:[#allocation2 + $0xad8] sm:$0xff]
    %v1537 = vld [vmem:[#allocation2 + $0xae0] sm:$0xff]
    %v1538 = vld [vmem:[#allocation2 + $0xae8] sm:$0xff]
    %v1539 = vld [vmem:[#allocation2 + $0xaf0] sm:$0xff]
    %v1540 = vld [vmem:[#allocation2 + $0xaf8] sm:$0xff]
    %v1541 = vld [vmem:[#allocation2 + $0xb00] sm:$0xff]
    %v1542 = vld [vmem:[#allocation2 + $0xb08] sm:$0xff]
    %v1543 = vld [vmem:[#allocation2 + $0xb10] sm:$0xff]
    %v1544 = vld [vmem:[#allocation2 + $0xb18] sm:$0xff]
    %v1545 = vld [vmem:[#allocation2 + $0xb20] sm:$0xff]
    %v1546 = vld [vmem:[#allocation2 + $0xb28] sm:$0xff]
    %v1547 = vld [vmem:[#allocation2 + $0xb30] sm:$0xff]
    %v1548 = vld [vmem:[#allocation2 + $0xb38] sm:$0xff]
    %v1549 = vld [vmem:[#allocation2 + $0xb40] sm:$0xff]
    %v1550 = vld [vmem:[#allocation2 + $0xb48] sm:$0xff]
    %v1551 = vld [vmem:[#allocation2 + $0xb50] sm:$0xff]
    %v1552 = vld [vmem:[#allocation2 + $0xb58] sm:$0xff]
    %v1553 = vld [vmem:[#allocation2 + $0xb60] sm:$0xff]
    %v1554 = vld [vmem:[#allocation2 + $0xb68] sm:$0xff]
    %v1555 = vld [vmem:[#allocation2 + $0xb70] sm:$0xff]
    %v1556 = vld [vmem:[#allocation2 + $0xb78] sm:$0xff]
    %v1557 = vld [vmem:[#allocation2 + $0xb80] sm:$0xff]
    %v1558 = vld [vmem:[#allocation2 + $0xb88] sm:$0xff]
    %v1559 = vld [vmem:[#allocation2 + $0xb90] sm:$0xff]
    %v1560 = vld [vmem:[#allocation2 + $0xb98] sm:$0xff]
    %v1561 = vld [vmem:[#allocation2 + $0xba0] sm:$0xff]
    %v1562 = vld [vmem:[#allocation2 + $0xba8] sm:$0xff]
    %v1563 = vld [vmem:[#allocation2 + $0xbb0] sm:$0xff]
    %v1564 = vld [vmem:[#allocation2 + $0xbb8] sm:$0xff]
    %v1565 = vld [vmem:[#allocation2 + $0xbc0] sm:$0xff]
    %v1566 = vld [vmem:[#allocation2 + $0xbc8] sm:$0xff]
    %v1567 = vld [vmem:[#allocation2 + $0xbd0] sm:$0xff]
    %v1568 = vld [vmem:[#allocation2 + $0xbd8] sm:$0xff]
    %v1569 = vld [vmem:[#allocation2 + $0xbe0] sm:$0xff]
    %v1570 = vld [vmem:[#allocation2 + $0xbe8] sm:$0xff]
    %v1571 = vld [vmem:[#allocation2 + $0xbf0] sm:$0xff]
    %v1572 = vld [vmem:[#allocation2 + $0xbf8] sm:$0xff]
    %v1573 = vld [vmem:[#allocation2 + $0xc00] sm:$0xff]
    %v1574 = vld [vmem:[#allocation2 + $0xc08] sm:$0xff]
    %v1575 = vld [vmem:[#allocation2 + $0xc10] sm:$0xff]
    %v1576 = vld [vmem:[#allocation2 + $0xc18] sm:$0xff]
    %v1577 = vld [vmem:[#allocation2 + $0xc20] sm:$0xff]
    %v1578 = vld [vmem:[#allocation2 + $0xc28] sm:$0xff]
    %v1579 = vld [vmem:[#allocation2 + $0xc30] sm:$0xff]
    %v1580 = vld [vmem:[#allocation2 + $0xc38] sm:$0xff]
    %v1581 = vld [vmem:[#allocation2 + $0xc40] sm:$0xff]
    %v1582 = vld [vmem:[#allocation2 + $0xc48] sm:$0xff]
    %v1583 = vld [vmem:[#allocation2 + $0xc50] sm:$0xff]
    %v1584 = vld [vmem:[#allocation2 + $0xc58] sm:$0xff]
    %v1585 = vld [vmem:[#allocation2 + $0xc60] sm:$0xff]
    %v1586 = vld [vmem:[#allocation2 + $0xc68] sm:$0xff]
    %v1587 = vld [vmem:[#allocation2 + $0xc70] sm:$0xff]
    %v1588 = vld [vmem:[#allocation2 + $0xc78] sm:$0xff]
    %v1589 = vld [vmem:[#allocation2 + $0xc80] sm:$0xff]
    %v1590 = vld [vmem:[#allocation2 + $0xc88] sm:$0xff]
    %v1591 = vld [vmem:[#allocation2 + $0xc90] sm:$0xff]
    %v1592 = vld [vmem:[#allocation2 + $0xc98] sm:$0xff]
    %v1593 = vld [vmem:[#allocation2 + $0xca0] sm:$0xff]
    %v1594 = vld [vmem:[#allocation2 + $0xca8] sm:$0xff]
    %v1595 = vld [vmem:[#allocation2 + $0xcb0] sm:$0xff]
    %v1596 = vld [vmem:[#allocation2 + $0xcb8] sm:$0xff]
    %v1597 = vld [vmem:[#allocation2 + $0xcc0] sm:$0xff]
    %v1598 = vld [vmem:[#allocation2 + $0xcc8] sm:$0xff]
    %v1599 = vld [vmem:[#allocation2 + $0xcd0] sm:$0xff]
    %v1600 = vld [vmem:[#allocation2 + $0xcd8] sm:$0xff]
    %v1601 = vld [vmem:[#allocation2 + $0xce0] sm:$0xff]
    %v1602 = vld [vmem:[#allocation2 + $0xce8] sm:$0xff]
    %v1603 = vld [vmem:[#allocation2 + $0xcf0] sm:$0xff]
    %v1604 = vld [vmem:[#allocation2 + $0xcf8] sm:$0xff]
    %v1605 = vld [vmem:[#allocation2 + $0xd00] sm:$0xff]
    %v1606 = vld [vmem:[#allocation2 + $0xd08] sm:$0xff]
    %v1607 = vld [vmem:[#allocation2 + $0xd10] sm:$0xff]
    %v1608 = vld [vmem:[#allocation2 + $0xd18] sm:$0xff]
    %v1609 = vld [vmem:[#allocation2 + $0xd20] sm:$0xff]
    %v1610 = vld [vmem:[#allocation2 + $0xd28] sm:$0xff]
    %v1611 = vld [vmem:[#allocation2 + $0xd30] sm:$0xff]
    %v1612 = vld [vmem:[#allocation2 + $0xd38] sm:$0xff]
    %v1613 = vld [vmem:[#allocation2 + $0xd40] sm:$0xff]
    %v1614 = vld [vmem:[#allocation2 + $0xd48] sm:$0xff]
    %v1615 = vld [vmem:[#allocation2 + $0xd50] sm:$0xff]
    %v1616 = vld [vmem:[#allocation2 + $0xd58] sm:$0xff]
    %v1617 = vld [vmem:[#allocation2 + $0xd60] sm:$0xff]
    %v1618 = vld [vmem:[#allocation2 + $0xd68] sm:$0xff]
    %v1619 = vld [vmem:[#allocation2 + $0xd70] sm:$0xff]
    %v1620 = vld [vmem:[#allocation2 + $0xd78] sm:$0xff]
    %v1621 = vld [vmem:[#allocation2 + $0xd80] sm:$0xff]
    %v1622 = vld [vmem:[#allocation2 + $0xd88] sm:$0xff]
    %v1623 = vld [vmem:[#allocation2 + $0xd90] sm:$0xff]
    %v1624 = vld [vmem:[#allocation2 + $0xd98] sm:$0xff]
    %v1625 = vld [vmem:[#allocation2 + $0xda0] sm:$0xff]
    %v1626 = vld [vmem:[#allocation2 + $0xda8] sm:$0xff]
    %v1627 = vld [vmem:[#allocation2 + $0xdb0] sm:$0xff]
    %v1628 = vld [vmem:[#allocation2 + $0xdb8] sm:$0xff]
    %v1629 = vld [vmem:[#allocation2 + $0xdc0] sm:$0xff]
    %v1630 = vld [vmem:[#allocation2 + $0xdc8] sm:$0xff]
    %v1631 = vld [vmem:[#allocation2 + $0xdd0] sm:$0xff]
    %v1632 = vld [vmem:[#allocation2 + $0xdd8] sm:$0xff]
    %v1633 = vld [vmem:[#allocation2 + $0xde0] sm:$0xff]
    %v1634 = vld [vmem:[#allocation2 + $0xde8] sm:$0xff]
    %v1635 = vld [vmem:[#allocation2 + $0xdf0] sm:$0xff]
    %v1636 = vld [vmem:[#allocation2 + $0xdf8] sm:$0xff]
    %v1637 = vld [vmem:[#allocation2 + $0xe00] sm:$0xff]
    %v1638 = vld [vmem:[#allocation2 + $0xe08] sm:$0xff]
    %v1639 = vld [vmem:[#allocation2 + $0xe10] sm:$0xff]
    %v1640 = vld [vmem:[#allocation2 + $0xe18] sm:$0xff]
    %v1641 = vld [vmem:[#allocation2 + $0xe20] sm:$0xff]
    %v1642 = vld [vmem:[#allocation2 + $0xe28] sm:$0xff]
    %v1643 = vld [vmem:[#allocation2 + $0xe30] sm:$0xff]
    %v1644 = vld [vmem:[#allocation2 + $0xe38] sm:$0xff]
    %v1645 = vld [vmem:[#allocation2 + $0xe40] sm:$0xff]
    %v1646 = vld [vmem:[#allocation2 + $0xe48] sm:$0xff]
    %v1647 = vld [vmem:[#allocation2 + $0xe50] sm:$0xff]
    %v1648 = vld [vmem:[#allocation2 + $0xe58] sm:$0xff]
    %v1649 = vld [vmem:[#allocation2 + $0xe60] sm:$0xff]
    %v1650 = vld [vmem:[#allocation2 + $0xe68] sm:$0xff]
    %v1651 = vld [vmem:[#allocation2 + $0xe70] sm:$0xff]
    %v1652 = vld [vmem:[#allocation2 + $0xe78] sm:$0xff]
    %v1653 = vld [vmem:[#allocation2 + $0xe80] sm:$0xff]
    %v1654 = vld [vmem:[#allocation2 + $0xe88] sm:$0xff]
    %v1655 = vld [vmem:[#allocation2 + $0xe90] sm:$0xff]
    %v1656 = vld [vmem:[#allocation2 + $0xe98] sm:$0xff]
    %v1657 = vld [vmem:[#allocation2 + $0xea0] sm:$0xff]
    %v1658 = vld [vmem:[#allocation2 + $0xea8] sm:$0xff]
    %v1659 = vld [vmem:[#allocation2 + $0xeb0] sm:$0xff]
    %v1660 = vld [vmem:[#allocation2 + $0xeb8] sm:$0xff]
    %v1661 = vld [vmem:[#allocation2 + $0xec0] sm:$0xff]
    %v1662 = vld [vmem:[#allocation2 + $0xec8] sm:$0xff]
    %v1663 = vld [vmem:[#allocation2 + $0xed0] sm:$0xff]
    %v1664 = vld [vmem:[#allocation2 + $0xed8] sm:$0xff]
    %v1665 = vld [vmem:[#allocation2 + $0xee0] sm:$0xff]
    %v1666 = vld [vmem:[#allocation2 + $0xee8] sm:$0xff]
    %v1667 = vld [vmem:[#allocation2 + $0xef0] sm:$0xff]
    %v1668 = vld [vmem:[#allocation2 + $0xef8] sm:$0xff]
    %v1669 = vld [vmem:[#allocation2 + $0xf00] sm:$0xff]
    %v1670 = vld [vmem:[#allocation2 + $0xf08] sm:$0xff]
    %v1671 = vld [vmem:[#allocation2 + $0xf10] sm:$0xff]
    %v1672 = vld [vmem:[#allocation2 + $0xf18] sm:$0xff]
    %v1673 = vld [vmem:[#allocation2 + $0xf20] sm:$0xff]
    %v1674 = vld [vmem:[#allocation2 + $0xf28] sm:$0xff]
    %v1675 = vld [vmem:[#allocation2 + $0xf30] sm:$0xff]
    %v1676 = vld [vmem:[#allocation2 + $0xf38] sm:$0xff]
    %v1677 = vld [vmem:[#allocation2 + $0xf40] sm:$0xff]
    %v1678 = vld [vmem:[#allocation2 + $0xf48] sm:$0xff]
    %v1679 = vld [vmem:[#allocation2 + $0xf50] sm:$0xff]
    %v1680 = vld [vmem:[#allocation2 + $0xf58] sm:$0xff]
    %v1681 = vld [vmem:[#allocation2 + $0xf60] sm:$0xff]
    %v1682 = vld [vmem:[#allocation2 + $0xf68] sm:$0xff]
    %v1683 = vld [vmem:[#allocation2 + $0xf70] sm:$0xff]
    %v1684 = vld [vmem:[#allocation2 + $0xf78] sm:$0xff]
    %v1685 = vld [vmem:[#allocation2 + $0xf80] sm:$0xff]
    %v1686 = vld [vmem:[#allocation2 + $0xf88] sm:$0xff]
    %v1687 = vld [vmem:[#allocation2 + $0xf90] sm:$0xff]
    %v1688 = vld [vmem:[#allocation2 + $0xf98] sm:$0xff]
    %v1689 = vld [vmem:[#allocation2 + $0xfa0] sm:$0xff]
    %v1690 = vld [vmem:[#allocation2 + $0xfa8] sm:$0xff]
    %v1691 = vld [vmem:[#allocation2 + $0xfb0] sm:$0xff]
    %v1692 = vld [vmem:[#allocation2 + $0xfb8] sm:$0xff]
    %v1693 = vld [vmem:[#allocation2 + $0xfc0] sm:$0xff]
    %v1694 = vld [vmem:[#allocation2 + $0xfc8] sm:$0xff]
    %v1695 = vld [vmem:[#allocation2 + $0xfd0] sm:$0xff]
    %v1696 = vld [vmem:[#allocation2 + $0xfd8] sm:$0xff]
    %v1697 = vld [vmem:[#allocation2 + $0xfe0] sm:$0xff]
    %v1698 = vld [vmem:[#allocation2 + $0xfe8] sm:$0xff]
    %v1699 = vld [vmem:[#allocation2 + $0xff0] sm:$0xff]
    %v1700 = vld [vmem:[#allocation2 + $0xff8] sm:$0xff]
    %v1701 = vld [vmem:[#allocation2 + $0x1000] sm:$0xff]
    %v1702 = vld [vmem:[#allocation2 + $0x1008] sm:$0xff]
    %v1703 = vld [vmem:[#allocation2 + $0x1010] sm:$0xff]
    %v1704 = vld [vmem:[#allocation2 + $0x1018] sm:$0xff]
    %v1705 = vld [vmem:[#allocation2 + $0x1020] sm:$0xff]
    %v1706 = vld [vmem:[#allocation2 + $0x1028] sm:$0xff]
    %v1707 = vld [vmem:[#allocation2 + $0x1030] sm:$0xff]
    %v1708 = vld [vmem:[#allocation2 + $0x1038] sm:$0xff]
    %v1709 = vld [vmem:[#allocation2 + $0x1040] sm:$0xff]
    %v1710 = vld [vmem:[#allocation2 + $0x1048] sm:$0xff]
    %v1711 = vld [vmem:[#allocation2 + $0x1050] sm:$0xff]
    %v1712 = vld [vmem:[#allocation2 + $0x1058] sm:$0xff]
    %v1713 = vld [vmem:[#allocation2 + $0x1060] sm:$0xff]
    %v1714 = vld [vmem:[#allocation2 + $0x1068] sm:$0xff]
    %v1715 = vld [vmem:[#allocation2 + $0x1070] sm:$0xff]
    %v1716 = vld [vmem:[#allocation2 + $0x1078] sm:$0xff]
    %v1717 = vld [vmem:[#allocation2 + $0x1080] sm:$0xff]
    %v1718 = vld [vmem:[#allocation2 + $0x1088] sm:$0xff]
    %v1719 = vld [vmem:[#allocation2 + $0x1090] sm:$0xff]
    %v1720 = vld [vmem:[#allocation2 + $0x1098] sm:$0xff]
    %v1721 = vld [vmem:[#allocation2 + $0x10a0] sm:$0xff]
    %v1722 = vld [vmem:[#allocation2 + $0x10a8] sm:$0xff]
    %v1723 = vld [vmem:[#allocation2 + $0x10b0] sm:$0xff]
    %v1724 = vld [vmem:[#allocation2 + $0x10b8] sm:$0xff]
    %v1725 = vld [vmem:[#allocation2 + $0x10c0] sm:$0xff]
    %v1726 = vld [vmem:[#allocation2 + $0x10c8] sm:$0xff]
    %v1727 = vld [vmem:[#allocation2 + $0x10d0] sm:$0xff]
    %v1728 = vld [vmem:[#allocation2 + $0x10d8] sm:$0xff]
    %v1729 = vld [vmem:[#allocation2 + $0x10e0] sm:$0xff]
    %v1730 = vld [vmem:[#allocation2 + $0x10e8] sm:$0xff]
    %v1731 = vld [vmem:[#allocation2 + $0x10f0] sm:$0xff]
    %v1732 = vld [vmem:[#allocation2 + $0x10f8] sm:$0xff]
    %v1733 = vld [vmem:[#allocation2 + $0x1100] sm:$0xff]
    %v1734 = vld [vmem:[#allocation2 + $0x1108] sm:$0xff]
    %v1735 = vld [vmem:[#allocation2 + $0x1110] sm:$0xff]
    %v1736 = vld [vmem:[#allocation2 + $0x1118] sm:$0xff]
    %v1737 = vld [vmem:[#allocation2 + $0x1120] sm:$0xff]
    %v1738 = vld [vmem:[#allocation2 + $0x1128] sm:$0xff]
    %v1739 = vld [vmem:[#allocation2 + $0x1130] sm:$0xff]
    %v1740 = vld [vmem:[#allocation2 + $0x1138] sm:$0xff]
    %v1741 = vld [vmem:[#allocation2 + $0x1140] sm:$0xff]
    %v1742 = vld [vmem:[#allocation2 + $0x1148] sm:$0xff]
    %v1743 = vld [vmem:[#allocation2 + $0x1150] sm:$0xff]
    %v1744 = vld [vmem:[#allocation2 + $0x1158] sm:$0xff]
    %v1745 = vld [vmem:[#allocation2 + $0x1160] sm:$0xff]
    %v1746 = vld [vmem:[#allocation2 + $0x1168] sm:$0xff]
    %v1747 = vld [vmem:[#allocation2 + $0x1170] sm:$0xff]
    %v1748 = vld [vmem:[#allocation2 + $0x1178] sm:$0xff]
    %v1749 = vld [vmem:[#allocation2 + $0x1180] sm:$0xff]
    %v1750 = vld [vmem:[#allocation2 + $0x1188] sm:$0xff]
    %v1751 = vld [vmem:[#allocation2 + $0x1190] sm:$0xff]
    %v1752 = vld [vmem:[#allocation2 + $0x1198] sm:$0xff]
    %v1753 = vld [vmem:[#allocation2 + $0x11a0] sm:$0xff]
    %v1754 = vld [vmem:[#allocation2 + $0x11a8] sm:$0xff]
    %v1755 = vld [vmem:[#allocation2 + $0x11b0] sm:$0xff]
    %v1756 = vld [vmem:[#allocation2 + $0x11b8] sm:$0xff]
    %v1757 = vld [vmem:[#allocation2 + $0x11c0] sm:$0xff]
    %v1758 = vld [vmem:[#allocation2 + $0x11c8] sm:$0xff]
    %v1759 = vld [vmem:[#allocation2 + $0x11d0] sm:$0xff]
    %v1760 = vld [vmem:[#allocation2 + $0x11d8] sm:$0xff]
    %v1761 = vld [vmem:[#allocation2 + $0x11e0] sm:$0xff]
    %v1762 = vld [vmem:[#allocation2 + $0x11e8] sm:$0xff]
    %v1763 = vld [vmem:[#allocation2 + $0x11f0] sm:$0xff]
    %v1764 = vld [vmem:[#allocation2 + $0x11f8] sm:$0xff]
    %v1765 = vld [vmem:[%s1] sm:$0xff]
    %v1766 = vld [vmem:[%s1 + $0x8] sm:$0xff]
    %v1767 = vld [vmem:[%s1 + $0x10] sm:$0xff]
    %v1768 = vld [vmem:[%s1 + $0x18] sm:$0xff]
    %v1769 = vld [vmem:[%s1 + $0x20] sm:$0xff]
    %v1770 = vld [vmem:[%s1 + $0x28] sm:$0xff]
    %v1771 = vld [vmem:[%s1 + $0x30] sm:$0xff]
    %v1772 = vld [vmem:[%s1 + $0x38] sm:$0xff]
    %v1773 = vld [vmem:[%s1 + $0x40] sm:$0xff]
    %v1774 = vld [vmem:[%s1 + $0x48] sm:$0xff]
    %v1775 = vld [vmem:[%s1 + $0x50] sm:$0xff]
    %v1776 = vld [vmem:[%s1 + $0x58] sm:$0xff]
    %v1777 = vld [vmem:[%s1 + $0x60] sm:$0xff]
    %v1778 = vld [vmem:[%s1 + $0x68] sm:$0xff]
    %v1779 = vld [vmem:[%s1 + $0x70] sm:$0xff]
    %v1780 = vld [vmem:[%s1 + $0x78] sm:$0xff]
    %v1781 = vld [vmem:[%s1 + $0x80] sm:$0xff]
    %v1782 = vld [vmem:[%s1 + $0x88] sm:$0xff]
    %v1783 = vld [vmem:[%s1 + $0x90] sm:$0xff]
    %v1784 = vld [vmem:[%s1 + $0x98] sm:$0xff]
    %v1785 = vld [vmem:[%s1 + $0xa0] sm:$0xff]
    %v1786 = vld [vmem:[%s1 + $0xa8] sm:$0xff]
    %v1787 = vld [vmem:[%s1 + $0xb0] sm:$0xff]
    %v1788 = vld [vmem:[%s1 + $0xb8] sm:$0xff]
    %v1789 = vld [vmem:[%s1 + $0xc0] sm:$0xff]
    %v1790 = vld [vmem:[%s1 + $0xc8] sm:$0xff]
    %v1791 = vld [vmem:[%s1 + $0xd0] sm:$0xff]
    %v1792 = vld [vmem:[%s1 + $0xd8] sm:$0xff]
    %v1793 = vld [vmem:[%s1 + $0xe0] sm:$0xff]
    %v1794 = vld [vmem:[%s1 + $0xe8] sm:$0xff]
    %v1795 = vld [vmem:[%s1 + $0xf0] sm:$0xff]
    %v1796 = vld [vmem:[%s1 + $0xf8] sm:$0xff]
    %v1797 = vld [vmem:[%s1 + $0x100] sm:$0xff]
    %v1798 = vld [vmem:[%s1 + $0x108] sm:$0xff]
    %v1799 = vld [vmem:[%s1 + $0x110] sm:$0xff]
    %v1800 = vld [vmem:[%s1 + $0x118] sm:$0xff]
    %v1801 = vld [vmem:[%s1 + $0x120] sm:$0xff]
    %v1802 = vld [vmem:[%s1 + $0x128] sm:$0xff]
    %v1803 = vld [vmem:[%s1 + $0x130] sm:$0xff]
    %v1804 = vld [vmem:[%s1 + $0x138] sm:$0xff]
    %v1805 = vld [vmem:[%s1 + $0x140] sm:$0xff]
    %v1806 = vld [vmem:[%s1 + $0x148] sm:$0xff]
    %v1807 = vld [vmem:[%s1 + $0x150] sm:$0xff]
    %v1808 = vld [vmem:[%s1 + $0x158] sm:$0xff]
    %v1809 = vld [vmem:[%s1 + $0x160] sm:$0xff]
    %v1810 = vld [vmem:[%s1 + $0x168] sm:$0xff]
    %v1811 = vld [vmem:[%s1 + $0x170] sm:$0xff]
    %v1812 = vld [vmem:[%s1 + $0x178] sm:$0xff]
    %v1813 = vld [vmem:[%s1 + $0x180] sm:$0xff]
    %v1814 = vld [vmem:[%s1 + $0x188] sm:$0xff]
    %v1815 = vld [vmem:[%s1 + $0x190] sm:$0xff]
    %v1816 = vld [vmem:[%s1 + $0x198] sm:$0xff]
    %v1817 = vld [vmem:[%s1 + $0x1a0] sm:$0xff]
    %v1818 = vld [vmem:[%s1 + $0x1a8] sm:$0xff]
    %v1819 = vld [vmem:[%s1 + $0x1b0] sm:$0xff]
    %v1820 = vld [vmem:[%s1 + $0x1b8] sm:$0xff]
    %v1821 = vld [vmem:[%s1 + $0x1c0] sm:$0xff]
    %v1822 = vld [vmem:[%s1 + $0x1c8] sm:$0xff]
    %v1823 = vld [vmem:[%s1 + $0x1d0] sm:$0xff]
    %v1824 = vld [vmem:[%s1 + $0x1d8] sm:$0xff]
    %v1825 = vld [vmem:[%s1 + $0x1e0] sm:$0xff]
    %v1826 = vld [vmem:[%s1 + $0x1e8] sm:$0xff]
    %v1827 = vld [vmem:[%s1 + $0x1f0] sm:$0xff]
    %v1828 = vld [vmem:[%s1 + $0x1f8] sm:$0xff]
    %v1829 = vld [vmem:[%s1 + $0x200] sm:$0xff]
    %v1830 = vld [vmem:[%s1 + $0x208] sm:$0xff]
    %v1831 = vld [vmem:[%s1 + $0x210] sm:$0xff]
    %v1832 = vld [vmem:[%s1 + $0x218] sm:$0xff]
    %v1833 = vld [vmem:[%s1 + $0x220] sm:$0xff]
    %v1834 = vld [vmem:[%s1 + $0x228] sm:$0xff]
    %v1835 = vld [vmem:[%s1 + $0x230] sm:$0xff]
    %v1836 = vld [vmem:[%s1 + $0x238] sm:$0xff]
    %v1837 = vld [vmem:[%s1 + $0x240] sm:$0xff]
    %v1838 = vld [vmem:[%s1 + $0x248] sm:$0xff]
    %v1839 = vld [vmem:[%s1 + $0x250] sm:$0xff]
    %v1840 = vld [vmem:[%s1 + $0x258] sm:$0xff]
    %v1841 = vld [vmem:[%s1 + $0x260] sm:$0xff]
    %v1842 = vld [vmem:[%s1 + $0x268] sm:$0xff]
    %v1843 = vld [vmem:[%s1 + $0x270] sm:$0xff]
    %v1844 = vld [vmem:[%s1 + $0x278] sm:$0xff]
    %v1845 = vld [vmem:[%s1 + $0x280] sm:$0xff]
    %v1846 = vld [vmem:[%s1 + $0x288] sm:$0xff]
    %v1847 = vld [vmem:[%s1 + $0x290] sm:$0xff]
    %v1848 = vld [vmem:[%s1 + $0x298] sm:$0xff]
    %v1849 = vld [vmem:[%s1 + $0x2a0] sm:$0xff]
    %v1850 = vld [vmem:[%s1 + $0x2a8] sm:$0xff]
    %v1851 = vld [vmem:[%s1 + $0x2b0] sm:$0xff]
    %v1852 = vld [vmem:[%s1 + $0x2b8] sm:$0xff]
    %v1853 = vld [vmem:[%s1 + $0x2c0] sm:$0xff]
    %v1854 = vld [vmem:[%s1 + $0x2c8] sm:$0xff]
    %v1855 = vld [vmem:[%s1 + $0x2d0] sm:$0xff]
    %v1856 = vld [vmem:[%s1 + $0x2d8] sm:$0xff]
    %v1857 = vld [vmem:[%s1 + $0x2e0] sm:$0xff]
    %v1858 = vld [vmem:[%s1 + $0x2e8] sm:$0xff]
    %v1859 = vld [vmem:[%s1 + $0x2f0] sm:$0xff]
    %v1860 = vld [vmem:[%s1 + $0x2f8] sm:$0xff]
    %v1861 = vld [vmem:[%s1 + $0x300] sm:$0xff]
    %v1862 = vld [vmem:[%s1 + $0x308] sm:$0xff]
    %v1863 = vld [vmem:[%s1 + $0x310] sm:$0xff]
    %v1864 = vld [vmem:[%s1 + $0x318] sm:$0xff]
    %v1865 = vld [vmem:[%s1 + $0x320] sm:$0xff]
    %v1866 = vld [vmem:[%s1 + $0x328] sm:$0xff]
    %v1867 = vld [vmem:[%s1 + $0x330] sm:$0xff]
    %v1868 = vld [vmem:[%s1 + $0x338] sm:$0xff]
    %v1869 = vld [vmem:[%s1 + $0x340] sm:$0xff]
    %v1870 = vld [vmem:[%s1 + $0x348] sm:$0xff]
    %v1871 = vld [vmem:[%s1 + $0x350] sm:$0xff]
    %v1872 = vld [vmem:[%s1 + $0x358] sm:$0xff]
    %v1873 = vld [vmem:[%s1 + $0x360] sm:$0xff]
    %v1874 = vld [vmem:[%s1 + $0x368] sm:$0xff]
    %v1875 = vld [vmem:[%s1 + $0x370] sm:$0xff]
    %v1876 = vld [vmem:[%s1 + $0x378] sm:$0xff]
    %v1877 = vld [vmem:[%s1 + $0x380] sm:$0xff]
    %v1878 = vld [vmem:[%s1 + $0x388] sm:$0xff]
    %v1879 = vld [vmem:[%s1 + $0x390] sm:$0xff]
    %v1880 = vld [vmem:[%s1 + $0x398] sm:$0xff]
    %v1881 = vld [vmem:[%s1 + $0x3a0] sm:$0xff]
    %v1882 = vld [vmem:[%s1 + $0x3a8] sm:$0xff]
    %v1883 = vld [vmem:[%s1 + $0x3b0] sm:$0xff]
    %v1884 = vld [vmem:[%s1 + $0x3b8] sm:$0xff]
    %v1885 = vld [vmem:[%s1 + $0x3c0] sm:$0xff]
    %v1886 = vld [vmem:[%s1 + $0x3c8] sm:$0xff]
    %v1887 = vld [vmem:[%s1 + $0x3d0] sm:$0xff]
    %v1888 = vld [vmem:[%s1 + $0x3d8] sm:$0xff]
    %v1889 = vld [vmem:[%s1 + $0x3e0] sm:$0xff]
    %v1890 = vld [vmem:[%s1 + $0x3e8] sm:$0xff]
    %v1891 = vld [vmem:[%s1 + $0x3f0] sm:$0xff]
    %v1892 = vld [vmem:[%s1 + $0x3f8] sm:$0xff]
    %v1893 = vld [vmem:[%s1 + $0x400] sm:$0xff]
    %v1894 = vld [vmem:[%s1 + $0x408] sm:$0xff]
    %v1895 = vld [vmem:[%s1 + $0x410] sm:$0xff]
    %v1896 = vld [vmem:[%s1 + $0x418] sm:$0xff]
    %v1897 = vld [vmem:[%s1 + $0x420] sm:$0xff]
    %v1898 = vld [vmem:[%s1 + $0x428] sm:$0xff]
    %v1899 = vld [vmem:[%s1 + $0x430] sm:$0xff]
    %v1900 = vld [vmem:[%s1 + $0x438] sm:$0xff]
    %v1901 = vld [vmem:[%s1 + $0x440] sm:$0xff]
    %v1902 = vld [vmem:[%s1 + $0x448] sm:$0xff]
    %v1903 = vld [vmem:[%s1 + $0x450] sm:$0xff]
    %v1904 = vld [vmem:[%s1 + $0x458] sm:$0xff]
    %v1905 = vld [vmem:[%s1 + $0x460] sm:$0xff]
    %v1906 = vld [vmem:[%s1 + $0x468] sm:$0xff]
    %v1907 = vld [vmem:[%s1 + $0x470] sm:$0xff]
    %v1908 = vld [vmem:[%s1 + $0x478] sm:$0xff]
    %v1909 = vld [vmem:[%s2] sm:$0x1]
    %v1911 = vlaneseq
    %v1912 = vshrl.u32 %v1911, 7
    %v1913 = vsub.s32 0, %v1912
    %v1914 = vrot.slane %v1909, %v1913
    %1916 = vmatprep.subr.mxu0 0.0
    %1917 = vmatpush1.msra.mxu0 %v1780
    %1918 = vmatprep.subr.mxu0 0.0
    %1919 = vmatpush1.msra.mxu0 %v1779
    %1920 = vmatprep.subr.mxu0 0.0
    %1921 = vmatpush1.msra.mxu0 %v1778
    %1922 = vmatprep.subr.mxu0 0.0
    %1923 = vmatpush1.msra.mxu0 %v1777
    %1924 = vmatprep.subr.mxu0 0.0
    %1925 = vmatpush1.msra.mxu0 %v1776
    %1926 = vmatprep.subr.mxu0 0.0
    %1927 = vmatpush1.msra.mxu0 %v1775
    %1928 = vmatprep.subr.mxu0 0.0
    %1929 = vmatpush1.msra.mxu0 %v1774
    %1930 = vmatprep.subr.mxu0 0.0
    %1931 = vmatpush1.msra.mxu0 %v1773
    %1932 = vmatprep.subr.mxu0 0.0
    %1933 = vmatpush1.msra.mxu0 %v1772
    %1934 = vmatprep.subr.mxu0 0.0
    %1935 = vmatpush1.msra.mxu0 %v1771
    %1936 = vmatprep.subr.mxu0 0.0
    %1937 = vmatpush1.msra.mxu0 %v1770
    %1938 = vmatprep.subr.mxu0 0.0
    %1939 = vmatpush1.msra.mxu0 %v1769
    %1940 = vmatprep.subr.mxu0 0.0
    %1941 = vmatpush1.msra.mxu0 %v1768
    %1942 = vmatprep.subr.mxu0 0.0
    %1943 = vmatpush1.msra.mxu0 %v1767
    %1944 = vmatprep.subr.mxu0 0.0
    %1945 = vmatpush1.msra.mxu0 %v1766
    %1946 = vmatprep.subr.mxu0 0.0
    %1947 = vmatpush1.msra.mxu0 %v1765
    %1948 = vmatprep.subr.mxu0 0.0
    %1949 = vmatpush2.msra.mxu0 %v1796
    %1950 = vmatprep.subr.mxu0 0.0
    %1951 = vmatpush2.msra.mxu0 %v1795
    %1952 = vmatprep.subr.mxu0 0.0
    %1953 = vmatpush2.msra.mxu0 %v1794
    %1954 = vmatprep.subr.mxu0 0.0
    %1955 = vmatpush2.msra.mxu0 %v1793
    %1956 = vmatprep.subr.mxu0 0.0
    %1957 = vmatpush2.msra.mxu0 %v1792
    %1958 = vmatprep.subr.mxu0 0.0
    %1959 = vmatpush2.msra.mxu0 %v1791
    %1960 = vmatprep.subr.mxu0 0.0
    %1961 = vmatpush2.msra.mxu0 %v1790
    %1962 = vmatprep.subr.mxu0 0.0
    %1963 = vmatpush2.msra.mxu0 %v1789
    %1964 = vmatprep.subr.mxu0 0.0
    %1965 = vmatpush2.msra.mxu0 %v1788
    %1966 = vmatprep.subr.mxu0 0.0
    %1967 = vmatpush2.msra.mxu0 %v1787
    %1968 = vmatprep.subr.mxu0 0.0
    %1969 = vmatpush2.msra.mxu0 %v1786
    %1970 = vmatprep.subr.mxu0 0.0
    %1971 = vmatpush2.msra.mxu0 %v1785
    %1972 = vmatprep.subr.mxu0 0.0
    %1973 = vmatpush2.msra.mxu0 %v1784
    %1974 = vmatprep.subr.mxu0 0.0
    %1975 = vmatpush2.msra.mxu0 %v1783
    %1976 = vmatprep.subr.mxu0 0.0
    %1977 = vmatpush2.msra.mxu0 %v1782
    %1978 = vmatprep.subr.mxu0 0.0
    %1979 = vmatpush2.msra.mxu0 %v1781
    %1980 = vmatprep.mubr.f32.mxu0 %v1190
    %1981 = vmatmul.mubr.f32.gmra.mxu0 %v1189
    %v1982 = vpop.f32.mrf.mxu0
    %v1983 = vadd.f32 %v1914, %v1982
    %v1984 = vpop.f32.mrf.mxu0
    %1985 = vmatprep.mubr.f32.mxu0 %v1199
    %1986 = vmatmul.mubr.f32.gmra.mxu0 %v1198
    %v1987 = vpop.f32.mrf.mxu0
    %v1988 = vadd.f32 %v1914, %v1987
    %v1989 = vpop.f32.mrf.mxu0
    %1990 = vmatprep.mubr.f32.mxu0 %v1208
    %1991 = vmatmul.mubr.f32.gmra.mxu0 %v1207
    %v1992 = vpop.f32.mrf.mxu0
    %v1993 = vadd.f32 %v1914, %v1992
    %v1994 = vpop.f32.mrf.mxu0
    %1995 = vmatprep.mubr.f32.mxu0 %v1217
    %1996 = vmatmul.mubr.f32.gmra.mxu0 %v1216
    %v1997 = vpop.f32.mrf.mxu0
    %v1998 = vadd.f32 %v1914, %v1997
    %v1999 = vpop.f32.mrf.mxu0
    %2000 = vmatprep.mubr.f32.mxu0 %v1226
    %2001 = vmatmul.mubr.f32.gmra.mxu0 %v1225
    %v2002 = vpop.f32.mrf.mxu0
    %v2003 = vadd.f32 %v1914, %v2002
    %v2004 = vpop.f32.mrf.mxu0
    %2005 = vmatprep.mubr.f32.mxu0 %v1235
    %2006 = vmatmul.mubr.f32.gmra.mxu0 %v1234
    %v2007 = vpop.f32.mrf.mxu0
    %v2008 = vadd.f32 %v1914, %v2007
    %v2009 = vpop.f32.mrf.mxu0
    %2010 = vmatprep.mubr.f32.mxu0 %v1244
    %2011 = vmatmul.mubr.f32.gmra.mxu0 %v1243
    %v2012 = vpop.f32.mrf.mxu0
    %v2013 = vadd.f32 %v1914, %v2012
    %v2014 = vpop.f32.mrf.mxu0
    %2015 = vmatprep.mubr.f32.mxu0 %v1253
    %2016 = vmatmul.mubr.f32.gmra.mxu0 %v1252
    %v2017 = vpop.f32.mrf.mxu0
    %v2018 = vadd.f32 %v1914, %v2017
    %v2019 = vpop.f32.mrf.mxu0
    %2020 = vmatprep.mubr.f32.mxu0 %v1262
    %2021 = vmatmul.mubr.f32.gmra.mxu0 %v1261
    %v2022 = vpop.f32.mrf.mxu0
    %v2023 = vadd.f32 %v1914, %v2022
    %v2024 = vpop.f32.mrf.mxu0
    %2025 = vmatprep.mubr.f32.mxu0 %v1271
    %2026 = vmatmul.mubr.f32.gmra.mxu0 %v1270
    %v2027 = vpop.f32.mrf.mxu0
    %v2028 = vadd.f32 %v1914, %v2027
    %v2029 = vpop.f32.mrf.mxu0
    %2030 = vmatprep.mubr.f32.mxu0 %v1280
    %2031 = vmatmul.mubr.f32.gmra.mxu0 %v1279
    %v2032 = vpop.f32.mrf.mxu0
    %v2033 = vadd.f32 %v1914, %v2032
    %v2034 = vpop.f32.mrf.mxu0
    %2035 = vmatprep.mubr.f32.mxu0 %v1289
    %2036 = vmatmul.mubr.f32.gmra.mxu0 %v1288
    %v2037 = vpop.f32.mrf.mxu0
    %v2038 = vadd.f32 %v1914, %v2037
    %v2039 = vpop.f32.mrf.mxu0
    %2040 = vmatprep.mubr.f32.mxu0 %v1298
    %2041 = vmatmul.mubr.f32.gmra.mxu0 %v1297
    %v2042 = vpop.f32.mrf.mxu0
    %v2043 = vadd.f32 %v1914, %v2042
    %v2044 = vpop.f32.mrf.mxu0
    %2045 = vmatprep.mubr.f32.mxu0 %v1307
    %2046 = vmatmul.mubr.f32.gmra.mxu0 %v1306
    %v2047 = vpop.f32.mrf.mxu0
    %v2048 = vadd.f32 %v1914, %v2047
    %v2049 = vpop.f32.mrf.mxu0
    %2050 = vmatprep.mubr.f32.mxu0 %v1316
    %2051 = vmatmul.mubr.f32.gmra.mxu0 %v1315
    %v2052 = vpop.f32.mrf.mxu0
    %v2053 = vadd.f32 %v1914, %v2052
    %v2054 = vpop.f32.mrf.mxu0
    %2055 = vmatprep.mubr.f32.mxu0 %v1325
    %2056 = vmatmul.mubr.f32.gmra.mxu0 %v1324
    %v2057 = vpop.f32.mrf.mxu0
    %v2058 = vadd.f32 %v1914, %v2057
    %v2059 = vpop.f32.mrf.mxu0
    %2060 = vmatprep.mubr.f32.mxu0 %v1334
    %2061 = vmatmul.mubr.f32.gmra.mxu0 %v1333
    %v2062 = vpop.f32.mrf.mxu0
    %v2063 = vadd.f32 %v1914, %v2062
    %v2064 = vpop.f32.mrf.mxu0
    %2065 = vmatprep.mubr.f32.mxu0 %v1343
    %2066 = vmatmul.mubr.f32.gmra.mxu0 %v1342
    %v2067 = vpop.f32.mrf.mxu0
    %v2068 = vadd.f32 %v1914, %v2067
    %v2069 = vpop.f32.mrf.mxu0
    %2070 = vmatprep.mubr.f32.mxu0 %v1352
    %2071 = vmatmul.mubr.f32.gmra.mxu0 %v1351
    %v2072 = vpop.f32.mrf.mxu0
    %v2073 = vadd.f32 %v1914, %v2072
    %v2074 = vpop.f32.mrf.mxu0
    %2075 = vmatprep.mubr.f32.mxu0 %v1361
    %2076 = vmatmul.mubr.f32.gmra.mxu0 %v1360
    %v2077 = vpop.f32.mrf.mxu0
    %v2078 = vadd.f32 %v1914, %v2077
    %v2079 = vpop.f32.mrf.mxu0
    %2080 = vmatprep.mubr.f32.mxu0 %v1370
    %2081 = vmatmul.mubr.f32.gmra.mxu0 %v1369
    %v2082 = vpop.f32.mrf.mxu0
    %v2083 = vadd.f32 %v1914, %v2082
    %v2084 = vpop.f32.mrf.mxu0
    %2085 = vmatprep.mubr.f32.mxu0 %v1379
    %2086 = vmatmul.mubr.f32.gmra.mxu0 %v1378
    %v2087 = vpop.f32.mrf.mxu0
    %v2088 = vadd.f32 %v1914, %v2087
    %v2089 = vpop.f32.mrf.mxu0
    %2090 = vmatprep.mubr.f32.mxu0 %v1388
    %2091 = vmatmul.mubr.f32.gmra.mxu0 %v1387
    %v2092 = vpop.f32.mrf.mxu0
    %v2093 = vadd.f32 %v1914, %v2092
    %v2094 = vpop.f32.mrf.mxu0
    %2095 = vmatprep.mubr.f32.mxu0 %v1397
    %2096 = vmatmul.mubr.f32.gmra.mxu0 %v1396
    %v2097 = vpop.f32.mrf.mxu0
    %v2098 = vadd.f32 %v1914, %v2097
    %v2099 = vpop.f32.mrf.mxu0
    %2100 = vmatprep.mubr.f32.mxu0 %v1406
    %2101 = vmatmul.mubr.f32.gmra.mxu0 %v1405
    %v2102 = vpop.f32.mrf.mxu0
    %v2103 = vadd.f32 %v1914, %v2102
    %v2104 = vpop.f32.mrf.mxu0
    %2105 = vmatprep.mubr.f32.mxu0 %v1415
    %2106 = vmatmul.mubr.f32.gmra.mxu0 %v1414
    %v2107 = vpop.f32.mrf.mxu0
    %v2108 = vadd.f32 %v1914, %v2107
    %v2109 = vpop.f32.mrf.mxu0
    %2110 = vmatprep.mubr.f32.mxu0 %v1424
    %2111 = vmatmul.mubr.f32.gmra.mxu0 %v1423
    %v2112 = vpop.f32.mrf.mxu0
    %v2113 = vadd.f32 %v1914, %v2112
    %v2114 = vpop.f32.mrf.mxu0
    %2115 = vmatprep.mubr.f32.mxu0 %v1433
    %2116 = vmatmul.mubr.f32.gmra.mxu0 %v1432
    %v2117 = vpop.f32.mrf.mxu0
    %v2118 = vadd.f32 %v1914, %v2117
    %v2119 = vpop.f32.mrf.mxu0
    %2120 = vmatprep.mubr.f32.mxu0 %v1442
    %2121 = vmatmul.mubr.f32.gmra.mxu0 %v1441
    %v2122 = vpop.f32.mrf.mxu0
    %v2123 = vadd.f32 %v1914, %v2122
    %v2124 = vpop.f32.mrf.mxu0
    %2125 = vmatprep.mubr.f32.mxu0 %v1451
    %2126 = vmatmul.mubr.f32.gmra.mxu0 %v1450
    %v2127 = vpop.f32.mrf.mxu0
    %v2128 = vadd.f32 %v1914, %v2127
    %v2129 = vpop.f32.mrf.mxu0
    %2130 = vmatprep.mubr.f32.mxu0 %v1460
    %2131 = vmatmul.mubr.f32.gmra.mxu0 %v1459
    %v2132 = vpop.f32.mrf.mxu0
    %v2133 = vadd.f32 %v1914, %v2132
    %v2134 = vpop.f32.mrf.mxu0
    %2135 = vmatprep.mubr.f32.mxu0 %v1469
    %2136 = vmatmul.mubr.f32.gmra.mxu0 %v1468
    %v2137 = vpop.f32.mrf.mxu0
    %v2138 = vadd.f32 %v1914, %v2137
    %v2139 = vpop.f32.mrf.mxu0
    %2140 = vmatprep.mubr.f32.mxu0 %v1478
    %2141 = vmatmul.mubr.f32.gmra.mxu0 %v1477
    %v2142 = vpop.f32.mrf.mxu0
    %v2143 = vadd.f32 %v1914, %v2142
    %v2144 = vpop.f32.mrf.mxu0
    %2145 = vmatprep.mubr.f32.mxu0 %v1487
    %2146 = vmatmul.mubr.f32.gmra.mxu0 %v1486
    %v2147 = vpop.f32.mrf.mxu0
    %v2148 = vadd.f32 %v1914, %v2147
    %v2149 = vpop.f32.mrf.mxu0
    %2150 = vmatprep.mubr.f32.mxu0 %v1496
    %2151 = vmatmul.mubr.f32.gmra.mxu0 %v1495
    %v2152 = vpop.f32.mrf.mxu0
    %v2153 = vadd.f32 %v1914, %v2152
    %v2154 = vpop.f32.mrf.mxu0
    %2155 = vmatprep.mubr.f32.mxu0 %v1505
    %2156 = vmatmul.mubr.f32.gmra.mxu0 %v1504
    %v2157 = vpop.f32.mrf.mxu0
    %v2158 = vadd.f32 %v1914, %v2157
    %v2159 = vpop.f32.mrf.mxu0
    %2160 = vmatprep.mubr.f32.mxu0 %v1514
    %2161 = vmatmul.mubr.f32.gmra.mxu0 %v1513
    %v2162 = vpop.f32.mrf.mxu0
    %v2163 = vadd.f32 %v1914, %v2162
    %v2164 = vpop.f32.mrf.mxu0
    %2165 = vmatprep.mubr.f32.mxu0 %v1523
    %2166 = vmatmul.mubr.f32.gmra.mxu0 %v1522
    %v2167 = vpop.f32.mrf.mxu0
    %v2168 = vadd.f32 %v1914, %v2167
    %v2169 = vpop.f32.mrf.mxu0
    %2170 = vmatprep.mubr.f32.mxu0 %v1532
    %2171 = vmatmul.mubr.f32.gmra.mxu0 %v1531
    %v2172 = vpop.f32.mrf.mxu0
    %v2173 = vadd.f32 %v1914, %v2172
    %v2174 = vpop.f32.mrf.mxu0
    %2175 = vmatprep.mubr.f32.mxu0 %v1541
    %2176 = vmatmul.mubr.f32.gmra.mxu0 %v1540
    %v2177 = vpop.f32.mrf.mxu0
    %v2178 = vadd.f32 %v1914, %v2177
    %v2179 = vpop.f32.mrf.mxu0
    %2180 = vmatprep.mubr.f32.mxu0 %v1550
    %2181 = vmatmul.mubr.f32.gmra.mxu0 %v1549
    %v2182 = vpop.f32.mrf.mxu0
    %v2183 = vadd.f32 %v1914, %v2182
    %v2184 = vpop.f32.mrf.mxu0
    %2185 = vmatprep.mubr.f32.mxu0 %v1559
    %2186 = vmatmul.mubr.f32.gmra.mxu0 %v1558
    %v2187 = vpop.f32.mrf.mxu0
    %v2188 = vadd.f32 %v1914, %v2187
    %v2189 = vpop.f32.mrf.mxu0
    %2190 = vmatprep.mubr.f32.mxu0 %v1568
    %2191 = vmatmul.mubr.f32.gmra.mxu0 %v1567
    %v2192 = vpop.f32.mrf.mxu0
    %v2193 = vadd.f32 %v1914, %v2192
    %v2194 = vpop.f32.mrf.mxu0
    %2195 = vmatprep.mubr.f32.mxu0 %v1577
    %2196 = vmatmul.mubr.f32.gmra.mxu0 %v1576
    %v2197 = vpop.f32.mrf.mxu0
    %v2198 = vadd.f32 %v1914, %v2197
    %v2199 = vpop.f32.mrf.mxu0
    %2200 = vmatprep.mubr.f32.mxu0 %v1586
    %2201 = vmatmul.mubr.f32.gmra.mxu0 %v1585
    %v2202 = vpop.f32.mrf.mxu0
    %v2203 = vadd.f32 %v1914, %v2202
    %v2204 = vpop.f32.mrf.mxu0
    %2205 = vmatprep.mubr.f32.mxu0 %v1595
    %2206 = vmatmul.mubr.f32.gmra.mxu0 %v1594
    %v2207 = vpop.f32.mrf.mxu0
    %v2208 = vadd.f32 %v1914, %v2207
    %v2209 = vpop.f32.mrf.mxu0
    %2210 = vmatprep.mubr.f32.mxu0 %v1604
    %2211 = vmatmul.mubr.f32.gmra.mxu0 %v1603
    %v2212 = vpop.f32.mrf.mxu0
    %v2213 = vadd.f32 %v1914, %v2212
    %v2214 = vpop.f32.mrf.mxu0
    %2215 = vmatprep.mubr.f32.mxu0 %v1613
    %2216 = vmatmul.mubr.f32.gmra.mxu0 %v1612
    %v2217 = vpop.f32.mrf.mxu0
    %v2218 = vadd.f32 %v1914, %v2217
    %v2219 = vpop.f32.mrf.mxu0
    %2220 = vmatprep.mubr.f32.mxu0 %v1622
    %2221 = vmatmul.mubr.f32.gmra.mxu0 %v1621
    %v2222 = vpop.f32.mrf.mxu0
    %v2223 = vadd.f32 %v1914, %v2222
    %v2224 = vpop.f32.mrf.mxu0
    %2225 = vmatprep.mubr.f32.mxu0 %v1631
    %2226 = vmatmul.mubr.f32.gmra.mxu0 %v1630
    %v2227 = vpop.f32.mrf.mxu0
    %v2228 = vadd.f32 %v1914, %v2227
    %v2229 = vpop.f32.mrf.mxu0
    %2230 = vmatprep.mubr.f32.mxu0 %v1640
    %2231 = vmatmul.mubr.f32.gmra.mxu0 %v1639
    %v2232 = vpop.f32.mrf.mxu0
    %v2233 = vadd.f32 %v1914, %v2232
    %v2234 = vpop.f32.mrf.mxu0
    %2235 = vmatprep.mubr.f32.mxu0 %v1649
    %2236 = vmatmul.mubr.f32.gmra.mxu0 %v1648
    %v2237 = vpop.f32.mrf.mxu0
    %v2238 = vadd.f32 %v1914, %v2237
    %v2239 = vpop.f32.mrf.mxu0
    %2240 = vmatprep.mubr.f32.mxu0 %v1658
    %2241 = vmatmul.mubr.f32.gmra.mxu0 %v1657
    %v2242 = vpop.f32.mrf.mxu0
    %v2243 = vadd.f32 %v1914, %v2242
    %v2244 = vpop.f32.mrf.mxu0
    %2245 = vmatprep.mubr.f32.mxu0 %v1667
    %2246 = vmatmul.mubr.f32.gmra.mxu0 %v1666
    %v2247 = vpop.f32.mrf.mxu0
    %v2248 = vadd.f32 %v1914, %v2247
    %v2249 = vpop.f32.mrf.mxu0
    %2250 = vmatprep.mubr.f32.mxu0 %v1676
    %2251 = vmatmul.mubr.f32.gmra.mxu0 %v1675
    %v2252 = vpop.f32.mrf.mxu0
    %v2253 = vadd.f32 %v1914, %v2252
    %v2254 = vpop.f32.mrf.mxu0
    %2255 = vmatprep.mubr.f32.mxu0 %v1685
    %2256 = vmatmul.mubr.f32.gmra.mxu0 %v1684
    %v2257 = vpop.f32.mrf.mxu0
    %v2258 = vadd.f32 %v1914, %v2257
    %v2259 = vpop.f32.mrf.mxu0
    %2260 = vmatprep.mubr.f32.mxu0 %v1694
    %2261 = vmatmul.mubr.f32.gmra.mxu0 %v1693
    %v2262 = vpop.f32.mrf.mxu0
    %v2263 = vadd.f32 %v1914, %v2262
    %v2264 = vpop.f32.mrf.mxu0
    %2265 = vmatprep.mubr.f32.mxu0 %v1703
    %2266 = vmatmul.mubr.f32.gmra.mxu0 %v1702
    %v2267 = vpop.f32.mrf.mxu0
    %v2268 = vadd.f32 %v1914, %v2267
    %v2269 = vpop.f32.mrf.mxu0
    %2270 = vmatprep.mubr.f32.mxu0 %v1712
    %2271 = vmatmul.mubr.f32.gmra.mxu0 %v1711
    %v2272 = vpop.f32.mrf.mxu0
    %v2273 = vadd.f32 %v1914, %v2272
    %v2274 = vpop.f32.mrf.mxu0
    %2275 = vmatprep.mubr.f32.mxu0 %v1721
    %2276 = vmatmul.mubr.f32.gmra.mxu0 %v1720
    %v2277 = vpop.f32.mrf.mxu0
    %v2278 = vadd.f32 %v1914, %v2277
    %v2279 = vpop.f32.mrf.mxu0
    %2280 = vmatprep.mubr.f32.mxu0 %v1730
    %2281 = vmatmul.mubr.f32.gmra.mxu0 %v1729
    %v2282 = vpop.f32.mrf.mxu0
    %v2283 = vadd.f32 %v1914, %v2282
    %v2284 = vpop.f32.mrf.mxu0
    %2285 = vmatprep.mubr.f32.mxu0 %v1739
    %2286 = vmatmul.mubr.f32.gmra.mxu0 %v1738
    %v2287 = vpop.f32.mrf.mxu0
    %v2288 = vadd.f32 %v1914, %v2287
    %v2289 = vpop.f32.mrf.mxu0
    %2290 = vmatprep.mubr.f32.mxu0 %v1748
    %2291 = vmatmul.mubr.f32.gmra.mxu0 %v1747
    %v2292 = vpop.f32.mrf.mxu0
    %v2293 = vadd.f32 %v1914, %v2292
    %v2294 = vpop.f32.mrf.mxu0
    %2295 = vmatprep.mubr.f32.mxu0 %v1757
    %2296 = vmatmul.mubr.f32.gmra.mxu0 %v1756
    %v2297 = vpop.f32.mrf.mxu0
    %v2298 = vadd.f32 %v1914, %v2297
    %v2299 = vpop.f32.mrf.mxu0
    %2300 = vdwg.mxu0
    %2301 = vmatprep.subr.mxu0 0.0
    %2302 = vmatpush1.msra.mxu0 %v1812
    %2303 = vmatprep.subr.mxu0 0.0
    %2304 = vmatpush1.msra.mxu0 %v1811
    %2305 = vmatprep.subr.mxu0 0.0
    %2306 = vmatpush1.msra.mxu0 %v1810
    %2307 = vmatprep.subr.mxu0 0.0
    %2308 = vmatpush1.msra.mxu0 %v1809
    %2309 = vmatprep.subr.mxu0 0.0
    %2310 = vmatpush1.msra.mxu0 %v1808
    %2311 = vmatprep.subr.mxu0 0.0
    %2312 = vmatpush1.msra.mxu0 %v1807
    %2313 = vmatprep.subr.mxu0 0.0
    %2314 = vmatpush1.msra.mxu0 %v1806
    %2315 = vmatprep.subr.mxu0 0.0
    %2316 = vmatpush1.msra.mxu0 %v1805
    %2317 = vmatprep.subr.mxu0 0.0
    %2318 = vmatpush1.msra.mxu0 %v1804
    %2319 = vmatprep.subr.mxu0 0.0
    %2320 = vmatpush1.msra.mxu0 %v1803
    %2321 = vmatprep.subr.mxu0 0.0
    %2322 = vmatpush1.msra.mxu0 %v1802
    %2323 = vmatprep.subr.mxu0 0.0
    %2324 = vmatpush1.msra.mxu0 %v1801
    %2325 = vmatprep.subr.mxu0 0.0
    %2326 = vmatpush1.msra.mxu0 %v1800
    %2327 = vmatprep.subr.mxu0 0.0
    %2328 = vmatpush1.msra.mxu0 %v1799
    %2329 = vmatprep.subr.mxu0 0.0
    %2330 = vmatpush1.msra.mxu0 %v1798
    %2331 = vmatprep.subr.mxu0 0.0
    %2332 = vmatpush1.msra.mxu0 %v1797
    %2333 = vmatprep.subr.mxu0 0.0
    %2334 = vmatpush2.msra.mxu0 %v1828
    %2335 = vmatprep.subr.mxu0 0.0
    %2336 = vmatpush2.msra.mxu0 %v1827
    %2337 = vmatprep.subr.mxu0 0.0
    %2338 = vmatpush2.msra.mxu0 %v1826
    %2339 = vmatprep.subr.mxu0 0.0
    %2340 = vmatpush2.msra.mxu0 %v1825
    %2341 = vmatprep.subr.mxu0 0.0
    %2342 = vmatpush2.msra.mxu0 %v1824
    %2343 = vmatprep.subr.mxu0 0.0
    %2344 = vmatpush2.msra.mxu0 %v1823
    %2345 = vmatprep.subr.mxu0 0.0
    %2346 = vmatpush2.msra.mxu0 %v1822
    %2347 = vmatprep.subr.mxu0 0.0
    %2348 = vmatpush2.msra.mxu0 %v1821
    %2349 = vmatprep.subr.mxu0 0.0
    %2350 = vmatpush2.msra.mxu0 %v1820
    %2351 = vmatprep.subr.mxu0 0.0
    %2352 = vmatpush2.msra.mxu0 %v1819
    %2353 = vmatprep.subr.mxu0 0.0
    %2354 = vmatpush2.msra.mxu0 %v1818
    %2355 = vmatprep.subr.mxu0 0.0
    %2356 = vmatpush2.msra.mxu0 %v1817
    %2357 = vmatprep.subr.mxu0 0.0
    %2358 = vmatpush2.msra.mxu0 %v1816
    %2359 = vmatprep.subr.mxu0 0.0
    %2360 = vmatpush2.msra.mxu0 %v1815
    %2361 = vmatprep.subr.mxu0 0.0
    %2362 = vmatpush2.msra.mxu0 %v1814
    %2363 = vmatprep.subr.mxu0 0.0
    %2364 = vmatpush2.msra.mxu0 %v1813
    %2365 = vmatprep.mubr.f32.mxu0 %v1192
    %2366 = vmatmul.mubr.f32.gmra.mxu0 %v1191
    %v2367 = vpop.f32.mrf.mxu0
    %v2368 = vadd.f32 %v1983, %v2367
    %v2369 = vpop.f32.mrf.mxu0
    %2370 = vmatprep.mubr.f32.mxu0 %v1201
    %2371 = vmatmul.mubr.f32.gmra.mxu0 %v1200
    %v2372 = vpop.f32.mrf.mxu0
    %v2373 = vadd.f32 %v1988, %v2372
    %v2374 = vpop.f32.mrf.mxu0
    %2375 = vmatprep.mubr.f32.mxu0 %v1210
    %2376 = vmatmul.mubr.f32.gmra.mxu0 %v1209
    %v2377 = vpop.f32.mrf.mxu0
    %v2378 = vadd.f32 %v1993, %v2377
    %v2379 = vpop.f32.mrf.mxu0
    %2380 = vmatprep.mubr.f32.mxu0 %v1219
    %2381 = vmatmul.mubr.f32.gmra.mxu0 %v1218
    %v2382 = vpop.f32.mrf.mxu0
    %v2383 = vadd.f32 %v1998, %v2382
    %v2384 = vpop.f32.mrf.mxu0
    %2385 = vmatprep.mubr.f32.mxu0 %v1228
    %2386 = vmatmul.mubr.f32.gmra.mxu0 %v1227
    %v2387 = vpop.f32.mrf.mxu0
    %v2388 = vadd.f32 %v2003, %v2387
    %v2389 = vpop.f32.mrf.mxu0
    %2390 = vmatprep.mubr.f32.mxu0 %v1237
    %2391 = vmatmul.mubr.f32.gmra.mxu0 %v1236
    %v2392 = vpop.f32.mrf.mxu0
    %v2393 = vadd.f32 %v2008, %v2392
    %v2394 = vpop.f32.mrf.mxu0
    %2395 = vmatprep.mubr.f32.mxu0 %v1246
    %2396 = vmatmul.mubr.f32.gmra.mxu0 %v1245
    %v2397 = vpop.f32.mrf.mxu0
    %v2398 = vadd.f32 %v2013, %v2397
    %v2399 = vpop.f32.mrf.mxu0
    %2400 = vmatprep.mubr.f32.mxu0 %v1255
    %2401 = vmatmul.mubr.f32.gmra.mxu0 %v1254
    %v2402 = vpop.f32.mrf.mxu0
    %v2403 = vadd.f32 %v2018, %v2402
    %v2404 = vpop.f32.mrf.mxu0
    %2405 = vmatprep.mubr.f32.mxu0 %v1264
    %2406 = vmatmul.mubr.f32.gmra.mxu0 %v1263
    %v2407 = vpop.f32.mrf.mxu0
    %v2408 = vadd.f32 %v2023, %v2407
    %v2409 = vpop.f32.mrf.mxu0
    %2410 = vmatprep.mubr.f32.mxu0 %v1273
    %2411 = vmatmul.mubr.f32.gmra.mxu0 %v1272
    %v2412 = vpop.f32.mrf.mxu0
    %v2413 = vadd.f32 %v2028, %v2412
    %v2414 = vpop.f32.mrf.mxu0
    %2415 = vmatprep.mubr.f32.mxu0 %v1282
    %2416 = vmatmul.mubr.f32.gmra.mxu0 %v1281
    %v2417 = vpop.f32.mrf.mxu0
    %v2418 = vadd.f32 %v2033, %v2417
    %v2419 = vpop.f32.mrf.mxu0
    %2420 = vmatprep.mubr.f32.mxu0 %v1291
    %2421 = vmatmul.mubr.f32.gmra.mxu0 %v1290
    %v2422 = vpop.f32.mrf.mxu0
    %v2423 = vadd.f32 %v2038, %v2422
    %v2424 = vpop.f32.mrf.mxu0
    %2425 = vmatprep.mubr.f32.mxu0 %v1300
    %2426 = vmatmul.mubr.f32.gmra.mxu0 %v1299
    %v2427 = vpop.f32.mrf.mxu0
    %v2428 = vadd.f32 %v2043, %v2427
    %v2429 = vpop.f32.mrf.mxu0
    %2430 = vmatprep.mubr.f32.mxu0 %v1309
    %2431 = vmatmul.mubr.f32.gmra.mxu0 %v1308
    %v2432 = vpop.f32.mrf.mxu0
    %v2433 = vadd.f32 %v2048, %v2432
    %v2434 = vpop.f32.mrf.mxu0
    %2435 = vmatprep.mubr.f32.mxu0 %v1318
    %2436 = vmatmul.mubr.f32.gmra.mxu0 %v1317
    %v2437 = vpop.f32.mrf.mxu0
    %v2438 = vadd.f32 %v2053, %v2437
    %v2439 = vpop.f32.mrf.mxu0
    %2440 = vmatprep.mubr.f32.mxu0 %v1327
    %2441 = vmatmul.mubr.f32.gmra.mxu0 %v1326
    %v2442 = vpop.f32.mrf.mxu0
    %v2443 = vadd.f32 %v2058, %v2442
    %v2444 = vpop.f32.mrf.mxu0
    %2445 = vmatprep.mubr.f32.mxu0 %v1336
    %2446 = vmatmul.mubr.f32.gmra.mxu0 %v1335
    %v2447 = vpop.f32.mrf.mxu0
    %v2448 = vadd.f32 %v2063, %v2447
    %v2449 = vpop.f32.mrf.mxu0
    %2450 = vmatprep.mubr.f32.mxu0 %v1345
    %2451 = vmatmul.mubr.f32.gmra.mxu0 %v1344
    %v2452 = vpop.f32.mrf.mxu0
    %v2453 = vadd.f32 %v2068, %v2452
    %v2454 = vpop.f32.mrf.mxu0
    %2455 = vmatprep.mubr.f32.mxu0 %v1354
    %2456 = vmatmul.mubr.f32.gmra.mxu0 %v1353
    %v2457 = vpop.f32.mrf.mxu0
    %v2458 = vadd.f32 %v2073, %v2457
    %v2459 = vpop.f32.mrf.mxu0
    %2460 = vmatprep.mubr.f32.mxu0 %v1363
    %2461 = vmatmul.mubr.f32.gmra.mxu0 %v1362
    %v2462 = vpop.f32.mrf.mxu0
    %v2463 = vadd.f32 %v2078, %v2462
    %v2464 = vpop.f32.mrf.mxu0
    %2465 = vmatprep.mubr.f32.mxu0 %v1372
    %2466 = vmatmul.mubr.f32.gmra.mxu0 %v1371
    %v2467 = vpop.f32.mrf.mxu0
    %v2468 = vadd.f32 %v2083, %v2467
    %v2469 = vpop.f32.mrf.mxu0
    %2470 = vmatprep.mubr.f32.mxu0 %v1381
    %2471 = vmatmul.mubr.f32.gmra.mxu0 %v1380
    %v2472 = vpop.f32.mrf.mxu0
    %v2473 = vadd.f32 %v2088, %v2472
    %v2474 = vpop.f32.mrf.mxu0
    %2475 = vmatprep.mubr.f32.mxu0 %v1390
    %2476 = vmatmul.mubr.f32.gmra.mxu0 %v1389
    %v2477 = vpop.f32.mrf.mxu0
    %v2478 = vadd.f32 %v2093, %v2477
    %v2479 = vpop.f32.mrf.mxu0
    %2480 = vmatprep.mubr.f32.mxu0 %v1399
    %2481 = vmatmul.mubr.f32.gmra.mxu0 %v1398
    %v2482 = vpop.f32.mrf.mxu0
    %v2483 = vadd.f32 %v2098, %v2482
    %v2484 = vpop.f32.mrf.mxu0
    %2485 = vmatprep.mubr.f32.mxu0 %v1408
    %2486 = vmatmul.mubr.f32.gmra.mxu0 %v1407
    %v2487 = vpop.f32.mrf.mxu0
    %v2488 = vadd.f32 %v2103, %v2487
    %v2489 = vpop.f32.mrf.mxu0
    %2490 = vmatprep.mubr.f32.mxu0 %v1417
    %2491 = vmatmul.mubr.f32.gmra.mxu0 %v1416
    %v2492 = vpop.f32.mrf.mxu0
    %v2493 = vadd.f32 %v2108, %v2492
    %v2494 = vpop.f32.mrf.mxu0
    %2495 = vmatprep.mubr.f32.mxu0 %v1426
    %2496 = vmatmul.mubr.f32.gmra.mxu0 %v1425
    %v2497 = vpop.f32.mrf.mxu0
    %v2498 = vadd.f32 %v2113, %v2497
    %v2499 = vpop.f32.mrf.mxu0
    %2500 = vmatprep.mubr.f32.mxu0 %v1435
    %2501 = vmatmul.mubr.f32.gmra.mxu0 %v1434
    %v2502 = vpop.f32.mrf.mxu0
    %v2503 = vadd.f32 %v2118, %v2502
    %v2504 = vpop.f32.mrf.mxu0
    %2505 = vmatprep.mubr.f32.mxu0 %v1444
    %2506 = vmatmul.mubr.f32.gmra.mxu0 %v1443
    %v2507 = vpop.f32.mrf.mxu0
    %v2508 = vadd.f32 %v2123, %v2507
    %v2509 = vpop.f32.mrf.mxu0
    %2510 = vmatprep.mubr.f32.mxu0 %v1453
    %2511 = vmatmul.mubr.f32.gmra.mxu0 %v1452
    %v2512 = vpop.f32.mrf.mxu0
    %v2513 = vadd.f32 %v2128, %v2512
    %v2514 = vpop.f32.mrf.mxu0
    %2515 = vmatprep.mubr.f32.mxu0 %v1462
    %2516 = vmatmul.mubr.f32.gmra.mxu0 %v1461
    %v2517 = vpop.f32.mrf.mxu0
    %v2518 = vadd.f32 %v2133, %v2517
    %v2519 = vpop.f32.mrf.mxu0
    %2520 = vmatprep.mubr.f32.mxu0 %v1471
    %2521 = vmatmul.mubr.f32.gmra.mxu0 %v1470
    %v2522 = vpop.f32.mrf.mxu0
    %v2523 = vadd.f32 %v2138, %v2522
    %v2524 = vpop.f32.mrf.mxu0
    %2525 = vmatprep.mubr.f32.mxu0 %v1480
    %2526 = vmatmul.mubr.f32.gmra.mxu0 %v1479
    %v2527 = vpop.f32.mrf.mxu0
    %v2528 = vadd.f32 %v2143, %v2527
    %v2529 = vpop.f32.mrf.mxu0
    %2530 = vmatprep.mubr.f32.mxu0 %v1489
    %2531 = vmatmul.mubr.f32.gmra.mxu0 %v1488
    %v2532 = vpop.f32.mrf.mxu0
    %v2533 = vadd.f32 %v2148, %v2532
    %v2534 = vpop.f32.mrf.mxu0
    %2535 = vmatprep.mubr.f32.mxu0 %v1498
    %2536 = vmatmul.mubr.f32.gmra.mxu0 %v1497
    %v2537 = vpop.f32.mrf.mxu0
    %v2538 = vadd.f32 %v2153, %v2537
    %v2539 = vpop.f32.mrf.mxu0
    %2540 = vmatprep.mubr.f32.mxu0 %v1507
    %2541 = vmatmul.mubr.f32.gmra.mxu0 %v1506
    %v2542 = vpop.f32.mrf.mxu0
    %v2543 = vadd.f32 %v2158, %v2542
    %v2544 = vpop.f32.mrf.mxu0
    %2545 = vmatprep.mubr.f32.mxu0 %v1516
    %2546 = vmatmul.mubr.f32.gmra.mxu0 %v1515
    %v2547 = vpop.f32.mrf.mxu0
    %v2548 = vadd.f32 %v2163, %v2547
    %v2549 = vpop.f32.mrf.mxu0
    %2550 = vmatprep.mubr.f32.mxu0 %v1525
    %2551 = vmatmul.mubr.f32.gmra.mxu0 %v1524
    %v2552 = vpop.f32.mrf.mxu0
    %v2553 = vadd.f32 %v2168, %v2552
    %v2554 = vpop.f32.mrf.mxu0
    %2555 = vmatprep.mubr.f32.mxu0 %v1534
    %2556 = vmatmul.mubr.f32.gmra.mxu0 %v1533
    %v2557 = vpop.f32.mrf.mxu0
    %v2558 = vadd.f32 %v2173, %v2557
    %v2559 = vpop.f32.mrf.mxu0
    %2560 = vmatprep.mubr.f32.mxu0 %v1543
    %2561 = vmatmul.mubr.f32.gmra.mxu0 %v1542
    %v2562 = vpop.f32.mrf.mxu0
    %v2563 = vadd.f32 %v2178, %v2562
    %v2564 = vpop.f32.mrf.mxu0
    %2565 = vmatprep.mubr.f32.mxu0 %v1552
    %2566 = vmatmul.mubr.f32.gmra.mxu0 %v1551
    %v2567 = vpop.f32.mrf.mxu0
    %v2568 = vadd.f32 %v2183, %v2567
    %v2569 = vpop.f32.mrf.mxu0
    %2570 = vmatprep.mubr.f32.mxu0 %v1561
    %2571 = vmatmul.mubr.f32.gmra.mxu0 %v1560
    %v2572 = vpop.f32.mrf.mxu0
    %v2573 = vadd.f32 %v2188, %v2572
    %v2574 = vpop.f32.mrf.mxu0
    %2575 = vmatprep.mubr.f32.mxu0 %v1570
    %2576 = vmatmul.mubr.f32.gmra.mxu0 %v1569
    %v2577 = vpop.f32.mrf.mxu0
    %v2578 = vadd.f32 %v2193, %v2577
    %v2579 = vpop.f32.mrf.mxu0
    %2580 = vmatprep.mubr.f32.mxu0 %v1579
    %2581 = vmatmul.mubr.f32.gmra.mxu0 %v1578
    %v2582 = vpop.f32.mrf.mxu0
    %v2583 = vadd.f32 %v2198, %v2582
    %v2584 = vpop.f32.mrf.mxu0
    %2585 = vmatprep.mubr.f32.mxu0 %v1588
    %2586 = vmatmul.mubr.f32.gmra.mxu0 %v1587
    %v2587 = vpop.f32.mrf.mxu0
    %v2588 = vadd.f32 %v2203, %v2587
    %v2589 = vpop.f32.mrf.mxu0
    %2590 = vmatprep.mubr.f32.mxu0 %v1597
    %2591 = vmatmul.mubr.f32.gmra.mxu0 %v1596
    %v2592 = vpop.f32.mrf.mxu0
    %v2593 = vadd.f32 %v2208, %v2592
    %v2594 = vpop.f32.mrf.mxu0
    %2595 = vmatprep.mubr.f32.mxu0 %v1606
    %2596 = vmatmul.mubr.f32.gmra.mxu0 %v1605
    %v2597 = vpop.f32.mrf.mxu0
    %v2598 = vadd.f32 %v2213, %v2597
    %v2599 = vpop.f32.mrf.mxu0
    %2600 = vmatprep.mubr.f32.mxu0 %v1615
    %2601 = vmatmul.mubr.f32.gmra.mxu0 %v1614
    %v2602 = vpop.f32.mrf.mxu0
    %v2603 = vadd.f32 %v2218, %v2602
    %v2604 = vpop.f32.mrf.mxu0
    %2605 = vmatprep.mubr.f32.mxu0 %v1624
    %2606 = vmatmul.mubr.f32.gmra.mxu0 %v1623
    %v2607 = vpop.f32.mrf.mxu0
    %v2608 = vadd.f32 %v2223, %v2607
    %v2609 = vpop.f32.mrf.mxu0
    %2610 = vmatprep.mubr.f32.mxu0 %v1633
    %2611 = vmatmul.mubr.f32.gmra.mxu0 %v1632
    %v2612 = vpop.f32.mrf.mxu0
    %v2613 = vadd.f32 %v2228, %v2612
    %v2614 = vpop.f32.mrf.mxu0
    %2615 = vmatprep.mubr.f32.mxu0 %v1642
    %2616 = vmatmul.mubr.f32.gmra.mxu0 %v1641
    %v2617 = vpop.f32.mrf.mxu0
    %v2618 = vadd.f32 %v2233, %v2617
    %v2619 = vpop.f32.mrf.mxu0
    %2620 = vmatprep.mubr.f32.mxu0 %v1651
    %2621 = vmatmul.mubr.f32.gmra.mxu0 %v1650
    %v2622 = vpop.f32.mrf.mxu0
    %v2623 = vadd.f32 %v2238, %v2622
    %v2624 = vpop.f32.mrf.mxu0
    %2625 = vmatprep.mubr.f32.mxu0 %v1660
    %2626 = vmatmul.mubr.f32.gmra.mxu0 %v1659
    %v2627 = vpop.f32.mrf.mxu0
    %v2628 = vadd.f32 %v2243, %v2627
    %v2629 = vpop.f32.mrf.mxu0
    %2630 = vmatprep.mubr.f32.mxu0 %v1669
    %2631 = vmatmul.mubr.f32.gmra.mxu0 %v1668
    %v2632 = vpop.f32.mrf.mxu0
    %v2633 = vadd.f32 %v2248, %v2632
    %v2634 = vpop.f32.mrf.mxu0
    %2635 = vmatprep.mubr.f32.mxu0 %v1678
    %2636 = vmatmul.mubr.f32.gmra.mxu0 %v1677
    %v2637 = vpop.f32.mrf.mxu0
    %v2638 = vadd.f32 %v2253, %v2637
    %v2639 = vpop.f32.mrf.mxu0
    %2640 = vmatprep.mubr.f32.mxu0 %v1687
    %2641 = vmatmul.mubr.f32.gmra.mxu0 %v1686
    %v2642 = vpop.f32.mrf.mxu0
    %v2643 = vadd.f32 %v2258, %v2642
    %v2644 = vpop.f32.mrf.mxu0
    %2645 = vmatprep.mubr.f32.mxu0 %v1696
    %2646 = vmatmul.mubr.f32.gmra.mxu0 %v1695
    %v2647 = vpop.f32.mrf.mxu0
    %v2648 = vadd.f32 %v2263, %v2647
    %v2649 = vpop.f32.mrf.mxu0
    %2650 = vmatprep.mubr.f32.mxu0 %v1705
    %2651 = vmatmul.mubr.f32.gmra.mxu0 %v1704
    %v2652 = vpop.f32.mrf.mxu0
    %v2653 = vadd.f32 %v2268, %v2652
    %v2654 = vpop.f32.mrf.mxu0
    %2655 = vmatprep.mubr.f32.mxu0 %v1714
    %2656 = vmatmul.mubr.f32.gmra.mxu0 %v1713
    %v2657 = vpop.f32.mrf.mxu0
    %v2658 = vadd.f32 %v2273, %v2657
    %v2659 = vpop.f32.mrf.mxu0
    %2660 = vmatprep.mubr.f32.mxu0 %v1723
    %2661 = vmatmul.mubr.f32.gmra.mxu0 %v1722
    %v2662 = vpop.f32.mrf.mxu0
    %v2663 = vadd.f32 %v2278, %v2662
    %v2664 = vpop.f32.mrf.mxu0
    %2665 = vmatprep.mubr.f32.mxu0 %v1732
    %2666 = vmatmul.mubr.f32.gmra.mxu0 %v1731
    %v2667 = vpop.f32.mrf.mxu0
    %v2668 = vadd.f32 %v2283, %v2667
    %v2669 = vpop.f32.mrf.mxu0
    %2670 = vmatprep.mubr.f32.mxu0 %v1741
    %2671 = vmatmul.mubr.f32.gmra.mxu0 %v1740
    %v2672 = vpop.f32.mrf.mxu0
    %v2673 = vadd.f32 %v2288, %v2672
    %v2674 = vpop.f32.mrf.mxu0
    %2675 = vmatprep.mubr.f32.mxu0 %v1750
    %2676 = vmatmul.mubr.f32.gmra.mxu0 %v1749
    %v2677 = vpop.f32.mrf.mxu0
    %v2678 = vadd.f32 %v2293, %v2677
    %v2679 = vpop.f32.mrf.mxu0
    %2680 = vmatprep.mubr.f32.mxu0 %v1759
    %2681 = vmatmul.mubr.f32.gmra.mxu0 %v1758
    %v2682 = vpop.f32.mrf.mxu0
    %v2683 = vadd.f32 %v2298, %v2682
    %v2684 = vpop.f32.mrf.mxu0
    %2685 = vdwg.mxu0
    %2686 = vmatprep.subr.mxu0 0.0
    %2687 = vmatpush1.msra.mxu0 %v1844
    %2688 = vmatprep.subr.mxu0 0.0
    %2689 = vmatpush1.msra.mxu0 %v1843
    %2690 = vmatprep.subr.mxu0 0.0
    %2691 = vmatpush1.msra.mxu0 %v1842
    %2692 = vmatprep.subr.mxu0 0.0
    %2693 = vmatpush1.msra.mxu0 %v1841
    %2694 = vmatprep.subr.mxu0 0.0
    %2695 = vmatpush1.msra.mxu0 %v1840
    %2696 = vmatprep.subr.mxu0 0.0
    %2697 = vmatpush1.msra.mxu0 %v1839
    %2698 = vmatprep.subr.mxu0 0.0
    %2699 = vmatpush1.msra.mxu0 %v1838
    %2700 = vmatprep.subr.mxu0 0.0
    %2701 = vmatpush1.msra.mxu0 %v1837
    %2702 = vmatprep.subr.mxu0 0.0
    %2703 = vmatpush1.msra.mxu0 %v1836
    %2704 = vmatprep.subr.mxu0 0.0
    %2705 = vmatpush1.msra.mxu0 %v1835
    %2706 = vmatprep.subr.mxu0 0.0
    %2707 = vmatpush1.msra.mxu0 %v1834
    %2708 = vmatprep.subr.mxu0 0.0
    %2709 = vmatpush1.msra.mxu0 %v1833
    %2710 = vmatprep.subr.mxu0 0.0
    %2711 = vmatpush1.msra.mxu0 %v1832
    %2712 = vmatprep.subr.mxu0 0.0
    %2713 = vmatpush1.msra.mxu0 %v1831
    %2714 = vmatprep.subr.mxu0 0.0
    %2715 = vmatpush1.msra.mxu0 %v1830
    %2716 = vmatprep.subr.mxu0 0.0
    %2717 = vmatpush1.msra.mxu0 %v1829
    %2718 = vmatprep.subr.mxu0 0.0
    %2719 = vmatpush2.msra.mxu0 %v1860
    %2720 = vmatprep.subr.mxu0 0.0
    %2721 = vmatpush2.msra.mxu0 %v1859
    %2722 = vmatprep.subr.mxu0 0.0
    %2723 = vmatpush2.msra.mxu0 %v1858
    %2724 = vmatprep.subr.mxu0 0.0
    %2725 = vmatpush2.msra.mxu0 %v1857
    %2726 = vmatprep.subr.mxu0 0.0
    %2727 = vmatpush2.msra.mxu0 %v1856
    %2728 = vmatprep.subr.mxu0 0.0
    %2729 = vmatpush2.msra.mxu0 %v1855
    %2730 = vmatprep.subr.mxu0 0.0
    %2731 = vmatpush2.msra.mxu0 %v1854
    %2732 = vmatprep.subr.mxu0 0.0
    %2733 = vmatpush2.msra.mxu0 %v1853
    %2734 = vmatprep.subr.mxu0 0.0
    %2735 = vmatpush2.msra.mxu0 %v1852
    %2736 = vmatprep.subr.mxu0 0.0
    %2737 = vmatpush2.msra.mxu0 %v1851
    %2738 = vmatprep.subr.mxu0 0.0
    %2739 = vmatpush2.msra.mxu0 %v1850
    %2740 = vmatprep.subr.mxu0 0.0
    %2741 = vmatpush2.msra.mxu0 %v1849
    %2742 = vmatprep.subr.mxu0 0.0
    %2743 = vmatpush2.msra.mxu0 %v1848
    %2744 = vmatprep.subr.mxu0 0.0
    %2745 = vmatpush2.msra.mxu0 %v1847
    %2746 = vmatprep.subr.mxu0 0.0
    %2747 = vmatpush2.msra.mxu0 %v1846
    %2748 = vmatprep.subr.mxu0 0.0
    %2749 = vmatpush2.msra.mxu0 %v1845
    %2750 = vmatprep.mubr.f32.mxu0 %v1194
    %2751 = vmatmul.mubr.f32.gmra.mxu0 %v1193
    %v2752 = vpop.f32.mrf.mxu0
    %v2753 = vadd.f32 %v2368, %v2752
    %v2754 = vpop.f32.mrf.mxu0
    %2755 = vmatprep.mubr.f32.mxu0 %v1203
    %2756 = vmatmul.mubr.f32.gmra.mxu0 %v1202
    %v2757 = vpop.f32.mrf.mxu0
    %v2758 = vadd.f32 %v2373, %v2757
    %v2759 = vpop.f32.mrf.mxu0
    %2760 = vmatprep.mubr.f32.mxu0 %v1212
    %2761 = vmatmul.mubr.f32.gmra.mxu0 %v1211
    %v2762 = vpop.f32.mrf.mxu0
    %v2763 = vadd.f32 %v2378, %v2762
    %v2764 = vpop.f32.mrf.mxu0
    %2765 = vmatprep.mubr.f32.mxu0 %v1221
    %2766 = vmatmul.mubr.f32.gmra.mxu0 %v1220
    %v2767 = vpop.f32.mrf.mxu0
    %v2768 = vadd.f32 %v2383, %v2767
    %v2769 = vpop.f32.mrf.mxu0
    %2770 = vmatprep.mubr.f32.mxu0 %v1230
    %2771 = vmatmul.mubr.f32.gmra.mxu0 %v1229
    %v2772 = vpop.f32.mrf.mxu0
    %v2773 = vadd.f32 %v2388, %v2772
    %v2774 = vpop.f32.mrf.mxu0
    %2775 = vmatprep.mubr.f32.mxu0 %v1239
    %2776 = vmatmul.mubr.f32.gmra.mxu0 %v1238
    %v2777 = vpop.f32.mrf.mxu0
    %v2778 = vadd.f32 %v2393, %v2777
    %v2779 = vpop.f32.mrf.mxu0
    %2780 = vmatprep.mubr.f32.mxu0 %v1248
    %2781 = vmatmul.mubr.f32.gmra.mxu0 %v1247
    %v2782 = vpop.f32.mrf.mxu0
    %v2783 = vadd.f32 %v2398, %v2782
    %v2784 = vpop.f32.mrf.mxu0
    %2785 = vmatprep.mubr.f32.mxu0 %v1257
    %2786 = vmatmul.mubr.f32.gmra.mxu0 %v1256
    %v2787 = vpop.f32.mrf.mxu0
    %v2788 = vadd.f32 %v2403, %v2787
    %v2789 = vpop.f32.mrf.mxu0
    %2790 = vmatprep.mubr.f32.mxu0 %v1266
    %2791 = vmatmul.mubr.f32.gmra.mxu0 %v1265
    %v2792 = vpop.f32.mrf.mxu0
    %v2793 = vadd.f32 %v2408, %v2792
    %v2794 = vpop.f32.mrf.mxu0
    %2795 = vmatprep.mubr.f32.mxu0 %v1275
    %2796 = vmatmul.mubr.f32.gmra.mxu0 %v1274
    %v2797 = vpop.f32.mrf.mxu0
    %v2798 = vadd.f32 %v2413, %v2797
    %v2799 = vpop.f32.mrf.mxu0
    %2800 = vmatprep.mubr.f32.mxu0 %v1284
    %2801 = vmatmul.mubr.f32.gmra.mxu0 %v1283
    %v2802 = vpop.f32.mrf.mxu0
    %v2803 = vadd.f32 %v2418, %v2802
    %v2804 = vpop.f32.mrf.mxu0
    %2805 = vmatprep.mubr.f32.mxu0 %v1293
    %2806 = vmatmul.mubr.f32.gmra.mxu0 %v1292
    %v2807 = vpop.f32.mrf.mxu0
    %v2808 = vadd.f32 %v2423, %v2807
    %v2809 = vpop.f32.mrf.mxu0
    %2810 = vmatprep.mubr.f32.mxu0 %v1302
    %2811 = vmatmul.mubr.f32.gmra.mxu0 %v1301
    %v2812 = vpop.f32.mrf.mxu0
    %v2813 = vadd.f32 %v2428, %v2812
    %v2814 = vpop.f32.mrf.mxu0
    %2815 = vmatprep.mubr.f32.mxu0 %v1311
    %2816 = vmatmul.mubr.f32.gmra.mxu0 %v1310
    %v2817 = vpop.f32.mrf.mxu0
    %v2818 = vadd.f32 %v2433, %v2817
    %v2819 = vpop.f32.mrf.mxu0
    %2820 = vmatprep.mubr.f32.mxu0 %v1320
    %2821 = vmatmul.mubr.f32.gmra.mxu0 %v1319
    %v2822 = vpop.f32.mrf.mxu0
    %v2823 = vadd.f32 %v2438, %v2822
    %v2824 = vpop.f32.mrf.mxu0
    %2825 = vmatprep.mubr.f32.mxu0 %v1329
    %2826 = vmatmul.mubr.f32.gmra.mxu0 %v1328
    %v2827 = vpop.f32.mrf.mxu0
    %v2828 = vadd.f32 %v2443, %v2827
    %v2829 = vpop.f32.mrf.mxu0
    %2830 = vmatprep.mubr.f32.mxu0 %v1338
    %2831 = vmatmul.mubr.f32.gmra.mxu0 %v1337
    %v2832 = vpop.f32.mrf.mxu0
    %v2833 = vadd.f32 %v2448, %v2832
    %v2834 = vpop.f32.mrf.mxu0
    %2835 = vmatprep.mubr.f32.mxu0 %v1347
    %2836 = vmatmul.mubr.f32.gmra.mxu0 %v1346
    %v2837 = vpop.f32.mrf.mxu0
    %v2838 = vadd.f32 %v2453, %v2837
    %v2839 = vpop.f32.mrf.mxu0
    %2840 = vmatprep.mubr.f32.mxu0 %v1356
    %2841 = vmatmul.mubr.f32.gmra.mxu0 %v1355
    %v2842 = vpop.f32.mrf.mxu0
    %v2843 = vadd.f32 %v2458, %v2842
    %v2844 = vpop.f32.mrf.mxu0
    %2845 = vmatprep.mubr.f32.mxu0 %v1365
    %2846 = vmatmul.mubr.f32.gmra.mxu0 %v1364
    %v2847 = vpop.f32.mrf.mxu0
    %v2848 = vadd.f32 %v2463, %v2847
    %v2849 = vpop.f32.mrf.mxu0
    %2850 = vmatprep.mubr.f32.mxu0 %v1374
    %2851 = vmatmul.mubr.f32.gmra.mxu0 %v1373
    %v2852 = vpop.f32.mrf.mxu0
    %v2853 = vadd.f32 %v2468, %v2852
    %v2854 = vpop.f32.mrf.mxu0
    %2855 = vmatprep.mubr.f32.mxu0 %v1383
    %2856 = vmatmul.mubr.f32.gmra.mxu0 %v1382
    %v2857 = vpop.f32.mrf.mxu0
    %v2858 = vadd.f32 %v2473, %v2857
    %v2859 = vpop.f32.mrf.mxu0
    %2860 = vmatprep.mubr.f32.mxu0 %v1392
    %2861 = vmatmul.mubr.f32.gmra.mxu0 %v1391
    %v2862 = vpop.f32.mrf.mxu0
    %v2863 = vadd.f32 %v2478, %v2862
    %v2864 = vpop.f32.mrf.mxu0
    %2865 = vmatprep.mubr.f32.mxu0 %v1401
    %2866 = vmatmul.mubr.f32.gmra.mxu0 %v1400
    %v2867 = vpop.f32.mrf.mxu0
    %v2868 = vadd.f32 %v2483, %v2867
    %v2869 = vpop.f32.mrf.mxu0
    %2870 = vmatprep.mubr.f32.mxu0 %v1410
    %2871 = vmatmul.mubr.f32.gmra.mxu0 %v1409
    %v2872 = vpop.f32.mrf.mxu0
    %v2873 = vadd.f32 %v2488, %v2872
    %v2874 = vpop.f32.mrf.mxu0
    %2875 = vmatprep.mubr.f32.mxu0 %v1419
    %2876 = vmatmul.mubr.f32.gmra.mxu0 %v1418
    %v2877 = vpop.f32.mrf.mxu0
    %v2878 = vadd.f32 %v2493, %v2877
    %v2879 = vpop.f32.mrf.mxu0
    %2880 = vmatprep.mubr.f32.mxu0 %v1428
    %2881 = vmatmul.mubr.f32.gmra.mxu0 %v1427
    %v2882 = vpop.f32.mrf.mxu0
    %v2883 = vadd.f32 %v2498, %v2882
    %v2884 = vpop.f32.mrf.mxu0
    %2885 = vmatprep.mubr.f32.mxu0 %v1437
    %2886 = vmatmul.mubr.f32.gmra.mxu0 %v1436
    %v2887 = vpop.f32.mrf.mxu0
    %v2888 = vadd.f32 %v2503, %v2887
    %v2889 = vpop.f32.mrf.mxu0
    %2890 = vmatprep.mubr.f32.mxu0 %v1446
    %2891 = vmatmul.mubr.f32.gmra.mxu0 %v1445
    %v2892 = vpop.f32.mrf.mxu0
    %v2893 = vadd.f32 %v2508, %v2892
    %v2894 = vpop.f32.mrf.mxu0
    %2895 = vmatprep.mubr.f32.mxu0 %v1455
    %2896 = vmatmul.mubr.f32.gmra.mxu0 %v1454
    %v2897 = vpop.f32.mrf.mxu0
    %v2898 = vadd.f32 %v2513, %v2897
    %v2899 = vpop.f32.mrf.mxu0
    %2900 = vmatprep.mubr.f32.mxu0 %v1464
    %2901 = vmatmul.mubr.f32.gmra.mxu0 %v1463
    %v2902 = vpop.f32.mrf.mxu0
    %v2903 = vadd.f32 %v2518, %v2902
    %v2904 = vpop.f32.mrf.mxu0
    %2905 = vmatprep.mubr.f32.mxu0 %v1473
    %2906 = vmatmul.mubr.f32.gmra.mxu0 %v1472
    %v2907 = vpop.f32.mrf.mxu0
    %v2908 = vadd.f32 %v2523, %v2907
    %v2909 = vpop.f32.mrf.mxu0
    %2910 = vmatprep.mubr.f32.mxu0 %v1482
    %2911 = vmatmul.mubr.f32.gmra.mxu0 %v1481
    %v2912 = vpop.f32.mrf.mxu0
    %v2913 = vadd.f32 %v2528, %v2912
    %v2914 = vpop.f32.mrf.mxu0
    %2915 = vmatprep.mubr.f32.mxu0 %v1491
    %2916 = vmatmul.mubr.f32.gmra.mxu0 %v1490
    %v2917 = vpop.f32.mrf.mxu0
    %v2918 = vadd.f32 %v2533, %v2917
    %v2919 = vpop.f32.mrf.mxu0
    %2920 = vmatprep.mubr.f32.mxu0 %v1500
    %2921 = vmatmul.mubr.f32.gmra.mxu0 %v1499
    %v2922 = vpop.f32.mrf.mxu0
    %v2923 = vadd.f32 %v2538, %v2922
    %v2924 = vpop.f32.mrf.mxu0
    %2925 = vmatprep.mubr.f32.mxu0 %v1509
    %2926 = vmatmul.mubr.f32.gmra.mxu0 %v1508
    %v2927 = vpop.f32.mrf.mxu0
    %v2928 = vadd.f32 %v2543, %v2927
    %v2929 = vpop.f32.mrf.mxu0
    %2930 = vmatprep.mubr.f32.mxu0 %v1518
    %2931 = vmatmul.mubr.f32.gmra.mxu0 %v1517
    %v2932 = vpop.f32.mrf.mxu0
    %v2933 = vadd.f32 %v2548, %v2932
    %v2934 = vpop.f32.mrf.mxu0
    %2935 = vmatprep.mubr.f32.mxu0 %v1527
    %2936 = vmatmul.mubr.f32.gmra.mxu0 %v1526
    %v2937 = vpop.f32.mrf.mxu0
    %v2938 = vadd.f32 %v2553, %v2937
    %v2939 = vpop.f32.mrf.mxu0
    %2940 = vmatprep.mubr.f32.mxu0 %v1536
    %2941 = vmatmul.mubr.f32.gmra.mxu0 %v1535
    %v2942 = vpop.f32.mrf.mxu0
    %v2943 = vadd.f32 %v2558, %v2942
    %v2944 = vpop.f32.mrf.mxu0
    %2945 = vmatprep.mubr.f32.mxu0 %v1545
    %2946 = vmatmul.mubr.f32.gmra.mxu0 %v1544
    %v2947 = vpop.f32.mrf.mxu0
    %v2948 = vadd.f32 %v2563, %v2947
    %v2949 = vpop.f32.mrf.mxu0
    %2950 = vmatprep.mubr.f32.mxu0 %v1554
    %2951 = vmatmul.mubr.f32.gmra.mxu0 %v1553
    %v2952 = vpop.f32.mrf.mxu0
    %v2953 = vadd.f32 %v2568, %v2952
    %v2954 = vpop.f32.mrf.mxu0
    %2955 = vmatprep.mubr.f32.mxu0 %v1563
    %2956 = vmatmul.mubr.f32.gmra.mxu0 %v1562
    %v2957 = vpop.f32.mrf.mxu0
    %v2958 = vadd.f32 %v2573, %v2957
    %v2959 = vpop.f32.mrf.mxu0
    %2960 = vmatprep.mubr.f32.mxu0 %v1572
    %2961 = vmatmul.mubr.f32.gmra.mxu0 %v1571
    %v2962 = vpop.f32.mrf.mxu0
    %v2963 = vadd.f32 %v2578, %v2962
    %v2964 = vpop.f32.mrf.mxu0
    %2965 = vmatprep.mubr.f32.mxu0 %v1581
    %2966 = vmatmul.mubr.f32.gmra.mxu0 %v1580
    %v2967 = vpop.f32.mrf.mxu0
    %v2968 = vadd.f32 %v2583, %v2967
    %v2969 = vpop.f32.mrf.mxu0
    %2970 = vmatprep.mubr.f32.mxu0 %v1590
    %2971 = vmatmul.mubr.f32.gmra.mxu0 %v1589
    %v2972 = vpop.f32.mrf.mxu0
    %v2973 = vadd.f32 %v2588, %v2972
    %v2974 = vpop.f32.mrf.mxu0
    %2975 = vmatprep.mubr.f32.mxu0 %v1599
    %2976 = vmatmul.mubr.f32.gmra.mxu0 %v1598
    %v2977 = vpop.f32.mrf.mxu0
    %v2978 = vadd.f32 %v2593, %v2977
    %v2979 = vpop.f32.mrf.mxu0
    %2980 = vmatprep.mubr.f32.mxu0 %v1608
    %2981 = vmatmul.mubr.f32.gmra.mxu0 %v1607
    %v2982 = vpop.f32.mrf.mxu0
    %v2983 = vadd.f32 %v2598, %v2982
    %v2984 = vpop.f32.mrf.mxu0
    %2985 = vmatprep.mubr.f32.mxu0 %v1617
    %2986 = vmatmul.mubr.f32.gmra.mxu0 %v1616
    %v2987 = vpop.f32.mrf.mxu0
    %v2988 = vadd.f32 %v2603, %v2987
    %v2989 = vpop.f32.mrf.mxu0
    %2990 = vmatprep.mubr.f32.mxu0 %v1626
    %2991 = vmatmul.mubr.f32.gmra.mxu0 %v1625
    %v2992 = vpop.f32.mrf.mxu0
    %v2993 = vadd.f32 %v2608, %v2992
    %v2994 = vpop.f32.mrf.mxu0
    %2995 = vmatprep.mubr.f32.mxu0 %v1635
    %2996 = vmatmul.mubr.f32.gmra.mxu0 %v1634
    %v2997 = vpop.f32.mrf.mxu0
    %v2998 = vadd.f32 %v2613, %v2997
    %v2999 = vpop.f32.mrf.mxu0
    %3000 = vmatprep.mubr.f32.mxu0 %v1644
    %3001 = vmatmul.mubr.f32.gmra.mxu0 %v1643
    %v3002 = vpop.f32.mrf.mxu0
    %v3003 = vadd.f32 %v2618, %v3002
    %v3004 = vpop.f32.mrf.mxu0
    %3005 = vmatprep.mubr.f32.mxu0 %v1653
    %3006 = vmatmul.mubr.f32.gmra.mxu0 %v1652
    %v3007 = vpop.f32.mrf.mxu0
    %v3008 = vadd.f32 %v2623, %v3007
    %v3009 = vpop.f32.mrf.mxu0
    %3010 = vmatprep.mubr.f32.mxu0 %v1662
    %3011 = vmatmul.mubr.f32.gmra.mxu0 %v1661
    %v3012 = vpop.f32.mrf.mxu0
    %v3013 = vadd.f32 %v2628, %v3012
    %v3014 = vpop.f32.mrf.mxu0
    %3015 = vmatprep.mubr.f32.mxu0 %v1671
    %3016 = vmatmul.mubr.f32.gmra.mxu0 %v1670
    %v3017 = vpop.f32.mrf.mxu0
    %v3018 = vadd.f32 %v2633, %v3017
    %v3019 = vpop.f32.mrf.mxu0
    %3020 = vmatprep.mubr.f32.mxu0 %v1680
    %3021 = vmatmul.mubr.f32.gmra.mxu0 %v1679
    %v3022 = vpop.f32.mrf.mxu0
    %v3023 = vadd.f32 %v2638, %v3022
    %v3024 = vpop.f32.mrf.mxu0
    %3025 = vmatprep.mubr.f32.mxu0 %v1689
    %3026 = vmatmul.mubr.f32.gmra.mxu0 %v1688
    %v3027 = vpop.f32.mrf.mxu0
    %v3028 = vadd.f32 %v2643, %v3027
    %v3029 = vpop.f32.mrf.mxu0
    %3030 = vmatprep.mubr.f32.mxu0 %v1698
    %3031 = vmatmul.mubr.f32.gmra.mxu0 %v1697
    %v3032 = vpop.f32.mrf.mxu0
    %v3033 = vadd.f32 %v2648, %v3032
    %v3034 = vpop.f32.mrf.mxu0
    %3035 = vmatprep.mubr.f32.mxu0 %v1707
    %3036 = vmatmul.mubr.f32.gmra.mxu0 %v1706
    %v3037 = vpop.f32.mrf.mxu0
    %v3038 = vadd.f32 %v2653, %v3037
    %v3039 = vpop.f32.mrf.mxu0
    %3040 = vmatprep.mubr.f32.mxu0 %v1716
    %3041 = vmatmul.mubr.f32.gmra.mxu0 %v1715
    %v3042 = vpop.f32.mrf.mxu0
    %v3043 = vadd.f32 %v2658, %v3042
    %v3044 = vpop.f32.mrf.mxu0
    %3045 = vmatprep.mubr.f32.mxu0 %v1725
    %3046 = vmatmul.mubr.f32.gmra.mxu0 %v1724
    %v3047 = vpop.f32.mrf.mxu0
    %v3048 = vadd.f32 %v2663, %v3047
    %v3049 = vpop.f32.mrf.mxu0
    %3050 = vmatprep.mubr.f32.mxu0 %v1734
    %3051 = vmatmul.mubr.f32.gmra.mxu0 %v1733
    %v3052 = vpop.f32.mrf.mxu0
    %v3053 = vadd.f32 %v2668, %v3052
    %v3054 = vpop.f32.mrf.mxu0
    %3055 = vmatprep.mubr.f32.mxu0 %v1743
    %3056 = vmatmul.mubr.f32.gmra.mxu0 %v1742
    %v3057 = vpop.f32.mrf.mxu0
    %v3058 = vadd.f32 %v2673, %v3057
    %v3059 = vpop.f32.mrf.mxu0
    %3060 = vmatprep.mubr.f32.mxu0 %v1752
    %3061 = vmatmul.mubr.f32.gmra.mxu0 %v1751
    %v3062 = vpop.f32.mrf.mxu0
    %v3063 = vadd.f32 %v2678, %v3062
    %v3064 = vpop.f32.mrf.mxu0
    %3065 = vmatprep.mubr.f32.mxu0 %v1761
    %3066 = vmatmul.mubr.f32.gmra.mxu0 %v1760
    %v3067 = vpop.f32.mrf.mxu0
    %v3068 = vadd.f32 %v2683, %v3067
    %v3069 = vpop.f32.mrf.mxu0
    %3070 = vdwg.mxu0
    %3071 = vmatprep.subr.mxu0 0.0
    %3072 = vmatpush1.msra.mxu0 %v1876
    %3073 = vmatprep.subr.mxu0 0.0
    %3074 = vmatpush1.msra.mxu0 %v1875
    %3075 = vmatprep.subr.mxu0 0.0
    %3076 = vmatpush1.msra.mxu0 %v1874
    %3077 = vmatprep.subr.mxu0 0.0
    %3078 = vmatpush1.msra.mxu0 %v1873
    %3079 = vmatprep.subr.mxu0 0.0
    %3080 = vmatpush1.msra.mxu0 %v1872
    %3081 = vmatprep.subr.mxu0 0.0
    %3082 = vmatpush1.msra.mxu0 %v1871
    %3083 = vmatprep.subr.mxu0 0.0
    %3084 = vmatpush1.msra.mxu0 %v1870
    %3085 = vmatprep.subr.mxu0 0.0
    %3086 = vmatpush1.msra.mxu0 %v1869
    %3087 = vmatprep.subr.mxu0 0.0
    %3088 = vmatpush1.msra.mxu0 %v1868
    %3089 = vmatprep.subr.mxu0 0.0
    %3090 = vmatpush1.msra.mxu0 %v1867
    %3091 = vmatprep.subr.mxu0 0.0
    %3092 = vmatpush1.msra.mxu0 %v1866
    %3093 = vmatprep.subr.mxu0 0.0
    %3094 = vmatpush1.msra.mxu0 %v1865
    %3095 = vmatprep.subr.mxu0 0.0
    %3096 = vmatpush1.msra.mxu0 %v1864
    %3097 = vmatprep.subr.mxu0 0.0
    %3098 = vmatpush1.msra.mxu0 %v1863
    %3099 = vmatprep.subr.mxu0 0.0
    %3100 = vmatpush1.msra.mxu0 %v1862
    %3101 = vmatprep.subr.mxu0 0.0
    %3102 = vmatpush1.msra.mxu0 %v1861
    %3103 = vmatprep.subr.mxu0 0.0
    %3104 = vmatpush2.msra.mxu0 %v1892
    %3105 = vmatprep.subr.mxu0 0.0
    %3106 = vmatpush2.msra.mxu0 %v1891
    %3107 = vmatprep.subr.mxu0 0.0
    %3108 = vmatpush2.msra.mxu0 %v1890
    %3109 = vmatprep.subr.mxu0 0.0
    %3110 = vmatpush2.msra.mxu0 %v1889
    %3111 = vmatprep.subr.mxu0 0.0
    %3112 = vmatpush2.msra.mxu0 %v1888
    %3113 = vmatprep.subr.mxu0 0.0
    %3114 = vmatpush2.msra.mxu0 %v1887
    %3115 = vmatprep.subr.mxu0 0.0
    %3116 = vmatpush2.msra.mxu0 %v1886
    %3117 = vmatprep.subr.mxu0 0.0
    %3118 = vmatpush2.msra.mxu0 %v1885
    %3119 = vmatprep.subr.mxu0 0.0
    %3120 = vmatpush2.msra.mxu0 %v1884
    %3121 = vmatprep.subr.mxu0 0.0
    %3122 = vmatpush2.msra.mxu0 %v1883
    %3123 = vmatprep.subr.mxu0 0.0
    %3124 = vmatpush2.msra.mxu0 %v1882
    %3125 = vmatprep.subr.mxu0 0.0
    %3126 = vmatpush2.msra.mxu0 %v1881
    %3127 = vmatprep.subr.mxu0 0.0
    %3128 = vmatpush2.msra.mxu0 %v1880
    %3129 = vmatprep.subr.mxu0 0.0
    %3130 = vmatpush2.msra.mxu0 %v1879
    %3131 = vmatprep.subr.mxu0 0.0
    %3132 = vmatpush2.msra.mxu0 %v1878
    %3133 = vmatprep.subr.mxu0 0.0
    %3134 = vmatpush2.msra.mxu0 %v1877
    %3135 = vmatprep.mubr.f32.mxu0 %v1196
    %3136 = vmatmul.mubr.f32.gmra.mxu0 %v1195
    %v3137 = vpop.f32.mrf.mxu0
    %v3138 = vadd.f32 %v2753, %v3137
    %v3139 = vpop.f32.mrf.mxu0
    %3140 = vmatprep.mubr.f32.mxu0 %v1205
    %3141 = vmatmul.mubr.f32.gmra.mxu0 %v1204
    %v3142 = vpop.f32.mrf.mxu0
    %v3143 = vadd.f32 %v2758, %v3142
    %v3144 = vpop.f32.mrf.mxu0
    %3145 = vmatprep.mubr.f32.mxu0 %v1214
    %3146 = vmatmul.mubr.f32.gmra.mxu0 %v1213
    %v3147 = vpop.f32.mrf.mxu0
    %v3148 = vadd.f32 %v2763, %v3147
    %v3149 = vpop.f32.mrf.mxu0
    %3150 = vmatprep.mubr.f32.mxu0 %v1223
    %3151 = vmatmul.mubr.f32.gmra.mxu0 %v1222
    %v3152 = vpop.f32.mrf.mxu0
    %v3153 = vadd.f32 %v2768, %v3152
    %v3154 = vpop.f32.mrf.mxu0
    %3155 = vmatprep.mubr.f32.mxu0 %v1232
    %3156 = vmatmul.mubr.f32.gmra.mxu0 %v1231
    %v3157 = vpop.f32.mrf.mxu0
    %v3158 = vadd.f32 %v2773, %v3157
    %v3159 = vpop.f32.mrf.mxu0
    %3160 = vmatprep.mubr.f32.mxu0 %v1241
    %3161 = vmatmul.mubr.f32.gmra.mxu0 %v1240
    %v3162 = vpop.f32.mrf.mxu0
    %v3163 = vadd.f32 %v2778, %v3162
    %v3164 = vpop.f32.mrf.mxu0
    %3165 = vmatprep.mubr.f32.mxu0 %v1250
    %3166 = vmatmul.mubr.f32.gmra.mxu0 %v1249
    %v3167 = vpop.f32.mrf.mxu0
    %v3168 = vadd.f32 %v2783, %v3167
    %v3169 = vpop.f32.mrf.mxu0
    %3170 = vmatprep.mubr.f32.mxu0 %v1259
    %3171 = vmatmul.mubr.f32.gmra.mxu0 %v1258
    %v3172 = vpop.f32.mrf.mxu0
    %v3173 = vadd.f32 %v2788, %v3172
    %v3174 = vpop.f32.mrf.mxu0
    %3175 = vmatprep.mubr.f32.mxu0 %v1268
    %3176 = vmatmul.mubr.f32.gmra.mxu0 %v1267
    %v3177 = vpop.f32.mrf.mxu0
    %v3178 = vadd.f32 %v2793, %v3177
    %v3179 = vpop.f32.mrf.mxu0
    %3180 = vmatprep.mubr.f32.mxu0 %v1277
    %3181 = vmatmul.mubr.f32.gmra.mxu0 %v1276
    %v3182 = vpop.f32.mrf.mxu0
    %v3183 = vadd.f32 %v2798, %v3182
    %v3184 = vpop.f32.mrf.mxu0
    %3185 = vmatprep.mubr.f32.mxu0 %v1286
    %3186 = vmatmul.mubr.f32.gmra.mxu0 %v1285
    %v3187 = vpop.f32.mrf.mxu0
    %v3188 = vadd.f32 %v2803, %v3187
    %v3189 = vpop.f32.mrf.mxu0
    %3190 = vmatprep.mubr.f32.mxu0 %v1295
    %3191 = vmatmul.mubr.f32.gmra.mxu0 %v1294
    %v3192 = vpop.f32.mrf.mxu0
    %v3193 = vadd.f32 %v2808, %v3192
    %v3194 = vpop.f32.mrf.mxu0
    %3195 = vmatprep.mubr.f32.mxu0 %v1304
    %3196 = vmatmul.mubr.f32.gmra.mxu0 %v1303
    %v3197 = vpop.f32.mrf.mxu0
    %v3198 = vadd.f32 %v2813, %v3197
    %v3199 = vpop.f32.mrf.mxu0
    %3200 = vmatprep.mubr.f32.mxu0 %v1313
    %3201 = vmatmul.mubr.f32.gmra.mxu0 %v1312
    %v3202 = vpop.f32.mrf.mxu0
    %v3203 = vadd.f32 %v2818, %v3202
    %v3204 = vpop.f32.mrf.mxu0
    %3205 = vmatprep.mubr.f32.mxu0 %v1322
    %3206 = vmatmul.mubr.f32.gmra.mxu0 %v1321
    %v3207 = vpop.f32.mrf.mxu0
    %v3208 = vadd.f32 %v2823, %v3207
    %v3209 = vpop.f32.mrf.mxu0
    %3210 = vmatprep.mubr.f32.mxu0 %v1331
    %3211 = vmatmul.mubr.f32.gmra.mxu0 %v1330
    %v3212 = vpop.f32.mrf.mxu0
    %v3213 = vadd.f32 %v2828, %v3212
    %v3214 = vpop.f32.mrf.mxu0
    %3215 = vmatprep.mubr.f32.mxu0 %v1340
    %3216 = vmatmul.mubr.f32.gmra.mxu0 %v1339
    %v3217 = vpop.f32.mrf.mxu0
    %v3218 = vadd.f32 %v2833, %v3217
    %v3219 = vpop.f32.mrf.mxu0
    %3220 = vmatprep.mubr.f32.mxu0 %v1349
    %3221 = vmatmul.mubr.f32.gmra.mxu0 %v1348
    %v3222 = vpop.f32.mrf.mxu0
    %v3223 = vadd.f32 %v2838, %v3222
    %v3224 = vpop.f32.mrf.mxu0
    %3225 = vmatprep.mubr.f32.mxu0 %v1358
    %3226 = vmatmul.mubr.f32.gmra.mxu0 %v1357
    %v3227 = vpop.f32.mrf.mxu0
    %v3228 = vadd.f32 %v2843, %v3227
    %v3229 = vpop.f32.mrf.mxu0
    %3230 = vmatprep.mubr.f32.mxu0 %v1367
    %3231 = vmatmul.mubr.f32.gmra.mxu0 %v1366
    %v3232 = vpop.f32.mrf.mxu0
    %v3233 = vadd.f32 %v2848, %v3232
    %v3234 = vpop.f32.mrf.mxu0
    %3235 = vmatprep.mubr.f32.mxu0 %v1376
    %3236 = vmatmul.mubr.f32.gmra.mxu0 %v1375
    %v3237 = vpop.f32.mrf.mxu0
    %v3238 = vadd.f32 %v2853, %v3237
    %v3239 = vpop.f32.mrf.mxu0
    %3240 = vmatprep.mubr.f32.mxu0 %v1385
    %3241 = vmatmul.mubr.f32.gmra.mxu0 %v1384
    %v3242 = vpop.f32.mrf.mxu0
    %v3243 = vadd.f32 %v2858, %v3242
    %v3244 = vpop.f32.mrf.mxu0
    %3245 = vmatprep.mubr.f32.mxu0 %v1394
    %3246 = vmatmul.mubr.f32.gmra.mxu0 %v1393
    %v3247 = vpop.f32.mrf.mxu0
    %v3248 = vadd.f32 %v2863, %v3247
    %v3249 = vpop.f32.mrf.mxu0
    %3250 = vmatprep.mubr.f32.mxu0 %v1403
    %3251 = vmatmul.mubr.f32.gmra.mxu0 %v1402
    %v3252 = vpop.f32.mrf.mxu0
    %v3253 = vadd.f32 %v2868, %v3252
    %v3254 = vpop.f32.mrf.mxu0
    %3255 = vmatprep.mubr.f32.mxu0 %v1412
    %3256 = vmatmul.mubr.f32.gmra.mxu0 %v1411
    %v3257 = vpop.f32.mrf.mxu0
    %v3258 = vadd.f32 %v2873, %v3257
    %v3259 = vpop.f32.mrf.mxu0
    %3260 = vmatprep.mubr.f32.mxu0 %v1421
    %3261 = vmatmul.mubr.f32.gmra.mxu0 %v1420
    %v3262 = vpop.f32.mrf.mxu0
    %v3263 = vadd.f32 %v2878, %v3262
    %v3264 = vpop.f32.mrf.mxu0
    %3265 = vmatprep.mubr.f32.mxu0 %v1430
    %3266 = vmatmul.mubr.f32.gmra.mxu0 %v1429
    %v3267 = vpop.f32.mrf.mxu0
    %v3268 = vadd.f32 %v2883, %v3267
    %v3269 = vpop.f32.mrf.mxu0
    %3270 = vmatprep.mubr.f32.mxu0 %v1439
    %3271 = vmatmul.mubr.f32.gmra.mxu0 %v1438
    %v3272 = vpop.f32.mrf.mxu0
    %v3273 = vadd.f32 %v2888, %v3272
    %v3274 = vpop.f32.mrf.mxu0
    %3275 = vmatprep.mubr.f32.mxu0 %v1448
    %3276 = vmatmul.mubr.f32.gmra.mxu0 %v1447
    %v3277 = vpop.f32.mrf.mxu0
    %v3278 = vadd.f32 %v2893, %v3277
    %v3279 = vpop.f32.mrf.mxu0
    %3280 = vmatprep.mubr.f32.mxu0 %v1457
    %3281 = vmatmul.mubr.f32.gmra.mxu0 %v1456
    %v3282 = vpop.f32.mrf.mxu0
    %v3283 = vadd.f32 %v2898, %v3282
    %v3284 = vpop.f32.mrf.mxu0
    %3285 = vmatprep.mubr.f32.mxu0 %v1466
    %3286 = vmatmul.mubr.f32.gmra.mxu0 %v1465
    %v3287 = vpop.f32.mrf.mxu0
    %v3288 = vadd.f32 %v2903, %v3287
    %v3289 = vpop.f32.mrf.mxu0
    %3290 = vmatprep.mubr.f32.mxu0 %v1475
    %3291 = vmatmul.mubr.f32.gmra.mxu0 %v1474
    %v3292 = vpop.f32.mrf.mxu0
    %v3293 = vadd.f32 %v2908, %v3292
    %v3294 = vpop.f32.mrf.mxu0
    %3295 = vmatprep.mubr.f32.mxu0 %v1484
    %3296 = vmatmul.mubr.f32.gmra.mxu0 %v1483
    %v3297 = vpop.f32.mrf.mxu0
    %v3298 = vadd.f32 %v2913, %v3297
    %v3299 = vpop.f32.mrf.mxu0
    %3300 = vmatprep.mubr.f32.mxu0 %v1493
    %3301 = vmatmul.mubr.f32.gmra.mxu0 %v1492
    %v3302 = vpop.f32.mrf.mxu0
    %v3303 = vadd.f32 %v2918, %v3302
    %v3304 = vpop.f32.mrf.mxu0
    %3305 = vmatprep.mubr.f32.mxu0 %v1502
    %3306 = vmatmul.mubr.f32.gmra.mxu0 %v1501
    %v3307 = vpop.f32.mrf.mxu0
    %v3308 = vadd.f32 %v2923, %v3307
    %v3309 = vpop.f32.mrf.mxu0
    %3310 = vmatprep.mubr.f32.mxu0 %v1511
    %3311 = vmatmul.mubr.f32.gmra.mxu0 %v1510
    %v3312 = vpop.f32.mrf.mxu0
    %v3313 = vadd.f32 %v2928, %v3312
    %v3314 = vpop.f32.mrf.mxu0
    %3315 = vmatprep.mubr.f32.mxu0 %v1520
    %3316 = vmatmul.mubr.f32.gmra.mxu0 %v1519
    %v3317 = vpop.f32.mrf.mxu0
    %v3318 = vadd.f32 %v2933, %v3317
    %v3319 = vpop.f32.mrf.mxu0
    %3320 = vmatprep.mubr.f32.mxu0 %v1529
    %3321 = vmatmul.mubr.f32.gmra.mxu0 %v1528
    %v3322 = vpop.f32.mrf.mxu0
    %v3323 = vadd.f32 %v2938, %v3322
    %v3324 = vpop.f32.mrf.mxu0
    %3325 = vmatprep.mubr.f32.mxu0 %v1538
    %3326 = vmatmul.mubr.f32.gmra.mxu0 %v1537
    %v3327 = vpop.f32.mrf.mxu0
    %v3328 = vadd.f32 %v2943, %v3327
    %v3329 = vpop.f32.mrf.mxu0
    %3330 = vmatprep.mubr.f32.mxu0 %v1547
    %3331 = vmatmul.mubr.f32.gmra.mxu0 %v1546
    %v3332 = vpop.f32.mrf.mxu0
    %v3333 = vadd.f32 %v2948, %v3332
    %v3334 = vpop.f32.mrf.mxu0
    %3335 = vmatprep.mubr.f32.mxu0 %v1556
    %3336 = vmatmul.mubr.f32.gmra.mxu0 %v1555
    %v3337 = vpop.f32.mrf.mxu0
    %v3338 = vadd.f32 %v2953, %v3337
    %v3339 = vpop.f32.mrf.mxu0
    %3340 = vmatprep.mubr.f32.mxu0 %v1565
    %3341 = vmatmul.mubr.f32.gmra.mxu0 %v1564
    %v3342 = vpop.f32.mrf.mxu0
    %v3343 = vadd.f32 %v2958, %v3342
    %v3344 = vpop.f32.mrf.mxu0
    %3345 = vmatprep.mubr.f32.mxu0 %v1574
    %3346 = vmatmul.mubr.f32.gmra.mxu0 %v1573
    %v3347 = vpop.f32.mrf.mxu0
    %v3348 = vadd.f32 %v2963, %v3347
    %v3349 = vpop.f32.mrf.mxu0
    %3350 = vmatprep.mubr.f32.mxu0 %v1583
    %3351 = vmatmul.mubr.f32.gmra.mxu0 %v1582
    %v3352 = vpop.f32.mrf.mxu0
    %v3353 = vadd.f32 %v2968, %v3352
    %v3354 = vpop.f32.mrf.mxu0
    %3355 = vmatprep.mubr.f32.mxu0 %v1592
    %3356 = vmatmul.mubr.f32.gmra.mxu0 %v1591
    %v3357 = vpop.f32.mrf.mxu0
    %v3358 = vadd.f32 %v2973, %v3357
    %v3359 = vpop.f32.mrf.mxu0
    %3360 = vmatprep.mubr.f32.mxu0 %v1601
    %3361 = vmatmul.mubr.f32.gmra.mxu0 %v1600
    %v3362 = vpop.f32.mrf.mxu0
    %v3363 = vadd.f32 %v2978, %v3362
    %v3364 = vpop.f32.mrf.mxu0
    %3365 = vmatprep.mubr.f32.mxu0 %v1610
    %3366 = vmatmul.mubr.f32.gmra.mxu0 %v1609
    %v3367 = vpop.f32.mrf.mxu0
    %v3368 = vadd.f32 %v2983, %v3367
    %v3369 = vpop.f32.mrf.mxu0
    %3370 = vmatprep.mubr.f32.mxu0 %v1619
    %3371 = vmatmul.mubr.f32.gmra.mxu0 %v1618
    %v3372 = vpop.f32.mrf.mxu0
    %v3373 = vadd.f32 %v2988, %v3372
    %v3374 = vpop.f32.mrf.mxu0
    %3375 = vmatprep.mubr.f32.mxu0 %v1628
    %3376 = vmatmul.mubr.f32.gmra.mxu0 %v1627
    %v3377 = vpop.f32.mrf.mxu0
    %v3378 = vadd.f32 %v2993, %v3377
    %v3379 = vpop.f32.mrf.mxu0
    %3380 = vmatprep.mubr.f32.mxu0 %v1637
    %3381 = vmatmul.mubr.f32.gmra.mxu0 %v1636
    %v3382 = vpop.f32.mrf.mxu0
    %v3383 = vadd.f32 %v2998, %v3382
    %v3384 = vpop.f32.mrf.mxu0
    %3385 = vmatprep.mubr.f32.mxu0 %v1646
    %3386 = vmatmul.mubr.f32.gmra.mxu0 %v1645
    %v3387 = vpop.f32.mrf.mxu0
    %v3388 = vadd.f32 %v3003, %v3387
    %v3389 = vpop.f32.mrf.mxu0
    %3390 = vmatprep.mubr.f32.mxu0 %v1655
    %3391 = vmatmul.mubr.f32.gmra.mxu0 %v1654
    %v3392 = vpop.f32.mrf.mxu0
    %v3393 = vadd.f32 %v3008, %v3392
    %v3394 = vpop.f32.mrf.mxu0
    %3395 = vmatprep.mubr.f32.mxu0 %v1664
    %3396 = vmatmul.mubr.f32.gmra.mxu0 %v1663
    %v3397 = vpop.f32.mrf.mxu0
    %v3398 = vadd.f32 %v3013, %v3397
    %v3399 = vpop.f32.mrf.mxu0
    %3400 = vmatprep.mubr.f32.mxu0 %v1673
    %3401 = vmatmul.mubr.f32.gmra.mxu0 %v1672
    %v3402 = vpop.f32.mrf.mxu0
    %v3403 = vadd.f32 %v3018, %v3402
    %v3404 = vpop.f32.mrf.mxu0
    %3405 = vmatprep.mubr.f32.mxu0 %v1682
    %3406 = vmatmul.mubr.f32.gmra.mxu0 %v1681
    %v3407 = vpop.f32.mrf.mxu0
    %v3408 = vadd.f32 %v3023, %v3407
    %v3409 = vpop.f32.mrf.mxu0
    %3410 = vmatprep.mubr.f32.mxu0 %v1691
    %3411 = vmatmul.mubr.f32.gmra.mxu0 %v1690
    %v3412 = vpop.f32.mrf.mxu0
    %v3413 = vadd.f32 %v3028, %v3412
    %v3414 = vpop.f32.mrf.mxu0
    %3415 = vmatprep.mubr.f32.mxu0 %v1700
    %3416 = vmatmul.mubr.f32.gmra.mxu0 %v1699
    %v3417 = vpop.f32.mrf.mxu0
    %v3418 = vadd.f32 %v3033, %v3417
    %v3419 = vpop.f32.mrf.mxu0
    %3420 = vmatprep.mubr.f32.mxu0 %v1709
    %3421 = vmatmul.mubr.f32.gmra.mxu0 %v1708
    %v3422 = vpop.f32.mrf.mxu0
    %v3423 = vadd.f32 %v3038, %v3422
    %v3424 = vpop.f32.mrf.mxu0
    %3425 = vmatprep.mubr.f32.mxu0 %v1718
    %3426 = vmatmul.mubr.f32.gmra.mxu0 %v1717
    %v3427 = vpop.f32.mrf.mxu0
    %v3428 = vadd.f32 %v3043, %v3427
    %v3429 = vpop.f32.mrf.mxu0
    %3430 = vmatprep.mubr.f32.mxu0 %v1727
    %3431 = vmatmul.mubr.f32.gmra.mxu0 %v1726
    %v3432 = vpop.f32.mrf.mxu0
    %v3433 = vadd.f32 %v3048, %v3432
    %v3434 = vpop.f32.mrf.mxu0
    %3435 = vmatprep.mubr.f32.mxu0 %v1736
    %3436 = vmatmul.mubr.f32.gmra.mxu0 %v1735
    %v3437 = vpop.f32.mrf.mxu0
    %v3438 = vadd.f32 %v3053, %v3437
    %v3439 = vpop.f32.mrf.mxu0
    %3440 = vmatprep.mubr.f32.mxu0 %v1745
    %3441 = vmatmul.mubr.f32.gmra.mxu0 %v1744
    %v3442 = vpop.f32.mrf.mxu0
    %v3443 = vadd.f32 %v3058, %v3442
    %v3444 = vpop.f32.mrf.mxu0
    %3445 = vmatprep.mubr.f32.mxu0 %v1754
    %3446 = vmatmul.mubr.f32.gmra.mxu0 %v1753
    %v3447 = vpop.f32.mrf.mxu0
    %v3448 = vadd.f32 %v3063, %v3447
    %v3449 = vpop.f32.mrf.mxu0
    %3450 = vmatprep.mubr.f32.mxu0 %v1763
    %3451 = vmatmul.mubr.f32.gmra.mxu0 %v1762
    %v3452 = vpop.f32.mrf.mxu0
    %v3453 = vadd.f32 %v3068, %v3452
    %v3454 = vpop.f32.mrf.mxu0
    %3455 = vdwg.mxu0
    %3456 = vmatprep.subr.mxu0 0.0
    %3457 = vmatpush1.msra.mxu0 %v1908
    %3458 = vmatprep.subr.mxu0 0.0
    %3459 = vmatpush1.msra.mxu0 %v1907
    %3460 = vmatprep.subr.mxu0 0.0
    %3461 = vmatpush1.msra.mxu0 %v1906
    %3462 = vmatprep.subr.mxu0 0.0
    %3463 = vmatpush1.msra.mxu0 %v1905
    %3464 = vmatprep.subr.mxu0 0.0
    %3465 = vmatpush1.msra.mxu0 %v1904
    %3466 = vmatprep.subr.mxu0 0.0
    %3467 = vmatpush1.msra.mxu0 %v1903
    %3468 = vmatprep.subr.mxu0 0.0
    %3469 = vmatpush1.msra.mxu0 %v1902
    %3470 = vmatprep.subr.mxu0 0.0
    %3471 = vmatpush1.msra.mxu0 %v1901
    %3472 = vmatprep.subr.mxu0 0.0
    %3473 = vmatpush1.msra.mxu0 %v1900
    %3474 = vmatprep.subr.mxu0 0.0
    %3475 = vmatpush1.msra.mxu0 %v1899
    %3476 = vmatprep.subr.mxu0 0.0
    %3477 = vmatpush1.msra.mxu0 %v1898
    %3478 = vmatprep.subr.mxu0 0.0
    %3479 = vmatpush1.msra.mxu0 %v1897
    %3480 = vmatprep.subr.mxu0 0.0
    %3481 = vmatpush1.msra.mxu0 %v1896
    %3482 = vmatprep.subr.mxu0 0.0
    %3483 = vmatpush1.msra.mxu0 %v1895
    %3484 = vmatprep.subr.mxu0 0.0
    %3485 = vmatpush1.msra.mxu0 %v1894
    %3486 = vmatprep.subr.mxu0 0.0
    %3487 = vmatpush1.msra.mxu0 %v1893
    %3488 = vmatprep.subr.mxu0 0.0
    %3489 = vmatpush2.msra.mxu0 0.0
    %3490 = vmatprep.subr.mxu0 0.0
    %3491 = vmatpush2.msra.mxu0 0.0
    %3492 = vmatprep.subr.mxu0 0.0
    %3493 = vmatpush2.msra.mxu0 0.0
    %3494 = vmatprep.subr.mxu0 0.0
    %3495 = vmatpush2.msra.mxu0 0.0
    %3496 = vmatprep.subr.mxu0 0.0
    %3497 = vmatpush2.msra.mxu0 0.0
    %3498 = vmatprep.subr.mxu0 0.0
    %3499 = vmatpush2.msra.mxu0 0.0
    %3500 = vmatprep.subr.mxu0 0.0
    %3501 = vmatpush2.msra.mxu0 0.0
    %3502 = vmatprep.subr.mxu0 0.0
    %3503 = vmatpush2.msra.mxu0 0.0
    %3504 = vmatprep.subr.mxu0 0.0
    %3505 = vmatpush2.msra.mxu0 0.0
    %3506 = vmatprep.subr.mxu0 0.0
    %3507 = vmatpush2.msra.mxu0 0.0
    %3508 = vmatprep.subr.mxu0 0.0
    %3509 = vmatpush2.msra.mxu0 0.0
    %3510 = vmatprep.subr.mxu0 0.0
    %3511 = vmatpush2.msra.mxu0 0.0
    %3512 = vmatprep.subr.mxu0 0.0
    %3513 = vmatpush2.msra.mxu0 0.0
    %3514 = vmatprep.subr.mxu0 0.0
    %3515 = vmatpush2.msra.mxu0 0.0
    %3516 = vmatprep.subr.mxu0 0.0
    %3517 = vmatpush2.msra.mxu0 0.0
    %3518 = vmatprep.subr.mxu0 0.0
    %3519 = vmatpush2.msra.mxu0 0.0
    %3520 = vmatprep.mubr.f32.mxu0 0.0
    %3521 = vmatmul.mubr.f32.gmra.mxu0 %v1197
    %v3522 = vpop.f32.mrf.mxu0
    %v3523 = vadd.f32 %v3138, %v3522
    %v3524 = vpop.f32.mrf.mxu0
    %3525 = vmatprep.mubr.f32.mxu0 0.0
    %3526 = vmatmul.mubr.f32.gmra.mxu0 %v1206
    %v3527 = vpop.f32.mrf.mxu0
    %v3528 = vadd.f32 %v3143, %v3527
    %v3529 = vpop.f32.mrf.mxu0
    %3530 = vmatprep.mubr.f32.mxu0 0.0
    %3531 = vmatmul.mubr.f32.gmra.mxu0 %v1215
    %v3532 = vpop.f32.mrf.mxu0
    %v3533 = vadd.f32 %v3148, %v3532
    %v3534 = vpop.f32.mrf.mxu0
    %3535 = vmatprep.mubr.f32.mxu0 0.0
    %3536 = vmatmul.mubr.f32.gmra.mxu0 %v1224
    %v3537 = vpop.f32.mrf.mxu0
    %v3538 = vadd.f32 %v3153, %v3537
    %v3539 = vpop.f32.mrf.mxu0
    %3540 = vmatprep.mubr.f32.mxu0 0.0
    %3541 = vmatmul.mubr.f32.gmra.mxu0 %v1233
    %v3542 = vpop.f32.mrf.mxu0
    %v3543 = vadd.f32 %v3158, %v3542
    %v3544 = vpop.f32.mrf.mxu0
    %3545 = vmatprep.mubr.f32.mxu0 0.0
    %3546 = vmatmul.mubr.f32.gmra.mxu0 %v1242
    %v3547 = vpop.f32.mrf.mxu0
    %v3548 = vadd.f32 %v3163, %v3547
    %v3549 = vpop.f32.mrf.mxu0
    %3550 = vmatprep.mubr.f32.mxu0 0.0
    %3551 = vmatmul.mubr.f32.gmra.mxu0 %v1251
    %v3552 = vpop.f32.mrf.mxu0
    %v3553 = vadd.f32 %v3168, %v3552
    %v3554 = vpop.f32.mrf.mxu0
    %3555 = vmatprep.mubr.f32.mxu0 0.0
    %3556 = vmatmul.mubr.f32.gmra.mxu0 %v1260
    %v3557 = vpop.f32.mrf.mxu0
    %v3558 = vadd.f32 %v3173, %v3557
    %v3559 = vpop.f32.mrf.mxu0
    %3560 = vmatprep.mubr.f32.mxu0 0.0
    %3561 = vmatmul.mubr.f32.gmra.mxu0 %v1269
    %v3562 = vpop.f32.mrf.mxu0
    %v3563 = vadd.f32 %v3178, %v3562
    %v3564 = vpop.f32.mrf.mxu0
    %3565 = vmatprep.mubr.f32.mxu0 0.0
    %3566 = vmatmul.mubr.f32.gmra.mxu0 %v1278
    %v3567 = vpop.f32.mrf.mxu0
    %v3568 = vadd.f32 %v3183, %v3567
    %v3569 = vpop.f32.mrf.mxu0
    %3570 = vmatprep.mubr.f32.mxu0 0.0
    %3571 = vmatmul.mubr.f32.gmra.mxu0 %v1287
    %v3572 = vpop.f32.mrf.mxu0
    %v3573 = vadd.f32 %v3188, %v3572
    %v3574 = vpop.f32.mrf.mxu0
    %3575 = vmatprep.mubr.f32.mxu0 0.0
    %3576 = vmatmul.mubr.f32.gmra.mxu0 %v1296
    %v3577 = vpop.f32.mrf.mxu0
    %v3578 = vadd.f32 %v3193, %v3577
    %v3579 = vpop.f32.mrf.mxu0
    %3580 = vmatprep.mubr.f32.mxu0 0.0
    %3581 = vmatmul.mubr.f32.gmra.mxu0 %v1305
    %v3582 = vpop.f32.mrf.mxu0
    %v3583 = vadd.f32 %v3198, %v3582
    %v3584 = vpop.f32.mrf.mxu0
    %3585 = vmatprep.mubr.f32.mxu0 0.0
    %3586 = vmatmul.mubr.f32.gmra.mxu0 %v1314
    %v3587 = vpop.f32.mrf.mxu0
    %v3588 = vadd.f32 %v3203, %v3587
    %v3589 = vpop.f32.mrf.mxu0
    %3590 = vmatprep.mubr.f32.mxu0 0.0
    %3591 = vmatmul.mubr.f32.gmra.mxu0 %v1323
    %v3592 = vpop.f32.mrf.mxu0
    %v3593 = vadd.f32 %v3208, %v3592
    %v3594 = vpop.f32.mrf.mxu0
    %3595 = vmatprep.mubr.f32.mxu0 0.0
    %3596 = vmatmul.mubr.f32.gmra.mxu0 %v1332
    %v3597 = vpop.f32.mrf.mxu0
    %v3598 = vadd.f32 %v3213, %v3597
    %v3599 = vpop.f32.mrf.mxu0
    %3600 = vmatprep.mubr.f32.mxu0 0.0
    %3601 = vmatmul.mubr.f32.gmra.mxu0 %v1341
    %v3602 = vpop.f32.mrf.mxu0
    %v3603 = vadd.f32 %v3218, %v3602
    %v3604 = vpop.f32.mrf.mxu0
    %3605 = vmatprep.mubr.f32.mxu0 0.0
    %3606 = vmatmul.mubr.f32.gmra.mxu0 %v1350
    %v3607 = vpop.f32.mrf.mxu0
    %v3608 = vadd.f32 %v3223, %v3607
    %v3609 = vpop.f32.mrf.mxu0
    %3610 = vmatprep.mubr.f32.mxu0 0.0
    %3611 = vmatmul.mubr.f32.gmra.mxu0 %v1359
    %v3612 = vpop.f32.mrf.mxu0
    %v3613 = vadd.f32 %v3228, %v3612
    %v3614 = vpop.f32.mrf.mxu0
    %3615 = vmatprep.mubr.f32.mxu0 0.0
    %3616 = vmatmul.mubr.f32.gmra.mxu0 %v1368
    %v3617 = vpop.f32.mrf.mxu0
    %v3618 = vadd.f32 %v3233, %v3617
    %v3619 = vpop.f32.mrf.mxu0
    %3620 = vmatprep.mubr.f32.mxu0 0.0
    %3621 = vmatmul.mubr.f32.gmra.mxu0 %v1377
    %v3622 = vpop.f32.mrf.mxu0
    %v3623 = vadd.f32 %v3238, %v3622
    %v3624 = vpop.f32.mrf.mxu0
    %3625 = vmatprep.mubr.f32.mxu0 0.0
    %3626 = vmatmul.mubr.f32.gmra.mxu0 %v1386
    %v3627 = vpop.f32.mrf.mxu0
    %v3628 = vadd.f32 %v3243, %v3627
    %v3629 = vpop.f32.mrf.mxu0
    %3630 = vmatprep.mubr.f32.mxu0 0.0
    %3631 = vmatmul.mubr.f32.gmra.mxu0 %v1395
    %v3632 = vpop.f32.mrf.mxu0
    %v3633 = vadd.f32 %v3248, %v3632
    %v3634 = vpop.f32.mrf.mxu0
    %3635 = vmatprep.mubr.f32.mxu0 0.0
    %3636 = vmatmul.mubr.f32.gmra.mxu0 %v1404
    %v3637 = vpop.f32.mrf.mxu0
    %v3638 = vadd.f32 %v3253, %v3637
    %v3639 = vpop.f32.mrf.mxu0
    %3640 = vmatprep.mubr.f32.mxu0 0.0
    %3641 = vmatmul.mubr.f32.gmra.mxu0 %v1413
    %v3642 = vpop.f32.mrf.mxu0
    %v3643 = vadd.f32 %v3258, %v3642
    %v3644 = vpop.f32.mrf.mxu0
    %3645 = vmatprep.mubr.f32.mxu0 0.0
    %3646 = vmatmul.mubr.f32.gmra.mxu0 %v1422
    %v3647 = vpop.f32.mrf.mxu0
    %v3648 = vadd.f32 %v3263, %v3647
    %v3649 = vpop.f32.mrf.mxu0
    %3650 = vmatprep.mubr.f32.mxu0 0.0
    %3651 = vmatmul.mubr.f32.gmra.mxu0 %v1431
    %v3652 = vpop.f32.mrf.mxu0
    %v3653 = vadd.f32 %v3268, %v3652
    %v3654 = vpop.f32.mrf.mxu0
    %3655 = vmatprep.mubr.f32.mxu0 0.0
    %3656 = vmatmul.mubr.f32.gmra.mxu0 %v1440
    %v3657 = vpop.f32.mrf.mxu0
    %v3658 = vadd.f32 %v3273, %v3657
    %v3659 = vpop.f32.mrf.mxu0
    %3660 = vmatprep.mubr.f32.mxu0 0.0
    %3661 = vmatmul.mubr.f32.gmra.mxu0 %v1449
    %v3662 = vpop.f32.mrf.mxu0
    %v3663 = vadd.f32 %v3278, %v3662
    %v3664 = vpop.f32.mrf.mxu0
    %3665 = vmatprep.mubr.f32.mxu0 0.0
    %3666 = vmatmul.mubr.f32.gmra.mxu0 %v1458
    %v3667 = vpop.f32.mrf.mxu0
    %v3668 = vadd.f32 %v3283, %v3667
    %v3669 = vpop.f32.mrf.mxu0
    %3670 = vmatprep.mubr.f32.mxu0 0.0
    %3671 = vmatmul.mubr.f32.gmra.mxu0 %v1467
    %v3672 = vpop.f32.mrf.mxu0
    %v3673 = vadd.f32 %v3288, %v3672
    %v3674 = vpop.f32.mrf.mxu0
    %3675 = vmatprep.mubr.f32.mxu0 0.0
    %3676 = vmatmul.mubr.f32.gmra.mxu0 %v1476
    %v3677 = vpop.f32.mrf.mxu0
    %v3678 = vadd.f32 %v3293, %v3677
    %v3679 = vpop.f32.mrf.mxu0
    %3680 = vmatprep.mubr.f32.mxu0 0.0
    %3681 = vmatmul.mubr.f32.gmra.mxu0 %v1485
    %v3682 = vpop.f32.mrf.mxu0
    %v3683 = vadd.f32 %v3298, %v3682
    %v3684 = vpop.f32.mrf.mxu0
    %3685 = vmatprep.mubr.f32.mxu0 0.0
    %3686 = vmatmul.mubr.f32.gmra.mxu0 %v1494
    %v3687 = vpop.f32.mrf.mxu0
    %v3688 = vadd.f32 %v3303, %v3687
    %v3689 = vpop.f32.mrf.mxu0
    %3690 = vmatprep.mubr.f32.mxu0 0.0
    %3691 = vmatmul.mubr.f32.gmra.mxu0 %v1503
    %v3692 = vpop.f32.mrf.mxu0
    %v3693 = vadd.f32 %v3308, %v3692
    %v3694 = vpop.f32.mrf.mxu0
    %3695 = vmatprep.mubr.f32.mxu0 0.0
    %3696 = vmatmul.mubr.f32.gmra.mxu0 %v1512
    %v3697 = vpop.f32.mrf.mxu0
    %v3698 = vadd.f32 %v3313, %v3697
    %v3699 = vpop.f32.mrf.mxu0
    %3700 = vmatprep.mubr.f32.mxu0 0.0
    %3701 = vmatmul.mubr.f32.gmra.mxu0 %v1521
    %v3702 = vpop.f32.mrf.mxu0
    %v3703 = vadd.f32 %v3318, %v3702
    %v3704 = vpop.f32.mrf.mxu0
    %3705 = vmatprep.mubr.f32.mxu0 0.0
    %3706 = vmatmul.mubr.f32.gmra.mxu0 %v1530
    %v3707 = vpop.f32.mrf.mxu0
    %v3708 = vadd.f32 %v3323, %v3707
    %v3709 = vpop.f32.mrf.mxu0
    %3710 = vmatprep.mubr.f32.mxu0 0.0
    %3711 = vmatmul.mubr.f32.gmra.mxu0 %v1539
    %v3712 = vpop.f32.mrf.mxu0
    %v3713 = vadd.f32 %v3328, %v3712
    %v3714 = vpop.f32.mrf.mxu0
    %3715 = vmatprep.mubr.f32.mxu0 0.0
    %3716 = vmatmul.mubr.f32.gmra.mxu0 %v1548
    %v3717 = vpop.f32.mrf.mxu0
    %v3718 = vadd.f32 %v3333, %v3717
    %v3719 = vpop.f32.mrf.mxu0
    %3720 = vmatprep.mubr.f32.mxu0 0.0
    %3721 = vmatmul.mubr.f32.gmra.mxu0 %v1557
    %v3722 = vpop.f32.mrf.mxu0
    %v3723 = vadd.f32 %v3338, %v3722
    %v3724 = vpop.f32.mrf.mxu0
    %3725 = vmatprep.mubr.f32.mxu0 0.0
    %3726 = vmatmul.mubr.f32.gmra.mxu0 %v1566
    %v3727 = vpop.f32.mrf.mxu0
    %v3728 = vadd.f32 %v3343, %v3727
    %v3729 = vpop.f32.mrf.mxu0
    %3730 = vmatprep.mubr.f32.mxu0 0.0
    %3731 = vmatmul.mubr.f32.gmra.mxu0 %v1575
    %v3732 = vpop.f32.mrf.mxu0
    %v3733 = vadd.f32 %v3348, %v3732
    %v3734 = vpop.f32.mrf.mxu0
    %3735 = vmatprep.mubr.f32.mxu0 0.0
    %3736 = vmatmul.mubr.f32.gmra.mxu0 %v1584
    %v3737 = vpop.f32.mrf.mxu0
    %v3738 = vadd.f32 %v3353, %v3737
    %v3739 = vpop.f32.mrf.mxu0
    %3740 = vmatprep.mubr.f32.mxu0 0.0
    %3741 = vmatmul.mubr.f32.gmra.mxu0 %v1593
    %v3742 = vpop.f32.mrf.mxu0
    %v3743 = vadd.f32 %v3358, %v3742
    %v3744 = vpop.f32.mrf.mxu0
    %3745 = vmatprep.mubr.f32.mxu0 0.0
    %3746 = vmatmul.mubr.f32.gmra.mxu0 %v1602
    %v3747 = vpop.f32.mrf.mxu0
    %v3748 = vadd.f32 %v3363, %v3747
    %v3749 = vpop.f32.mrf.mxu0
    %3750 = vmatprep.mubr.f32.mxu0 0.0
    %3751 = vmatmul.mubr.f32.gmra.mxu0 %v1611
    %v3752 = vpop.f32.mrf.mxu0
    %v3753 = vadd.f32 %v3368, %v3752
    %v3754 = vpop.f32.mrf.mxu0
    %3755 = vmatprep.mubr.f32.mxu0 0.0
    %3756 = vmatmul.mubr.f32.gmra.mxu0 %v1620
    %v3757 = vpop.f32.mrf.mxu0
    %v3758 = vadd.f32 %v3373, %v3757
    %v3759 = vpop.f32.mrf.mxu0
    %3760 = vmatprep.mubr.f32.mxu0 0.0
    %3761 = vmatmul.mubr.f32.gmra.mxu0 %v1629
    %v3762 = vpop.f32.mrf.mxu0
    %v3763 = vadd.f32 %v3378, %v3762
    %v3764 = vpop.f32.mrf.mxu0
    %3765 = vmatprep.mubr.f32.mxu0 0.0
    %3766 = vmatmul.mubr.f32.gmra.mxu0 %v1638
    %v3767 = vpop.f32.mrf.mxu0
    %v3768 = vadd.f32 %v3383, %v3767
    %v3769 = vpop.f32.mrf.mxu0
    %3770 = vmatprep.mubr.f32.mxu0 0.0
    %3771 = vmatmul.mubr.f32.gmra.mxu0 %v1647
    %v3772 = vpop.f32.mrf.mxu0
    %v3773 = vadd.f32 %v3388, %v3772
    %v3774 = vpop.f32.mrf.mxu0
    %3775 = vmatprep.mubr.f32.mxu0 0.0
    %3776 = vmatmul.mubr.f32.gmra.mxu0 %v1656
    %v3777 = vpop.f32.mrf.mxu0
    %v3778 = vadd.f32 %v3393, %v3777
    %v3779 = vpop.f32.mrf.mxu0
    %3780 = vmatprep.mubr.f32.mxu0 0.0
    %3781 = vmatmul.mubr.f32.gmra.mxu0 %v1665
    %v3782 = vpop.f32.mrf.mxu0
    %v3783 = vadd.f32 %v3398, %v3782
    %v3784 = vpop.f32.mrf.mxu0
    %3785 = vmatprep.mubr.f32.mxu0 0.0
    %3786 = vmatmul.mubr.f32.gmra.mxu0 %v1674
    %v3787 = vpop.f32.mrf.mxu0
    %v3788 = vadd.f32 %v3403, %v3787
    %v3789 = vpop.f32.mrf.mxu0
    %3790 = vmatprep.mubr.f32.mxu0 0.0
    %3791 = vmatmul.mubr.f32.gmra.mxu0 %v1683
    %v3792 = vpop.f32.mrf.mxu0
    %v3793 = vadd.f32 %v3408, %v3792
    %v3794 = vpop.f32.mrf.mxu0
    %3795 = vmatprep.mubr.f32.mxu0 0.0
    %3796 = vmatmul.mubr.f32.gmra.mxu0 %v1692
    %v3797 = vpop.f32.mrf.mxu0
    %v3798 = vadd.f32 %v3413, %v3797
    %v3799 = vpop.f32.mrf.mxu0
    %3800 = vmatprep.mubr.f32.mxu0 0.0
    %3801 = vmatmul.mubr.f32.gmra.mxu0 %v1701
    %v3802 = vpop.f32.mrf.mxu0
    %v3803 = vadd.f32 %v3418, %v3802
    %v3804 = vpop.f32.mrf.mxu0
    %3805 = vmatprep.mubr.f32.mxu0 0.0
    %3806 = vmatmul.mubr.f32.gmra.mxu0 %v1710
    %v3807 = vpop.f32.mrf.mxu0
    %v3808 = vadd.f32 %v3423, %v3807
    %v3809 = vpop.f32.mrf.mxu0
    %3810 = vmatprep.mubr.f32.mxu0 0.0
    %3811 = vmatmul.mubr.f32.gmra.mxu0 %v1719
    %v3812 = vpop.f32.mrf.mxu0
    %v3813 = vadd.f32 %v3428, %v3812
    %v3814 = vpop.f32.mrf.mxu0
    %3815 = vmatprep.mubr.f32.mxu0 0.0
    %3816 = vmatmul.mubr.f32.gmra.mxu0 %v1728
    %v3817 = vpop.f32.mrf.mxu0
    %v3818 = vadd.f32 %v3433, %v3817
    %v3819 = vpop.f32.mrf.mxu0
    %3820 = vmatprep.mubr.f32.mxu0 0.0
    %3821 = vmatmul.mubr.f32.gmra.mxu0 %v1737
    %v3822 = vpop.f32.mrf.mxu0
    %v3823 = vadd.f32 %v3438, %v3822
    %v3824 = vpop.f32.mrf.mxu0
    %3825 = vmatprep.mubr.f32.mxu0 0.0
    %3826 = vmatmul.mubr.f32.gmra.mxu0 %v1746
    %v3827 = vpop.f32.mrf.mxu0
    %v3828 = vadd.f32 %v3443, %v3827
    %v3829 = vpop.f32.mrf.mxu0
    %3830 = vmatprep.mubr.f32.mxu0 0.0
    %3831 = vmatmul.mubr.f32.gmra.mxu0 %v1755
    %v3832 = vpop.f32.mrf.mxu0
    %v3833 = vadd.f32 %v3448, %v3832
    %v3834 = vpop.f32.mrf.mxu0
    %3835 = vmatprep.mubr.f32.mxu0 0.0
    %3836 = vmatmul.mubr.f32.gmra.mxu0 %v1764
    %v3837 = vpop.f32.mrf.mxu0
    %v3838 = vadd.f32 %v3453, %v3837
    %v3839 = vpop.f32.mrf.mxu0
    %3840 = vdwg.mxu0
    %v3841 = vmax.f32 %v3523, 0.0
    %v3842 = vmax.f32 %v3528, 0.0
    %v3843 = vmax.f32 %v3533, 0.0
    %v3844 = vmax.f32 %v3538, 0.0
    %v3845 = vmax.f32 %v3543, 0.0
    %v3846 = vmax.f32 %v3548, 0.0
    %v3847 = vmax.f32 %v3553, 0.0
    %v3848 = vmax.f32 %v3558, 0.0
    %v3849 = vmax.f32 %v3563, 0.0
    %v3850 = vmax.f32 %v3568, 0.0
    %v3851 = vmax.f32 %v3573, 0.0
    %v3852 = vmax.f32 %v3578, 0.0
    %v3853 = vmax.f32 %v3583, 0.0
    %v3854 = vmax.f32 %v3588, 0.0
    %v3855 = vmax.f32 %v3593, 0.0
    %v3856 = vmax.f32 %v3598, 0.0
    %v3857 = vmax.f32 %v3603, 0.0
    %v3858 = vmax.f32 %v3608, 0.0
    %v3859 = vmax.f32 %v3613, 0.0
    %v3860 = vmax.f32 %v3618, 0.0
    %v3861 = vmax.f32 %v3623, 0.0
    %v3862 = vmax.f32 %v3628, 0.0
    %v3863 = vmax.f32 %v3633, 0.0
    %v3864 = vmax.f32 %v3638, 0.0
    %v3865 = vmax.f32 %v3643, 0.0
    %v3866 = vmax.f32 %v3648, 0.0
    %v3867 = vmax.f32 %v3653, 0.0
    %v3868 = vmax.f32 %v3658, 0.0
    %v3869 = vmax.f32 %v3663, 0.0
    %v3870 = vmax.f32 %v3668, 0.0
    %v3871 = vmax.f32 %v3673, 0.0
    %v3872 = vmax.f32 %v3678, 0.0
    %v3873 = vmax.f32 %v3683, 0.0
    %v3874 = vmax.f32 %v3688, 0.0
    %v3875 = vmax.f32 %v3693, 0.0
    %v3876 = vmax.f32 %v3698, 0.0
    %v3877 = vmax.f32 %v3703, 0.0
    %v3878 = vmax.f32 %v3708, 0.0
    %v3879 = vmax.f32 %v3713, 0.0
    %v3880 = vmax.f32 %v3718, 0.0
    %v3881 = vmax.f32 %v3723, 0.0
    %v3882 = vmax.f32 %v3728, 0.0
    %v3883 = vmax.f32 %v3733, 0.0
    %v3884 = vmax.f32 %v3738, 0.0
    %v3885 = vmax.f32 %v3743, 0.0
    %v3886 = vmax.f32 %v3748, 0.0
    %v3887 = vmax.f32 %v3753, 0.0
    %v3888 = vmax.f32 %v3758, 0.0
    %v3889 = vmax.f32 %v3763, 0.0
    %v3890 = vmax.f32 %v3768, 0.0
    %v3891 = vmax.f32 %v3773, 0.0
    %v3892 = vmax.f32 %v3778, 0.0
    %v3893 = vmax.f32 %v3783, 0.0
    %v3894 = vmax.f32 %v3788, 0.0
    %v3895 = vmax.f32 %v3793, 0.0
    %v3896 = vmax.f32 %v3798, 0.0
    %v3897 = vmax.f32 %v3803, 0.0
    %v3898 = vmax.f32 %v3808, 0.0
    %v3899 = vmax.f32 %v3813, 0.0
    %v3900 = vmax.f32 %v3818, 0.0
    %v3901 = vmax.f32 %v3823, 0.0
    %v3902 = vmax.f32 %v3828, 0.0
    %v3903 = vmax.f32 %v3833, 0.0
    %v3904 = vmax.f32 %v3838, 0.0
    %3905 = vst [vmem:[#allocation3] sm:$0x1] 0.0
    %3906 = vst [vmem:[#allocation3 + $0x18] sm:$0x1] 0.0
    %3907 = vst [vmem:[#allocation3 + $0x30] sm:$0x1] 0.0
    %3908 = vst [vmem:[#allocation3 + $0x48] sm:$0x1] 0.0
    %3909 = vst [vmem:[#allocation3 + $0x60] sm:$0x1] 0.0
    %3910 = vst [vmem:[#allocation3 + $0x78] sm:$0x1] 0.0
    %3911 = vst [vmem:[#allocation3 + $0x90] sm:$0x1] 0.0
    %3912 = vst [vmem:[#allocation3 + $0xa8] sm:$0x1] 0.0
    %3913 = vst [vmem:[#allocation3 + $0xc0] sm:$0x1] 0.0
    %3914 = vst [vmem:[#allocation3 + $0xd8] sm:$0x1] 0.0
    %3915 = vst [vmem:[#allocation3 + $0xf0] sm:$0x1] 0.0
    %3916 = vst [vmem:[#allocation3 + $0x108] sm:$0x1] 0.0
    %3917 = vst [vmem:[#allocation3 + $0x120] sm:$0x1] 0.0
    %3918 = vst [vmem:[#allocation3 + $0x138] sm:$0x1] 0.0
    %3919 = vst [vmem:[#allocation3 + $0x150] sm:$0x1] 0.0
    %3920 = vst [vmem:[#allocation3 + $0x168] sm:$0x1] 0.0
    %3921 = vst [vmem:[#allocation3 + $0x180] sm:$0x1] 0.0
    %3922 = vst [vmem:[#allocation3 + $0x198] sm:$0x1] 0.0
    %3923 = vst [vmem:[#allocation3 + $0x1b0] sm:$0x1] 0.0
    %3924 = vst [vmem:[#allocation3 + $0x1c8] sm:$0x1] 0.0
    %3925 = vst [vmem:[#allocation3 + $0x1e0] sm:$0x1] 0.0
    %3926 = vst [vmem:[#allocation3 + $0x1f8] sm:$0x1] 0.0
    %3927 = vst [vmem:[#allocation3 + $0x210] sm:$0x1] 0.0
    %3928 = vst [vmem:[#allocation3 + $0x228] sm:$0x1] 0.0
    %3929 = vst [vmem:[#allocation3 + $0x240] sm:$0x1] 0.0
    %3930 = vst [vmem:[#allocation3 + $0x258] sm:$0x1] 0.0
    %3931 = vst [vmem:[#allocation3 + $0x270] sm:$0x1] 0.0
    %3932 = vst [vmem:[#allocation3 + $0x288] sm:$0x1] 0.0
    %3933 = vst [vmem:[#allocation3 + $0x2a0] sm:$0x1] 0.0
    %3934 = vst [vmem:[#allocation3 + $0x2b8] sm:$0x1] 0.0
    %3935 = vst [vmem:[#allocation3 + $0x2d0] sm:$0x1] 0.0
    %3936 = vst [vmem:[#allocation3 + $0x2e8] sm:$0x1] 0.0
    %3937 = vst [vmem:[#allocation3 + $0x300] sm:$0x1] 0.0
    %3938 = vst [vmem:[#allocation3 + $0x318] sm:$0x1] 0.0
    %3939 = vst [vmem:[#allocation3 + $0x330] sm:$0x1] 0.0
    %3940 = vst [vmem:[#allocation3 + $0x348] sm:$0x1] 0.0
    %3941 = vst [vmem:[#allocation3 + $0x11] sm:$0x1] 0.0
    %3942 = vst [vmem:[#allocation3 + $0x29] sm:$0x1] 0.0
    %3943 = vst [vmem:[#allocation3 + $0x41] sm:$0x1] 0.0
    %3944 = vst [vmem:[#allocation3 + $0x59] sm:$0x1] 0.0
    %3945 = vst [vmem:[#allocation3 + $0x71] sm:$0x1] 0.0
    %3946 = vst [vmem:[#allocation3 + $0x89] sm:$0x1] 0.0
    %3947 = vst [vmem:[#allocation3 + $0xa1] sm:$0x1] 0.0
    %3948 = vst [vmem:[#allocation3 + $0xb9] sm:$0x1] 0.0
    %3949 = vst [vmem:[#allocation3 + $0xd1] sm:$0x1] 0.0
    %3950 = vst [vmem:[#allocation3 + $0xe9] sm:$0x1] 0.0
    %3951 = vst [vmem:[#allocation3 + $0x101] sm:$0x1] 0.0
    %3952 = vst [vmem:[#allocation3 + $0x119] sm:$0x1] 0.0
    %3953 = vst [vmem:[#allocation3 + $0x131] sm:$0x1] 0.0
    %3954 = vst [vmem:[#allocation3 + $0x149] sm:$0x1] 0.0
    %3955 = vst [vmem:[#allocation3 + $0x161] sm:$0x1] 0.0
    %3956 = vst [vmem:[#allocation3 + $0x179] sm:$0x1] 0.0
    %3957 = vst [vmem:[#allocation3 + $0x191] sm:$0x1] 0.0
    %3958 = vst [vmem:[#allocation3 + $0x1a9] sm:$0x1] 0.0
    %3959 = vst [vmem:[#allocation3 + $0x1c1] sm:$0x1] 0.0
    %3960 = vst [vmem:[#allocation3 + $0x1d9] sm:$0x1] 0.0
    %3961 = vst [vmem:[#allocation3 + $0x1f1] sm:$0x1] 0.0
    %3962 = vst [vmem:[#allocation3 + $0x209] sm:$0x1] 0.0
    %3963 = vst [vmem:[#allocation3 + $0x221] sm:$0x1] 0.0
    %3964 = vst [vmem:[#allocation3 + $0x239] sm:$0x1] 0.0
    %3965 = vst [vmem:[#allocation3 + $0x251] sm:$0x1] 0.0
    %3966 = vst [vmem:[#allocation3 + $0x269] sm:$0x1] 0.0
    %3967 = vst [vmem:[#allocation3 + $0x281] sm:$0x1] 0.0
    %3968 = vst [vmem:[#allocation3 + $0x299] sm:$0x1] 0.0
    %3969 = vst [vmem:[#allocation3 + $0x2b1] sm:$0x1] 0.0
    %3970 = vst [vmem:[#allocation3 + $0x2c9] sm:$0x1] 0.0
    %3971 = vst [vmem:[#allocation3 + $0x2e1] sm:$0x1] 0.0
    %3972 = vst [vmem:[#allocation3 + $0x2f9] sm:$0x1] 0.0
    %3973 = vst [vmem:[#allocation3 + $0x311] sm:$0x1] 0.0
    %3974 = vst [vmem:[#allocation3 + $0x329] sm:$0x1] 0.0
    %3975 = vst [vmem:[#allocation3 + $0x341] sm:$0x1] 0.0
    %3976 = vst [vmem:[#allocation3 + $0x359] sm:$0x1] 0.0
    %3977 = vst [vmem:[#allocation3] sm:$0xff] 0.0
    %3978 = vst [vmem:[#allocation3 + $0x8] sm:$0xff] 0.0
    %3979 = vst [vmem:[#allocation3 + $0x10] sm:$0x3] 0.0
    %3980 = vst [vmem:[#allocation3 + $0x1b0] sm:$0xff] 0.0
    %3981 = vst [vmem:[#allocation3 + $0x1b8] sm:$0xff] 0.0
    %3982 = vst [vmem:[#allocation3 + $0x1c0] sm:$0x3] 0.0
    %s3983 = scalar_lea.vmem [#allocation3], 408
    %3984 = vst [vmem:[%s3983] sm:$0xff] 0.0
    %3985 = vst [vmem:[%s3983 + $0x8] sm:$0xff] 0.0
    %3986 = vst [vmem:[%s3983 + $0x10] sm:$0x3] 0.0
    %3987 = vst [vmem:[%s3983 + $0x1b0] sm:$0xff] 0.0
    %3988 = vst [vmem:[%s3983 + $0x1b8] sm:$0xff] 0.0
    %3989 = vst [vmem:[%s3983 + $0x1c0] sm:$0x3] 0.0
    %s3990 = scalar_lea.vmem [#allocation3], 24
    %3991 = vst [vmem:[%s3990 + $0x1] sm:$0xff] %v3841
    %3992 = vst [vmem:[%s3990 + $0x9] sm:$0xff] %v3842
    %3993 = vst [vmem:[%s3990 + $0x19] sm:$0xff] %v3843
    %3994 = vst [vmem:[%s3990 + $0x21] sm:$0xff] %v3844
    %3995 = vst [vmem:[%s3990 + $0x31] sm:$0xff] %v3845
    %3996 = vst [vmem:[%s3990 + $0x39] sm:$0xff] %v3846
    %3997 = vst [vmem:[%s3990 + $0x49] sm:$0xff] %v3847
    %3998 = vst [vmem:[%s3990 + $0x51] sm:$0xff] %v3848
    %3999 = vst [vmem:[%s3990 + $0x61] sm:$0xff] %v3849
    %4000 = vst [vmem:[%s3990 + $0x69] sm:$0xff] %v3850
    %4001 = vst [vmem:[%s3990 + $0x79] sm:$0xff] %v3851
    %4002 = vst [vmem:[%s3990 + $0x81] sm:$0xff] %v3852
    %4003 = vst [vmem:[%s3990 + $0x91] sm:$0xff] %v3853
    %4004 = vst [vmem:[%s3990 + $0x99] sm:$0xff] %v3854
    %4005 = vst [vmem:[%s3990 + $0xa9] sm:$0xff] %v3855
    %4006 = vst [vmem:[%s3990 + $0xb1] sm:$0xff] %v3856
    %4007 = vst [vmem:[%s3990 + $0xc1] sm:$0xff] %v3857
    %4008 = vst [vmem:[%s3990 + $0xc9] sm:$0xff] %v3858
    %4009 = vst [vmem:[%s3990 + $0xd9] sm:$0xff] %v3859
    %4010 = vst [vmem:[%s3990 + $0xe1] sm:$0xff] %v3860
    %4011 = vst [vmem:[%s3990 + $0xf1] sm:$0xff] %v3861
    %4012 = vst [vmem:[%s3990 + $0xf9] sm:$0xff] %v3862
    %4013 = vst [vmem:[%s3990 + $0x109] sm:$0xff] %v3863
    %4014 = vst [vmem:[%s3990 + $0x111] sm:$0xff] %v3864
    %4015 = vst [vmem:[%s3990 + $0x121] sm:$0xff] %v3865
    %4016 = vst [vmem:[%s3990 + $0x129] sm:$0xff] %v3866
    %4017 = vst [vmem:[%s3990 + $0x139] sm:$0xff] %v3867
    %4018 = vst [vmem:[%s3990 + $0x141] sm:$0xff] %v3868
    %4019 = vst [vmem:[%s3990 + $0x151] sm:$0xff] %v3869
    %4020 = vst [vmem:[%s3990 + $0x159] sm:$0xff] %v3870
    %4021 = vst [vmem:[%s3990 + $0x169] sm:$0xff] %v3871
    %4022 = vst [vmem:[%s3990 + $0x171] sm:$0xff] %v3872
    %4023 = vst [vmem:[%s3990 + $0x1b1] sm:$0xff] %v3873
    %4024 = vst [vmem:[%s3990 + $0x1b9] sm:$0xff] %v3874
    %4025 = vst [vmem:[%s3990 + $0x1c9] sm:$0xff] %v3875
    %4026 = vst [vmem:[%s3990 + $0x1d1] sm:$0xff] %v3876
    %4027 = vst [vmem:[%s3990 + $0x1e1] sm:$0xff] %v3877
    %4028 = vst [vmem:[%s3990 + $0x1e9] sm:$0xff] %v3878
    %4029 = vst [vmem:[%s3990 + $0x1f9] sm:$0xff] %v3879
    %4030 = vst [vmem:[%s3990 + $0x201] sm:$0xff] %v3880
    %4031 = vst [vmem:[%s3990 + $0x211] sm:$0xff] %v3881
    %4032 = vst [vmem:[%s3990 + $0x219] sm:$0xff] %v3882
    %4033 = vst [vmem:[%s3990 + $0x229] sm:$0xff] %v3883
    %4034 = vst [vmem:[%s3990 + $0x231] sm:$0xff] %v3884
    %4035 = vst [vmem:[%s3990 + $0x241] sm:$0xff] %v3885
    %4036 = vst [vmem:[%s3990 + $0x249] sm:$0xff] %v3886
    %4037 = vst [vmem:[%s3990 + $0x259] sm:$0xff] %v3887
    %4038 = vst [vmem:[%s3990 + $0x261] sm:$0xff] %v3888
    %4039 = vst [vmem:[%s3990 + $0x271] sm:$0xff] %v3889
    %4040 = vst [vmem:[%s3990 + $0x279] sm:$0xff] %v3890
    %4041 = vst [vmem:[%s3990 + $0x289] sm:$0xff] %v3891
    %4042 = vst [vmem:[%s3990 + $0x291] sm:$0xff] %v3892
    %4043 = vst [vmem:[%s3990 + $0x2a1] sm:$0xff] %v3893
    %4044 = vst [vmem:[%s3990 + $0x2a9] sm:$0xff] %v3894
    %4045 = vst [vmem:[%s3990 + $0x2b9] sm:$0xff] %v3895
    %4046 = vst [vmem:[%s3990 + $0x2c1] sm:$0xff] %v3896
    %4047 = vst [vmem:[%s3990 + $0x2d1] sm:$0xff] %v3897
    %4048 = vst [vmem:[%s3990 + $0x2d9] sm:$0xff] %v3898
    %4049 = vst [vmem:[%s3990 + $0x2e9] sm:$0xff] %v3899
    %4050 = vst [vmem:[%s3990 + $0x2f1] sm:$0xff] %v3900
    %4051 = vst [vmem:[%s3990 + $0x301] sm:$0xff] %v3901
    %4052 = vst [vmem:[%s3990 + $0x309] sm:$0xff] %v3902
    %4053 = vst [vmem:[%s3990 + $0x319] sm:$0xff] %v3903
    %4054 = vst [vmem:[%s3990 + $0x321] sm:$0xff] %v3904
    %v4055 = vld [vmem:[#allocation3] sm:$0xff]
    %v4056 = vld [vmem:[#allocation3 + $0x8] sm:$0xff]
    %v4057 = vld [vmem:[#allocation3 + $0x18] sm:$0xff]
    %v4058 = vld [vmem:[#allocation3 + $0x20] sm:$0xff]
    %v4059 = vld [vmem:[#allocation3 + $0x30] sm:$0xff]
    %v4060 = vld [vmem:[#allocation3 + $0x38] sm:$0xff]
    %v4061 = vld [vmem:[#allocation3 + $0x48] sm:$0xff]
    %v4062 = vld [vmem:[#allocation3 + $0x50] sm:$0xff]
    %v4063 = vld [vmem:[#allocation3 + $0x60] sm:$0xff]
    %v4064 = vld [vmem:[#allocation3 + $0x68] sm:$0xff]
    %v4065 = vld [vmem:[#allocation3 + $0x78] sm:$0xff]
    %v4066 = vld [vmem:[#allocation3 + $0x80] sm:$0xff]
    %v4067 = vld [vmem:[#allocation3 + $0x90] sm:$0xff]
    %v4068 = vld [vmem:[#allocation3 + $0x98] sm:$0xff]
    %v4069 = vld [vmem:[#allocation3 + $0xa8] sm:$0xff]
    %v4070 = vld [vmem:[#allocation3 + $0xb0] sm:$0xff]
    %v4071 = vld [vmem:[#allocation3 + $0xc0] sm:$0xff]
    %v4072 = vld [vmem:[#allocation3 + $0xc8] sm:$0xff]
    %v4073 = vld [vmem:[#allocation3 + $0xd8] sm:$0xff]
    %v4074 = vld [vmem:[#allocation3 + $0xe0] sm:$0xff]
    %v4075 = vld [vmem:[#allocation3 + $0xf0] sm:$0xff]
    %v4076 = vld [vmem:[#allocation3 + $0xf8] sm:$0xff]
    %v4077 = vld [vmem:[#allocation3 + $0x108] sm:$0xff]
    %v4078 = vld [vmem:[#allocation3 + $0x110] sm:$0xff]
    %v4079 = vld [vmem:[#allocation3 + $0x120] sm:$0xff]
    %v4080 = vld [vmem:[#allocation3 + $0x128] sm:$0xff]
    %v4081 = vld [vmem:[#allocation3 + $0x138] sm:$0xff]
    %v4082 = vld [vmem:[#allocation3 + $0x140] sm:$0xff]
    %v4083 = vld [vmem:[#allocation3 + $0x150] sm:$0xff]
    %v4084 = vld [vmem:[#allocation3 + $0x158] sm:$0xff]
    %v4085 = vld [vmem:[#allocation3 + $0x168] sm:$0xff]
    %v4086 = vld [vmem:[#allocation3 + $0x170] sm:$0xff]
    %v4087 = vld [vmem:[#allocation3 + $0x1b0] sm:$0xff]
    %v4088 = vld [vmem:[#allocation3 + $0x1b8] sm:$0xff]
    %v4089 = vld [vmem:[#allocation3 + $0x1c8] sm:$0xff]
    %v4090 = vld [vmem:[#allocation3 + $0x1d0] sm:$0xff]
    %v4091 = vld [vmem:[#allocation3 + $0x1e0] sm:$0xff]
    %v4092 = vld [vmem:[#allocation3 + $0x1e8] sm:$0xff]
    %v4093 = vld [vmem:[#allocation3 + $0x1f8] sm:$0xff]
    %v4094 = vld [vmem:[#allocation3 + $0x200] sm:$0xff]
    %v4095 = vld [vmem:[#allocation3 + $0x210] sm:$0xff]
    %v4096 = vld [vmem:[#allocation3 + $0x218] sm:$0xff]
    %v4097 = vld [vmem:[#allocation3 + $0x228] sm:$0xff]
    %v4098 = vld [vmem:[#allocation3 + $0x230] sm:$0xff]
    %v4099 = vld [vmem:[#allocation3 + $0x240] sm:$0xff]
    %v4100 = vld [vmem:[#allocation3 + $0x248] sm:$0xff]
    %v4101 = vld [vmem:[#allocation3 + $0x258] sm:$0xff]
    %v4102 = vld [vmem:[#allocation3 + $0x260] sm:$0xff]
    %v4103 = vld [vmem:[#allocation3 + $0x270] sm:$0xff]
    %v4104 = vld [vmem:[#allocation3 + $0x278] sm:$0xff]
    %v4105 = vld [vmem:[#allocation3 + $0x288] sm:$0xff]
    %v4106 = vld [vmem:[#allocation3 + $0x290] sm:$0xff]
    %v4107 = vld [vmem:[#allocation3 + $0x2a0] sm:$0xff]
    %v4108 = vld [vmem:[#allocation3 + $0x2a8] sm:$0xff]
    %v4109 = vld [vmem:[#allocation3 + $0x2b8] sm:$0xff]
    %v4110 = vld [vmem:[#allocation3 + $0x2c0] sm:$0xff]
    %v4111 = vld [vmem:[#allocation3 + $0x2d0] sm:$0xff]
    %v4112 = vld [vmem:[#allocation3 + $0x2d8] sm:$0xff]
    %v4113 = vld [vmem:[#allocation3 + $0x2e8] sm:$0xff]
    %v4114 = vld [vmem:[#allocation3 + $0x2f0] sm:$0xff]
    %v4115 = vld [vmem:[#allocation3 + $0x300] sm:$0xff]
    %v4116 = vld [vmem:[#allocation3 + $0x308] sm:$0xff]
    %v4117 = vld [vmem:[#allocation3 + $0x318] sm:$0xff]
    %v4118 = vld [vmem:[#allocation3 + $0x320] sm:$0xff]
    %4119 = vst [vmem:[#allocation2] sm:$0xff] %v4055
    %4120 = vst [vmem:[#allocation2 + $0x48] sm:$0xff] %v4056
    %4121 = vst [vmem:[#allocation2 + $0x90] sm:$0xff] %v4057
    %4122 = vst [vmem:[#allocation2 + $0xd8] sm:$0xff] %v4058
    %4123 = vst [vmem:[#allocation2 + $0x120] sm:$0xff] %v4059
    %4124 = vst [vmem:[#allocation2 + $0x168] sm:$0xff] %v4060
    %4125 = vst [vmem:[#allocation2 + $0x1b0] sm:$0xff] %v4061
    %4126 = vst [vmem:[#allocation2 + $0x1f8] sm:$0xff] %v4062
    %4127 = vst [vmem:[#allocation2 + $0x240] sm:$0xff] %v4063
    %4128 = vst [vmem:[#allocation2 + $0x288] sm:$0xff] %v4064
    %4129 = vst [vmem:[#allocation2 + $0x2d0] sm:$0xff] %v4065
    %4130 = vst [vmem:[#allocation2 + $0x318] sm:$0xff] %v4066
    %4131 = vst [vmem:[#allocation2 + $0x360] sm:$0xff] %v4067
    %4132 = vst [vmem:[#allocation2 + $0x3a8] sm:$0xff] %v4068
    %4133 = vst [vmem:[#allocation2 + $0x3f0] sm:$0xff] %v4069
    %4134 = vst [vmem:[#allocation2 + $0x438] sm:$0xff] %v4070
    %4135 = vst [vmem:[#allocation2 + $0x480] sm:$0xff] %v4071
    %4136 = vst [vmem:[#allocation2 + $0x4c8] sm:$0xff] %v4072
    %4137 = vst [vmem:[#allocation2 + $0x510] sm:$0xff] %v4073
    %4138 = vst [vmem:[#allocation2 + $0x558] sm:$0xff] %v4074
    %4139 = vst [vmem:[#allocation2 + $0x5a0] sm:$0xff] %v4075
    %4140 = vst [vmem:[#allocation2 + $0x5e8] sm:$0xff] %v4076
    %4141 = vst [vmem:[#allocation2 + $0x630] sm:$0xff] %v4077
    %4142 = vst [vmem:[#allocation2 + $0x678] sm:$0xff] %v4078
    %4143 = vst [vmem:[#allocation2 + $0x6c0] sm:$0xff] %v4079
    %4144 = vst [vmem:[#allocation2 + $0x708] sm:$0xff] %v4080
    %4145 = vst [vmem:[#allocation2 + $0x750] sm:$0xff] %v4081
    %4146 = vst [vmem:[#allocation2 + $0x798] sm:$0xff] %v4082
    %4147 = vst [vmem:[#allocation2 + $0x7e0] sm:$0xff] %v4083
    %4148 = vst [vmem:[#allocation2 + $0x828] sm:$0xff] %v4084
    %4149 = vst [vmem:[#allocation2 + $0x870] sm:$0xff] %v4085
    %4150 = vst [vmem:[#allocation2 + $0x8b8] sm:$0xff] %v4086
    %4151 = vst [vmem:[#allocation2 + $0x900] sm:$0xff] %v4087
    %4152 = vst [vmem:[#allocation2 + $0x948] sm:$0xff] %v4088
    %4153 = vst [vmem:[#allocation2 + $0x990] sm:$0xff] %v4089
    %4154 = vst [vmem:[#allocation2 + $0x9d8] sm:$0xff] %v4090
    %4155 = vst [vmem:[#allocation2 + $0xa20] sm:$0xff] %v4091
    %4156 = vst [vmem:[#allocation2 + $0xa68] sm:$0xff] %v4092
    %4157 = vst [vmem:[#allocation2 + $0xab0] sm:$0xff] %v4093
    %4158 = vst [vmem:[#allocation2 + $0xaf8] sm:$0xff] %v4094
    %4159 = vst [vmem:[#allocation2 + $0xb40] sm:$0xff] %v4095
    %4160 = vst [vmem:[#allocation2 + $0xb88] sm:$0xff] %v4096
    %4161 = vst [vmem:[#allocation2 + $0xbd0] sm:$0xff] %v4097
    %4162 = vst [vmem:[#allocation2 + $0xc18] sm:$0xff] %v4098
    %4163 = vst [vmem:[#allocation2 + $0xc60] sm:$0xff] %v4099
    %4164 = vst [vmem:[#allocation2 + $0xca8] sm:$0xff] %v4100
    %4165 = vst [vmem:[#allocation2 + $0xcf0] sm:$0xff] %v4101
    %4166 = vst [vmem:[#allocation2 + $0xd38] sm:$0xff] %v4102
    %4167 = vst [vmem:[#allocation2 + $0xd80] sm:$0xff] %v4103
    %4168 = vst [vmem:[#allocation2 + $0xdc8] sm:$0xff] %v4104
    %4169 = vst [vmem:[#allocation2 + $0xe10] sm:$0xff] %v4105
    %4170 = vst [vmem:[#allocation2 + $0xe58] sm:$0xff] %v4106
    %4171 = vst [vmem:[#allocation2 + $0xea0] sm:$0xff] %v4107
    %4172 = vst [vmem:[#allocation2 + $0xee8] sm:$0xff] %v4108
    %4173 = vst [vmem:[#allocation2 + $0xf30] sm:$0xff] %v4109
    %4174 = vst [vmem:[#allocation2 + $0xf78] sm:$0xff] %v4110
    %4175 = vst [vmem:[#allocation2 + $0xfc0] sm:$0xff] %v4111
    %4176 = vst [vmem:[#allocation2 + $0x1008] sm:$0xff] %v4112
    %4177 = vst [vmem:[#allocation2 + $0x1050] sm:$0xff] %v4113
    %4178 = vst [vmem:[#allocation2 + $0x1098] sm:$0xff] %v4114
    %4179 = vst [vmem:[#allocation2 + $0x10e0] sm:$0xff] %v4115
    %4180 = vst [vmem:[#allocation2 + $0x1128] sm:$0xff] %v4116
    %4181 = vst [vmem:[#allocation2 + $0x1170] sm:$0xff] %v4117
    %4182 = vst [vmem:[#allocation2 + $0x11b8] sm:$0xff] %v4118
    %v4183 = vld [vmem:[#allocation3 + $0x1] sm:$0xff]
    %v4184 = vld [vmem:[#allocation3 + $0x9] sm:$0xff]
    %v4185 = vld [vmem:[#allocation3 + $0x19] sm:$0xff]
    %v4186 = vld [vmem:[#allocation3 + $0x21] sm:$0xff]
    %v4187 = vld [vmem:[#allocation3 + $0x31] sm:$0xff]
    %v4188 = vld [vmem:[#allocation3 + $0x39] sm:$0xff]
    %v4189 = vld [vmem:[#allocation3 + $0x49] sm:$0xff]
    %v4190 = vld [vmem:[#allocation3 + $0x51] sm:$0xff]
    %v4191 = vld [vmem:[#allocation3 + $0x61] sm:$0xff]
    %v4192 = vld [vmem:[#allocation3 + $0x69] sm:$0xff]
    %v4193 = vld [vmem:[#allocation3 + $0x79] sm:$0xff]
    %v4194 = vld [vmem:[#allocation3 + $0x81] sm:$0xff]
    %v4195 = vld [vmem:[#allocation3 + $0x91] sm:$0xff]
    %v4196 = vld [vmem:[#allocation3 + $0x99] sm:$0xff]
    %v4197 = vld [vmem:[#allocation3 + $0xa9] sm:$0xff]
    %v4198 = vld [vmem:[#allocation3 + $0xb1] sm:$0xff]
    %v4199 = vld [vmem:[#allocation3 + $0xc1] sm:$0xff]
    %v4200 = vld [vmem:[#allocation3 + $0xc9] sm:$0xff]
    %v4201 = vld [vmem:[#allocation3 + $0xd9] sm:$0xff]
    %v4202 = vld [vmem:[#allocation3 + $0xe1] sm:$0xff]
    %v4203 = vld [vmem:[#allocation3 + $0xf1] sm:$0xff]
    %v4204 = vld [vmem:[#allocation3 + $0xf9] sm:$0xff]
    %v4205 = vld [vmem:[#allocation3 + $0x109] sm:$0xff]
    %v4206 = vld [vmem:[#allocation3 + $0x111] sm:$0xff]
    %v4207 = vld [vmem:[#allocation3 + $0x121] sm:$0xff]
    %v4208 = vld [vmem:[#allocation3 + $0x129] sm:$0xff]
    %v4209 = vld [vmem:[#allocation3 + $0x139] sm:$0xff]
    %v4210 = vld [vmem:[#allocation3 + $0x141] sm:$0xff]
    %v4211 = vld [vmem:[#allocation3 + $0x151] sm:$0xff]
    %v4212 = vld [vmem:[#allocation3 + $0x159] sm:$0xff]
    %v4213 = vld [vmem:[#allocation3 + $0x169] sm:$0xff]
    %v4214 = vld [vmem:[#allocation3 + $0x171] sm:$0xff]
    %v4215 = vld [vmem:[#allocation3 + $0x1b1] sm:$0xff]
    %v4216 = vld [vmem:[#allocation3 + $0x1b9] sm:$0xff]
    %v4217 = vld [vmem:[#allocation3 + $0x1c9] sm:$0xff]
    %v4218 = vld [vmem:[#allocation3 + $0x1d1] sm:$0xff]
    %v4219 = vld [vmem:[#allocation3 + $0x1e1] sm:$0xff]
    %v4220 = vld [vmem:[#allocation3 + $0x1e9] sm:$0xff]
    %v4221 = vld [vmem:[#allocation3 + $0x1f9] sm:$0xff]
    %v4222 = vld [vmem:[#allocation3 + $0x201] sm:$0xff]
    %v4223 = vld [vmem:[#allocation3 + $0x211] sm:$0xff]
    %v4224 = vld [vmem:[#allocation3 + $0x219] sm:$0xff]
    %v4225 = vld [vmem:[#allocation3 + $0x229] sm:$0xff]
    %v4226 = vld [vmem:[#allocation3 + $0x231] sm:$0xff]
    %v4227 = vld [vmem:[#allocation3 + $0x241] sm:$0xff]
    %v4228 = vld [vmem:[#allocation3 + $0x249] sm:$0xff]
    %v4229 = vld [vmem:[#allocation3 + $0x259] sm:$0xff]
    %v4230 = vld [vmem:[#allocation3 + $0x261] sm:$0xff]
    %v4231 = vld [vmem:[#allocation3 + $0x271] sm:$0xff]
    %v4232 = vld [vmem:[#allocation3 + $0x279] sm:$0xff]
    %v4233 = vld [vmem:[#allocation3 + $0x289] sm:$0xff]
    %v4234 = vld [vmem:[#allocation3 + $0x291] sm:$0xff]
    %v4235 = vld [vmem:[#allocation3 + $0x2a1] sm:$0xff]
    %v4236 = vld [vmem:[#allocation3 + $0x2a9] sm:$0xff]
    %v4237 = vld [vmem:[#allocation3 + $0x2b9] sm:$0xff]
    %v4238 = vld [vmem:[#allocation3 + $0x2c1] sm:$0xff]
    %v4239 = vld [vmem:[#allocation3 + $0x2d1] sm:$0xff]
    %v4240 = vld [vmem:[#allocation3 + $0x2d9] sm:$0xff]
    %v4241 = vld [vmem:[#allocation3 + $0x2e9] sm:$0xff]
    %v4242 = vld [vmem:[#allocation3 + $0x2f1] sm:$0xff]
    %v4243 = vld [vmem:[#allocation3 + $0x301] sm:$0xff]
    %v4244 = vld [vmem:[#allocation3 + $0x309] sm:$0xff]
    %v4245 = vld [vmem:[#allocation3 + $0x319] sm:$0xff]
    %v4246 = vld [vmem:[#allocation3 + $0x321] sm:$0xff]
    %4247 = vst [vmem:[#allocation2 + $0x8] sm:$0xff] %v4183
    %4248 = vst [vmem:[#allocation2 + $0x50] sm:$0xff] %v4184
    %4249 = vst [vmem:[#allocation2 + $0x98] sm:$0xff] %v4185
    %4250 = vst [vmem:[#allocation2 + $0xe0] sm:$0xff] %v4186
    %4251 = vst [vmem:[#allocation2 + $0x128] sm:$0xff] %v4187
    %4252 = vst [vmem:[#allocation2 + $0x170] sm:$0xff] %v4188
    %4253 = vst [vmem:[#allocation2 + $0x1b8] sm:$0xff] %v4189
    %4254 = vst [vmem:[#allocation2 + $0x200] sm:$0xff] %v4190
    %4255 = vst [vmem:[#allocation2 + $0x248] sm:$0xff] %v4191
    %4256 = vst [vmem:[#allocation2 + $0x290] sm:$0xff] %v4192
    %4257 = vst [vmem:[#allocation2 + $0x2d8] sm:$0xff] %v4193
    %4258 = vst [vmem:[#allocation2 + $0x320] sm:$0xff] %v4194
    %4259 = vst [vmem:[#allocation2 + $0x368] sm:$0xff] %v4195
    %4260 = vst [vmem:[#allocation2 + $0x3b0] sm:$0xff] %v4196
    %4261 = vst [vmem:[#allocation2 + $0x3f8] sm:$0xff] %v4197
    %4262 = vst [vmem:[#allocation2 + $0x440] sm:$0xff] %v4198
    %4263 = vst [vmem:[#allocation2 + $0x488] sm:$0xff] %v4199
    %4264 = vst [vmem:[#allocation2 + $0x4d0] sm:$0xff] %v4200
    %4265 = vst [vmem:[#allocation2 + $0x518] sm:$0xff] %v4201
    %4266 = vst [vmem:[#allocation2 + $0x560] sm:$0xff] %v4202
    %4267 = vst [vmem:[#allocation2 + $0x5a8] sm:$0xff] %v4203
    %4268 = vst [vmem:[#allocation2 + $0x5f0] sm:$0xff] %v4204
    %4269 = vst [vmem:[#allocation2 + $0x638] sm:$0xff] %v4205
    %4270 = vst [vmem:[#allocation2 + $0x680] sm:$0xff] %v4206
    %4271 = vst [vmem:[#allocation2 + $0x6c8] sm:$0xff] %v4207
    %4272 = vst [vmem:[#allocation2 + $0x710] sm:$0xff] %v4208
    %4273 = vst [vmem:[#allocation2 + $0x758] sm:$0xff] %v4209
    %4274 = vst [vmem:[#allocation2 + $0x7a0] sm:$0xff] %v4210
    %4275 = vst [vmem:[#allocation2 + $0x7e8] sm:$0xff] %v4211
    %4276 = vst [vmem:[#allocation2 + $0x830] sm:$0xff] %v4212
    %4277 = vst [vmem:[#allocation2 + $0x878] sm:$0xff] %v4213
    %4278 = vst [vmem:[#allocation2 + $0x8c0] sm:$0xff] %v4214
    %4279 = vst [vmem:[#allocation2 + $0x908] sm:$0xff] %v4215
    %4280 = vst [vmem:[#allocation2 + $0x950] sm:$0xff] %v4216
    %4281 = vst [vmem:[#allocation2 + $0x998] sm:$0xff] %v4217
    %4282 = vst [vmem:[#allocation2 + $0x9e0] sm:$0xff] %v4218
    %4283 = vst [vmem:[#allocation2 + $0xa28] sm:$0xff] %v4219
    %4284 = vst [vmem:[#allocation2 + $0xa70] sm:$0xff] %v4220
    %4285 = vst [vmem:[#allocation2 + $0xab8] sm:$0xff] %v4221
    %4286 = vst [vmem:[#allocation2 + $0xb00] sm:$0xff] %v4222
    %4287 = vst [vmem:[#allocation2 + $0xb48] sm:$0xff] %v4223
    %4288 = vst [vmem:[#allocation2 + $0xb90] sm:$0xff] %v4224
    %4289 = vst [vmem:[#allocation2 + $0xbd8] sm:$0xff] %v4225
    %4290 = vst [vmem:[#allocation2 + $0xc20] sm:$0xff] %v4226
    %4291 = vst [vmem:[#allocation2 + $0xc68] sm:$0xff] %v4227
    %4292 = vst [vmem:[#allocation2 + $0xcb0] sm:$0xff] %v4228
    %4293 = vst [vmem:[#allocation2 + $0xcf8] sm:$0xff] %v4229
    %4294 = vst [vmem:[#allocation2 + $0xd40] sm:$0xff] %v4230
    %4295 = vst [vmem:[#allocation2 + $0xd88] sm:$0xff] %v4231
    %4296 = vst [vmem:[#allocation2 + $0xdd0] sm:$0xff] %v4232
    %4297 = vst [vmem:[#allocation2 + $0xe18] sm:$0xff] %v4233
    %4298 = vst [vmem:[#allocation2 + $0xe60] sm:$0xff] %v4234
    %4299 = vst [vmem:[#allocation2 + $0xea8] sm:$0xff] %v4235
    %4300 = vst [vmem:[#allocation2 + $0xef0] sm:$0xff] %v4236
    %4301 = vst [vmem:[#allocation2 + $0xf38] sm:$0xff] %v4237
    %4302 = vst [vmem:[#allocation2 + $0xf80] sm:$0xff] %v4238
    %4303 = vst [vmem:[#allocation2 + $0xfc8] sm:$0xff] %v4239
    %4304 = vst [vmem:[#allocation2 + $0x1010] sm:$0xff] %v4240
    %4305 = vst [vmem:[#allocation2 + $0x1058] sm:$0xff] %v4241
    %4306 = vst [vmem:[#allocation2 + $0x10a0] sm:$0xff] %v4242
    %4307 = vst [vmem:[#allocation2 + $0x10e8] sm:$0xff] %v4243
    %4308 = vst [vmem:[#allocation2 + $0x1130] sm:$0xff] %v4244
    %4309 = vst [vmem:[#allocation2 + $0x1178] sm:$0xff] %v4245
    %4310 = vst [vmem:[#allocation2 + $0x11c0] sm:$0xff] %v4246
    %v4311 = vld [vmem:[#allocation3 + $0x2] sm:$0xff]
    %v4312 = vld [vmem:[#allocation3 + $0xa] sm:$0xff]
    %v4313 = vld [vmem:[#allocation3 + $0x1a] sm:$0xff]
    %v4314 = vld [vmem:[#allocation3 + $0x22] sm:$0xff]
    %v4315 = vld [vmem:[#allocation3 + $0x32] sm:$0xff]
    %v4316 = vld [vmem:[#allocation3 + $0x3a] sm:$0xff]
    %v4317 = vld [vmem:[#allocation3 + $0x4a] sm:$0xff]
    %v4318 = vld [vmem:[#allocation3 + $0x52] sm:$0xff]
    %v4319 = vld [vmem:[#allocation3 + $0x62] sm:$0xff]
    %v4320 = vld [vmem:[#allocation3 + $0x6a] sm:$0xff]
    %v4321 = vld [vmem:[#allocation3 + $0x7a] sm:$0xff]
    %v4322 = vld [vmem:[#allocation3 + $0x82] sm:$0xff]
    %v4323 = vld [vmem:[#allocation3 + $0x92] sm:$0xff]
    %v4324 = vld [vmem:[#allocation3 + $0x9a] sm:$0xff]
    %v4325 = vld [vmem:[#allocation3 + $0xaa] sm:$0xff]
    %v4326 = vld [vmem:[#allocation3 + $0xb2] sm:$0xff]
    %v4327 = vld [vmem:[#allocation3 + $0xc2] sm:$0xff]
    %v4328 = vld [vmem:[#allocation3 + $0xca] sm:$0xff]
    %v4329 = vld [vmem:[#allocation3 + $0xda] sm:$0xff]
    %v4330 = vld [vmem:[#allocation3 + $0xe2] sm:$0xff]
    %v4331 = vld [vmem:[#allocation3 + $0xf2] sm:$0xff]
    %v4332 = vld [vmem:[#allocation3 + $0xfa] sm:$0xff]
    %v4333 = vld [vmem:[#allocation3 + $0x10a] sm:$0xff]
    %v4334 = vld [vmem:[#allocation3 + $0x112] sm:$0xff]
    %v4335 = vld [vmem:[#allocation3 + $0x122] sm:$0xff]
    %v4336 = vld [vmem:[#allocation3 + $0x12a] sm:$0xff]
    %v4337 = vld [vmem:[#allocation3 + $0x13a] sm:$0xff]
    %v4338 = vld [vmem:[#allocation3 + $0x142] sm:$0xff]
    %v4339 = vld [vmem:[#allocation3 + $0x152] sm:$0xff]
    %v4340 = vld [vmem:[#allocation3 + $0x15a] sm:$0xff]
    %v4341 = vld [vmem:[#allocation3 + $0x16a] sm:$0xff]
    %v4342 = vld [vmem:[#allocation3 + $0x172] sm:$0xff]
    %v4343 = vld [vmem:[#allocation3 + $0x1b2] sm:$0xff]
    %v4344 = vld [vmem:[#allocation3 + $0x1ba] sm:$0xff]
    %v4345 = vld [vmem:[#allocation3 + $0x1ca] sm:$0xff]
    %v4346 = vld [vmem:[#allocation3 + $0x1d2] sm:$0xff]
    %v4347 = vld [vmem:[#allocation3 + $0x1e2] sm:$0xff]
    %v4348 = vld [vmem:[#allocation3 + $0x1ea] sm:$0xff]
    %v4349 = vld [vmem:[#allocation3 + $0x1fa] sm:$0xff]
    %v4350 = vld [vmem:[#allocation3 + $0x202] sm:$0xff]
    %v4351 = vld [vmem:[#allocation3 + $0x212] sm:$0xff]
    %v4352 = vld [vmem:[#allocation3 + $0x21a] sm:$0xff]
    %v4353 = vld [vmem:[#allocation3 + $0x22a] sm:$0xff]
    %v4354 = vld [vmem:[#allocation3 + $0x232] sm:$0xff]
    %v4355 = vld [vmem:[#allocation3 + $0x242] sm:$0xff]
    %v4356 = vld [vmem:[#allocation3 + $0x24a] sm:$0xff]
    %v4357 = vld [vmem:[#allocation3 + $0x25a] sm:$0xff]
    %v4358 = vld [vmem:[#allocation3 + $0x262] sm:$0xff]
    %v4359 = vld [vmem:[#allocation3 + $0x272] sm:$0xff]
    %v4360 = vld [vmem:[#allocation3 + $0x27a] sm:$0xff]
    %v4361 = vld [vmem:[#allocation3 + $0x28a] sm:$0xff]
    %v4362 = vld [vmem:[#allocation3 + $0x292] sm:$0xff]
    %v4363 = vld [vmem:[#allocation3 + $0x2a2] sm:$0xff]
    %v4364 = vld [vmem:[#allocation3 + $0x2aa] sm:$0xff]
    %v4365 = vld [vmem:[#allocation3 + $0x2ba] sm:$0xff]
    %v4366 = vld [vmem:[#allocation3 + $0x2c2] sm:$0xff]
    %v4367 = vld [vmem:[#allocation3 + $0x2d2] sm:$0xff]
    %v4368 = vld [vmem:[#allocation3 + $0x2da] sm:$0xff]
    %v4369 = vld [vmem:[#allocation3 + $0x2ea] sm:$0xff]
    %v4370 = vld [vmem:[#allocation3 + $0x2f2] sm:$0xff]
    %v4371 = vld [vmem:[#allocation3 + $0x302] sm:$0xff]
    %v4372 = vld [vmem:[#allocation3 + $0x30a] sm:$0xff]
    %v4373 = vld [vmem:[#allocation3 + $0x31a] sm:$0xff]
    %v4374 = vld [vmem:[#allocation3 + $0x322] sm:$0xff]
    %4375 = vst [vmem:[#allocation2 + $0x10] sm:$0xff] %v4311
    %4376 = vst [vmem:[#allocation2 + $0x58] sm:$0xff] %v4312
    %4377 = vst [vmem:[#allocation2 + $0xa0] sm:$0xff] %v4313
    %4378 = vst [vmem:[#allocation2 + $0xe8] sm:$0xff] %v4314
    %4379 = vst [vmem:[#allocation2 + $0x130] sm:$0xff] %v4315
    %4380 = vst [vmem:[#allocation2 + $0x178] sm:$0xff] %v4316
    %4381 = vst [vmem:[#allocation2 + $0x1c0] sm:$0xff] %v4317
    %4382 = vst [vmem:[#allocation2 + $0x208] sm:$0xff] %v4318
    %4383 = vst [vmem:[#allocation2 + $0x250] sm:$0xff] %v4319
    %4384 = vst [vmem:[#allocation2 + $0x298] sm:$0xff] %v4320
    %4385 = vst [vmem:[#allocation2 + $0x2e0] sm:$0xff] %v4321
    %4386 = vst [vmem:[#allocation2 + $0x328] sm:$0xff] %v4322
    %4387 = vst [vmem:[#allocation2 + $0x370] sm:$0xff] %v4323
    %4388 = vst [vmem:[#allocation2 + $0x3b8] sm:$0xff] %v4324
    %4389 = vst [vmem:[#allocation2 + $0x400] sm:$0xff] %v4325
    %4390 = vst [vmem:[#allocation2 + $0x448] sm:$0xff] %v4326
    %4391 = vst [vmem:[#allocation2 + $0x490] sm:$0xff] %v4327
    %4392 = vst [vmem:[#allocation2 + $0x4d8] sm:$0xff] %v4328
    %4393 = vst [vmem:[#allocation2 + $0x520] sm:$0xff] %v4329
    %4394 = vst [vmem:[#allocation2 + $0x568] sm:$0xff] %v4330
    %4395 = vst [vmem:[#allocation2 + $0x5b0] sm:$0xff] %v4331
    %4396 = vst [vmem:[#allocation2 + $0x5f8] sm:$0xff] %v4332
    %4397 = vst [vmem:[#allocation2 + $0x640] sm:$0xff] %v4333
    %4398 = vst [vmem:[#allocation2 + $0x688] sm:$0xff] %v4334
    %4399 = vst [vmem:[#allocation2 + $0x6d0] sm:$0xff] %v4335
    %4400 = vst [vmem:[#allocation2 + $0x718] sm:$0xff] %v4336
    %4401 = vst [vmem:[#allocation2 + $0x760] sm:$0xff] %v4337
    %4402 = vst [vmem:[#allocation2 + $0x7a8] sm:$0xff] %v4338
    %4403 = vst [vmem:[#allocation2 + $0x7f0] sm:$0xff] %v4339
    %4404 = vst [vmem:[#allocation2 + $0x838] sm:$0xff] %v4340
    %4405 = vst [vmem:[#allocation2 + $0x880] sm:$0xff] %v4341
    %4406 = vst [vmem:[#allocation2 + $0x8c8] sm:$0xff] %v4342
    %4407 = vst [vmem:[#allocation2 + $0x910] sm:$0xff] %v4343
    %4408 = vst [vmem:[#allocation2 + $0x958] sm:$0xff] %v4344
    %4409 = vst [vmem:[#allocation2 + $0x9a0] sm:$0xff] %v4345
    %4410 = vst [vmem:[#allocation2 + $0x9e8] sm:$0xff] %v4346
    %4411 = vst [vmem:[#allocation2 + $0xa30] sm:$0xff] %v4347
    %4412 = vst [vmem:[#allocation2 + $0xa78] sm:$0xff] %v4348
    %4413 = vst [vmem:[#allocation2 + $0xac0] sm:$0xff] %v4349
    %4414 = vst [vmem:[#allocation2 + $0xb08] sm:$0xff] %v4350
    %4415 = vst [vmem:[#allocation2 + $0xb50] sm:$0xff] %v4351
    %4416 = vst [vmem:[#allocation2 + $0xb98] sm:$0xff] %v4352
    %4417 = vst [vmem:[#allocation2 + $0xbe0] sm:$0xff] %v4353
    %4418 = vst [vmem:[#allocation2 + $0xc28] sm:$0xff] %v4354
    %4419 = vst [vmem:[#allocation2 + $0xc70] sm:$0xff] %v4355
    %4420 = vst [vmem:[#allocation2 + $0xcb8] sm:$0xff] %v4356
    %4421 = vst [vmem:[#allocation2 + $0xd00] sm:$0xff] %v4357
    %4422 = vst [vmem:[#allocation2 + $0xd48] sm:$0xff] %v4358
    %4423 = vst [vmem:[#allocation2 + $0xd90] sm:$0xff] %v4359
    %4424 = vst [vmem:[#allocation2 + $0xdd8] sm:$0xff] %v4360
    %4425 = vst [vmem:[#allocation2 + $0xe20] sm:$0xff] %v4361
    %4426 = vst [vmem:[#allocation2 + $0xe68] sm:$0xff] %v4362
    %4427 = vst [vmem:[#allocation2 + $0xeb0] sm:$0xff] %v4363
    %4428 = vst [vmem:[#allocation2 + $0xef8] sm:$0xff] %v4364
    %4429 = vst [vmem:[#allocation2 + $0xf40] sm:$0xff] %v4365
    %4430 = vst [vmem:[#allocation2 + $0xf88] sm:$0xff] %v4366
    %4431 = vst [vmem:[#allocation2 + $0xfd0] sm:$0xff] %v4367
    %4432 = vst [vmem:[#allocation2 + $0x1018] sm:$0xff] %v4368
    %4433 = vst [vmem:[#allocation2 + $0x1060] sm:$0xff] %v4369
    %4434 = vst [vmem:[#allocation2 + $0x10a8] sm:$0xff] %v4370
    %4435 = vst [vmem:[#allocation2 + $0x10f0] sm:$0xff] %v4371
    %4436 = vst [vmem:[#allocation2 + $0x1138] sm:$0xff] %v4372
    %4437 = vst [vmem:[#allocation2 + $0x1180] sm:$0xff] %v4373
    %4438 = vst [vmem:[#allocation2 + $0x11c8] sm:$0xff] %v4374
    %v4439 = vld [vmem:[%s3990] sm:$0xff]
    %v4440 = vld [vmem:[%s3990 + $0x8] sm:$0xff]
    %v4441 = vld [vmem:[%s3990 + $0x18] sm:$0xff]
    %v4442 = vld [vmem:[%s3990 + $0x20] sm:$0xff]
    %v4443 = vld [vmem:[%s3990 + $0x30] sm:$0xff]
    %v4444 = vld [vmem:[%s3990 + $0x38] sm:$0xff]
    %v4445 = vld [vmem:[%s3990 + $0x48] sm:$0xff]
    %v4446 = vld [vmem:[%s3990 + $0x50] sm:$0xff]
    %v4447 = vld [vmem:[%s3990 + $0x60] sm:$0xff]
    %v4448 = vld [vmem:[%s3990 + $0x68] sm:$0xff]
    %v4449 = vld [vmem:[%s3990 + $0x78] sm:$0xff]
    %v4450 = vld [vmem:[%s3990 + $0x80] sm:$0xff]
    %v4451 = vld [vmem:[%s3990 + $0x90] sm:$0xff]
    %v4452 = vld [vmem:[%s3990 + $0x98] sm:$0xff]
    %v4453 = vld [vmem:[%s3990 + $0xa8] sm:$0xff]
    %v4454 = vld [vmem:[%s3990 + $0xb0] sm:$0xff]
    %v4455 = vld [vmem:[%s3990 + $0xc0] sm:$0xff]
    %v4456 = vld [vmem:[%s3990 + $0xc8] sm:$0xff]
    %v4457 = vld [vmem:[%s3990 + $0xd8] sm:$0xff]
    %v4458 = vld [vmem:[%s3990 + $0xe0] sm:$0xff]
    %v4459 = vld [vmem:[%s3990 + $0xf0] sm:$0xff]
    %v4460 = vld [vmem:[%s3990 + $0xf8] sm:$0xff]
    %v4461 = vld [vmem:[%s3990 + $0x108] sm:$0xff]
    %v4462 = vld [vmem:[%s3990 + $0x110] sm:$0xff]
    %v4463 = vld [vmem:[%s3990 + $0x120] sm:$0xff]
    %v4464 = vld [vmem:[%s3990 + $0x128] sm:$0xff]
    %v4465 = vld [vmem:[%s3990 + $0x138] sm:$0xff]
    %v4466 = vld [vmem:[%s3990 + $0x140] sm:$0xff]
    %v4467 = vld [vmem:[%s3990 + $0x150] sm:$0xff]
    %v4468 = vld [vmem:[%s3990 + $0x158] sm:$0xff]
    %v4469 = vld [vmem:[%s3990 + $0x168] sm:$0xff]
    %v4470 = vld [vmem:[%s3990 + $0x170] sm:$0xff]
    %v4471 = vld [vmem:[%s3990 + $0x1b0] sm:$0xff]
    %v4472 = vld [vmem:[%s3990 + $0x1b8] sm:$0xff]
    %v4473 = vld [vmem:[%s3990 + $0x1c8] sm:$0xff]
    %v4474 = vld [vmem:[%s3990 + $0x1d0] sm:$0xff]
    %v4475 = vld [vmem:[%s3990 + $0x1e0] sm:$0xff]
    %v4476 = vld [vmem:[%s3990 + $0x1e8] sm:$0xff]
    %v4477 = vld [vmem:[%s3990 + $0x1f8] sm:$0xff]
    %v4478 = vld [vmem:[%s3990 + $0x200] sm:$0xff]
    %v4479 = vld [vmem:[%s3990 + $0x210] sm:$0xff]
    %v4480 = vld [vmem:[%s3990 + $0x218] sm:$0xff]
    %v4481 = vld [vmem:[%s3990 + $0x228] sm:$0xff]
    %v4482 = vld [vmem:[%s3990 + $0x230] sm:$0xff]
    %v4483 = vld [vmem:[%s3990 + $0x240] sm:$0xff]
    %v4484 = vld [vmem:[%s3990 + $0x248] sm:$0xff]
    %v4485 = vld [vmem:[%s3990 + $0x258] sm:$0xff]
    %v4486 = vld [vmem:[%s3990 + $0x260] sm:$0xff]
    %v4487 = vld [vmem:[%s3990 + $0x270] sm:$0xff]
    %v4488 = vld [vmem:[%s3990 + $0x278] sm:$0xff]
    %v4489 = vld [vmem:[%s3990 + $0x288] sm:$0xff]
    %v4490 = vld [vmem:[%s3990 + $0x290] sm:$0xff]
    %v4491 = vld [vmem:[%s3990 + $0x2a0] sm:$0xff]
    %v4492 = vld [vmem:[%s3990 + $0x2a8] sm:$0xff]
    %v4493 = vld [vmem:[%s3990 + $0x2b8] sm:$0xff]
    %v4494 = vld [vmem:[%s3990 + $0x2c0] sm:$0xff]
    %v4495 = vld [vmem:[%s3990 + $0x2d0] sm:$0xff]
    %v4496 = vld [vmem:[%s3990 + $0x2d8] sm:$0xff]
    %v4497 = vld [vmem:[%s3990 + $0x2e8] sm:$0xff]
    %v4498 = vld [vmem:[%s3990 + $0x2f0] sm:$0xff]
    %v4499 = vld [vmem:[%s3990 + $0x300] sm:$0xff]
    %v4500 = vld [vmem:[%s3990 + $0x308] sm:$0xff]
    %v4501 = vld [vmem:[%s3990 + $0x318] sm:$0xff]
    %v4502 = vld [vmem:[%s3990 + $0x320] sm:$0xff]
    %4503 = vst [vmem:[#allocation2 + $0x18] sm:$0xff] %v4439
    %4504 = vst [vmem:[#allocation2 + $0x60] sm:$0xff] %v4440
    %4505 = vst [vmem:[#allocation2 + $0xa8] sm:$0xff] %v4441
    %4506 = vst [vmem:[#allocation2 + $0xf0] sm:$0xff] %v4442
    %4507 = vst [vmem:[#allocation2 + $0x138] sm:$0xff] %v4443
    %4508 = vst [vmem:[#allocation2 + $0x180] sm:$0xff] %v4444
    %4509 = vst [vmem:[#allocation2 + $0x1c8] sm:$0xff] %v4445
    %4510 = vst [vmem:[#allocation2 + $0x210] sm:$0xff] %v4446
    %4511 = vst [vmem:[#allocation2 + $0x258] sm:$0xff] %v4447
    %4512 = vst [vmem:[#allocation2 + $0x2a0] sm:$0xff] %v4448
    %4513 = vst [vmem:[#allocation2 + $0x2e8] sm:$0xff] %v4449
    %4514 = vst [vmem:[#allocation2 + $0x330] sm:$0xff] %v4450
    %4515 = vst [vmem:[#allocation2 + $0x378] sm:$0xff] %v4451
    %4516 = vst [vmem:[#allocation2 + $0x3c0] sm:$0xff] %v4452
    %4517 = vst [vmem:[#allocation2 + $0x408] sm:$0xff] %v4453
    %4518 = vst [vmem:[#allocation2 + $0x450] sm:$0xff] %v4454
    %4519 = vst [vmem:[#allocation2 + $0x498] sm:$0xff] %v4455
    %4520 = vst [vmem:[#allocation2 + $0x4e0] sm:$0xff] %v4456
    %4521 = vst [vmem:[#allocation2 + $0x528] sm:$0xff] %v4457
    %4522 = vst [vmem:[#allocation2 + $0x570] sm:$0xff] %v4458
    %4523 = vst [vmem:[#allocation2 + $0x5b8] sm:$0xff] %v4459
    %4524 = vst [vmem:[#allocation2 + $0x600] sm:$0xff] %v4460
    %4525 = vst [vmem:[#allocation2 + $0x648] sm:$0xff] %v4461
    %4526 = vst [vmem:[#allocation2 + $0x690] sm:$0xff] %v4462
    %4527 = vst [vmem:[#allocation2 + $0x6d8] sm:$0xff] %v4463
    %4528 = vst [vmem:[#allocation2 + $0x720] sm:$0xff] %v4464
    %4529 = vst [vmem:[#allocation2 + $0x768] sm:$0xff] %v4465
    %4530 = vst [vmem:[#allocation2 + $0x7b0] sm:$0xff] %v4466
    %4531 = vst [vmem:[#allocation2 + $0x7f8] sm:$0xff] %v4467
    %4532 = vst [vmem:[#allocation2 + $0x840] sm:$0xff] %v4468
    %4533 = vst [vmem:[#allocation2 + $0x888] sm:$0xff] %v4469
    %4534 = vst [vmem:[#allocation2 + $0x8d0] sm:$0xff] %v4470
    %4535 = vst [vmem:[#allocation2 + $0x918] sm:$0xff] %v4471
    %4536 = vst [vmem:[#allocation2 + $0x960] sm:$0xff] %v4472
    %4537 = vst [vmem:[#allocation2 + $0x9a8] sm:$0xff] %v4473
    %4538 = vst [vmem:[#allocation2 + $0x9f0] sm:$0xff] %v4474
    %4539 = vst [vmem:[#allocation2 + $0xa38] sm:$0xff] %v4475
    %4540 = vst [vmem:[#allocation2 + $0xa80] sm:$0xff] %v4476
    %4541 = vst [vmem:[#allocation2 + $0xac8] sm:$0xff] %v4477
    %4542 = vst [vmem:[#allocation2 + $0xb10] sm:$0xff] %v4478
    %4543 = vst [vmem:[#allocation2 + $0xb58] sm:$0xff] %v4479
    %4544 = vst [vmem:[#allocation2 + $0xba0] sm:$0xff] %v4480
    %4545 = vst [vmem:[#allocation2 + $0xbe8] sm:$0xff] %v4481
    %4546 = vst [vmem:[#allocation2 + $0xc30] sm:$0xff] %v4482
    %4547 = vst [vmem:[#allocation2 + $0xc78] sm:$0xff] %v4483
    %4548 = vst [vmem:[#allocation2 + $0xcc0] sm:$0xff] %v4484
    %4549 = vst [vmem:[#allocation2 + $0xd08] sm:$0xff] %v4485
    %4550 = vst [vmem:[#allocation2 + $0xd50] sm:$0xff] %v4486
    %4551 = vst [vmem:[#allocation2 + $0xd98] sm:$0xff] %v4487
    %4552 = vst [vmem:[#allocation2 + $0xde0] sm:$0xff] %v4488
    %4553 = vst [vmem:[#allocation2 + $0xe28] sm:$0xff] %v4489
    %4554 = vst [vmem:[#allocation2 + $0xe70] sm:$0xff] %v4490
    %4555 = vst [vmem:[#allocation2 + $0xeb8] sm:$0xff] %v4491
    %4556 = vst [vmem:[#allocation2 + $0xf00] sm:$0xff] %v4492
    %4557 = vst [vmem:[#allocation2 + $0xf48] sm:$0xff] %v4493
    %4558 = vst [vmem:[#allocation2 + $0xf90] sm:$0xff] %v4494
    %4559 = vst [vmem:[#allocation2 + $0xfd8] sm:$0xff] %v4495
    %4560 = vst [vmem:[#allocation2 + $0x1020] sm:$0xff] %v4496
    %4561 = vst [vmem:[#allocation2 + $0x1068] sm:$0xff] %v4497
    %4562 = vst [vmem:[#allocation2 + $0x10b0] sm:$0xff] %v4498
    %4563 = vst [vmem:[#allocation2 + $0x10f8] sm:$0xff] %v4499
    %4564 = vst [vmem:[#allocation2 + $0x1140] sm:$0xff] %v4500
    %4565 = vst [vmem:[#allocation2 + $0x1188] sm:$0xff] %v4501
    %4566 = vst [vmem:[#allocation2 + $0x11d0] sm:$0xff] %v4502
    %v4567 = vld [vmem:[%s3990 + $0x1] sm:$0xff]
    %v4568 = vld [vmem:[%s3990 + $0x9] sm:$0xff]
    %v4569 = vld [vmem:[%s3990 + $0x19] sm:$0xff]
    %v4570 = vld [vmem:[%s3990 + $0x21] sm:$0xff]
    %v4571 = vld [vmem:[%s3990 + $0x31] sm:$0xff]
    %v4572 = vld [vmem:[%s3990 + $0x39] sm:$0xff]
    %v4573 = vld [vmem:[%s3990 + $0x49] sm:$0xff]
    %v4574 = vld [vmem:[%s3990 + $0x51] sm:$0xff]
    %v4575 = vld [vmem:[%s3990 + $0x61] sm:$0xff]
    %v4576 = vld [vmem:[%s3990 + $0x69] sm:$0xff]
    %v4577 = vld [vmem:[%s3990 + $0x79] sm:$0xff]
    %v4578 = vld [vmem:[%s3990 + $0x81] sm:$0xff]
    %v4579 = vld [vmem:[%s3990 + $0x91] sm:$0xff]
    %v4580 = vld [vmem:[%s3990 + $0x99] sm:$0xff]
    %v4581 = vld [vmem:[%s3990 + $0xa9] sm:$0xff]
    %v4582 = vld [vmem:[%s3990 + $0xb1] sm:$0xff]
    %v4583 = vld [vmem:[%s3990 + $0xc1] sm:$0xff]
    %v4584 = vld [vmem:[%s3990 + $0xc9] sm:$0xff]
    %v4585 = vld [vmem:[%s3990 + $0xd9] sm:$0xff]
    %v4586 = vld [vmem:[%s3990 + $0xe1] sm:$0xff]
    %v4587 = vld [vmem:[%s3990 + $0xf1] sm:$0xff]
    %v4588 = vld [vmem:[%s3990 + $0xf9] sm:$0xff]
    %v4589 = vld [vmem:[%s3990 + $0x109] sm:$0xff]
    %v4590 = vld [vmem:[%s3990 + $0x111] sm:$0xff]
    %v4591 = vld [vmem:[%s3990 + $0x121] sm:$0xff]
    %v4592 = vld [vmem:[%s3990 + $0x129] sm:$0xff]
    %v4593 = vld [vmem:[%s3990 + $0x139] sm:$0xff]
    %v4594 = vld [vmem:[%s3990 + $0x141] sm:$0xff]
    %v4595 = vld [vmem:[%s3990 + $0x151] sm:$0xff]
    %v4596 = vld [vmem:[%s3990 + $0x159] sm:$0xff]
    %v4597 = vld [vmem:[%s3990 + $0x169] sm:$0xff]
    %v4598 = vld [vmem:[%s3990 + $0x171] sm:$0xff]
    %v4599 = vld [vmem:[%s3990 + $0x1b1] sm:$0xff]
    %v4600 = vld [vmem:[%s3990 + $0x1b9] sm:$0xff]
    %v4601 = vld [vmem:[%s3990 + $0x1c9] sm:$0xff]
    %v4602 = vld [vmem:[%s3990 + $0x1d1] sm:$0xff]
    %v4603 = vld [vmem:[%s3990 + $0x1e1] sm:$0xff]
    %v4604 = vld [vmem:[%s3990 + $0x1e9] sm:$0xff]
    %v4605 = vld [vmem:[%s3990 + $0x1f9] sm:$0xff]
    %v4606 = vld [vmem:[%s3990 + $0x201] sm:$0xff]
    %v4607 = vld [vmem:[%s3990 + $0x211] sm:$0xff]
    %v4608 = vld [vmem:[%s3990 + $0x219] sm:$0xff]
    %v4609 = vld [vmem:[%s3990 + $0x229] sm:$0xff]
    %v4610 = vld [vmem:[%s3990 + $0x231] sm:$0xff]
    %v4611 = vld [vmem:[%s3990 + $0x241] sm:$0xff]
    %v4612 = vld [vmem:[%s3990 + $0x249] sm:$0xff]
    %v4613 = vld [vmem:[%s3990 + $0x259] sm:$0xff]
    %v4614 = vld [vmem:[%s3990 + $0x261] sm:$0xff]
    %v4615 = vld [vmem:[%s3990 + $0x271] sm:$0xff]
    %v4616 = vld [vmem:[%s3990 + $0x279] sm:$0xff]
    %v4617 = vld [vmem:[%s3990 + $0x289] sm:$0xff]
    %v4618 = vld [vmem:[%s3990 + $0x291] sm:$0xff]
    %v4619 = vld [vmem:[%s3990 + $0x2a1] sm:$0xff]
    %v4620 = vld [vmem:[%s3990 + $0x2a9] sm:$0xff]
    %v4621 = vld [vmem:[%s3990 + $0x2b9] sm:$0xff]
    %v4622 = vld [vmem:[%s3990 + $0x2c1] sm:$0xff]
    %v4623 = vld [vmem:[%s3990 + $0x2d1] sm:$0xff]
    %v4624 = vld [vmem:[%s3990 + $0x2d9] sm:$0xff]
    %v4625 = vld [vmem:[%s3990 + $0x2e9] sm:$0xff]
    %v4626 = vld [vmem:[%s3990 + $0x2f1] sm:$0xff]
    %v4627 = vld [vmem:[%s3990 + $0x301] sm:$0xff]
    %v4628 = vld [vmem:[%s3990 + $0x309] sm:$0xff]
    %v4629 = vld [vmem:[%s3990 + $0x319] sm:$0xff]
    %v4630 = vld [vmem:[%s3990 + $0x321] sm:$0xff]
    %4631 = vst [vmem:[#allocation2 + $0x20] sm:$0xff] %v4567
    %4632 = vst [vmem:[#allocation2 + $0x68] sm:$0xff] %v4568
    %4633 = vst [vmem:[#allocation2 + $0xb0] sm:$0xff] %v4569
    %4634 = vst [vmem:[#allocation2 + $0xf8] sm:$0xff] %v4570
    %4635 = vst [vmem:[#allocation2 + $0x140] sm:$0xff] %v4571
    %4636 = vst [vmem:[#allocation2 + $0x188] sm:$0xff] %v4572
    %4637 = vst [vmem:[#allocation2 + $0x1d0] sm:$0xff] %v4573
    %4638 = vst [vmem:[#allocation2 + $0x218] sm:$0xff] %v4574
    %4639 = vst [vmem:[#allocation2 + $0x260] sm:$0xff] %v4575
    %4640 = vst [vmem:[#allocation2 + $0x2a8] sm:$0xff] %v4576
    %4641 = vst [vmem:[#allocation2 + $0x2f0] sm:$0xff] %v4577
    %4642 = vst [vmem:[#allocation2 + $0x338] sm:$0xff] %v4578
    %4643 = vst [vmem:[#allocation2 + $0x380] sm:$0xff] %v4579
    %4644 = vst [vmem:[#allocation2 + $0x3c8] sm:$0xff] %v4580
    %4645 = vst [vmem:[#allocation2 + $0x410] sm:$0xff] %v4581
    %4646 = vst [vmem:[#allocation2 + $0x458] sm:$0xff] %v4582
    %4647 = vst [vmem:[#allocation2 + $0x4a0] sm:$0xff] %v4583
    %4648 = vst [vmem:[#allocation2 + $0x4e8] sm:$0xff] %v4584
    %4649 = vst [vmem:[#allocation2 + $0x530] sm:$0xff] %v4585
    %4650 = vst [vmem:[#allocation2 + $0x578] sm:$0xff] %v4586
    %4651 = vst [vmem:[#allocation2 + $0x5c0] sm:$0xff] %v4587
    %4652 = vst [vmem:[#allocation2 + $0x608] sm:$0xff] %v4588
    %4653 = vst [vmem:[#allocation2 + $0x650] sm:$0xff] %v4589
    %4654 = vst [vmem:[#allocation2 + $0x698] sm:$0xff] %v4590
    %4655 = vst [vmem:[#allocation2 + $0x6e0] sm:$0xff] %v4591
    %4656 = vst [vmem:[#allocation2 + $0x728] sm:$0xff] %v4592
    %4657 = vst [vmem:[#allocation2 + $0x770] sm:$0xff] %v4593
    %4658 = vst [vmem:[#allocation2 + $0x7b8] sm:$0xff] %v4594
    %4659 = vst [vmem:[#allocation2 + $0x800] sm:$0xff] %v4595
    %4660 = vst [vmem:[#allocation2 + $0x848] sm:$0xff] %v4596
    %4661 = vst [vmem:[#allocation2 + $0x890] sm:$0xff] %v4597
    %4662 = vst [vmem:[#allocation2 + $0x8d8] sm:$0xff] %v4598
    %4663 = vst [vmem:[#allocation2 + $0x920] sm:$0xff] %v4599
    %4664 = vst [vmem:[#allocation2 + $0x968] sm:$0xff] %v4600
    %4665 = vst [vmem:[#allocation2 + $0x9b0] sm:$0xff] %v4601
    %4666 = vst [vmem:[#allocation2 + $0x9f8] sm:$0xff] %v4602
    %4667 = vst [vmem:[#allocation2 + $0xa40] sm:$0xff] %v4603
    %4668 = vst [vmem:[#allocation2 + $0xa88] sm:$0xff] %v4604
    %4669 = vst [vmem:[#allocation2 + $0xad0] sm:$0xff] %v4605
    %4670 = vst [vmem:[#allocation2 + $0xb18] sm:$0xff] %v4606
    %4671 = vst [vmem:[#allocation2 + $0xb60] sm:$0xff] %v4607
    %4672 = vst [vmem:[#allocation2 + $0xba8] sm:$0xff] %v4608
    %4673 = vst [vmem:[#allocation2 + $0xbf0] sm:$0xff] %v4609
    %4674 = vst [vmem:[#allocation2 + $0xc38] sm:$0xff] %v4610
    %4675 = vst [vmem:[#allocation2 + $0xc80] sm:$0xff] %v4611
    %4676 = vst [vmem:[#allocation2 + $0xcc8] sm:$0xff] %v4612
    %4677 = vst [vmem:[#allocation2 + $0xd10] sm:$0xff] %v4613
    %4678 = vst [vmem:[#allocation2 + $0xd58] sm:$0xff] %v4614
    %4679 = vst [vmem:[#allocation2 + $0xda0] sm:$0xff] %v4615
    %4680 = vst [vmem:[#allocation2 + $0xde8] sm:$0xff] %v4616
    %4681 = vst [vmem:[#allocation2 + $0xe30] sm:$0xff] %v4617
    %4682 = vst [vmem:[#allocation2 + $0xe78] sm:$0xff] %v4618
    %4683 = vst [vmem:[#allocation2 + $0xec0] sm:$0xff] %v4619
    %4684 = vst [vmem:[#allocation2 + $0xf08] sm:$0xff] %v4620
    %4685 = vst [vmem:[#allocation2 + $0xf50] sm:$0xff] %v4621
    %4686 = vst [vmem:[#allocation2 + $0xf98] sm:$0xff] %v4622
    %4687 = vst [vmem:[#allocation2 + $0xfe0] sm:$0xff] %v4623
    %4688 = vst [vmem:[#allocation2 + $0x1028] sm:$0xff] %v4624
    %4689 = vst [vmem:[#allocation2 + $0x1070] sm:$0xff] %v4625
    %4690 = vst [vmem:[#allocation2 + $0x10b8] sm:$0xff] %v4626
    %4691 = vst [vmem:[#allocation2 + $0x1100] sm:$0xff] %v4627
    %4692 = vst [vmem:[#allocation2 + $0x1148] sm:$0xff] %v4628
    %4693 = vst [vmem:[#allocation2 + $0x1190] sm:$0xff] %v4629
    %4694 = vst [vmem:[#allocation2 + $0x11d8] sm:$0xff] %v4630
    %v4695 = vld [vmem:[%s3990 + $0x2] sm:$0xff]
    %v4696 = vld [vmem:[%s3990 + $0xa] sm:$0xff]
    %v4697 = vld [vmem:[%s3990 + $0x1a] sm:$0xff]
    %v4698 = vld [vmem:[%s3990 + $0x22] sm:$0xff]
    %v4699 = vld [vmem:[%s3990 + $0x32] sm:$0xff]
    %v4700 = vld [vmem:[%s3990 + $0x3a] sm:$0xff]
    %v4701 = vld [vmem:[%s3990 + $0x4a] sm:$0xff]
    %v4702 = vld [vmem:[%s3990 + $0x52] sm:$0xff]
    %v4703 = vld [vmem:[%s3990 + $0x62] sm:$0xff]
    %v4704 = vld [vmem:[%s3990 + $0x6a] sm:$0xff]
    %v4705 = vld [vmem:[%s3990 + $0x7a] sm:$0xff]
    %v4706 = vld [vmem:[%s3990 + $0x82] sm:$0xff]
    %v4707 = vld [vmem:[%s3990 + $0x92] sm:$0xff]
    %v4708 = vld [vmem:[%s3990 + $0x9a] sm:$0xff]
    %v4709 = vld [vmem:[%s3990 + $0xaa] sm:$0xff]
    %v4710 = vld [vmem:[%s3990 + $0xb2] sm:$0xff]
    %v4711 = vld [vmem:[%s3990 + $0xc2] sm:$0xff]
    %v4712 = vld [vmem:[%s3990 + $0xca] sm:$0xff]
    %v4713 = vld [vmem:[%s3990 + $0xda] sm:$0xff]
    %v4714 = vld [vmem:[%s3990 + $0xe2] sm:$0xff]
    %v4715 = vld [vmem:[%s3990 + $0xf2] sm:$0xff]
    %v4716 = vld [vmem:[%s3990 + $0xfa] sm:$0xff]
    %v4717 = vld [vmem:[%s3990 + $0x10a] sm:$0xff]
    %v4718 = vld [vmem:[%s3990 + $0x112] sm:$0xff]
    %v4719 = vld [vmem:[%s3990 + $0x122] sm:$0xff]
    %v4720 = vld [vmem:[%s3990 + $0x12a] sm:$0xff]
    %v4721 = vld [vmem:[%s3990 + $0x13a] sm:$0xff]
    %v4722 = vld [vmem:[%s3990 + $0x142] sm:$0xff]
    %v4723 = vld [vmem:[%s3990 + $0x152] sm:$0xff]
    %v4724 = vld [vmem:[%s3990 + $0x15a] sm:$0xff]
    %v4725 = vld [vmem:[%s3990 + $0x16a] sm:$0xff]
    %v4726 = vld [vmem:[%s3990 + $0x172] sm:$0xff]
    %v4727 = vld [vmem:[%s3990 + $0x1b2] sm:$0xff]
    %v4728 = vld [vmem:[%s3990 + $0x1ba] sm:$0xff]
    %v4729 = vld [vmem:[%s3990 + $0x1ca] sm:$0xff]
    %v4730 = vld [vmem:[%s3990 + $0x1d2] sm:$0xff]
    %v4731 = vld [vmem:[%s3990 + $0x1e2] sm:$0xff]
    %v4732 = vld [vmem:[%s3990 + $0x1ea] sm:$0xff]
    %v4733 = vld [vmem:[%s3990 + $0x1fa] sm:$0xff]
    %v4734 = vld [vmem:[%s3990 + $0x202] sm:$0xff]
    %v4735 = vld [vmem:[%s3990 + $0x212] sm:$0xff]
    %v4736 = vld [vmem:[%s3990 + $0x21a] sm:$0xff]
    %v4737 = vld [vmem:[%s3990 + $0x22a] sm:$0xff]
    %v4738 = vld [vmem:[%s3990 + $0x232] sm:$0xff]
    %v4739 = vld [vmem:[%s3990 + $0x242] sm:$0xff]
    %v4740 = vld [vmem:[%s3990 + $0x24a] sm:$0xff]
    %v4741 = vld [vmem:[%s3990 + $0x25a] sm:$0xff]
    %v4742 = vld [vmem:[%s3990 + $0x262] sm:$0xff]
    %v4743 = vld [vmem:[%s3990 + $0x272] sm:$0xff]
    %v4744 = vld [vmem:[%s3990 + $0x27a] sm:$0xff]
    %v4745 = vld [vmem:[%s3990 + $0x28a] sm:$0xff]
    %v4746 = vld [vmem:[%s3990 + $0x292] sm:$0xff]
    %v4747 = vld [vmem:[%s3990 + $0x2a2] sm:$0xff]
    %v4748 = vld [vmem:[%s3990 + $0x2aa] sm:$0xff]
    %v4749 = vld [vmem:[%s3990 + $0x2ba] sm:$0xff]
    %v4750 = vld [vmem:[%s3990 + $0x2c2] sm:$0xff]
    %v4751 = vld [vmem:[%s3990 + $0x2d2] sm:$0xff]
    %v4752 = vld [vmem:[%s3990 + $0x2da] sm:$0xff]
    %v4753 = vld [vmem:[%s3990 + $0x2ea] sm:$0xff]
    %v4754 = vld [vmem:[%s3990 + $0x2f2] sm:$0xff]
    %v4755 = vld [vmem:[%s3990 + $0x302] sm:$0xff]
    %v4756 = vld [vmem:[%s3990 + $0x30a] sm:$0xff]
    %v4757 = vld [vmem:[%s3990 + $0x31a] sm:$0xff]
    %v4758 = vld [vmem:[%s3990 + $0x322] sm:$0xff]
    %4759 = vst [vmem:[#allocation2 + $0x28] sm:$0xff] %v4695
    %4760 = vst [vmem:[#allocation2 + $0x70] sm:$0xff] %v4696
    %4761 = vst [vmem:[#allocation2 + $0xb8] sm:$0xff] %v4697
    %4762 = vst [vmem:[#allocation2 + $0x100] sm:$0xff] %v4698
    %4763 = vst [vmem:[#allocation2 + $0x148] sm:$0xff] %v4699
    %4764 = vst [vmem:[#allocation2 + $0x190] sm:$0xff] %v4700
    %4765 = vst [vmem:[#allocation2 + $0x1d8] sm:$0xff] %v4701
    %4766 = vst [vmem:[#allocation2 + $0x220] sm:$0xff] %v4702
    %4767 = vst [vmem:[#allocation2 + $0x268] sm:$0xff] %v4703
    %4768 = vst [vmem:[#allocation2 + $0x2b0] sm:$0xff] %v4704
    %4769 = vst [vmem:[#allocation2 + $0x2f8] sm:$0xff] %v4705
    %4770 = vst [vmem:[#allocation2 + $0x340] sm:$0xff] %v4706
    %4771 = vst [vmem:[#allocation2 + $0x388] sm:$0xff] %v4707
    %4772 = vst [vmem:[#allocation2 + $0x3d0] sm:$0xff] %v4708
    %4773 = vst [vmem:[#allocation2 + $0x418] sm:$0xff] %v4709
    %4774 = vst [vmem:[#allocation2 + $0x460] sm:$0xff] %v4710
    %4775 = vst [vmem:[#allocation2 + $0x4a8] sm:$0xff] %v4711
    %4776 = vst [vmem:[#allocation2 + $0x4f0] sm:$0xff] %v4712
    %4777 = vst [vmem:[#allocation2 + $0x538] sm:$0xff] %v4713
    %4778 = vst [vmem:[#allocation2 + $0x580] sm:$0xff] %v4714
    %4779 = vst [vmem:[#allocation2 + $0x5c8] sm:$0xff] %v4715
    %4780 = vst [vmem:[#allocation2 + $0x610] sm:$0xff] %v4716
    %4781 = vst [vmem:[#allocation2 + $0x658] sm:$0xff] %v4717
    %4782 = vst [vmem:[#allocation2 + $0x6a0] sm:$0xff] %v4718
    %4783 = vst [vmem:[#allocation2 + $0x6e8] sm:$0xff] %v4719
    %4784 = vst [vmem:[#allocation2 + $0x730] sm:$0xff] %v4720
    %4785 = vst [vmem:[#allocation2 + $0x778] sm:$0xff] %v4721
    %4786 = vst [vmem:[#allocation2 + $0x7c0] sm:$0xff] %v4722
    %4787 = vst [vmem:[#allocation2 + $0x808] sm:$0xff] %v4723
    %4788 = vst [vmem:[#allocation2 + $0x850] sm:$0xff] %v4724
    %4789 = vst [vmem:[#allocation2 + $0x898] sm:$0xff] %v4725
    %4790 = vst [vmem:[#allocation2 + $0x8e0] sm:$0xff] %v4726
    %4791 = vst [vmem:[#allocation2 + $0x928] sm:$0xff] %v4727
    %4792 = vst [vmem:[#allocation2 + $0x970] sm:$0xff] %v4728
    %4793 = vst [vmem:[#allocation2 + $0x9b8] sm:$0xff] %v4729
    %4794 = vst [vmem:[#allocation2 + $0xa00] sm:$0xff] %v4730
    %4795 = vst [vmem:[#allocation2 + $0xa48] sm:$0xff] %v4731
    %4796 = vst [vmem:[#allocation2 + $0xa90] sm:$0xff] %v4732
    %4797 = vst [vmem:[#allocation2 + $0xad8] sm:$0xff] %v4733
    %4798 = vst [vmem:[#allocation2 + $0xb20] sm:$0xff] %v4734
    %4799 = vst [vmem:[#allocation2 + $0xb68] sm:$0xff] %v4735
    %4800 = vst [vmem:[#allocation2 + $0xbb0] sm:$0xff] %v4736
    %4801 = vst [vmem:[#allocation2 + $0xbf8] sm:$0xff] %v4737
    %4802 = vst [vmem:[#allocation2 + $0xc40] sm:$0xff] %v4738
    %4803 = vst [vmem:[#allocation2 + $0xc88] sm:$0xff] %v4739
    %4804 = vst [vmem:[#allocation2 + $0xcd0] sm:$0xff] %v4740
    %4805 = vst [vmem:[#allocation2 + $0xd18] sm:$0xff] %v4741
    %4806 = vst [vmem:[#allocation2 + $0xd60] sm:$0xff] %v4742
    %4807 = vst [vmem:[#allocation2 + $0xda8] sm:$0xff] %v4743
    %4808 = vst [vmem:[#allocation2 + $0xdf0] sm:$0xff] %v4744
    %4809 = vst [vmem:[#allocation2 + $0xe38] sm:$0xff] %v4745
    %4810 = vst [vmem:[#allocation2 + $0xe80] sm:$0xff] %v4746
    %4811 = vst [vmem:[#allocation2 + $0xec8] sm:$0xff] %v4747
    %4812 = vst [vmem:[#allocation2 + $0xf10] sm:$0xff] %v4748
    %4813 = vst [vmem:[#allocation2 + $0xf58] sm:$0xff] %v4749
    %4814 = vst [vmem:[#allocation2 + $0xfa0] sm:$0xff] %v4750
    %4815 = vst [vmem:[#allocation2 + $0xfe8] sm:$0xff] %v4751
    %4816 = vst [vmem:[#allocation2 + $0x1030] sm:$0xff] %v4752
    %4817 = vst [vmem:[#allocation2 + $0x1078] sm:$0xff] %v4753
    %4818 = vst [vmem:[#allocation2 + $0x10c0] sm:$0xff] %v4754
    %4819 = vst [vmem:[#allocation2 + $0x1108] sm:$0xff] %v4755
    %4820 = vst [vmem:[#allocation2 + $0x1150] sm:$0xff] %v4756
    %4821 = vst [vmem:[#allocation2 + $0x1198] sm:$0xff] %v4757
    %4822 = vst [vmem:[#allocation2 + $0x11e0] sm:$0xff] %v4758
    %s4823 = scalar_lea.vmem [#allocation3], 48
    %v4824 = vld [vmem:[%s4823] sm:$0xff]
    %v4825 = vld [vmem:[%s4823 + $0x8] sm:$0xff]
    %v4826 = vld [vmem:[%s4823 + $0x18] sm:$0xff]
    %v4827 = vld [vmem:[%s4823 + $0x20] sm:$0xff]
    %v4828 = vld [vmem:[%s4823 + $0x30] sm:$0xff]
    %v4829 = vld [vmem:[%s4823 + $0x38] sm:$0xff]
    %v4830 = vld [vmem:[%s4823 + $0x48] sm:$0xff]
    %v4831 = vld [vmem:[%s4823 + $0x50] sm:$0xff]
    %v4832 = vld [vmem:[%s4823 + $0x60] sm:$0xff]
    %v4833 = vld [vmem:[%s4823 + $0x68] sm:$0xff]
    %v4834 = vld [vmem:[%s4823 + $0x78] sm:$0xff]
    %v4835 = vld [vmem:[%s4823 + $0x80] sm:$0xff]
    %v4836 = vld [vmem:[%s4823 + $0x90] sm:$0xff]
    %v4837 = vld [vmem:[%s4823 + $0x98] sm:$0xff]
    %v4838 = vld [vmem:[%s4823 + $0xa8] sm:$0xff]
    %v4839 = vld [vmem:[%s4823 + $0xb0] sm:$0xff]
    %v4840 = vld [vmem:[%s4823 + $0xc0] sm:$0xff]
    %v4841 = vld [vmem:[%s4823 + $0xc8] sm:$0xff]
    %v4842 = vld [vmem:[%s4823 + $0xd8] sm:$0xff]
    %v4843 = vld [vmem:[%s4823 + $0xe0] sm:$0xff]
    %v4844 = vld [vmem:[%s4823 + $0xf0] sm:$0xff]
    %v4845 = vld [vmem:[%s4823 + $0xf8] sm:$0xff]
    %v4846 = vld [vmem:[%s4823 + $0x108] sm:$0xff]
    %v4847 = vld [vmem:[%s4823 + $0x110] sm:$0xff]
    %v4848 = vld [vmem:[%s4823 + $0x120] sm:$0xff]
    %v4849 = vld [vmem:[%s4823 + $0x128] sm:$0xff]
    %v4850 = vld [vmem:[%s4823 + $0x138] sm:$0xff]
    %v4851 = vld [vmem:[%s4823 + $0x140] sm:$0xff]
    %v4852 = vld [vmem:[%s4823 + $0x150] sm:$0xff]
    %v4853 = vld [vmem:[%s4823 + $0x158] sm:$0xff]
    %v4854 = vld [vmem:[%s4823 + $0x168] sm:$0xff]
    %v4855 = vld [vmem:[%s4823 + $0x170] sm:$0xff]
    %v4856 = vld [vmem:[%s4823 + $0x1b0] sm:$0xff]
    %v4857 = vld [vmem:[%s4823 + $0x1b8] sm:$0xff]
    %v4858 = vld [vmem:[%s4823 + $0x1c8] sm:$0xff]
    %v4859 = vld [vmem:[%s4823 + $0x1d0] sm:$0xff]
    %v4860 = vld [vmem:[%s4823 + $0x1e0] sm:$0xff]
    %v4861 = vld [vmem:[%s4823 + $0x1e8] sm:$0xff]
    %v4862 = vld [vmem:[%s4823 + $0x1f8] sm:$0xff]
    %v4863 = vld [vmem:[%s4823 + $0x200] sm:$0xff]
    %v4864 = vld [vmem:[%s4823 + $0x210] sm:$0xff]
    %v4865 = vld [vmem:[%s4823 + $0x218] sm:$0xff]
    %v4866 = vld [vmem:[%s4823 + $0x228] sm:$0xff]
    %v4867 = vld [vmem:[%s4823 + $0x230] sm:$0xff]
    %v4868 = vld [vmem:[%s4823 + $0x240] sm:$0xff]
    %v4869 = vld [vmem:[%s4823 + $0x248] sm:$0xff]
    %v4870 = vld [vmem:[%s4823 + $0x258] sm:$0xff]
    %v4871 = vld [vmem:[%s4823 + $0x260] sm:$0xff]
    %v4872 = vld [vmem:[%s4823 + $0x270] sm:$0xff]
    %v4873 = vld [vmem:[%s4823 + $0x278] sm:$0xff]
    %v4874 = vld [vmem:[%s4823 + $0x288] sm:$0xff]
    %v4875 = vld [vmem:[%s4823 + $0x290] sm:$0xff]
    %v4876 = vld [vmem:[%s4823 + $0x2a0] sm:$0xff]
    %v4877 = vld [vmem:[%s4823 + $0x2a8] sm:$0xff]
    %v4878 = vld [vmem:[%s4823 + $0x2b8] sm:$0xff]
    %v4879 = vld [vmem:[%s4823 + $0x2c0] sm:$0xff]
    %v4880 = vld [vmem:[%s4823 + $0x2d0] sm:$0xff]
    %v4881 = vld [vmem:[%s4823 + $0x2d8] sm:$0xff]
    %v4882 = vld [vmem:[%s4823 + $0x2e8] sm:$0xff]
    %v4883 = vld [vmem:[%s4823 + $0x2f0] sm:$0xff]
    %v4884 = vld [vmem:[%s4823 + $0x300] sm:$0xff]
    %v4885 = vld [vmem:[%s4823 + $0x308] sm:$0xff]
    %v4886 = vld [vmem:[%s4823 + $0x318] sm:$0xff]
    %v4887 = vld [vmem:[%s4823 + $0x320] sm:$0xff]
    %4888 = vst [vmem:[#allocation2 + $0x30] sm:$0xff] %v4824
    %4889 = vst [vmem:[#allocation2 + $0x78] sm:$0xff] %v4825
    %4890 = vst [vmem:[#allocation2 + $0xc0] sm:$0xff] %v4826
    %4891 = vst [vmem:[#allocation2 + $0x108] sm:$0xff] %v4827
    %4892 = vst [vmem:[#allocation2 + $0x150] sm:$0xff] %v4828
    %4893 = vst [vmem:[#allocation2 + $0x198] sm:$0xff] %v4829
    %4894 = vst [vmem:[#allocation2 + $0x1e0] sm:$0xff] %v4830
    %4895 = vst [vmem:[#allocation2 + $0x228] sm:$0xff] %v4831
    %4896 = vst [vmem:[#allocation2 + $0x270] sm:$0xff] %v4832
    %4897 = vst [vmem:[#allocation2 + $0x2b8] sm:$0xff] %v4833
    %4898 = vst [vmem:[#allocation2 + $0x300] sm:$0xff] %v4834
    %4899 = vst [vmem:[#allocation2 + $0x348] sm:$0xff] %v4835
    %4900 = vst [vmem:[#allocation2 + $0x390] sm:$0xff] %v4836
    %4901 = vst [vmem:[#allocation2 + $0x3d8] sm:$0xff] %v4837
    %4902 = vst [vmem:[#allocation2 + $0x420] sm:$0xff] %v4838
    %4903 = vst [vmem:[#allocation2 + $0x468] sm:$0xff] %v4839
    %4904 = vst [vmem:[#allocation2 + $0x4b0] sm:$0xff] %v4840
    %4905 = vst [vmem:[#allocation2 + $0x4f8] sm:$0xff] %v4841
    %4906 = vst [vmem:[#allocation2 + $0x540] sm:$0xff] %v4842
    %4907 = vst [vmem:[#allocation2 + $0x588] sm:$0xff] %v4843
    %4908 = vst [vmem:[#allocation2 + $0x5d0] sm:$0xff] %v4844
    %4909 = vst [vmem:[#allocation2 + $0x618] sm:$0xff] %v4845
    %4910 = vst [vmem:[#allocation2 + $0x660] sm:$0xff] %v4846
    %4911 = vst [vmem:[#allocation2 + $0x6a8] sm:$0xff] %v4847
    %4912 = vst [vmem:[#allocation2 + $0x6f0] sm:$0xff] %v4848
    %4913 = vst [vmem:[#allocation2 + $0x738] sm:$0xff] %v4849
    %4914 = vst [vmem:[#allocation2 + $0x780] sm:$0xff] %v4850
    %4915 = vst [vmem:[#allocation2 + $0x7c8] sm:$0xff] %v4851
    %4916 = vst [vmem:[#allocation2 + $0x810] sm:$0xff] %v4852
    %4917 = vst [vmem:[#allocation2 + $0x858] sm:$0xff] %v4853
    %4918 = vst [vmem:[#allocation2 + $0x8a0] sm:$0xff] %v4854
    %4919 = vst [vmem:[#allocation2 + $0x8e8] sm:$0xff] %v4855
    %4920 = vst [vmem:[#allocation2 + $0x930] sm:$0xff] %v4856
    %4921 = vst [vmem:[#allocation2 + $0x978] sm:$0xff] %v4857
    %4922 = vst [vmem:[#allocation2 + $0x9c0] sm:$0xff] %v4858
    %4923 = vst [vmem:[#allocation2 + $0xa08] sm:$0xff] %v4859
    %4924 = vst [vmem:[#allocation2 + $0xa50] sm:$0xff] %v4860
    %4925 = vst [vmem:[#allocation2 + $0xa98] sm:$0xff] %v4861
    %4926 = vst [vmem:[#allocation2 + $0xae0] sm:$0xff] %v4862
    %4927 = vst [vmem:[#allocation2 + $0xb28] sm:$0xff] %v4863
    %4928 = vst [vmem:[#allocation2 + $0xb70] sm:$0xff] %v4864
    %4929 = vst [vmem:[#allocation2 + $0xbb8] sm:$0xff] %v4865
    %4930 = vst [vmem:[#allocation2 + $0xc00] sm:$0xff] %v4866
    %4931 = vst [vmem:[#allocation2 + $0xc48] sm:$0xff] %v4867
    %4932 = vst [vmem:[#allocation2 + $0xc90] sm:$0xff] %v4868
    %4933 = vst [vmem:[#allocation2 + $0xcd8] sm:$0xff] %v4869
    %4934 = vst [vmem:[#allocation2 + $0xd20] sm:$0xff] %v4870
    %4935 = vst [vmem:[#allocation2 + $0xd68] sm:$0xff] %v4871
    %4936 = vst [vmem:[#allocation2 + $0xdb0] sm:$0xff] %v4872
    %4937 = vst [vmem:[#allocation2 + $0xdf8] sm:$0xff] %v4873
    %4938 = vst [vmem:[#allocation2 + $0xe40] sm:$0xff] %v4874
    %4939 = vst [vmem:[#allocation2 + $0xe88] sm:$0xff] %v4875
    %4940 = vst [vmem:[#allocation2 + $0xed0] sm:$0xff] %v4876
    %4941 = vst [vmem:[#allocation2 + $0xf18] sm:$0xff] %v4877
    %4942 = vst [vmem:[#allocation2 + $0xf60] sm:$0xff] %v4878
    %4943 = vst [vmem:[#allocation2 + $0xfa8] sm:$0xff] %v4879
    %4944 = vst [vmem:[#allocation2 + $0xff0] sm:$0xff] %v4880
    %4945 = vst [vmem:[#allocation2 + $0x1038] sm:$0xff] %v4881
    %4946 = vst [vmem:[#allocation2 + $0x1080] sm:$0xff] %v4882
    %4947 = vst [vmem:[#allocation2 + $0x10c8] sm:$0xff] %v4883
    %4948 = vst [vmem:[#allocation2 + $0x1110] sm:$0xff] %v4884
    %4949 = vst [vmem:[#allocation2 + $0x1158] sm:$0xff] %v4885
    %4950 = vst [vmem:[#allocation2 + $0x11a0] sm:$0xff] %v4886
    %4951 = vst [vmem:[#allocation2 + $0x11e8] sm:$0xff] %v4887
    %v4952 = vld [vmem:[%s4823 + $0x1] sm:$0xff]
    %v4953 = vld [vmem:[%s4823 + $0x9] sm:$0xff]
    %v4954 = vld [vmem:[%s4823 + $0x19] sm:$0xff]
    %v4955 = vld [vmem:[%s4823 + $0x21] sm:$0xff]
    %v4956 = vld [vmem:[%s4823 + $0x31] sm:$0xff]
    %v4957 = vld [vmem:[%s4823 + $0x39] sm:$0xff]
    %v4958 = vld [vmem:[%s4823 + $0x49] sm:$0xff]
    %v4959 = vld [vmem:[%s4823 + $0x51] sm:$0xff]
    %v4960 = vld [vmem:[%s4823 + $0x61] sm:$0xff]
    %v4961 = vld [vmem:[%s4823 + $0x69] sm:$0xff]
    %v4962 = vld [vmem:[%s4823 + $0x79] sm:$0xff]
    %v4963 = vld [vmem:[%s4823 + $0x81] sm:$0xff]
    %v4964 = vld [vmem:[%s4823 + $0x91] sm:$0xff]
    %v4965 = vld [vmem:[%s4823 + $0x99] sm:$0xff]
    %v4966 = vld [vmem:[%s4823 + $0xa9] sm:$0xff]
    %v4967 = vld [vmem:[%s4823 + $0xb1] sm:$0xff]
    %v4968 = vld [vmem:[%s4823 + $0xc1] sm:$0xff]
    %v4969 = vld [vmem:[%s4823 + $0xc9] sm:$0xff]
    %v4970 = vld [vmem:[%s4823 + $0xd9] sm:$0xff]
    %v4971 = vld [vmem:[%s4823 + $0xe1] sm:$0xff]
    %v4972 = vld [vmem:[%s4823 + $0xf1] sm:$0xff]
    %v4973 = vld [vmem:[%s4823 + $0xf9] sm:$0xff]
    %v4974 = vld [vmem:[%s4823 + $0x109] sm:$0xff]
    %v4975 = vld [vmem:[%s4823 + $0x111] sm:$0xff]
    %v4976 = vld [vmem:[%s4823 + $0x121] sm:$0xff]
    %v4977 = vld [vmem:[%s4823 + $0x129] sm:$0xff]
    %v4978 = vld [vmem:[%s4823 + $0x139] sm:$0xff]
    %v4979 = vld [vmem:[%s4823 + $0x141] sm:$0xff]
    %v4980 = vld [vmem:[%s4823 + $0x151] sm:$0xff]
    %v4981 = vld [vmem:[%s4823 + $0x159] sm:$0xff]
    %v4982 = vld [vmem:[%s4823 + $0x169] sm:$0xff]
    %v4983 = vld [vmem:[%s4823 + $0x171] sm:$0xff]
    %v4984 = vld [vmem:[%s4823 + $0x1b1] sm:$0xff]
    %v4985 = vld [vmem:[%s4823 + $0x1b9] sm:$0xff]
    %v4986 = vld [vmem:[%s4823 + $0x1c9] sm:$0xff]
    %v4987 = vld [vmem:[%s4823 + $0x1d1] sm:$0xff]
    %v4988 = vld [vmem:[%s4823 + $0x1e1] sm:$0xff]
    %v4989 = vld [vmem:[%s4823 + $0x1e9] sm:$0xff]
    %v4990 = vld [vmem:[%s4823 + $0x1f9] sm:$0xff]
    %v4991 = vld [vmem:[%s4823 + $0x201] sm:$0xff]
    %v4992 = vld [vmem:[%s4823 + $0x211] sm:$0xff]
    %v4993 = vld [vmem:[%s4823 + $0x219] sm:$0xff]
    %v4994 = vld [vmem:[%s4823 + $0x229] sm:$0xff]
    %v4995 = vld [vmem:[%s4823 + $0x231] sm:$0xff]
    %v4996 = vld [vmem:[%s4823 + $0x241] sm:$0xff]
    %v4997 = vld [vmem:[%s4823 + $0x249] sm:$0xff]
    %v4998 = vld [vmem:[%s4823 + $0x259] sm:$0xff]
    %v4999 = vld [vmem:[%s4823 + $0x261] sm:$0xff]
    %v5000 = vld [vmem:[%s4823 + $0x271] sm:$0xff]
    %v5001 = vld [vmem:[%s4823 + $0x279] sm:$0xff]
    %v5002 = vld [vmem:[%s4823 + $0x289] sm:$0xff]
    %v5003 = vld [vmem:[%s4823 + $0x291] sm:$0xff]
    %v5004 = vld [vmem:[%s4823 + $0x2a1] sm:$0xff]
    %v5005 = vld [vmem:[%s4823 + $0x2a9] sm:$0xff]
    %v5006 = vld [vmem:[%s4823 + $0x2b9] sm:$0xff]
    %v5007 = vld [vmem:[%s4823 + $0x2c1] sm:$0xff]
    %v5008 = vld [vmem:[%s4823 + $0x2d1] sm:$0xff]
    %v5009 = vld [vmem:[%s4823 + $0x2d9] sm:$0xff]
    %v5010 = vld [vmem:[%s4823 + $0x2e9] sm:$0xff]
    %v5011 = vld [vmem:[%s4823 + $0x2f1] sm:$0xff]
    %v5012 = vld [vmem:[%s4823 + $0x301] sm:$0xff]
    %v5013 = vld [vmem:[%s4823 + $0x309] sm:$0xff]
    %v5014 = vld [vmem:[%s4823 + $0x319] sm:$0xff]
    %v5015 = vld [vmem:[%s4823 + $0x321] sm:$0xff]
    %5016 = vst [vmem:[#allocation2 + $0x38] sm:$0xff] %v4952
    %5017 = vst [vmem:[#allocation2 + $0x80] sm:$0xff] %v4953
    %5018 = vst [vmem:[#allocation2 + $0xc8] sm:$0xff] %v4954
    %5019 = vst [vmem:[#allocation2 + $0x110] sm:$0xff] %v4955
    %5020 = vst [vmem:[#allocation2 + $0x158] sm:$0xff] %v4956
    %5021 = vst [vmem:[#allocation2 + $0x1a0] sm:$0xff] %v4957
    %5022 = vst [vmem:[#allocation2 + $0x1e8] sm:$0xff] %v4958
    %5023 = vst [vmem:[#allocation2 + $0x230] sm:$0xff] %v4959
    %5024 = vst [vmem:[#allocation2 + $0x278] sm:$0xff] %v4960
    %5025 = vst [vmem:[#allocation2 + $0x2c0] sm:$0xff] %v4961
    %5026 = vst [vmem:[#allocation2 + $0x308] sm:$0xff] %v4962
    %5027 = vst [vmem:[#allocation2 + $0x350] sm:$0xff] %v4963
    %5028 = vst [vmem:[#allocation2 + $0x398] sm:$0xff] %v4964
    %5029 = vst [vmem:[#allocation2 + $0x3e0] sm:$0xff] %v4965
    %5030 = vst [vmem:[#allocation2 + $0x428] sm:$0xff] %v4966
    %5031 = vst [vmem:[#allocation2 + $0x470] sm:$0xff] %v4967
    %5032 = vst [vmem:[#allocation2 + $0x4b8] sm:$0xff] %v4968
    %5033 = vst [vmem:[#allocation2 + $0x500] sm:$0xff] %v4969
    %5034 = vst [vmem:[#allocation2 + $0x548] sm:$0xff] %v4970
    %5035 = vst [vmem:[#allocation2 + $0x590] sm:$0xff] %v4971
    %5036 = vst [vmem:[#allocation2 + $0x5d8] sm:$0xff] %v4972
    %5037 = vst [vmem:[#allocation2 + $0x620] sm:$0xff] %v4973
    %5038 = vst [vmem:[#allocation2 + $0x668] sm:$0xff] %v4974
    %5039 = vst [vmem:[#allocation2 + $0x6b0] sm:$0xff] %v4975
    %5040 = vst [vmem:[#allocation2 + $0x6f8] sm:$0xff] %v4976
    %5041 = vst [vmem:[#allocation2 + $0x740] sm:$0xff] %v4977
    %5042 = vst [vmem:[#allocation2 + $0x788] sm:$0xff] %v4978
    %5043 = vst [vmem:[#allocation2 + $0x7d0] sm:$0xff] %v4979
    %5044 = vst [vmem:[#allocation2 + $0x818] sm:$0xff] %v4980
    %5045 = vst [vmem:[#allocation2 + $0x860] sm:$0xff] %v4981
    %5046 = vst [vmem:[#allocation2 + $0x8a8] sm:$0xff] %v4982
    %5047 = vst [vmem:[#allocation2 + $0x8f0] sm:$0xff] %v4983
    %5048 = vst [vmem:[#allocation2 + $0x938] sm:$0xff] %v4984
    %5049 = vst [vmem:[#allocation2 + $0x980] sm:$0xff] %v4985
    %5050 = vst [vmem:[#allocation2 + $0x9c8] sm:$0xff] %v4986
    %5051 = vst [vmem:[#allocation2 + $0xa10] sm:$0xff] %v4987
    %5052 = vst [vmem:[#allocation2 + $0xa58] sm:$0xff] %v4988
    %5053 = vst [vmem:[#allocation2 + $0xaa0] sm:$0xff] %v4989
    %5054 = vst [vmem:[#allocation2 + $0xae8] sm:$0xff] %v4990
    %5055 = vst [vmem:[#allocation2 + $0xb30] sm:$0xff] %v4991
    %5056 = vst [vmem:[#allocation2 + $0xb78] sm:$0xff] %v4992
    %5057 = vst [vmem:[#allocation2 + $0xbc0] sm:$0xff] %v4993
    %5058 = vst [vmem:[#allocation2 + $0xc08] sm:$0xff] %v4994
    %5059 = vst [vmem:[#allocation2 + $0xc50] sm:$0xff] %v4995
    %5060 = vst [vmem:[#allocation2 + $0xc98] sm:$0xff] %v4996
    %5061 = vst [vmem:[#allocation2 + $0xce0] sm:$0xff] %v4997
    %5062 = vst [vmem:[#allocation2 + $0xd28] sm:$0xff] %v4998
    %5063 = vst [vmem:[#allocation2 + $0xd70] sm:$0xff] %v4999
    %5064 = vst [vmem:[#allocation2 + $0xdb8] sm:$0xff] %v5000
    %5065 = vst [vmem:[#allocation2 + $0xe00] sm:$0xff] %v5001
    %5066 = vst [vmem:[#allocation2 + $0xe48] sm:$0xff] %v5002
    %5067 = vst [vmem:[#allocation2 + $0xe90] sm:$0xff] %v5003
    %5068 = vst [vmem:[#allocation2 + $0xed8] sm:$0xff] %v5004
    %5069 = vst [vmem:[#allocation2 + $0xf20] sm:$0xff] %v5005
    %5070 = vst [vmem:[#allocation2 + $0xf68] sm:$0xff] %v5006
    %5071 = vst [vmem:[#allocation2 + $0xfb0] sm:$0xff] %v5007
    %5072 = vst [vmem:[#allocation2 + $0xff8] sm:$0xff] %v5008
    %5073 = vst [vmem:[#allocation2 + $0x1040] sm:$0xff] %v5009
    %5074 = vst [vmem:[#allocation2 + $0x1088] sm:$0xff] %v5010
    %5075 = vst [vmem:[#allocation2 + $0x10d0] sm:$0xff] %v5011
    %5076 = vst [vmem:[#allocation2 + $0x1118] sm:$0xff] %v5012
    %5077 = vst [vmem:[#allocation2 + $0x1160] sm:$0xff] %v5013
    %5078 = vst [vmem:[#allocation2 + $0x11a8] sm:$0xff] %v5014
    %5079 = vst [vmem:[#allocation2 + $0x11f0] sm:$0xff] %v5015
    %v5080 = vld [vmem:[%s4823 + $0x2] sm:$0xff]
    %v5081 = vld [vmem:[%s4823 + $0xa] sm:$0xff]
    %v5082 = vld [vmem:[%s4823 + $0x1a] sm:$0xff]
    %v5083 = vld [vmem:[%s4823 + $0x22] sm:$0xff]
    %v5084 = vld [vmem:[%s4823 + $0x32] sm:$0xff]
    %v5085 = vld [vmem:[%s4823 + $0x3a] sm:$0xff]
    %v5086 = vld [vmem:[%s4823 + $0x4a] sm:$0xff]
    %v5087 = vld [vmem:[%s4823 + $0x52] sm:$0xff]
    %v5088 = vld [vmem:[%s4823 + $0x62] sm:$0xff]
    %v5089 = vld [vmem:[%s4823 + $0x6a] sm:$0xff]
    %v5090 = vld [vmem:[%s4823 + $0x7a] sm:$0xff]
    %v5091 = vld [vmem:[%s4823 + $0x82] sm:$0xff]
    %v5092 = vld [vmem:[%s4823 + $0x92] sm:$0xff]
    %v5093 = vld [vmem:[%s4823 + $0x9a] sm:$0xff]
    %v5094 = vld [vmem:[%s4823 + $0xaa] sm:$0xff]
    %v5095 = vld [vmem:[%s4823 + $0xb2] sm:$0xff]
    %v5096 = vld [vmem:[%s4823 + $0xc2] sm:$0xff]
    %v5097 = vld [vmem:[%s4823 + $0xca] sm:$0xff]
    %v5098 = vld [vmem:[%s4823 + $0xda] sm:$0xff]
    %v5099 = vld [vmem:[%s4823 + $0xe2] sm:$0xff]
    %v5100 = vld [vmem:[%s4823 + $0xf2] sm:$0xff]
    %v5101 = vld [vmem:[%s4823 + $0xfa] sm:$0xff]
    %v5102 = vld [vmem:[%s4823 + $0x10a] sm:$0xff]
    %v5103 = vld [vmem:[%s4823 + $0x112] sm:$0xff]
    %v5104 = vld [vmem:[%s4823 + $0x122] sm:$0xff]
    %v5105 = vld [vmem:[%s4823 + $0x12a] sm:$0xff]
    %v5106 = vld [vmem:[%s4823 + $0x13a] sm:$0xff]
    %v5107 = vld [vmem:[%s4823 + $0x142] sm:$0xff]
    %v5108 = vld [vmem:[%s4823 + $0x152] sm:$0xff]
    %v5109 = vld [vmem:[%s4823 + $0x15a] sm:$0xff]
    %v5110 = vld [vmem:[%s4823 + $0x16a] sm:$0xff]
    %v5111 = vld [vmem:[%s4823 + $0x172] sm:$0xff]
    %v5112 = vld [vmem:[%s4823 + $0x1b2] sm:$0xff]
    %v5113 = vld [vmem:[%s4823 + $0x1ba] sm:$0xff]
    %v5114 = vld [vmem:[%s4823 + $0x1ca] sm:$0xff]
    %v5115 = vld [vmem:[%s4823 + $0x1d2] sm:$0xff]
    %v5116 = vld [vmem:[%s4823 + $0x1e2] sm:$0xff]
    %v5117 = vld [vmem:[%s4823 + $0x1ea] sm:$0xff]
    %v5118 = vld [vmem:[%s4823 + $0x1fa] sm:$0xff]
    %v5119 = vld [vmem:[%s4823 + $0x202] sm:$0xff]
    %v5120 = vld [vmem:[%s4823 + $0x212] sm:$0xff]
    %v5121 = vld [vmem:[%s4823 + $0x21a] sm:$0xff]
    %v5122 = vld [vmem:[%s4823 + $0x22a] sm:$0xff]
    %v5123 = vld [vmem:[%s4823 + $0x232] sm:$0xff]
    %v5124 = vld [vmem:[%s4823 + $0x242] sm:$0xff]
    %v5125 = vld [vmem:[%s4823 + $0x24a] sm:$0xff]
    %v5126 = vld [vmem:[%s4823 + $0x25a] sm:$0xff]
    %v5127 = vld [vmem:[%s4823 + $0x262] sm:$0xff]
    %v5128 = vld [vmem:[%s4823 + $0x272] sm:$0xff]
    %v5129 = vld [vmem:[%s4823 + $0x27a] sm:$0xff]
    %v5130 = vld [vmem:[%s4823 + $0x28a] sm:$0xff]
    %v5131 = vld [vmem:[%s4823 + $0x292] sm:$0xff]
    %v5132 = vld [vmem:[%s4823 + $0x2a2] sm:$0xff]
    %v5133 = vld [vmem:[%s4823 + $0x2aa] sm:$0xff]
    %v5134 = vld [vmem:[%s4823 + $0x2ba] sm:$0xff]
    %v5135 = vld [vmem:[%s4823 + $0x2c2] sm:$0xff]
    %v5136 = vld [vmem:[%s4823 + $0x2d2] sm:$0xff]
    %v5137 = vld [vmem:[%s4823 + $0x2da] sm:$0xff]
    %v5138 = vld [vmem:[%s4823 + $0x2ea] sm:$0xff]
    %v5139 = vld [vmem:[%s4823 + $0x2f2] sm:$0xff]
    %v5140 = vld [vmem:[%s4823 + $0x302] sm:$0xff]
    %v5141 = vld [vmem:[%s4823 + $0x30a] sm:$0xff]
    %v5142 = vld [vmem:[%s4823 + $0x31a] sm:$0xff]
    %v5143 = vld [vmem:[%s4823 + $0x322] sm:$0xff]
    %5144 = vst [vmem:[#allocation2 + $0x40] sm:$0xff] %v5080
    %5145 = vst [vmem:[#allocation2 + $0x88] sm:$0xff] %v5081
    %5146 = vst [vmem:[#allocation2 + $0xd0] sm:$0xff] %v5082
    %5147 = vst [vmem:[#allocation2 + $0x118] sm:$0xff] %v5083
    %5148 = vst [vmem:[#allocation2 + $0x160] sm:$0xff] %v5084
    %5149 = vst [vmem:[#allocation2 + $0x1a8] sm:$0xff] %v5085
    %5150 = vst [vmem:[#allocation2 + $0x1f0] sm:$0xff] %v5086
    %5151 = vst [vmem:[#allocation2 + $0x238] sm:$0xff] %v5087
    %5152 = vst [vmem:[#allocation2 + $0x280] sm:$0xff] %v5088
    %5153 = vst [vmem:[#allocation2 + $0x2c8] sm:$0xff] %v5089
    %5154 = vst [vmem:[#allocation2 + $0x310] sm:$0xff] %v5090
    %5155 = vst [vmem:[#allocation2 + $0x358] sm:$0xff] %v5091
    %5156 = vst [vmem:[#allocation2 + $0x3a0] sm:$0xff] %v5092
    %5157 = vst [vmem:[#allocation2 + $0x3e8] sm:$0xff] %v5093
    %5158 = vst [vmem:[#allocation2 + $0x430] sm:$0xff] %v5094
    %5159 = vst [vmem:[#allocation2 + $0x478] sm:$0xff] %v5095
    %5160 = vst [vmem:[#allocation2 + $0x4c0] sm:$0xff] %v5096
    %5161 = vst [vmem:[#allocation2 + $0x508] sm:$0xff] %v5097
    %5162 = vst [vmem:[#allocation2 + $0x550] sm:$0xff] %v5098
    %5163 = vst [vmem:[#allocation2 + $0x598] sm:$0xff] %v5099
    %5164 = vst [vmem:[#allocation2 + $0x5e0] sm:$0xff] %v5100
    %5165 = vst [vmem:[#allocation2 + $0x628] sm:$0xff] %v5101
    %5166 = vst [vmem:[#allocation2 + $0x670] sm:$0xff] %v5102
    %5167 = vst [vmem:[#allocation2 + $0x6b8] sm:$0xff] %v5103
    %5168 = vst [vmem:[#allocation2 + $0x700] sm:$0xff] %v5104
    %5169 = vst [vmem:[#allocation2 + $0x748] sm:$0xff] %v5105
    %5170 = vst [vmem:[#allocation2 + $0x790] sm:$0xff] %v5106
    %5171 = vst [vmem:[#allocation2 + $0x7d8] sm:$0xff] %v5107
    %5172 = vst [vmem:[#allocation2 + $0x820] sm:$0xff] %v5108
    %5173 = vst [vmem:[#allocation2 + $0x868] sm:$0xff] %v5109
    %5174 = vst [vmem:[#allocation2 + $0x8b0] sm:$0xff] %v5110
    %5175 = vst [vmem:[#allocation2 + $0x8f8] sm:$0xff] %v5111
    %5176 = vst [vmem:[#allocation2 + $0x940] sm:$0xff] %v5112
    %5177 = vst [vmem:[#allocation2 + $0x988] sm:$0xff] %v5113
    %5178 = vst [vmem:[#allocation2 + $0x9d0] sm:$0xff] %v5114
    %5179 = vst [vmem:[#allocation2 + $0xa18] sm:$0xff] %v5115
    %5180 = vst [vmem:[#allocation2 + $0xa60] sm:$0xff] %v5116
    %5181 = vst [vmem:[#allocation2 + $0xaa8] sm:$0xff] %v5117
    %5182 = vst [vmem:[#allocation2 + $0xaf0] sm:$0xff] %v5118
    %5183 = vst [vmem:[#allocation2 + $0xb38] sm:$0xff] %v5119
    %5184 = vst [vmem:[#allocation2 + $0xb80] sm:$0xff] %v5120
    %5185 = vst [vmem:[#allocation2 + $0xbc8] sm:$0xff] %v5121
    %5186 = vst [vmem:[#allocation2 + $0xc10] sm:$0xff] %v5122
    %5187 = vst [vmem:[#allocation2 + $0xc58] sm:$0xff] %v5123
    %5188 = vst [vmem:[#allocation2 + $0xca0] sm:$0xff] %v5124
    %5189 = vst [vmem:[#allocation2 + $0xce8] sm:$0xff] %v5125
    %5190 = vst [vmem:[#allocation2 + $0xd30] sm:$0xff] %v5126
    %5191 = vst [vmem:[#allocation2 + $0xd78] sm:$0xff] %v5127
    %5192 = vst [vmem:[#allocation2 + $0xdc0] sm:$0xff] %v5128
    %5193 = vst [vmem:[#allocation2 + $0xe08] sm:$0xff] %v5129
    %5194 = vst [vmem:[#allocation2 + $0xe50] sm:$0xff] %v5130
    %5195 = vst [vmem:[#allocation2 + $0xe98] sm:$0xff] %v5131
    %5196 = vst [vmem:[#allocation2 + $0xee0] sm:$0xff] %v5132
    %5197 = vst [vmem:[#allocation2 + $0xf28] sm:$0xff] %v5133
    %5198 = vst [vmem:[#allocation2 + $0xf70] sm:$0xff] %v5134
    %5199 = vst [vmem:[#allocation2 + $0xfb8] sm:$0xff] %v5135
    %5200 = vst [vmem:[#allocation2 + $0x1000] sm:$0xff] %v5136
    %5201 = vst [vmem:[#allocation2 + $0x1048] sm:$0xff] %v5137
    %5202 = vst [vmem:[#allocation2 + $0x1090] sm:$0xff] %v5138
    %5203 = vst [vmem:[#allocation2 + $0x10d8] sm:$0xff] %v5139
    %5204 = vst [vmem:[#allocation2 + $0x1120] sm:$0xff] %v5140
    %5205 = vst [vmem:[#allocation2 + $0x1168] sm:$0xff] %v5141
    %5206 = vst [vmem:[#allocation2 + $0x11b0] sm:$0xff] %v5142
    %5207 = vst [vmem:[#allocation2 + $0x11f8] sm:$0xff] %v5143
    %v5208 = vld [vmem:[#allocation2] sm:$0xff]
    %v5209 = vld [vmem:[#allocation2 + $0x8] sm:$0xff]
    %v5210 = vld [vmem:[#allocation2 + $0x10] sm:$0xff]
    %v5211 = vld [vmem:[#allocation2 + $0x18] sm:$0xff]
    %v5212 = vld [vmem:[#allocation2 + $0x20] sm:$0xff]
    %v5213 = vld [vmem:[#allocation2 + $0x28] sm:$0xff]
    %v5214 = vld [vmem:[#allocation2 + $0x30] sm:$0xff]
    %v5215 = vld [vmem:[#allocation2 + $0x38] sm:$0xff]
    %v5216 = vld [vmem:[#allocation2 + $0x40] sm:$0xff]
    %v5217 = vld [vmem:[#allocation2 + $0x48] sm:$0xff]
    %v5218 = vld [vmem:[#allocation2 + $0x50] sm:$0xff]
    %v5219 = vld [vmem:[#allocation2 + $0x58] sm:$0xff]
    %v5220 = vld [vmem:[#allocation2 + $0x60] sm:$0xff]
    %v5221 = vld [vmem:[#allocation2 + $0x68] sm:$0xff]
    %v5222 = vld [vmem:[#allocation2 + $0x70] sm:$0xff]
    %v5223 = vld [vmem:[#allocation2 + $0x78] sm:$0xff]
    %v5224 = vld [vmem:[#allocation2 + $0x80] sm:$0xff]
    %v5225 = vld [vmem:[#allocation2 + $0x88] sm:$0xff]
    %v5226 = vld [vmem:[#allocation2 + $0x90] sm:$0xff]
    %v5227 = vld [vmem:[#allocation2 + $0x98] sm:$0xff]
    %v5228 = vld [vmem:[#allocation2 + $0xa0] sm:$0xff]
    %v5229 = vld [vmem:[#allocation2 + $0xa8] sm:$0xff]
    %v5230 = vld [vmem:[#allocation2 + $0xb0] sm:$0xff]
    %v5231 = vld [vmem:[#allocation2 + $0xb8] sm:$0xff]
    %v5232 = vld [vmem:[#allocation2 + $0xc0] sm:$0xff]
    %v5233 = vld [vmem:[#allocation2 + $0xc8] sm:$0xff]
    %v5234 = vld [vmem:[#allocation2 + $0xd0] sm:$0xff]
    %v5235 = vld [vmem:[#allocation2 + $0xd8] sm:$0xff]
    %v5236 = vld [vmem:[#allocation2 + $0xe0] sm:$0xff]
    %v5237 = vld [vmem:[#allocation2 + $0xe8] sm:$0xff]
    %v5238 = vld [vmem:[#allocation2 + $0xf0] sm:$0xff]
    %v5239 = vld [vmem:[#allocation2 + $0xf8] sm:$0xff]
    %v5240 = vld [vmem:[#allocation2 + $0x100] sm:$0xff]
    %v5241 = vld [vmem:[#allocation2 + $0x108] sm:$0xff]
    %v5242 = vld [vmem:[#allocation2 + $0x110] sm:$0xff]
    %v5243 = vld [vmem:[#allocation2 + $0x118] sm:$0xff]
    %v5244 = vld [vmem:[#allocation2 + $0x120] sm:$0xff]
    %v5245 = vld [vmem:[#allocation2 + $0x128] sm:$0xff]
    %v5246 = vld [vmem:[#allocation2 + $0x130] sm:$0xff]
    %v5247 = vld [vmem:[#allocation2 + $0x138] sm:$0xff]
    %v5248 = vld [vmem:[#allocation2 + $0x140] sm:$0xff]
    %v5249 = vld [vmem:[#allocation2 + $0x148] sm:$0xff]
    %v5250 = vld [vmem:[#allocation2 + $0x150] sm:$0xff]
    %v5251 = vld [vmem:[#allocation2 + $0x158] sm:$0xff]
    %v5252 = vld [vmem:[#allocation2 + $0x160] sm:$0xff]
    %v5253 = vld [vmem:[#allocation2 + $0x168] sm:$0xff]
    %v5254 = vld [vmem:[#allocation2 + $0x170] sm:$0xff]
    %v5255 = vld [vmem:[#allocation2 + $0x178] sm:$0xff]
    %v5256 = vld [vmem:[#allocation2 + $0x180] sm:$0xff]
    %v5257 = vld [vmem:[#allocation2 + $0x188] sm:$0xff]
    %v5258 = vld [vmem:[#allocation2 + $0x190] sm:$0xff]
    %v5259 = vld [vmem:[#allocation2 + $0x198] sm:$0xff]
    %v5260 = vld [vmem:[#allocation2 + $0x1a0] sm:$0xff]
    %v5261 = vld [vmem:[#allocation2 + $0x1a8] sm:$0xff]
    %v5262 = vld [vmem:[#allocation2 + $0x1b0] sm:$0xff]
    %v5263 = vld [vmem:[#allocation2 + $0x1b8] sm:$0xff]
    %v5264 = vld [vmem:[#allocation2 + $0x1c0] sm:$0xff]
    %v5265 = vld [vmem:[#allocation2 + $0x1c8] sm:$0xff]
    %v5266 = vld [vmem:[#allocation2 + $0x1d0] sm:$0xff]
    %v5267 = vld [vmem:[#allocation2 + $0x1d8] sm:$0xff]
    %v5268 = vld [vmem:[#allocation2 + $0x1e0] sm:$0xff]
    %v5269 = vld [vmem:[#allocation2 + $0x1e8] sm:$0xff]
    %v5270 = vld [vmem:[#allocation2 + $0x1f0] sm:$0xff]
    %v5271 = vld [vmem:[#allocation2 + $0x1f8] sm:$0xff]
    %v5272 = vld [vmem:[#allocation2 + $0x200] sm:$0xff]
    %v5273 = vld [vmem:[#allocation2 + $0x208] sm:$0xff]
    %v5274 = vld [vmem:[#allocation2 + $0x210] sm:$0xff]
    %v5275 = vld [vmem:[#allocation2 + $0x218] sm:$0xff]
    %v5276 = vld [vmem:[#allocation2 + $0x220] sm:$0xff]
    %v5277 = vld [vmem:[#allocation2 + $0x228] sm:$0xff]
    %v5278 = vld [vmem:[#allocation2 + $0x230] sm:$0xff]
    %v5279 = vld [vmem:[#allocation2 + $0x238] sm:$0xff]
    %v5280 = vld [vmem:[#allocation2 + $0x240] sm:$0xff]
    %v5281 = vld [vmem:[#allocation2 + $0x248] sm:$0xff]
    %v5282 = vld [vmem:[#allocation2 + $0x250] sm:$0xff]
    %v5283 = vld [vmem:[#allocation2 + $0x258] sm:$0xff]
    %v5284 = vld [vmem:[#allocation2 + $0x260] sm:$0xff]
    %v5285 = vld [vmem:[#allocation2 + $0x268] sm:$0xff]
    %v5286 = vld [vmem:[#allocation2 + $0x270] sm:$0xff]
    %v5287 = vld [vmem:[#allocation2 + $0x278] sm:$0xff]
    %v5288 = vld [vmem:[#allocation2 + $0x280] sm:$0xff]
    %v5289 = vld [vmem:[#allocation2 + $0x288] sm:$0xff]
    %v5290 = vld [vmem:[#allocation2 + $0x290] sm:$0xff]
    %v5291 = vld [vmem:[#allocation2 + $0x298] sm:$0xff]
    %v5292 = vld [vmem:[#allocation2 + $0x2a0] sm:$0xff]
    %v5293 = vld [vmem:[#allocation2 + $0x2a8] sm:$0xff]
    %v5294 = vld [vmem:[#allocation2 + $0x2b0] sm:$0xff]
    %v5295 = vld [vmem:[#allocation2 + $0x2b8] sm:$0xff]
    %v5296 = vld [vmem:[#allocation2 + $0x2c0] sm:$0xff]
    %v5297 = vld [vmem:[#allocation2 + $0x2c8] sm:$0xff]
    %v5298 = vld [vmem:[#allocation2 + $0x2d0] sm:$0xff]
    %v5299 = vld [vmem:[#allocation2 + $0x2d8] sm:$0xff]
    %v5300 = vld [vmem:[#allocation2 + $0x2e0] sm:$0xff]
    %v5301 = vld [vmem:[#allocation2 + $0x2e8] sm:$0xff]
    %v5302 = vld [vmem:[#allocation2 + $0x2f0] sm:$0xff]
    %v5303 = vld [vmem:[#allocation2 + $0x2f8] sm:$0xff]
    %v5304 = vld [vmem:[#allocation2 + $0x300] sm:$0xff]
    %v5305 = vld [vmem:[#allocation2 + $0x308] sm:$0xff]
    %v5306 = vld [vmem:[#allocation2 + $0x310] sm:$0xff]
    %v5307 = vld [vmem:[#allocation2 + $0x318] sm:$0xff]
    %v5308 = vld [vmem:[#allocation2 + $0x320] sm:$0xff]
    %v5309 = vld [vmem:[#allocation2 + $0x328] sm:$0xff]
    %v5310 = vld [vmem:[#allocation2 + $0x330] sm:$0xff]
    %v5311 = vld [vmem:[#allocation2 + $0x338] sm:$0xff]
    %v5312 = vld [vmem:[#allocation2 + $0x340] sm:$0xff]
    %v5313 = vld [vmem:[#allocation2 + $0x348] sm:$0xff]
    %v5314 = vld [vmem:[#allocation2 + $0x350] sm:$0xff]
    %v5315 = vld [vmem:[#allocation2 + $0x358] sm:$0xff]
    %v5316 = vld [vmem:[#allocation2 + $0x360] sm:$0xff]
    %v5317 = vld [vmem:[#allocation2 + $0x368] sm:$0xff]
    %v5318 = vld [vmem:[#allocation2 + $0x370] sm:$0xff]
    %v5319 = vld [vmem:[#allocation2 + $0x378] sm:$0xff]
    %v5320 = vld [vmem:[#allocation2 + $0x380] sm:$0xff]
    %v5321 = vld [vmem:[#allocation2 + $0x388] sm:$0xff]
    %v5322 = vld [vmem:[#allocation2 + $0x390] sm:$0xff]
    %v5323 = vld [vmem:[#allocation2 + $0x398] sm:$0xff]
    %v5324 = vld [vmem:[#allocation2 + $0x3a0] sm:$0xff]
    %v5325 = vld [vmem:[#allocation2 + $0x3a8] sm:$0xff]
    %v5326 = vld [vmem:[#allocation2 + $0x3b0] sm:$0xff]
    %v5327 = vld [vmem:[#allocation2 + $0x3b8] sm:$0xff]
    %v5328 = vld [vmem:[#allocation2 + $0x3c0] sm:$0xff]
    %v5329 = vld [vmem:[#allocation2 + $0x3c8] sm:$0xff]
    %v5330 = vld [vmem:[#allocation2 + $0x3d0] sm:$0xff]
    %v5331 = vld [vmem:[#allocation2 + $0x3d8] sm:$0xff]
    %v5332 = vld [vmem:[#allocation2 + $0x3e0] sm:$0xff]
    %v5333 = vld [vmem:[#allocation2 + $0x3e8] sm:$0xff]
    %v5334 = vld [vmem:[#allocation2 + $0x3f0] sm:$0xff]
    %v5335 = vld [vmem:[#allocation2 + $0x3f8] sm:$0xff]
    %v5336 = vld [vmem:[#allocation2 + $0x400] sm:$0xff]
    %v5337 = vld [vmem:[#allocation2 + $0x408] sm:$0xff]
    %v5338 = vld [vmem:[#allocation2 + $0x410] sm:$0xff]
    %v5339 = vld [vmem:[#allocation2 + $0x418] sm:$0xff]
    %v5340 = vld [vmem:[#allocation2 + $0x420] sm:$0xff]
    %v5341 = vld [vmem:[#allocation2 + $0x428] sm:$0xff]
    %v5342 = vld [vmem:[#allocation2 + $0x430] sm:$0xff]
    %v5343 = vld [vmem:[#allocation2 + $0x438] sm:$0xff]
    %v5344 = vld [vmem:[#allocation2 + $0x440] sm:$0xff]
    %v5345 = vld [vmem:[#allocation2 + $0x448] sm:$0xff]
    %v5346 = vld [vmem:[#allocation2 + $0x450] sm:$0xff]
    %v5347 = vld [vmem:[#allocation2 + $0x458] sm:$0xff]
    %v5348 = vld [vmem:[#allocation2 + $0x460] sm:$0xff]
    %v5349 = vld [vmem:[#allocation2 + $0x468] sm:$0xff]
    %v5350 = vld [vmem:[#allocation2 + $0x470] sm:$0xff]
    %v5351 = vld [vmem:[#allocation2 + $0x478] sm:$0xff]
    %v5352 = vld [vmem:[#allocation2 + $0x480] sm:$0xff]
    %v5353 = vld [vmem:[#allocation2 + $0x488] sm:$0xff]
    %v5354 = vld [vmem:[#allocation2 + $0x490] sm:$0xff]
    %v5355 = vld [vmem:[#allocation2 + $0x498] sm:$0xff]
    %v5356 = vld [vmem:[#allocation2 + $0x4a0] sm:$0xff]
    %v5357 = vld [vmem:[#allocation2 + $0x4a8] sm:$0xff]
    %v5358 = vld [vmem:[#allocation2 + $0x4b0] sm:$0xff]
    %v5359 = vld [vmem:[#allocation2 + $0x4b8] sm:$0xff]
    %v5360 = vld [vmem:[#allocation2 + $0x4c0] sm:$0xff]
    %v5361 = vld [vmem:[#allocation2 + $0x4c8] sm:$0xff]
    %v5362 = vld [vmem:[#allocation2 + $0x4d0] sm:$0xff]
    %v5363 = vld [vmem:[#allocation2 + $0x4d8] sm:$0xff]
    %v5364 = vld [vmem:[#allocation2 + $0x4e0] sm:$0xff]
    %v5365 = vld [vmem:[#allocation2 + $0x4e8] sm:$0xff]
    %v5366 = vld [vmem:[#allocation2 + $0x4f0] sm:$0xff]
    %v5367 = vld [vmem:[#allocation2 + $0x4f8] sm:$0xff]
    %v5368 = vld [vmem:[#allocation2 + $0x500] sm:$0xff]
    %v5369 = vld [vmem:[#allocation2 + $0x508] sm:$0xff]
    %v5370 = vld [vmem:[#allocation2 + $0x510] sm:$0xff]
    %v5371 = vld [vmem:[#allocation2 + $0x518] sm:$0xff]
    %v5372 = vld [vmem:[#allocation2 + $0x520] sm:$0xff]
    %v5373 = vld [vmem:[#allocation2 + $0x528] sm:$0xff]
    %v5374 = vld [vmem:[#allocation2 + $0x530] sm:$0xff]
    %v5375 = vld [vmem:[#allocation2 + $0x538] sm:$0xff]
    %v5376 = vld [vmem:[#allocation2 + $0x540] sm:$0xff]
    %v5377 = vld [vmem:[#allocation2 + $0x548] sm:$0xff]
    %v5378 = vld [vmem:[#allocation2 + $0x550] sm:$0xff]
    %v5379 = vld [vmem:[#allocation2 + $0x558] sm:$0xff]
    %v5380 = vld [vmem:[#allocation2 + $0x560] sm:$0xff]
    %v5381 = vld [vmem:[#allocation2 + $0x568] sm:$0xff]
    %v5382 = vld [vmem:[#allocation2 + $0x570] sm:$0xff]
    %v5383 = vld [vmem:[#allocation2 + $0x578] sm:$0xff]
    %v5384 = vld [vmem:[#allocation2 + $0x580] sm:$0xff]
    %v5385 = vld [vmem:[#allocation2 + $0x588] sm:$0xff]
    %v5386 = vld [vmem:[#allocation2 + $0x590] sm:$0xff]
    %v5387 = vld [vmem:[#allocation2 + $0x598] sm:$0xff]
    %v5388 = vld [vmem:[#allocation2 + $0x5a0] sm:$0xff]
    %v5389 = vld [vmem:[#allocation2 + $0x5a8] sm:$0xff]
    %v5390 = vld [vmem:[#allocation2 + $0x5b0] sm:$0xff]
    %v5391 = vld [vmem:[#allocation2 + $0x5b8] sm:$0xff]
    %v5392 = vld [vmem:[#allocation2 + $0x5c0] sm:$0xff]
    %v5393 = vld [vmem:[#allocation2 + $0x5c8] sm:$0xff]
    %v5394 = vld [vmem:[#allocation2 + $0x5d0] sm:$0xff]
    %v5395 = vld [vmem:[#allocation2 + $0x5d8] sm:$0xff]
    %v5396 = vld [vmem:[#allocation2 + $0x5e0] sm:$0xff]
    %v5397 = vld [vmem:[#allocation2 + $0x5e8] sm:$0xff]
    %v5398 = vld [vmem:[#allocation2 + $0x5f0] sm:$0xff]
    %v5399 = vld [vmem:[#allocation2 + $0x5f8] sm:$0xff]
    %v5400 = vld [vmem:[#allocation2 + $0x600] sm:$0xff]
    %v5401 = vld [vmem:[#allocation2 + $0x608] sm:$0xff]
    %v5402 = vld [vmem:[#allocation2 + $0x610] sm:$0xff]
    %v5403 = vld [vmem:[#allocation2 + $0x618] sm:$0xff]
    %v5404 = vld [vmem:[#allocation2 + $0x620] sm:$0xff]
    %v5405 = vld [vmem:[#allocation2 + $0x628] sm:$0xff]
    %v5406 = vld [vmem:[#allocation2 + $0x630] sm:$0xff]
    %v5407 = vld [vmem:[#allocation2 + $0x638] sm:$0xff]
    %v5408 = vld [vmem:[#allocation2 + $0x640] sm:$0xff]
    %v5409 = vld [vmem:[#allocation2 + $0x648] sm:$0xff]
    %v5410 = vld [vmem:[#allocation2 + $0x650] sm:$0xff]
    %v5411 = vld [vmem:[#allocation2 + $0x658] sm:$0xff]
    %v5412 = vld [vmem:[#allocation2 + $0x660] sm:$0xff]
    %v5413 = vld [vmem:[#allocation2 + $0x668] sm:$0xff]
    %v5414 = vld [vmem:[#allocation2 + $0x670] sm:$0xff]
    %v5415 = vld [vmem:[#allocation2 + $0x678] sm:$0xff]
    %v5416 = vld [vmem:[#allocation2 + $0x680] sm:$0xff]
    %v5417 = vld [vmem:[#allocation2 + $0x688] sm:$0xff]
    %v5418 = vld [vmem:[#allocation2 + $0x690] sm:$0xff]
    %v5419 = vld [vmem:[#allocation2 + $0x698] sm:$0xff]
    %v5420 = vld [vmem:[#allocation2 + $0x6a0] sm:$0xff]
    %v5421 = vld [vmem:[#allocation2 + $0x6a8] sm:$0xff]
    %v5422 = vld [vmem:[#allocation2 + $0x6b0] sm:$0xff]
    %v5423 = vld [vmem:[#allocation2 + $0x6b8] sm:$0xff]
    %v5424 = vld [vmem:[#allocation2 + $0x6c0] sm:$0xff]
    %v5425 = vld [vmem:[#allocation2 + $0x6c8] sm:$0xff]
    %v5426 = vld [vmem:[#allocation2 + $0x6d0] sm:$0xff]
    %v5427 = vld [vmem:[#allocation2 + $0x6d8] sm:$0xff]
    %v5428 = vld [vmem:[#allocation2 + $0x6e0] sm:$0xff]
    %v5429 = vld [vmem:[#allocation2 + $0x6e8] sm:$0xff]
    %v5430 = vld [vmem:[#allocation2 + $0x6f0] sm:$0xff]
    %v5431 = vld [vmem:[#allocation2 + $0x6f8] sm:$0xff]
    %v5432 = vld [vmem:[#allocation2 + $0x700] sm:$0xff]
    %v5433 = vld [vmem:[#allocation2 + $0x708] sm:$0xff]
    %v5434 = vld [vmem:[#allocation2 + $0x710] sm:$0xff]
    %v5435 = vld [vmem:[#allocation2 + $0x718] sm:$0xff]
    %v5436 = vld [vmem:[#allocation2 + $0x720] sm:$0xff]
    %v5437 = vld [vmem:[#allocation2 + $0x728] sm:$0xff]
    %v5438 = vld [vmem:[#allocation2 + $0x730] sm:$0xff]
    %v5439 = vld [vmem:[#allocation2 + $0x738] sm:$0xff]
    %v5440 = vld [vmem:[#allocation2 + $0x740] sm:$0xff]
    %v5441 = vld [vmem:[#allocation2 + $0x748] sm:$0xff]
    %v5442 = vld [vmem:[#allocation2 + $0x750] sm:$0xff]
    %v5443 = vld [vmem:[#allocation2 + $0x758] sm:$0xff]
    %v5444 = vld [vmem:[#allocation2 + $0x760] sm:$0xff]
    %v5445 = vld [vmem:[#allocation2 + $0x768] sm:$0xff]
    %v5446 = vld [vmem:[#allocation2 + $0x770] sm:$0xff]
    %v5447 = vld [vmem:[#allocation2 + $0x778] sm:$0xff]
    %v5448 = vld [vmem:[#allocation2 + $0x780] sm:$0xff]
    %v5449 = vld [vmem:[#allocation2 + $0x788] sm:$0xff]
    %v5450 = vld [vmem:[#allocation2 + $0x790] sm:$0xff]
    %v5451 = vld [vmem:[#allocation2 + $0x798] sm:$0xff]
    %v5452 = vld [vmem:[#allocation2 + $0x7a0] sm:$0xff]
    %v5453 = vld [vmem:[#allocation2 + $0x7a8] sm:$0xff]
    %v5454 = vld [vmem:[#allocation2 + $0x7b0] sm:$0xff]
    %v5455 = vld [vmem:[#allocation2 + $0x7b8] sm:$0xff]
    %v5456 = vld [vmem:[#allocation2 + $0x7c0] sm:$0xff]
    %v5457 = vld [vmem:[#allocation2 + $0x7c8] sm:$0xff]
    %v5458 = vld [vmem:[#allocation2 + $0x7d0] sm:$0xff]
    %v5459 = vld [vmem:[#allocation2 + $0x7d8] sm:$0xff]
    %v5460 = vld [vmem:[#allocation2 + $0x7e0] sm:$0xff]
    %v5461 = vld [vmem:[#allocation2 + $0x7e8] sm:$0xff]
    %v5462 = vld [vmem:[#allocation2 + $0x7f0] sm:$0xff]
    %v5463 = vld [vmem:[#allocation2 + $0x7f8] sm:$0xff]
    %v5464 = vld [vmem:[#allocation2 + $0x800] sm:$0xff]
    %v5465 = vld [vmem:[#allocation2 + $0x808] sm:$0xff]
    %v5466 = vld [vmem:[#allocation2 + $0x810] sm:$0xff]
    %v5467 = vld [vmem:[#allocation2 + $0x818] sm:$0xff]
    %v5468 = vld [vmem:[#allocation2 + $0x820] sm:$0xff]
    %v5469 = vld [vmem:[#allocation2 + $0x828] sm:$0xff]
    %v5470 = vld [vmem:[#allocation2 + $0x830] sm:$0xff]
    %v5471 = vld [vmem:[#allocation2 + $0x838] sm:$0xff]
    %v5472 = vld [vmem:[#allocation2 + $0x840] sm:$0xff]
    %v5473 = vld [vmem:[#allocation2 + $0x848] sm:$0xff]
    %v5474 = vld [vmem:[#allocation2 + $0x850] sm:$0xff]
    %v5475 = vld [vmem:[#allocation2 + $0x858] sm:$0xff]
    %v5476 = vld [vmem:[#allocation2 + $0x860] sm:$0xff]
    %v5477 = vld [vmem:[#allocation2 + $0x868] sm:$0xff]
    %v5478 = vld [vmem:[#allocation2 + $0x870] sm:$0xff]
    %v5479 = vld [vmem:[#allocation2 + $0x878] sm:$0xff]
    %v5480 = vld [vmem:[#allocation2 + $0x880] sm:$0xff]
    %v5481 = vld [vmem:[#allocation2 + $0x888] sm:$0xff]
    %v5482 = vld [vmem:[#allocation2 + $0x890] sm:$0xff]
    %v5483 = vld [vmem:[#allocation2 + $0x898] sm:$0xff]
    %v5484 = vld [vmem:[#allocation2 + $0x8a0] sm:$0xff]
    %v5485 = vld [vmem:[#allocation2 + $0x8a8] sm:$0xff]
    %v5486 = vld [vmem:[#allocation2 + $0x8b0] sm:$0xff]
    %v5487 = vld [vmem:[#allocation2 + $0x8b8] sm:$0xff]
    %v5488 = vld [vmem:[#allocation2 + $0x8c0] sm:$0xff]
    %v5489 = vld [vmem:[#allocation2 + $0x8c8] sm:$0xff]
    %v5490 = vld [vmem:[#allocation2 + $0x8d0] sm:$0xff]
    %v5491 = vld [vmem:[#allocation2 + $0x8d8] sm:$0xff]
    %v5492 = vld [vmem:[#allocation2 + $0x8e0] sm:$0xff]
    %v5493 = vld [vmem:[#allocation2 + $0x8e8] sm:$0xff]
    %v5494 = vld [vmem:[#allocation2 + $0x8f0] sm:$0xff]
    %v5495 = vld [vmem:[#allocation2 + $0x8f8] sm:$0xff]
    %v5496 = vld [vmem:[#allocation2 + $0x900] sm:$0xff]
    %v5497 = vld [vmem:[#allocation2 + $0x908] sm:$0xff]
    %v5498 = vld [vmem:[#allocation2 + $0x910] sm:$0xff]
    %v5499 = vld [vmem:[#allocation2 + $0x918] sm:$0xff]
    %v5500 = vld [vmem:[#allocation2 + $0x920] sm:$0xff]
    %v5501 = vld [vmem:[#allocation2 + $0x928] sm:$0xff]
    %v5502 = vld [vmem:[#allocation2 + $0x930] sm:$0xff]
    %v5503 = vld [vmem:[#allocation2 + $0x938] sm:$0xff]
    %v5504 = vld [vmem:[#allocation2 + $0x940] sm:$0xff]
    %v5505 = vld [vmem:[#allocation2 + $0x948] sm:$0xff]
    %v5506 = vld [vmem:[#allocation2 + $0x950] sm:$0xff]
    %v5507 = vld [vmem:[#allocation2 + $0x958] sm:$0xff]
    %v5508 = vld [vmem:[#allocation2 + $0x960] sm:$0xff]
    %v5509 = vld [vmem:[#allocation2 + $0x968] sm:$0xff]
    %v5510 = vld [vmem:[#allocation2 + $0x970] sm:$0xff]
    %v5511 = vld [vmem:[#allocation2 + $0x978] sm:$0xff]
    %v5512 = vld [vmem:[#allocation2 + $0x980] sm:$0xff]
    %v5513 = vld [vmem:[#allocation2 + $0x988] sm:$0xff]
    %v5514 = vld [vmem:[#allocation2 + $0x990] sm:$0xff]
    %v5515 = vld [vmem:[#allocation2 + $0x998] sm:$0xff]
    %v5516 = vld [vmem:[#allocation2 + $0x9a0] sm:$0xff]
    %v5517 = vld [vmem:[#allocation2 + $0x9a8] sm:$0xff]
    %v5518 = vld [vmem:[#allocation2 + $0x9b0] sm:$0xff]
    %v5519 = vld [vmem:[#allocation2 + $0x9b8] sm:$0xff]
    %v5520 = vld [vmem:[#allocation2 + $0x9c0] sm:$0xff]
    %v5521 = vld [vmem:[#allocation2 + $0x9c8] sm:$0xff]
    %v5522 = vld [vmem:[#allocation2 + $0x9d0] sm:$0xff]
    %v5523 = vld [vmem:[#allocation2 + $0x9d8] sm:$0xff]
    %v5524 = vld [vmem:[#allocation2 + $0x9e0] sm:$0xff]
    %v5525 = vld [vmem:[#allocation2 + $0x9e8] sm:$0xff]
    %v5526 = vld [vmem:[#allocation2 + $0x9f0] sm:$0xff]
    %v5527 = vld [vmem:[#allocation2 + $0x9f8] sm:$0xff]
    %v5528 = vld [vmem:[#allocation2 + $0xa00] sm:$0xff]
    %v5529 = vld [vmem:[#allocation2 + $0xa08] sm:$0xff]
    %v5530 = vld [vmem:[#allocation2 + $0xa10] sm:$0xff]
    %v5531 = vld [vmem:[#allocation2 + $0xa18] sm:$0xff]
    %v5532 = vld [vmem:[#allocation2 + $0xa20] sm:$0xff]
    %v5533 = vld [vmem:[#allocation2 + $0xa28] sm:$0xff]
    %v5534 = vld [vmem:[#allocation2 + $0xa30] sm:$0xff]
    %v5535 = vld [vmem:[#allocation2 + $0xa38] sm:$0xff]
    %v5536 = vld [vmem:[#allocation2 + $0xa40] sm:$0xff]
    %v5537 = vld [vmem:[#allocation2 + $0xa48] sm:$0xff]
    %v5538 = vld [vmem:[#allocation2 + $0xa50] sm:$0xff]
    %v5539 = vld [vmem:[#allocation2 + $0xa58] sm:$0xff]
    %v5540 = vld [vmem:[#allocation2 + $0xa60] sm:$0xff]
    %v5541 = vld [vmem:[#allocation2 + $0xa68] sm:$0xff]
    %v5542 = vld [vmem:[#allocation2 + $0xa70] sm:$0xff]
    %v5543 = vld [vmem:[#allocation2 + $0xa78] sm:$0xff]
    %v5544 = vld [vmem:[#allocation2 + $0xa80] sm:$0xff]
    %v5545 = vld [vmem:[#allocation2 + $0xa88] sm:$0xff]
    %v5546 = vld [vmem:[#allocation2 + $0xa90] sm:$0xff]
    %v5547 = vld [vmem:[#allocation2 + $0xa98] sm:$0xff]
    %v5548 = vld [vmem:[#allocation2 + $0xaa0] sm:$0xff]
    %v5549 = vld [vmem:[#allocation2 + $0xaa8] sm:$0xff]
    %v5550 = vld [vmem:[#allocation2 + $0xab0] sm:$0xff]
    %v5551 = vld [vmem:[#allocation2 + $0xab8] sm:$0xff]
    %v5552 = vld [vmem:[#allocation2 + $0xac0] sm:$0xff]
    %v5553 = vld [vmem:[#allocation2 + $0xac8] sm:$0xff]
    %v5554 = vld [vmem:[#allocation2 + $0xad0] sm:$0xff]
    %v5555 = vld [vmem:[#allocation2 + $0xad8] sm:$0xff]
    %v5556 = vld [vmem:[#allocation2 + $0xae0] sm:$0xff]
    %v5557 = vld [vmem:[#allocation2 + $0xae8] sm:$0xff]
    %v5558 = vld [vmem:[#allocation2 + $0xaf0] sm:$0xff]
    %v5559 = vld [vmem:[#allocation2 + $0xaf8] sm:$0xff]
    %v5560 = vld [vmem:[#allocation2 + $0xb00] sm:$0xff]
    %v5561 = vld [vmem:[#allocation2 + $0xb08] sm:$0xff]
    %v5562 = vld [vmem:[#allocation2 + $0xb10] sm:$0xff]
    %v5563 = vld [vmem:[#allocation2 + $0xb18] sm:$0xff]
    %v5564 = vld [vmem:[#allocation2 + $0xb20] sm:$0xff]
    %v5565 = vld [vmem:[#allocation2 + $0xb28] sm:$0xff]
    %v5566 = vld [vmem:[#allocation2 + $0xb30] sm:$0xff]
    %v5567 = vld [vmem:[#allocation2 + $0xb38] sm:$0xff]
    %v5568 = vld [vmem:[#allocation2 + $0xb40] sm:$0xff]
    %v5569 = vld [vmem:[#allocation2 + $0xb48] sm:$0xff]
    %v5570 = vld [vmem:[#allocation2 + $0xb50] sm:$0xff]
    %v5571 = vld [vmem:[#allocation2 + $0xb58] sm:$0xff]
    %v5572 = vld [vmem:[#allocation2 + $0xb60] sm:$0xff]
    %v5573 = vld [vmem:[#allocation2 + $0xb68] sm:$0xff]
    %v5574 = vld [vmem:[#allocation2 + $0xb70] sm:$0xff]
    %v5575 = vld [vmem:[#allocation2 + $0xb78] sm:$0xff]
    %v5576 = vld [vmem:[#allocation2 + $0xb80] sm:$0xff]
    %v5577 = vld [vmem:[#allocation2 + $0xb88] sm:$0xff]
    %v5578 = vld [vmem:[#allocation2 + $0xb90] sm:$0xff]
    %v5579 = vld [vmem:[#allocation2 + $0xb98] sm:$0xff]
    %v5580 = vld [vmem:[#allocation2 + $0xba0] sm:$0xff]
    %v5581 = vld [vmem:[#allocation2 + $0xba8] sm:$0xff]
    %v5582 = vld [vmem:[#allocation2 + $0xbb0] sm:$0xff]
    %v5583 = vld [vmem:[#allocation2 + $0xbb8] sm:$0xff]
    %v5584 = vld [vmem:[#allocation2 + $0xbc0] sm:$0xff]
    %v5585 = vld [vmem:[#allocation2 + $0xbc8] sm:$0xff]
    %v5586 = vld [vmem:[#allocation2 + $0xbd0] sm:$0xff]
    %v5587 = vld [vmem:[#allocation2 + $0xbd8] sm:$0xff]
    %v5588 = vld [vmem:[#allocation2 + $0xbe0] sm:$0xff]
    %v5589 = vld [vmem:[#allocation2 + $0xbe8] sm:$0xff]
    %v5590 = vld [vmem:[#allocation2 + $0xbf0] sm:$0xff]
    %v5591 = vld [vmem:[#allocation2 + $0xbf8] sm:$0xff]
    %v5592 = vld [vmem:[#allocation2 + $0xc00] sm:$0xff]
    %v5593 = vld [vmem:[#allocation2 + $0xc08] sm:$0xff]
    %v5594 = vld [vmem:[#allocation2 + $0xc10] sm:$0xff]
    %v5595 = vld [vmem:[#allocation2 + $0xc18] sm:$0xff]
    %v5596 = vld [vmem:[#allocation2 + $0xc20] sm:$0xff]
    %v5597 = vld [vmem:[#allocation2 + $0xc28] sm:$0xff]
    %v5598 = vld [vmem:[#allocation2 + $0xc30] sm:$0xff]
    %v5599 = vld [vmem:[#allocation2 + $0xc38] sm:$0xff]
    %v5600 = vld [vmem:[#allocation2 + $0xc40] sm:$0xff]
    %v5601 = vld [vmem:[#allocation2 + $0xc48] sm:$0xff]
    %v5602 = vld [vmem:[#allocation2 + $0xc50] sm:$0xff]
    %v5603 = vld [vmem:[#allocation2 + $0xc58] sm:$0xff]
    %v5604 = vld [vmem:[#allocation2 + $0xc60] sm:$0xff]
    %v5605 = vld [vmem:[#allocation2 + $0xc68] sm:$0xff]
    %v5606 = vld [vmem:[#allocation2 + $0xc70] sm:$0xff]
    %v5607 = vld [vmem:[#allocation2 + $0xc78] sm:$0xff]
    %v5608 = vld [vmem:[#allocation2 + $0xc80] sm:$0xff]
    %v5609 = vld [vmem:[#allocation2 + $0xc88] sm:$0xff]
    %v5610 = vld [vmem:[#allocation2 + $0xc90] sm:$0xff]
    %v5611 = vld [vmem:[#allocation2 + $0xc98] sm:$0xff]
    %v5612 = vld [vmem:[#allocation2 + $0xca0] sm:$0xff]
    %v5613 = vld [vmem:[#allocation2 + $0xca8] sm:$0xff]
    %v5614 = vld [vmem:[#allocation2 + $0xcb0] sm:$0xff]
    %v5615 = vld [vmem:[#allocation2 + $0xcb8] sm:$0xff]
    %v5616 = vld [vmem:[#allocation2 + $0xcc0] sm:$0xff]
    %v5617 = vld [vmem:[#allocation2 + $0xcc8] sm:$0xff]
    %v5618 = vld [vmem:[#allocation2 + $0xcd0] sm:$0xff]
    %v5619 = vld [vmem:[#allocation2 + $0xcd8] sm:$0xff]
    %v5620 = vld [vmem:[#allocation2 + $0xce0] sm:$0xff]
    %v5621 = vld [vmem:[#allocation2 + $0xce8] sm:$0xff]
    %v5622 = vld [vmem:[#allocation2 + $0xcf0] sm:$0xff]
    %v5623 = vld [vmem:[#allocation2 + $0xcf8] sm:$0xff]
    %v5624 = vld [vmem:[#allocation2 + $0xd00] sm:$0xff]
    %v5625 = vld [vmem:[#allocation2 + $0xd08] sm:$0xff]
    %v5626 = vld [vmem:[#allocation2 + $0xd10] sm:$0xff]
    %v5627 = vld [vmem:[#allocation2 + $0xd18] sm:$0xff]
    %v5628 = vld [vmem:[#allocation2 + $0xd20] sm:$0xff]
    %v5629 = vld [vmem:[#allocation2 + $0xd28] sm:$0xff]
    %v5630 = vld [vmem:[#allocation2 + $0xd30] sm:$0xff]
    %v5631 = vld [vmem:[#allocation2 + $0xd38] sm:$0xff]
    %v5632 = vld [vmem:[#allocation2 + $0xd40] sm:$0xff]
    %v5633 = vld [vmem:[#allocation2 + $0xd48] sm:$0xff]
    %v5634 = vld [vmem:[#allocation2 + $0xd50] sm:$0xff]
    %v5635 = vld [vmem:[#allocation2 + $0xd58] sm:$0xff]
    %v5636 = vld [vmem:[#allocation2 + $0xd60] sm:$0xff]
    %v5637 = vld [vmem:[#allocation2 + $0xd68] sm:$0xff]
    %v5638 = vld [vmem:[#allocation2 + $0xd70] sm:$0xff]
    %v5639 = vld [vmem:[#allocation2 + $0xd78] sm:$0xff]
    %v5640 = vld [vmem:[#allocation2 + $0xd80] sm:$0xff]
    %v5641 = vld [vmem:[#allocation2 + $0xd88] sm:$0xff]
    %v5642 = vld [vmem:[#allocation2 + $0xd90] sm:$0xff]
    %v5643 = vld [vmem:[#allocation2 + $0xd98] sm:$0xff]
    %v5644 = vld [vmem:[#allocation2 + $0xda0] sm:$0xff]
    %v5645 = vld [vmem:[#allocation2 + $0xda8] sm:$0xff]
    %v5646 = vld [vmem:[#allocation2 + $0xdb0] sm:$0xff]
    %v5647 = vld [vmem:[#allocation2 + $0xdb8] sm:$0xff]
    %v5648 = vld [vmem:[#allocation2 + $0xdc0] sm:$0xff]
    %v5649 = vld [vmem:[#allocation2 + $0xdc8] sm:$0xff]
    %v5650 = vld [vmem:[#allocation2 + $0xdd0] sm:$0xff]
    %v5651 = vld [vmem:[#allocation2 + $0xdd8] sm:$0xff]
    %v5652 = vld [vmem:[#allocation2 + $0xde0] sm:$0xff]
    %v5653 = vld [vmem:[#allocation2 + $0xde8] sm:$0xff]
    %v5654 = vld [vmem:[#allocation2 + $0xdf0] sm:$0xff]
    %v5655 = vld [vmem:[#allocation2 + $0xdf8] sm:$0xff]
    %v5656 = vld [vmem:[#allocation2 + $0xe00] sm:$0xff]
    %v5657 = vld [vmem:[#allocation2 + $0xe08] sm:$0xff]
    %v5658 = vld [vmem:[#allocation2 + $0xe10] sm:$0xff]
    %v5659 = vld [vmem:[#allocation2 + $0xe18] sm:$0xff]
    %v5660 = vld [vmem:[#allocation2 + $0xe20] sm:$0xff]
    %v5661 = vld [vmem:[#allocation2 + $0xe28] sm:$0xff]
    %v5662 = vld [vmem:[#allocation2 + $0xe30] sm:$0xff]
    %v5663 = vld [vmem:[#allocation2 + $0xe38] sm:$0xff]
    %v5664 = vld [vmem:[#allocation2 + $0xe40] sm:$0xff]
    %v5665 = vld [vmem:[#allocation2 + $0xe48] sm:$0xff]
    %v5666 = vld [vmem:[#allocation2 + $0xe50] sm:$0xff]
    %v5667 = vld [vmem:[#allocation2 + $0xe58] sm:$0xff]
    %v5668 = vld [vmem:[#allocation2 + $0xe60] sm:$0xff]
    %v5669 = vld [vmem:[#allocation2 + $0xe68] sm:$0xff]
    %v5670 = vld [vmem:[#allocation2 + $0xe70] sm:$0xff]
    %v5671 = vld [vmem:[#allocation2 + $0xe78] sm:$0xff]
    %v5672 = vld [vmem:[#allocation2 + $0xe80] sm:$0xff]
    %v5673 = vld [vmem:[#allocation2 + $0xe88] sm:$0xff]
    %v5674 = vld [vmem:[#allocation2 + $0xe90] sm:$0xff]
    %v5675 = vld [vmem:[#allocation2 + $0xe98] sm:$0xff]
    %v5676 = vld [vmem:[#allocation2 + $0xea0] sm:$0xff]
    %v5677 = vld [vmem:[#allocation2 + $0xea8] sm:$0xff]
    %v5678 = vld [vmem:[#allocation2 + $0xeb0] sm:$0xff]
    %v5679 = vld [vmem:[#allocation2 + $0xeb8] sm:$0xff]
    %v5680 = vld [vmem:[#allocation2 + $0xec0] sm:$0xff]
    %v5681 = vld [vmem:[#allocation2 + $0xec8] sm:$0xff]
    %v5682 = vld [vmem:[#allocation2 + $0xed0] sm:$0xff]
    %v5683 = vld [vmem:[#allocation2 + $0xed8] sm:$0xff]
    %v5684 = vld [vmem:[#allocation2 + $0xee0] sm:$0xff]
    %v5685 = vld [vmem:[#allocation2 + $0xee8] sm:$0xff]
    %v5686 = vld [vmem:[#allocation2 + $0xef0] sm:$0xff]
    %v5687 = vld [vmem:[#allocation2 + $0xef8] sm:$0xff]
    %v5688 = vld [vmem:[#allocation2 + $0xf00] sm:$0xff]
    %v5689 = vld [vmem:[#allocation2 + $0xf08] sm:$0xff]
    %v5690 = vld [vmem:[#allocation2 + $0xf10] sm:$0xff]
    %v5691 = vld [vmem:[#allocation2 + $0xf18] sm:$0xff]
    %v5692 = vld [vmem:[#allocation2 + $0xf20] sm:$0xff]
    %v5693 = vld [vmem:[#allocation2 + $0xf28] sm:$0xff]
    %v5694 = vld [vmem:[#allocation2 + $0xf30] sm:$0xff]
    %v5695 = vld [vmem:[#allocation2 + $0xf38] sm:$0xff]
    %v5696 = vld [vmem:[#allocation2 + $0xf40] sm:$0xff]
    %v5697 = vld [vmem:[#allocation2 + $0xf48] sm:$0xff]
    %v5698 = vld [vmem:[#allocation2 + $0xf50] sm:$0xff]
    %v5699 = vld [vmem:[#allocation2 + $0xf58] sm:$0xff]
    %v5700 = vld [vmem:[#allocation2 + $0xf60] sm:$0xff]
    %v5701 = vld [vmem:[#allocation2 + $0xf68] sm:$0xff]
    %v5702 = vld [vmem:[#allocation2 + $0xf70] sm:$0xff]
    %v5703 = vld [vmem:[#allocation2 + $0xf78] sm:$0xff]
    %v5704 = vld [vmem:[#allocation2 + $0xf80] sm:$0xff]
    %v5705 = vld [vmem:[#allocation2 + $0xf88] sm:$0xff]
    %v5706 = vld [vmem:[#allocation2 + $0xf90] sm:$0xff]
    %v5707 = vld [vmem:[#allocation2 + $0xf98] sm:$0xff]
    %v5708 = vld [vmem:[#allocation2 + $0xfa0] sm:$0xff]
    %v5709 = vld [vmem:[#allocation2 + $0xfa8] sm:$0xff]
    %v5710 = vld [vmem:[#allocation2 + $0xfb0] sm:$0xff]
    %v5711 = vld [vmem:[#allocation2 + $0xfb8] sm:$0xff]
    %v5712 = vld [vmem:[#allocation2 + $0xfc0] sm:$0xff]
    %v5713 = vld [vmem:[#allocation2 + $0xfc8] sm:$0xff]
    %v5714 = vld [vmem:[#allocation2 + $0xfd0] sm:$0xff]
    %v5715 = vld [vmem:[#allocation2 + $0xfd8] sm:$0xff]
    %v5716 = vld [vmem:[#allocation2 + $0xfe0] sm:$0xff]
    %v5717 = vld [vmem:[#allocation2 + $0xfe8] sm:$0xff]
    %v5718 = vld [vmem:[#allocation2 + $0xff0] sm:$0xff]
    %v5719 = vld [vmem:[#allocation2 + $0xff8] sm:$0xff]
    %v5720 = vld [vmem:[#allocation2 + $0x1000] sm:$0xff]
    %v5721 = vld [vmem:[#allocation2 + $0x1008] sm:$0xff]
    %v5722 = vld [vmem:[#allocation2 + $0x1010] sm:$0xff]
    %v5723 = vld [vmem:[#allocation2 + $0x1018] sm:$0xff]
    %v5724 = vld [vmem:[#allocation2 + $0x1020] sm:$0xff]
    %v5725 = vld [vmem:[#allocation2 + $0x1028] sm:$0xff]
    %v5726 = vld [vmem:[#allocation2 + $0x1030] sm:$0xff]
    %v5727 = vld [vmem:[#allocation2 + $0x1038] sm:$0xff]
    %v5728 = vld [vmem:[#allocation2 + $0x1040] sm:$0xff]
    %v5729 = vld [vmem:[#allocation2 + $0x1048] sm:$0xff]
    %v5730 = vld [vmem:[#allocation2 + $0x1050] sm:$0xff]
    %v5731 = vld [vmem:[#allocation2 + $0x1058] sm:$0xff]
    %v5732 = vld [vmem:[#allocation2 + $0x1060] sm:$0xff]
    %v5733 = vld [vmem:[#allocation2 + $0x1068] sm:$0xff]
    %v5734 = vld [vmem:[#allocation2 + $0x1070] sm:$0xff]
    %v5735 = vld [vmem:[#allocation2 + $0x1078] sm:$0xff]
    %v5736 = vld [vmem:[#allocation2 + $0x1080] sm:$0xff]
    %v5737 = vld [vmem:[#allocation2 + $0x1088] sm:$0xff]
    %v5738 = vld [vmem:[#allocation2 + $0x1090] sm:$0xff]
    %v5739 = vld [vmem:[#allocation2 + $0x1098] sm:$0xff]
    %v5740 = vld [vmem:[#allocation2 + $0x10a0] sm:$0xff]
    %v5741 = vld [vmem:[#allocation2 + $0x10a8] sm:$0xff]
    %v5742 = vld [vmem:[#allocation2 + $0x10b0] sm:$0xff]
    %v5743 = vld [vmem:[#allocation2 + $0x10b8] sm:$0xff]
    %v5744 = vld [vmem:[#allocation2 + $0x10c0] sm:$0xff]
    %v5745 = vld [vmem:[#allocation2 + $0x10c8] sm:$0xff]
    %v5746 = vld [vmem:[#allocation2 + $0x10d0] sm:$0xff]
    %v5747 = vld [vmem:[#allocation2 + $0x10d8] sm:$0xff]
    %v5748 = vld [vmem:[#allocation2 + $0x10e0] sm:$0xff]
    %v5749 = vld [vmem:[#allocation2 + $0x10e8] sm:$0xff]
    %v5750 = vld [vmem:[#allocation2 + $0x10f0] sm:$0xff]
    %v5751 = vld [vmem:[#allocation2 + $0x10f8] sm:$0xff]
    %v5752 = vld [vmem:[#allocation2 + $0x1100] sm:$0xff]
    %v5753 = vld [vmem:[#allocation2 + $0x1108] sm:$0xff]
    %v5754 = vld [vmem:[#allocation2 + $0x1110] sm:$0xff]
    %v5755 = vld [vmem:[#allocation2 + $0x1118] sm:$0xff]
    %v5756 = vld [vmem:[#allocation2 + $0x1120] sm:$0xff]
    %v5757 = vld [vmem:[#allocation2 + $0x1128] sm:$0xff]
    %v5758 = vld [vmem:[#allocation2 + $0x1130] sm:$0xff]
    %v5759 = vld [vmem:[#allocation2 + $0x1138] sm:$0xff]
    %v5760 = vld [vmem:[#allocation2 + $0x1140] sm:$0xff]
    %v5761 = vld [vmem:[#allocation2 + $0x1148] sm:$0xff]
    %v5762 = vld [vmem:[#allocation2 + $0x1150] sm:$0xff]
    %v5763 = vld [vmem:[#allocation2 + $0x1158] sm:$0xff]
    %v5764 = vld [vmem:[#allocation2 + $0x1160] sm:$0xff]
    %v5765 = vld [vmem:[#allocation2 + $0x1168] sm:$0xff]
    %v5766 = vld [vmem:[#allocation2 + $0x1170] sm:$0xff]
    %v5767 = vld [vmem:[#allocation2 + $0x1178] sm:$0xff]
    %v5768 = vld [vmem:[#allocation2 + $0x1180] sm:$0xff]
    %v5769 = vld [vmem:[#allocation2 + $0x1188] sm:$0xff]
    %v5770 = vld [vmem:[#allocation2 + $0x1190] sm:$0xff]
    %v5771 = vld [vmem:[#allocation2 + $0x1198] sm:$0xff]
    %v5772 = vld [vmem:[#allocation2 + $0x11a0] sm:$0xff]
    %v5773 = vld [vmem:[#allocation2 + $0x11a8] sm:$0xff]
    %v5774 = vld [vmem:[#allocation2 + $0x11b0] sm:$0xff]
    %v5775 = vld [vmem:[#allocation2 + $0x11b8] sm:$0xff]
    %v5776 = vld [vmem:[#allocation2 + $0x11c0] sm:$0xff]
    %v5777 = vld [vmem:[#allocation2 + $0x11c8] sm:$0xff]
    %v5778 = vld [vmem:[#allocation2 + $0x11d0] sm:$0xff]
    %v5779 = vld [vmem:[#allocation2 + $0x11d8] sm:$0xff]
    %v5780 = vld [vmem:[#allocation2 + $0x11e0] sm:$0xff]
    %v5781 = vld [vmem:[#allocation2 + $0x11e8] sm:$0xff]
    %v5782 = vld [vmem:[#allocation2 + $0x11f0] sm:$0xff]
    %v5783 = vld [vmem:[#allocation2 + $0x11f8] sm:$0xff]
    %v5784 = vld [vmem:[#allocation4] sm:$0xff]
    %v5785 = vld [vmem:[#allocation4 + $0x8] sm:$0xff]
    %v5786 = vld [vmem:[#allocation4 + $0x10] sm:$0xff]
    %v5787 = vld [vmem:[#allocation4 + $0x18] sm:$0xff]
    %v5788 = vld [vmem:[#allocation4 + $0x20] sm:$0xff]
    %v5789 = vld [vmem:[#allocation4 + $0x28] sm:$0xff]
    %v5790 = vld [vmem:[#allocation4 + $0x30] sm:$0xff]
    %v5791 = vld [vmem:[#allocation4 + $0x38] sm:$0xff]
    %v5792 = vld [vmem:[#allocation4 + $0x40] sm:$0xff]
    %v5793 = vld [vmem:[#allocation4 + $0x48] sm:$0xff]
    %v5794 = vld [vmem:[#allocation4 + $0x50] sm:$0xff]
    %v5795 = vld [vmem:[#allocation4 + $0x58] sm:$0xff]
    %v5796 = vld [vmem:[#allocation4 + $0x60] sm:$0xff]
    %v5797 = vld [vmem:[#allocation4 + $0x68] sm:$0xff]
    %v5798 = vld [vmem:[#allocation4 + $0x70] sm:$0xff]
    %v5799 = vld [vmem:[#allocation4 + $0x78] sm:$0xff]
    %v5800 = vld [vmem:[#allocation4 + $0x80] sm:$0xff]
    %v5801 = vld [vmem:[#allocation4 + $0x88] sm:$0xff]
    %v5802 = vld [vmem:[#allocation4 + $0x90] sm:$0xff]
    %v5803 = vld [vmem:[#allocation4 + $0x98] sm:$0xff]
    %v5804 = vld [vmem:[#allocation4 + $0xa0] sm:$0xff]
    %v5805 = vld [vmem:[#allocation4 + $0xa8] sm:$0xff]
    %v5806 = vld [vmem:[#allocation4 + $0xb0] sm:$0xff]
    %v5807 = vld [vmem:[#allocation4 + $0xb8] sm:$0xff]
    %v5808 = vld [vmem:[#allocation4 + $0xc0] sm:$0xff]
    %v5809 = vld [vmem:[#allocation4 + $0xc8] sm:$0xff]
    %v5810 = vld [vmem:[#allocation4 + $0xd0] sm:$0xff]
    %v5811 = vld [vmem:[#allocation4 + $0xd8] sm:$0xff]
    %v5812 = vld [vmem:[#allocation4 + $0xe0] sm:$0xff]
    %v5813 = vld [vmem:[#allocation4 + $0xe8] sm:$0xff]
    %v5814 = vld [vmem:[#allocation4 + $0xf0] sm:$0xff]
    %v5815 = vld [vmem:[#allocation4 + $0xf8] sm:$0xff]
    %v5816 = vld [vmem:[#allocation4 + $0x100] sm:$0xff]
    %v5817 = vld [vmem:[#allocation4 + $0x108] sm:$0xff]
    %v5818 = vld [vmem:[#allocation4 + $0x110] sm:$0xff]
    %v5819 = vld [vmem:[#allocation4 + $0x118] sm:$0xff]
    %v5820 = vld [vmem:[#allocation4 + $0x120] sm:$0xff]
    %v5821 = vld [vmem:[#allocation4 + $0x128] sm:$0xff]
    %v5822 = vld [vmem:[#allocation4 + $0x130] sm:$0xff]
    %v5823 = vld [vmem:[#allocation4 + $0x138] sm:$0xff]
    %v5824 = vld [vmem:[#allocation4 + $0x140] sm:$0xff]
    %v5825 = vld [vmem:[#allocation4 + $0x148] sm:$0xff]
    %v5826 = vld [vmem:[#allocation4 + $0x150] sm:$0xff]
    %v5827 = vld [vmem:[#allocation4 + $0x158] sm:$0xff]
    %v5828 = vld [vmem:[#allocation4 + $0x160] sm:$0xff]
    %v5829 = vld [vmem:[#allocation4 + $0x168] sm:$0xff]
    %v5830 = vld [vmem:[#allocation4 + $0x170] sm:$0xff]
    %v5831 = vld [vmem:[#allocation4 + $0x178] sm:$0xff]
    %v5832 = vld [vmem:[#allocation4 + $0x180] sm:$0xff]
    %v5833 = vld [vmem:[#allocation4 + $0x188] sm:$0xff]
    %v5834 = vld [vmem:[#allocation4 + $0x190] sm:$0xff]
    %v5835 = vld [vmem:[#allocation4 + $0x198] sm:$0xff]
    %v5836 = vld [vmem:[#allocation4 + $0x1a0] sm:$0xff]
    %v5837 = vld [vmem:[#allocation4 + $0x1a8] sm:$0xff]
    %v5838 = vld [vmem:[#allocation4 + $0x1b0] sm:$0xff]
    %v5839 = vld [vmem:[#allocation4 + $0x1b8] sm:$0xff]
    %v5840 = vld [vmem:[#allocation4 + $0x1c0] sm:$0xff]
    %v5841 = vld [vmem:[#allocation4 + $0x1c8] sm:$0xff]
    %v5842 = vld [vmem:[#allocation4 + $0x1d0] sm:$0xff]
    %v5843 = vld [vmem:[#allocation4 + $0x1d8] sm:$0xff]
    %v5844 = vld [vmem:[#allocation4 + $0x1e0] sm:$0xff]
    %v5845 = vld [vmem:[#allocation4 + $0x1e8] sm:$0xff]
    %v5846 = vld [vmem:[#allocation4 + $0x1f0] sm:$0xff]
    %v5847 = vld [vmem:[#allocation4 + $0x1f8] sm:$0xff]
    %v5848 = vld [vmem:[#allocation4 + $0x200] sm:$0xff]
    %v5849 = vld [vmem:[#allocation4 + $0x208] sm:$0xff]
    %v5850 = vld [vmem:[#allocation4 + $0x210] sm:$0xff]
    %v5851 = vld [vmem:[#allocation4 + $0x218] sm:$0xff]
    %v5852 = vld [vmem:[#allocation4 + $0x220] sm:$0xff]
    %v5853 = vld [vmem:[#allocation4 + $0x228] sm:$0xff]
    %v5854 = vld [vmem:[#allocation4 + $0x230] sm:$0xff]
    %v5855 = vld [vmem:[#allocation4 + $0x238] sm:$0xff]
    %v5856 = vld [vmem:[#allocation4 + $0x240] sm:$0xff]
    %v5857 = vld [vmem:[#allocation4 + $0x248] sm:$0xff]
    %v5858 = vld [vmem:[#allocation4 + $0x250] sm:$0xff]
    %v5859 = vld [vmem:[#allocation4 + $0x258] sm:$0xff]
    %v5860 = vld [vmem:[#allocation4 + $0x260] sm:$0xff]
    %v5861 = vld [vmem:[#allocation4 + $0x268] sm:$0xff]
    %v5862 = vld [vmem:[#allocation4 + $0x270] sm:$0xff]
    %v5863 = vld [vmem:[#allocation4 + $0x278] sm:$0xff]
    %v5864 = vld [vmem:[#allocation4 + $0x280] sm:$0xff]
    %v5865 = vld [vmem:[#allocation4 + $0x288] sm:$0xff]
    %v5866 = vld [vmem:[#allocation4 + $0x290] sm:$0xff]
    %v5867 = vld [vmem:[#allocation4 + $0x298] sm:$0xff]
    %v5868 = vld [vmem:[#allocation4 + $0x2a0] sm:$0xff]
    %v5869 = vld [vmem:[#allocation4 + $0x2a8] sm:$0xff]
    %v5870 = vld [vmem:[#allocation4 + $0x2b0] sm:$0xff]
    %v5871 = vld [vmem:[#allocation4 + $0x2b8] sm:$0xff]
    %v5872 = vld [vmem:[#allocation4 + $0x2c0] sm:$0xff]
    %v5873 = vld [vmem:[#allocation4 + $0x2c8] sm:$0xff]
    %v5874 = vld [vmem:[#allocation4 + $0x2d0] sm:$0xff]
    %v5875 = vld [vmem:[#allocation4 + $0x2d8] sm:$0xff]
    %v5876 = vld [vmem:[#allocation4 + $0x2e0] sm:$0xff]
    %v5877 = vld [vmem:[#allocation4 + $0x2e8] sm:$0xff]
    %v5878 = vld [vmem:[#allocation4 + $0x2f0] sm:$0xff]
    %v5879 = vld [vmem:[#allocation4 + $0x2f8] sm:$0xff]
    %v5880 = vld [vmem:[#allocation4 + $0x300] sm:$0xff]
    %v5881 = vld [vmem:[#allocation4 + $0x308] sm:$0xff]
    %v5882 = vld [vmem:[#allocation4 + $0x310] sm:$0xff]
    %v5883 = vld [vmem:[#allocation4 + $0x318] sm:$0xff]
    %v5884 = vld [vmem:[#allocation4 + $0x320] sm:$0xff]
    %v5885 = vld [vmem:[#allocation4 + $0x328] sm:$0xff]
    %v5886 = vld [vmem:[#allocation4 + $0x330] sm:$0xff]
    %v5887 = vld [vmem:[#allocation4 + $0x338] sm:$0xff]
    %v5888 = vld [vmem:[#allocation4 + $0x340] sm:$0xff]
    %v5889 = vld [vmem:[#allocation4 + $0x348] sm:$0xff]
    %v5890 = vld [vmem:[#allocation4 + $0x350] sm:$0xff]
    %v5891 = vld [vmem:[#allocation4 + $0x358] sm:$0xff]
    %v5892 = vld [vmem:[#allocation4 + $0x360] sm:$0xff]
    %v5893 = vld [vmem:[#allocation4 + $0x368] sm:$0xff]
    %v5894 = vld [vmem:[#allocation4 + $0x370] sm:$0xff]
    %v5895 = vld [vmem:[#allocation4 + $0x378] sm:$0xff]
    %v5896 = vld [vmem:[#allocation4 + $0x380] sm:$0xff]
    %v5897 = vld [vmem:[#allocation4 + $0x388] sm:$0xff]
    %v5898 = vld [vmem:[#allocation4 + $0x390] sm:$0xff]
    %v5899 = vld [vmem:[#allocation4 + $0x398] sm:$0xff]
    %v5900 = vld [vmem:[#allocation4 + $0x3a0] sm:$0xff]
    %v5901 = vld [vmem:[#allocation4 + $0x3a8] sm:$0xff]
    %v5902 = vld [vmem:[#allocation4 + $0x3b0] sm:$0xff]
    %v5903 = vld [vmem:[#allocation4 + $0x3b8] sm:$0xff]
    %v5904 = vld [vmem:[#allocation4 + $0x3c0] sm:$0xff]
    %v5905 = vld [vmem:[#allocation4 + $0x3c8] sm:$0xff]
    %v5906 = vld [vmem:[#allocation4 + $0x3d0] sm:$0xff]
    %v5907 = vld [vmem:[#allocation4 + $0x3d8] sm:$0xff]
    %v5908 = vld [vmem:[#allocation4 + $0x3e0] sm:$0xff]
    %v5909 = vld [vmem:[#allocation4 + $0x3e8] sm:$0xff]
    %v5910 = vld [vmem:[#allocation4 + $0x3f0] sm:$0xff]
    %v5911 = vld [vmem:[#allocation4 + $0x3f8] sm:$0xff]
    %v5912 = vld [vmem:[#allocation4 + $0x400] sm:$0xff]
    %v5913 = vld [vmem:[#allocation4 + $0x408] sm:$0xff]
    %v5914 = vld [vmem:[#allocation4 + $0x410] sm:$0xff]
    %v5915 = vld [vmem:[#allocation4 + $0x418] sm:$0xff]
    %v5916 = vld [vmem:[#allocation4 + $0x420] sm:$0xff]
    %v5917 = vld [vmem:[#allocation4 + $0x428] sm:$0xff]
    %v5918 = vld [vmem:[#allocation4 + $0x430] sm:$0xff]
    %v5919 = vld [vmem:[#allocation4 + $0x438] sm:$0xff]
    %v5920 = vld [vmem:[#allocation4 + $0x440] sm:$0xff]
    %v5921 = vld [vmem:[#allocation4 + $0x448] sm:$0xff]
    %v5922 = vld [vmem:[#allocation4 + $0x450] sm:$0xff]
    %v5923 = vld [vmem:[#allocation4 + $0x458] sm:$0xff]
    %v5924 = vld [vmem:[#allocation4 + $0x460] sm:$0xff]
    %v5925 = vld [vmem:[#allocation4 + $0x468] sm:$0xff]
    %v5926 = vld [vmem:[#allocation4 + $0x470] sm:$0xff]
    %v5927 = vld [vmem:[#allocation4 + $0x478] sm:$0xff]
    %v5928 = vld [vmem:[%s419 + $0x1] sm:$0xff]
    %v5929 = vld [vmem:[%s419 + $0x9] sm:$0xff]
    %v5930 = vld [vmem:[%s419 + $0x19] sm:$0xff]
    %v5931 = vld [vmem:[%s419 + $0x21] sm:$0xff]
    %v5932 = vld [vmem:[%s419 + $0x31] sm:$0xff]
    %v5933 = vld [vmem:[%s419 + $0x39] sm:$0xff]
    %v5934 = vld [vmem:[%s419 + $0x49] sm:$0xff]
    %v5935 = vld [vmem:[%s419 + $0x51] sm:$0xff]
    %v5936 = vld [vmem:[%s419 + $0x61] sm:$0xff]
    %v5937 = vld [vmem:[%s419 + $0x69] sm:$0xff]
    %v5938 = vld [vmem:[%s419 + $0x79] sm:$0xff]
    %v5939 = vld [vmem:[%s419 + $0x81] sm:$0xff]
    %v5940 = vld [vmem:[%s419 + $0x91] sm:$0xff]
    %v5941 = vld [vmem:[%s419 + $0x99] sm:$0xff]
    %v5942 = vld [vmem:[%s419 + $0xa9] sm:$0xff]
    %v5943 = vld [vmem:[%s419 + $0xb1] sm:$0xff]
    %v5944 = vld [vmem:[%s419 + $0xc1] sm:$0xff]
    %v5945 = vld [vmem:[%s419 + $0xc9] sm:$0xff]
    %v5946 = vld [vmem:[%s419 + $0xd9] sm:$0xff]
    %v5947 = vld [vmem:[%s419 + $0xe1] sm:$0xff]
    %v5948 = vld [vmem:[%s419 + $0xf1] sm:$0xff]
    %v5949 = vld [vmem:[%s419 + $0xf9] sm:$0xff]
    %v5950 = vld [vmem:[%s419 + $0x109] sm:$0xff]
    %v5951 = vld [vmem:[%s419 + $0x111] sm:$0xff]
    %v5952 = vld [vmem:[%s419 + $0x121] sm:$0xff]
    %v5953 = vld [vmem:[%s419 + $0x129] sm:$0xff]
    %v5954 = vld [vmem:[%s419 + $0x139] sm:$0xff]
    %v5955 = vld [vmem:[%s419 + $0x141] sm:$0xff]
    %v5956 = vld [vmem:[%s419 + $0x151] sm:$0xff]
    %v5957 = vld [vmem:[%s419 + $0x159] sm:$0xff]
    %v5958 = vld [vmem:[%s419 + $0x169] sm:$0xff]
    %v5959 = vld [vmem:[%s419 + $0x171] sm:$0xff]
    %v5960 = vld [vmem:[%s419 + $0x1b1] sm:$0xff]
    %v5961 = vld [vmem:[%s419 + $0x1b9] sm:$0xff]
    %v5962 = vld [vmem:[%s419 + $0x1c9] sm:$0xff]
    %v5963 = vld [vmem:[%s419 + $0x1d1] sm:$0xff]
    %v5964 = vld [vmem:[%s419 + $0x1e1] sm:$0xff]
    %v5965 = vld [vmem:[%s419 + $0x1e9] sm:$0xff]
    %v5966 = vld [vmem:[%s419 + $0x1f9] sm:$0xff]
    %v5967 = vld [vmem:[%s419 + $0x201] sm:$0xff]
    %v5968 = vld [vmem:[%s419 + $0x211] sm:$0xff]
    %v5969 = vld [vmem:[%s419 + $0x219] sm:$0xff]
    %v5970 = vld [vmem:[%s419 + $0x229] sm:$0xff]
    %v5971 = vld [vmem:[%s419 + $0x231] sm:$0xff]
    %v5972 = vld [vmem:[%s419 + $0x241] sm:$0xff]
    %v5973 = vld [vmem:[%s419 + $0x249] sm:$0xff]
    %v5974 = vld [vmem:[%s419 + $0x259] sm:$0xff]
    %v5975 = vld [vmem:[%s419 + $0x261] sm:$0xff]
    %v5976 = vld [vmem:[%s419 + $0x271] sm:$0xff]
    %v5977 = vld [vmem:[%s419 + $0x279] sm:$0xff]
    %v5978 = vld [vmem:[%s419 + $0x289] sm:$0xff]
    %v5979 = vld [vmem:[%s419 + $0x291] sm:$0xff]
    %v5980 = vld [vmem:[%s419 + $0x2a1] sm:$0xff]
    %v5981 = vld [vmem:[%s419 + $0x2a9] sm:$0xff]
    %v5982 = vld [vmem:[%s419 + $0x2b9] sm:$0xff]
    %v5983 = vld [vmem:[%s419 + $0x2c1] sm:$0xff]
    %v5984 = vld [vmem:[%s419 + $0x2d1] sm:$0xff]
    %v5985 = vld [vmem:[%s419 + $0x2d9] sm:$0xff]
    %v5986 = vld [vmem:[%s419 + $0x2e9] sm:$0xff]
    %v5987 = vld [vmem:[%s419 + $0x2f1] sm:$0xff]
    %v5988 = vld [vmem:[%s419 + $0x301] sm:$0xff]
    %v5989 = vld [vmem:[%s419 + $0x309] sm:$0xff]
    %v5990 = vld [vmem:[%s419 + $0x319] sm:$0xff]
    %v5991 = vld [vmem:[%s419 + $0x321] sm:$0xff]
    %v5992 = vld [vmem:[%s4] sm:$0x1]
    %v5994 = vlaneseq
    %v5995 = vshrl.u32 %v5994, 7
    %v5996 = vsub.s32 0, %v5995
    %v5997 = vrot.slane %v5992, %v5996
    %5999 = vmatprep.subr.mxu0 0.0
    %6000 = vmatpush1.msra.mxu0 %v5799
    %6001 = vmatprep.subr.mxu0 0.0
    %6002 = vmatpush1.msra.mxu0 %v5798
    %6003 = vmatprep.subr.mxu0 0.0
    %6004 = vmatpush1.msra.mxu0 %v5797
    %6005 = vmatprep.subr.mxu0 0.0
    %6006 = vmatpush1.msra.mxu0 %v5796
    %6007 = vmatprep.subr.mxu0 0.0
    %6008 = vmatpush1.msra.mxu0 %v5795
    %6009 = vmatprep.subr.mxu0 0.0
    %6010 = vmatpush1.msra.mxu0 %v5794
    %6011 = vmatprep.subr.mxu0 0.0
    %6012 = vmatpush1.msra.mxu0 %v5793
    %6013 = vmatprep.subr.mxu0 0.0
    %6014 = vmatpush1.msra.mxu0 %v5792
    %6015 = vmatprep.subr.mxu0 0.0
    %6016 = vmatpush1.msra.mxu0 %v5791
    %6017 = vmatprep.subr.mxu0 0.0
    %6018 = vmatpush1.msra.mxu0 %v5790
    %6019 = vmatprep.subr.mxu0 0.0
    %6020 = vmatpush1.msra.mxu0 %v5789
    %6021 = vmatprep.subr.mxu0 0.0
    %6022 = vmatpush1.msra.mxu0 %v5788
    %6023 = vmatprep.subr.mxu0 0.0
    %6024 = vmatpush1.msra.mxu0 %v5787
    %6025 = vmatprep.subr.mxu0 0.0
    %6026 = vmatpush1.msra.mxu0 %v5786
    %6027 = vmatprep.subr.mxu0 0.0
    %6028 = vmatpush1.msra.mxu0 %v5785
    %6029 = vmatprep.subr.mxu0 0.0
    %6030 = vmatpush1.msra.mxu0 %v5784
    %6031 = vmatprep.subr.mxu0 0.0
    %6032 = vmatpush2.msra.mxu0 %v5815
    %6033 = vmatprep.subr.mxu0 0.0
    %6034 = vmatpush2.msra.mxu0 %v5814
    %6035 = vmatprep.subr.mxu0 0.0
    %6036 = vmatpush2.msra.mxu0 %v5813
    %6037 = vmatprep.subr.mxu0 0.0
    %6038 = vmatpush2.msra.mxu0 %v5812
    %6039 = vmatprep.subr.mxu0 0.0
    %6040 = vmatpush2.msra.mxu0 %v5811
    %6041 = vmatprep.subr.mxu0 0.0
    %6042 = vmatpush2.msra.mxu0 %v5810
    %6043 = vmatprep.subr.mxu0 0.0
    %6044 = vmatpush2.msra.mxu0 %v5809
    %6045 = vmatprep.subr.mxu0 0.0
    %6046 = vmatpush2.msra.mxu0 %v5808
    %6047 = vmatprep.subr.mxu0 0.0
    %6048 = vmatpush2.msra.mxu0 %v5807
    %6049 = vmatprep.subr.mxu0 0.0
    %6050 = vmatpush2.msra.mxu0 %v5806
    %6051 = vmatprep.subr.mxu0 0.0
    %6052 = vmatpush2.msra.mxu0 %v5805
    %6053 = vmatprep.subr.mxu0 0.0
    %6054 = vmatpush2.msra.mxu0 %v5804
    %6055 = vmatprep.subr.mxu0 0.0
    %6056 = vmatpush2.msra.mxu0 %v5803
    %6057 = vmatprep.subr.mxu0 0.0
    %6058 = vmatpush2.msra.mxu0 %v5802
    %6059 = vmatprep.subr.mxu0 0.0
    %6060 = vmatpush2.msra.mxu0 %v5801
    %6061 = vmatprep.subr.mxu0 0.0
    %6062 = vmatpush2.msra.mxu0 %v5800
    %6063 = vmatprep.mubr.f32.mxu0 %v5209
    %6064 = vmatmul.mubr.f32.gmra.mxu0 %v5208
    %v6065 = vpop.f32.mrf.mxu0
    %v6066 = vadd.f32 %v5997, %v6065
    %v6067 = vpop.f32.mrf.mxu0
    %6068 = vmatprep.mubr.f32.mxu0 %v5218
    %6069 = vmatmul.mubr.f32.gmra.mxu0 %v5217
    %v6070 = vpop.f32.mrf.mxu0
    %v6071 = vadd.f32 %v5997, %v6070
    %v6072 = vpop.f32.mrf.mxu0
    %6073 = vmatprep.mubr.f32.mxu0 %v5227
    %6074 = vmatmul.mubr.f32.gmra.mxu0 %v5226
    %v6075 = vpop.f32.mrf.mxu0
    %v6076 = vadd.f32 %v5997, %v6075
    %v6077 = vpop.f32.mrf.mxu0
    %6078 = vmatprep.mubr.f32.mxu0 %v5236
    %6079 = vmatmul.mubr.f32.gmra.mxu0 %v5235
    %v6080 = vpop.f32.mrf.mxu0
    %v6081 = vadd.f32 %v5997, %v6080
    %v6082 = vpop.f32.mrf.mxu0
    %6083 = vmatprep.mubr.f32.mxu0 %v5245
    %6084 = vmatmul.mubr.f32.gmra.mxu0 %v5244
    %v6085 = vpop.f32.mrf.mxu0
    %v6086 = vadd.f32 %v5997, %v6085
    %v6087 = vpop.f32.mrf.mxu0
    %6088 = vmatprep.mubr.f32.mxu0 %v5254
    %6089 = vmatmul.mubr.f32.gmra.mxu0 %v5253
    %v6090 = vpop.f32.mrf.mxu0
    %v6091 = vadd.f32 %v5997, %v6090
    %v6092 = vpop.f32.mrf.mxu0
    %6093 = vmatprep.mubr.f32.mxu0 %v5263
    %6094 = vmatmul.mubr.f32.gmra.mxu0 %v5262
    %v6095 = vpop.f32.mrf.mxu0
    %v6096 = vadd.f32 %v5997, %v6095
    %v6097 = vpop.f32.mrf.mxu0
    %6098 = vmatprep.mubr.f32.mxu0 %v5272
    %6099 = vmatmul.mubr.f32.gmra.mxu0 %v5271
    %v6100 = vpop.f32.mrf.mxu0
    %v6101 = vadd.f32 %v5997, %v6100
    %v6102 = vpop.f32.mrf.mxu0
    %6103 = vmatprep.mubr.f32.mxu0 %v5281
    %6104 = vmatmul.mubr.f32.gmra.mxu0 %v5280
    %v6105 = vpop.f32.mrf.mxu0
    %v6106 = vadd.f32 %v5997, %v6105
    %v6107 = vpop.f32.mrf.mxu0
    %6108 = vmatprep.mubr.f32.mxu0 %v5290
    %6109 = vmatmul.mubr.f32.gmra.mxu0 %v5289
    %v6110 = vpop.f32.mrf.mxu0
    %v6111 = vadd.f32 %v5997, %v6110
    %v6112 = vpop.f32.mrf.mxu0
    %6113 = vmatprep.mubr.f32.mxu0 %v5299
    %6114 = vmatmul.mubr.f32.gmra.mxu0 %v5298
    %v6115 = vpop.f32.mrf.mxu0
    %v6116 = vadd.f32 %v5997, %v6115
    %v6117 = vpop.f32.mrf.mxu0
    %6118 = vmatprep.mubr.f32.mxu0 %v5308
    %6119 = vmatmul.mubr.f32.gmra.mxu0 %v5307
    %v6120 = vpop.f32.mrf.mxu0
    %v6121 = vadd.f32 %v5997, %v6120
    %v6122 = vpop.f32.mrf.mxu0
    %6123 = vmatprep.mubr.f32.mxu0 %v5317
    %6124 = vmatmul.mubr.f32.gmra.mxu0 %v5316
    %v6125 = vpop.f32.mrf.mxu0
    %v6126 = vadd.f32 %v5997, %v6125
    %v6127 = vpop.f32.mrf.mxu0
    %6128 = vmatprep.mubr.f32.mxu0 %v5326
    %6129 = vmatmul.mubr.f32.gmra.mxu0 %v5325
    %v6130 = vpop.f32.mrf.mxu0
    %v6131 = vadd.f32 %v5997, %v6130
    %v6132 = vpop.f32.mrf.mxu0
    %6133 = vmatprep.mubr.f32.mxu0 %v5335
    %6134 = vmatmul.mubr.f32.gmra.mxu0 %v5334
    %v6135 = vpop.f32.mrf.mxu0
    %v6136 = vadd.f32 %v5997, %v6135
    %v6137 = vpop.f32.mrf.mxu0
    %6138 = vmatprep.mubr.f32.mxu0 %v5344
    %6139 = vmatmul.mubr.f32.gmra.mxu0 %v5343
    %v6140 = vpop.f32.mrf.mxu0
    %v6141 = vadd.f32 %v5997, %v6140
    %v6142 = vpop.f32.mrf.mxu0
    %6143 = vmatprep.mubr.f32.mxu0 %v5353
    %6144 = vmatmul.mubr.f32.gmra.mxu0 %v5352
    %v6145 = vpop.f32.mrf.mxu0
    %v6146 = vadd.f32 %v5997, %v6145
    %v6147 = vpop.f32.mrf.mxu0
    %6148 = vmatprep.mubr.f32.mxu0 %v5362
    %6149 = vmatmul.mubr.f32.gmra.mxu0 %v5361
    %v6150 = vpop.f32.mrf.mxu0
    %v6151 = vadd.f32 %v5997, %v6150
    %v6152 = vpop.f32.mrf.mxu0
    %6153 = vmatprep.mubr.f32.mxu0 %v5371
    %6154 = vmatmul.mubr.f32.gmra.mxu0 %v5370
    %v6155 = vpop.f32.mrf.mxu0
    %v6156 = vadd.f32 %v5997, %v6155
    %v6157 = vpop.f32.mrf.mxu0
    %6158 = vmatprep.mubr.f32.mxu0 %v5380
    %6159 = vmatmul.mubr.f32.gmra.mxu0 %v5379
    %v6160 = vpop.f32.mrf.mxu0
    %v6161 = vadd.f32 %v5997, %v6160
    %v6162 = vpop.f32.mrf.mxu0
    %6163 = vmatprep.mubr.f32.mxu0 %v5389
    %6164 = vmatmul.mubr.f32.gmra.mxu0 %v5388
    %v6165 = vpop.f32.mrf.mxu0
    %v6166 = vadd.f32 %v5997, %v6165
    %v6167 = vpop.f32.mrf.mxu0
    %6168 = vmatprep.mubr.f32.mxu0 %v5398
    %6169 = vmatmul.mubr.f32.gmra.mxu0 %v5397
    %v6170 = vpop.f32.mrf.mxu0
    %v6171 = vadd.f32 %v5997, %v6170
    %v6172 = vpop.f32.mrf.mxu0
    %6173 = vmatprep.mubr.f32.mxu0 %v5407
    %6174 = vmatmul.mubr.f32.gmra.mxu0 %v5406
    %v6175 = vpop.f32.mrf.mxu0
    %v6176 = vadd.f32 %v5997, %v6175
    %v6177 = vpop.f32.mrf.mxu0
    %6178 = vmatprep.mubr.f32.mxu0 %v5416
    %6179 = vmatmul.mubr.f32.gmra.mxu0 %v5415
    %v6180 = vpop.f32.mrf.mxu0
    %v6181 = vadd.f32 %v5997, %v6180
    %v6182 = vpop.f32.mrf.mxu0
    %6183 = vmatprep.mubr.f32.mxu0 %v5425
    %6184 = vmatmul.mubr.f32.gmra.mxu0 %v5424
    %v6185 = vpop.f32.mrf.mxu0
    %v6186 = vadd.f32 %v5997, %v6185
    %v6187 = vpop.f32.mrf.mxu0
    %6188 = vmatprep.mubr.f32.mxu0 %v5434
    %6189 = vmatmul.mubr.f32.gmra.mxu0 %v5433
    %v6190 = vpop.f32.mrf.mxu0
    %v6191 = vadd.f32 %v5997, %v6190
    %v6192 = vpop.f32.mrf.mxu0
    %6193 = vmatprep.mubr.f32.mxu0 %v5443
    %6194 = vmatmul.mubr.f32.gmra.mxu0 %v5442
    %v6195 = vpop.f32.mrf.mxu0
    %v6196 = vadd.f32 %v5997, %v6195
    %v6197 = vpop.f32.mrf.mxu0
    %6198 = vmatprep.mubr.f32.mxu0 %v5452
    %6199 = vmatmul.mubr.f32.gmra.mxu0 %v5451
    %v6200 = vpop.f32.mrf.mxu0
    %v6201 = vadd.f32 %v5997, %v6200
    %v6202 = vpop.f32.mrf.mxu0
    %6203 = vmatprep.mubr.f32.mxu0 %v5461
    %6204 = vmatmul.mubr.f32.gmra.mxu0 %v5460
    %v6205 = vpop.f32.mrf.mxu0
    %v6206 = vadd.f32 %v5997, %v6205
    %v6207 = vpop.f32.mrf.mxu0
    %6208 = vmatprep.mubr.f32.mxu0 %v5470
    %6209 = vmatmul.mubr.f32.gmra.mxu0 %v5469
    %v6210 = vpop.f32.mrf.mxu0
    %v6211 = vadd.f32 %v5997, %v6210
    %v6212 = vpop.f32.mrf.mxu0
    %6213 = vmatprep.mubr.f32.mxu0 %v5479
    %6214 = vmatmul.mubr.f32.gmra.mxu0 %v5478
    %v6215 = vpop.f32.mrf.mxu0
    %v6216 = vadd.f32 %v5997, %v6215
    %v6217 = vpop.f32.mrf.mxu0
    %6218 = vmatprep.mubr.f32.mxu0 %v5488
    %6219 = vmatmul.mubr.f32.gmra.mxu0 %v5487
    %v6220 = vpop.f32.mrf.mxu0
    %v6221 = vadd.f32 %v5997, %v6220
    %v6222 = vpop.f32.mrf.mxu0
    %6223 = vmatprep.mubr.f32.mxu0 %v5497
    %6224 = vmatmul.mubr.f32.gmra.mxu0 %v5496
    %v6225 = vpop.f32.mrf.mxu0
    %v6226 = vadd.f32 %v5997, %v6225
    %v6227 = vpop.f32.mrf.mxu0
    %6228 = vmatprep.mubr.f32.mxu0 %v5506
    %6229 = vmatmul.mubr.f32.gmra.mxu0 %v5505
    %v6230 = vpop.f32.mrf.mxu0
    %v6231 = vadd.f32 %v5997, %v6230
    %v6232 = vpop.f32.mrf.mxu0
    %6233 = vmatprep.mubr.f32.mxu0 %v5515
    %6234 = vmatmul.mubr.f32.gmra.mxu0 %v5514
    %v6235 = vpop.f32.mrf.mxu0
    %v6236 = vadd.f32 %v5997, %v6235
    %v6237 = vpop.f32.mrf.mxu0
    %6238 = vmatprep.mubr.f32.mxu0 %v5524
    %6239 = vmatmul.mubr.f32.gmra.mxu0 %v5523
    %v6240 = vpop.f32.mrf.mxu0
    %v6241 = vadd.f32 %v5997, %v6240
    %v6242 = vpop.f32.mrf.mxu0
    %6243 = vmatprep.mubr.f32.mxu0 %v5533
    %6244 = vmatmul.mubr.f32.gmra.mxu0 %v5532
    %v6245 = vpop.f32.mrf.mxu0
    %v6246 = vadd.f32 %v5997, %v6245
    %v6247 = vpop.f32.mrf.mxu0
    %6248 = vmatprep.mubr.f32.mxu0 %v5542
    %6249 = vmatmul.mubr.f32.gmra.mxu0 %v5541
    %v6250 = vpop.f32.mrf.mxu0
    %v6251 = vadd.f32 %v5997, %v6250
    %v6252 = vpop.f32.mrf.mxu0
    %6253 = vmatprep.mubr.f32.mxu0 %v5551
    %6254 = vmatmul.mubr.f32.gmra.mxu0 %v5550
    %v6255 = vpop.f32.mrf.mxu0
    %v6256 = vadd.f32 %v5997, %v6255
    %v6257 = vpop.f32.mrf.mxu0
    %6258 = vmatprep.mubr.f32.mxu0 %v5560
    %6259 = vmatmul.mubr.f32.gmra.mxu0 %v5559
    %v6260 = vpop.f32.mrf.mxu0
    %v6261 = vadd.f32 %v5997, %v6260
    %v6262 = vpop.f32.mrf.mxu0
    %6263 = vmatprep.mubr.f32.mxu0 %v5569
    %6264 = vmatmul.mubr.f32.gmra.mxu0 %v5568
    %v6265 = vpop.f32.mrf.mxu0
    %v6266 = vadd.f32 %v5997, %v6265
    %v6267 = vpop.f32.mrf.mxu0
    %6268 = vmatprep.mubr.f32.mxu0 %v5578
    %6269 = vmatmul.mubr.f32.gmra.mxu0 %v5577
    %v6270 = vpop.f32.mrf.mxu0
    %v6271 = vadd.f32 %v5997, %v6270
    %v6272 = vpop.f32.mrf.mxu0
    %6273 = vmatprep.mubr.f32.mxu0 %v5587
    %6274 = vmatmul.mubr.f32.gmra.mxu0 %v5586
    %v6275 = vpop.f32.mrf.mxu0
    %v6276 = vadd.f32 %v5997, %v6275
    %v6277 = vpop.f32.mrf.mxu0
    %6278 = vmatprep.mubr.f32.mxu0 %v5596
    %6279 = vmatmul.mubr.f32.gmra.mxu0 %v5595
    %v6280 = vpop.f32.mrf.mxu0
    %v6281 = vadd.f32 %v5997, %v6280
    %v6282 = vpop.f32.mrf.mxu0
    %6283 = vmatprep.mubr.f32.mxu0 %v5605
    %6284 = vmatmul.mubr.f32.gmra.mxu0 %v5604
    %v6285 = vpop.f32.mrf.mxu0
    %v6286 = vadd.f32 %v5997, %v6285
    %v6287 = vpop.f32.mrf.mxu0
    %6288 = vmatprep.mubr.f32.mxu0 %v5614
    %6289 = vmatmul.mubr.f32.gmra.mxu0 %v5613
    %v6290 = vpop.f32.mrf.mxu0
    %v6291 = vadd.f32 %v5997, %v6290
    %v6292 = vpop.f32.mrf.mxu0
    %6293 = vmatprep.mubr.f32.mxu0 %v5623
    %6294 = vmatmul.mubr.f32.gmra.mxu0 %v5622
    %v6295 = vpop.f32.mrf.mxu0
    %v6296 = vadd.f32 %v5997, %v6295
    %v6297 = vpop.f32.mrf.mxu0
    %6298 = vmatprep.mubr.f32.mxu0 %v5632
    %6299 = vmatmul.mubr.f32.gmra.mxu0 %v5631
    %v6300 = vpop.f32.mrf.mxu0
    %v6301 = vadd.f32 %v5997, %v6300
    %v6302 = vpop.f32.mrf.mxu0
    %6303 = vmatprep.mubr.f32.mxu0 %v5641
    %6304 = vmatmul.mubr.f32.gmra.mxu0 %v5640
    %v6305 = vpop.f32.mrf.mxu0
    %v6306 = vadd.f32 %v5997, %v6305
    %v6307 = vpop.f32.mrf.mxu0
    %6308 = vmatprep.mubr.f32.mxu0 %v5650
    %6309 = vmatmul.mubr.f32.gmra.mxu0 %v5649
    %v6310 = vpop.f32.mrf.mxu0
    %v6311 = vadd.f32 %v5997, %v6310
    %v6312 = vpop.f32.mrf.mxu0
    %6313 = vmatprep.mubr.f32.mxu0 %v5659
    %6314 = vmatmul.mubr.f32.gmra.mxu0 %v5658
    %v6315 = vpop.f32.mrf.mxu0
    %v6316 = vadd.f32 %v5997, %v6315
    %v6317 = vpop.f32.mrf.mxu0
    %6318 = vmatprep.mubr.f32.mxu0 %v5668
    %6319 = vmatmul.mubr.f32.gmra.mxu0 %v5667
    %v6320 = vpop.f32.mrf.mxu0
    %v6321 = vadd.f32 %v5997, %v6320
    %v6322 = vpop.f32.mrf.mxu0
    %6323 = vmatprep.mubr.f32.mxu0 %v5677
    %6324 = vmatmul.mubr.f32.gmra.mxu0 %v5676
    %v6325 = vpop.f32.mrf.mxu0
    %v6326 = vadd.f32 %v5997, %v6325
    %v6327 = vpop.f32.mrf.mxu0
    %6328 = vmatprep.mubr.f32.mxu0 %v5686
    %6329 = vmatmul.mubr.f32.gmra.mxu0 %v5685
    %v6330 = vpop.f32.mrf.mxu0
    %v6331 = vadd.f32 %v5997, %v6330
    %v6332 = vpop.f32.mrf.mxu0
    %6333 = vmatprep.mubr.f32.mxu0 %v5695
    %6334 = vmatmul.mubr.f32.gmra.mxu0 %v5694
    %v6335 = vpop.f32.mrf.mxu0
    %v6336 = vadd.f32 %v5997, %v6335
    %v6337 = vpop.f32.mrf.mxu0
    %6338 = vmatprep.mubr.f32.mxu0 %v5704
    %6339 = vmatmul.mubr.f32.gmra.mxu0 %v5703
    %v6340 = vpop.f32.mrf.mxu0
    %v6341 = vadd.f32 %v5997, %v6340
    %v6342 = vpop.f32.mrf.mxu0
    %6343 = vmatprep.mubr.f32.mxu0 %v5713
    %6344 = vmatmul.mubr.f32.gmra.mxu0 %v5712
    %v6345 = vpop.f32.mrf.mxu0
    %v6346 = vadd.f32 %v5997, %v6345
    %v6347 = vpop.f32.mrf.mxu0
    %6348 = vmatprep.mubr.f32.mxu0 %v5722
    %6349 = vmatmul.mubr.f32.gmra.mxu0 %v5721
    %v6350 = vpop.f32.mrf.mxu0
    %v6351 = vadd.f32 %v5997, %v6350
    %v6352 = vpop.f32.mrf.mxu0
    %6353 = vmatprep.mubr.f32.mxu0 %v5731
    %6354 = vmatmul.mubr.f32.gmra.mxu0 %v5730
    %v6355 = vpop.f32.mrf.mxu0
    %v6356 = vadd.f32 %v5997, %v6355
    %v6357 = vpop.f32.mrf.mxu0
    %6358 = vmatprep.mubr.f32.mxu0 %v5740
    %6359 = vmatmul.mubr.f32.gmra.mxu0 %v5739
    %v6360 = vpop.f32.mrf.mxu0
    %v6361 = vadd.f32 %v5997, %v6360
    %v6362 = vpop.f32.mrf.mxu0
    %6363 = vmatprep.mubr.f32.mxu0 %v5749
    %6364 = vmatmul.mubr.f32.gmra.mxu0 %v5748
    %v6365 = vpop.f32.mrf.mxu0
    %v6366 = vadd.f32 %v5997, %v6365
    %v6367 = vpop.f32.mrf.mxu0
    %6368 = vmatprep.mubr.f32.mxu0 %v5758
    %6369 = vmatmul.mubr.f32.gmra.mxu0 %v5757
    %v6370 = vpop.f32.mrf.mxu0
    %v6371 = vadd.f32 %v5997, %v6370
    %v6372 = vpop.f32.mrf.mxu0
    %6373 = vmatprep.mubr.f32.mxu0 %v5767
    %6374 = vmatmul.mubr.f32.gmra.mxu0 %v5766
    %v6375 = vpop.f32.mrf.mxu0
    %v6376 = vadd.f32 %v5997, %v6375
    %v6377 = vpop.f32.mrf.mxu0
    %6378 = vmatprep.mubr.f32.mxu0 %v5776
    %6379 = vmatmul.mubr.f32.gmra.mxu0 %v5775
    %v6380 = vpop.f32.mrf.mxu0
    %v6381 = vadd.f32 %v5997, %v6380
    %v6382 = vpop.f32.mrf.mxu0
    %6383 = vdwg.mxu0
    %6384 = vmatprep.subr.mxu0 0.0
    %6385 = vmatpush1.msra.mxu0 %v5831
    %6386 = vmatprep.subr.mxu0 0.0
    %6387 = vmatpush1.msra.mxu0 %v5830
    %6388 = vmatprep.subr.mxu0 0.0
    %6389 = vmatpush1.msra.mxu0 %v5829
    %6390 = vmatprep.subr.mxu0 0.0
    %6391 = vmatpush1.msra.mxu0 %v5828
    %6392 = vmatprep.subr.mxu0 0.0
    %6393 = vmatpush1.msra.mxu0 %v5827
    %6394 = vmatprep.subr.mxu0 0.0
    %6395 = vmatpush1.msra.mxu0 %v5826
    %6396 = vmatprep.subr.mxu0 0.0
    %6397 = vmatpush1.msra.mxu0 %v5825
    %6398 = vmatprep.subr.mxu0 0.0
    %6399 = vmatpush1.msra.mxu0 %v5824
    %6400 = vmatprep.subr.mxu0 0.0
    %6401 = vmatpush1.msra.mxu0 %v5823
    %6402 = vmatprep.subr.mxu0 0.0
    %6403 = vmatpush1.msra.mxu0 %v5822
    %6404 = vmatprep.subr.mxu0 0.0
    %6405 = vmatpush1.msra.mxu0 %v5821
    %6406 = vmatprep.subr.mxu0 0.0
    %6407 = vmatpush1.msra.mxu0 %v5820
    %6408 = vmatprep.subr.mxu0 0.0
    %6409 = vmatpush1.msra.mxu0 %v5819
    %6410 = vmatprep.subr.mxu0 0.0
    %6411 = vmatpush1.msra.mxu0 %v5818
    %6412 = vmatprep.subr.mxu0 0.0
    %6413 = vmatpush1.msra.mxu0 %v5817
    %6414 = vmatprep.subr.mxu0 0.0
    %6415 = vmatpush1.msra.mxu0 %v5816
    %6416 = vmatprep.subr.mxu0 0.0
    %6417 = vmatpush2.msra.mxu0 %v5847
    %6418 = vmatprep.subr.mxu0 0.0
    %6419 = vmatpush2.msra.mxu0 %v5846
    %6420 = vmatprep.subr.mxu0 0.0
    %6421 = vmatpush2.msra.mxu0 %v5845
    %6422 = vmatprep.subr.mxu0 0.0
    %6423 = vmatpush2.msra.mxu0 %v5844
    %6424 = vmatprep.subr.mxu0 0.0
    %6425 = vmatpush2.msra.mxu0 %v5843
    %6426 = vmatprep.subr.mxu0 0.0
    %6427 = vmatpush2.msra.mxu0 %v5842
    %6428 = vmatprep.subr.mxu0 0.0
    %6429 = vmatpush2.msra.mxu0 %v5841
    %6430 = vmatprep.subr.mxu0 0.0
    %6431 = vmatpush2.msra.mxu0 %v5840
    %6432 = vmatprep.subr.mxu0 0.0
    %6433 = vmatpush2.msra.mxu0 %v5839
    %6434 = vmatprep.subr.mxu0 0.0
    %6435 = vmatpush2.msra.mxu0 %v5838
    %6436 = vmatprep.subr.mxu0 0.0
    %6437 = vmatpush2.msra.mxu0 %v5837
    %6438 = vmatprep.subr.mxu0 0.0
    %6439 = vmatpush2.msra.mxu0 %v5836
    %6440 = vmatprep.subr.mxu0 0.0
    %6441 = vmatpush2.msra.mxu0 %v5835
    %6442 = vmatprep.subr.mxu0 0.0
    %6443 = vmatpush2.msra.mxu0 %v5834
    %6444 = vmatprep.subr.mxu0 0.0
    %6445 = vmatpush2.msra.mxu0 %v5833
    %6446 = vmatprep.subr.mxu0 0.0
    %6447 = vmatpush2.msra.mxu0 %v5832
    %6448 = vmatprep.mubr.f32.mxu0 %v5211
    %6449 = vmatmul.mubr.f32.gmra.mxu0 %v5210
    %v6450 = vpop.f32.mrf.mxu0
    %v6451 = vadd.f32 %v6066, %v6450
    %v6452 = vpop.f32.mrf.mxu0
    %6453 = vmatprep.mubr.f32.mxu0 %v5220
    %6454 = vmatmul.mubr.f32.gmra.mxu0 %v5219
    %v6455 = vpop.f32.mrf.mxu0
    %v6456 = vadd.f32 %v6071, %v6455
    %v6457 = vpop.f32.mrf.mxu0
    %6458 = vmatprep.mubr.f32.mxu0 %v5229
    %6459 = vmatmul.mubr.f32.gmra.mxu0 %v5228
    %v6460 = vpop.f32.mrf.mxu0
    %v6461 = vadd.f32 %v6076, %v6460
    %v6462 = vpop.f32.mrf.mxu0
    %6463 = vmatprep.mubr.f32.mxu0 %v5238
    %6464 = vmatmul.mubr.f32.gmra.mxu0 %v5237
    %v6465 = vpop.f32.mrf.mxu0
    %v6466 = vadd.f32 %v6081, %v6465
    %v6467 = vpop.f32.mrf.mxu0
    %6468 = vmatprep.mubr.f32.mxu0 %v5247
    %6469 = vmatmul.mubr.f32.gmra.mxu0 %v5246
    %v6470 = vpop.f32.mrf.mxu0
    %v6471 = vadd.f32 %v6086, %v6470
    %v6472 = vpop.f32.mrf.mxu0
    %6473 = vmatprep.mubr.f32.mxu0 %v5256
    %6474 = vmatmul.mubr.f32.gmra.mxu0 %v5255
    %v6475 = vpop.f32.mrf.mxu0
    %v6476 = vadd.f32 %v6091, %v6475
    %v6477 = vpop.f32.mrf.mxu0
    %6478 = vmatprep.mubr.f32.mxu0 %v5265
    %6479 = vmatmul.mubr.f32.gmra.mxu0 %v5264
    %v6480 = vpop.f32.mrf.mxu0
    %v6481 = vadd.f32 %v6096, %v6480
    %v6482 = vpop.f32.mrf.mxu0
    %6483 = vmatprep.mubr.f32.mxu0 %v5274
    %6484 = vmatmul.mubr.f32.gmra.mxu0 %v5273
    %v6485 = vpop.f32.mrf.mxu0
    %v6486 = vadd.f32 %v6101, %v6485
    %v6487 = vpop.f32.mrf.mxu0
    %6488 = vmatprep.mubr.f32.mxu0 %v5283
    %6489 = vmatmul.mubr.f32.gmra.mxu0 %v5282
    %v6490 = vpop.f32.mrf.mxu0
    %v6491 = vadd.f32 %v6106, %v6490
    %v6492 = vpop.f32.mrf.mxu0
    %6493 = vmatprep.mubr.f32.mxu0 %v5292
    %6494 = vmatmul.mubr.f32.gmra.mxu0 %v5291
    %v6495 = vpop.f32.mrf.mxu0
    %v6496 = vadd.f32 %v6111, %v6495
    %v6497 = vpop.f32.mrf.mxu0
    %6498 = vmatprep.mubr.f32.mxu0 %v5301
    %6499 = vmatmul.mubr.f32.gmra.mxu0 %v5300
    %v6500 = vpop.f32.mrf.mxu0
    %v6501 = vadd.f32 %v6116, %v6500
    %v6502 = vpop.f32.mrf.mxu0
    %6503 = vmatprep.mubr.f32.mxu0 %v5310
    %6504 = vmatmul.mubr.f32.gmra.mxu0 %v5309
    %v6505 = vpop.f32.mrf.mxu0
    %v6506 = vadd.f32 %v6121, %v6505
    %v6507 = vpop.f32.mrf.mxu0
    %6508 = vmatprep.mubr.f32.mxu0 %v5319
    %6509 = vmatmul.mubr.f32.gmra.mxu0 %v5318
    %v6510 = vpop.f32.mrf.mxu0
    %v6511 = vadd.f32 %v6126, %v6510
    %v6512 = vpop.f32.mrf.mxu0
    %6513 = vmatprep.mubr.f32.mxu0 %v5328
    %6514 = vmatmul.mubr.f32.gmra.mxu0 %v5327
    %v6515 = vpop.f32.mrf.mxu0
    %v6516 = vadd.f32 %v6131, %v6515
    %v6517 = vpop.f32.mrf.mxu0
    %6518 = vmatprep.mubr.f32.mxu0 %v5337
    %6519 = vmatmul.mubr.f32.gmra.mxu0 %v5336
    %v6520 = vpop.f32.mrf.mxu0
    %v6521 = vadd.f32 %v6136, %v6520
    %v6522 = vpop.f32.mrf.mxu0
    %6523 = vmatprep.mubr.f32.mxu0 %v5346
    %6524 = vmatmul.mubr.f32.gmra.mxu0 %v5345
    %v6525 = vpop.f32.mrf.mxu0
    %v6526 = vadd.f32 %v6141, %v6525
    %v6527 = vpop.f32.mrf.mxu0
    %6528 = vmatprep.mubr.f32.mxu0 %v5355
    %6529 = vmatmul.mubr.f32.gmra.mxu0 %v5354
    %v6530 = vpop.f32.mrf.mxu0
    %v6531 = vadd.f32 %v6146, %v6530
    %v6532 = vpop.f32.mrf.mxu0
    %6533 = vmatprep.mubr.f32.mxu0 %v5364
    %6534 = vmatmul.mubr.f32.gmra.mxu0 %v5363
    %v6535 = vpop.f32.mrf.mxu0
    %v6536 = vadd.f32 %v6151, %v6535
    %v6537 = vpop.f32.mrf.mxu0
    %6538 = vmatprep.mubr.f32.mxu0 %v5373
    %6539 = vmatmul.mubr.f32.gmra.mxu0 %v5372
    %v6540 = vpop.f32.mrf.mxu0
    %v6541 = vadd.f32 %v6156, %v6540
    %v6542 = vpop.f32.mrf.mxu0
    %6543 = vmatprep.mubr.f32.mxu0 %v5382
    %6544 = vmatmul.mubr.f32.gmra.mxu0 %v5381
    %v6545 = vpop.f32.mrf.mxu0
    %v6546 = vadd.f32 %v6161, %v6545
    %v6547 = vpop.f32.mrf.mxu0
    %6548 = vmatprep.mubr.f32.mxu0 %v5391
    %6549 = vmatmul.mubr.f32.gmra.mxu0 %v5390
    %v6550 = vpop.f32.mrf.mxu0
    %v6551 = vadd.f32 %v6166, %v6550
    %v6552 = vpop.f32.mrf.mxu0
    %6553 = vmatprep.mubr.f32.mxu0 %v5400
    %6554 = vmatmul.mubr.f32.gmra.mxu0 %v5399
    %v6555 = vpop.f32.mrf.mxu0
    %v6556 = vadd.f32 %v6171, %v6555
    %v6557 = vpop.f32.mrf.mxu0
    %6558 = vmatprep.mubr.f32.mxu0 %v5409
    %6559 = vmatmul.mubr.f32.gmra.mxu0 %v5408
    %v6560 = vpop.f32.mrf.mxu0
    %v6561 = vadd.f32 %v6176, %v6560
    %v6562 = vpop.f32.mrf.mxu0
    %6563 = vmatprep.mubr.f32.mxu0 %v5418
    %6564 = vmatmul.mubr.f32.gmra.mxu0 %v5417
    %v6565 = vpop.f32.mrf.mxu0
    %v6566 = vadd.f32 %v6181, %v6565
    %v6567 = vpop.f32.mrf.mxu0
    %6568 = vmatprep.mubr.f32.mxu0 %v5427
    %6569 = vmatmul.mubr.f32.gmra.mxu0 %v5426
    %v6570 = vpop.f32.mrf.mxu0
    %v6571 = vadd.f32 %v6186, %v6570
    %v6572 = vpop.f32.mrf.mxu0
    %6573 = vmatprep.mubr.f32.mxu0 %v5436
    %6574 = vmatmul.mubr.f32.gmra.mxu0 %v5435
    %v6575 = vpop.f32.mrf.mxu0
    %v6576 = vadd.f32 %v6191, %v6575
    %v6577 = vpop.f32.mrf.mxu0
    %6578 = vmatprep.mubr.f32.mxu0 %v5445
    %6579 = vmatmul.mubr.f32.gmra.mxu0 %v5444
    %v6580 = vpop.f32.mrf.mxu0
    %v6581 = vadd.f32 %v6196, %v6580
    %v6582 = vpop.f32.mrf.mxu0
    %6583 = vmatprep.mubr.f32.mxu0 %v5454
    %6584 = vmatmul.mubr.f32.gmra.mxu0 %v5453
    %v6585 = vpop.f32.mrf.mxu0
    %v6586 = vadd.f32 %v6201, %v6585
    %v6587 = vpop.f32.mrf.mxu0
    %6588 = vmatprep.mubr.f32.mxu0 %v5463
    %6589 = vmatmul.mubr.f32.gmra.mxu0 %v5462
    %v6590 = vpop.f32.mrf.mxu0
    %v6591 = vadd.f32 %v6206, %v6590
    %v6592 = vpop.f32.mrf.mxu0
    %6593 = vmatprep.mubr.f32.mxu0 %v5472
    %6594 = vmatmul.mubr.f32.gmra.mxu0 %v5471
    %v6595 = vpop.f32.mrf.mxu0
    %v6596 = vadd.f32 %v6211, %v6595
    %v6597 = vpop.f32.mrf.mxu0
    %6598 = vmatprep.mubr.f32.mxu0 %v5481
    %6599 = vmatmul.mubr.f32.gmra.mxu0 %v5480
    %v6600 = vpop.f32.mrf.mxu0
    %v6601 = vadd.f32 %v6216, %v6600
    %v6602 = vpop.f32.mrf.mxu0
    %6603 = vmatprep.mubr.f32.mxu0 %v5490
    %6604 = vmatmul.mubr.f32.gmra.mxu0 %v5489
    %v6605 = vpop.f32.mrf.mxu0
    %v6606 = vadd.f32 %v6221, %v6605
    %v6607 = vpop.f32.mrf.mxu0
    %6608 = vmatprep.mubr.f32.mxu0 %v5499
    %6609 = vmatmul.mubr.f32.gmra.mxu0 %v5498
    %v6610 = vpop.f32.mrf.mxu0
    %v6611 = vadd.f32 %v6226, %v6610
    %v6612 = vpop.f32.mrf.mxu0
    %6613 = vmatprep.mubr.f32.mxu0 %v5508
    %6614 = vmatmul.mubr.f32.gmra.mxu0 %v5507
    %v6615 = vpop.f32.mrf.mxu0
    %v6616 = vadd.f32 %v6231, %v6615
    %v6617 = vpop.f32.mrf.mxu0
    %6618 = vmatprep.mubr.f32.mxu0 %v5517
    %6619 = vmatmul.mubr.f32.gmra.mxu0 %v5516
    %v6620 = vpop.f32.mrf.mxu0
    %v6621 = vadd.f32 %v6236, %v6620
    %v6622 = vpop.f32.mrf.mxu0
    %6623 = vmatprep.mubr.f32.mxu0 %v5526
    %6624 = vmatmul.mubr.f32.gmra.mxu0 %v5525
    %v6625 = vpop.f32.mrf.mxu0
    %v6626 = vadd.f32 %v6241, %v6625
    %v6627 = vpop.f32.mrf.mxu0
    %6628 = vmatprep.mubr.f32.mxu0 %v5535
    %6629 = vmatmul.mubr.f32.gmra.mxu0 %v5534
    %v6630 = vpop.f32.mrf.mxu0
    %v6631 = vadd.f32 %v6246, %v6630
    %v6632 = vpop.f32.mrf.mxu0
    %6633 = vmatprep.mubr.f32.mxu0 %v5544
    %6634 = vmatmul.mubr.f32.gmra.mxu0 %v5543
    %v6635 = vpop.f32.mrf.mxu0
    %v6636 = vadd.f32 %v6251, %v6635
    %v6637 = vpop.f32.mrf.mxu0
    %6638 = vmatprep.mubr.f32.mxu0 %v5553
    %6639 = vmatmul.mubr.f32.gmra.mxu0 %v5552
    %v6640 = vpop.f32.mrf.mxu0
    %v6641 = vadd.f32 %v6256, %v6640
    %v6642 = vpop.f32.mrf.mxu0
    %6643 = vmatprep.mubr.f32.mxu0 %v5562
    %6644 = vmatmul.mubr.f32.gmra.mxu0 %v5561
    %v6645 = vpop.f32.mrf.mxu0
    %v6646 = vadd.f32 %v6261, %v6645
    %v6647 = vpop.f32.mrf.mxu0
    %6648 = vmatprep.mubr.f32.mxu0 %v5571
    %6649 = vmatmul.mubr.f32.gmra.mxu0 %v5570
    %v6650 = vpop.f32.mrf.mxu0
    %v6651 = vadd.f32 %v6266, %v6650
    %v6652 = vpop.f32.mrf.mxu0
    %6653 = vmatprep.mubr.f32.mxu0 %v5580
    %6654 = vmatmul.mubr.f32.gmra.mxu0 %v5579
    %v6655 = vpop.f32.mrf.mxu0
    %v6656 = vadd.f32 %v6271, %v6655
    %v6657 = vpop.f32.mrf.mxu0
    %6658 = vmatprep.mubr.f32.mxu0 %v5589
    %6659 = vmatmul.mubr.f32.gmra.mxu0 %v5588
    %v6660 = vpop.f32.mrf.mxu0
    %v6661 = vadd.f32 %v6276, %v6660
    %v6662 = vpop.f32.mrf.mxu0
    %6663 = vmatprep.mubr.f32.mxu0 %v5598
    %6664 = vmatmul.mubr.f32.gmra.mxu0 %v5597
    %v6665 = vpop.f32.mrf.mxu0
    %v6666 = vadd.f32 %v6281, %v6665
    %v6667 = vpop.f32.mrf.mxu0
    %6668 = vmatprep.mubr.f32.mxu0 %v5607
    %6669 = vmatmul.mubr.f32.gmra.mxu0 %v5606
    %v6670 = vpop.f32.mrf.mxu0
    %v6671 = vadd.f32 %v6286, %v6670
    %v6672 = vpop.f32.mrf.mxu0
    %6673 = vmatprep.mubr.f32.mxu0 %v5616
    %6674 = vmatmul.mubr.f32.gmra.mxu0 %v5615
    %v6675 = vpop.f32.mrf.mxu0
    %v6676 = vadd.f32 %v6291, %v6675
    %v6677 = vpop.f32.mrf.mxu0
    %6678 = vmatprep.mubr.f32.mxu0 %v5625
    %6679 = vmatmul.mubr.f32.gmra.mxu0 %v5624
    %v6680 = vpop.f32.mrf.mxu0
    %v6681 = vadd.f32 %v6296, %v6680
    %v6682 = vpop.f32.mrf.mxu0
    %6683 = vmatprep.mubr.f32.mxu0 %v5634
    %6684 = vmatmul.mubr.f32.gmra.mxu0 %v5633
    %v6685 = vpop.f32.mrf.mxu0
    %v6686 = vadd.f32 %v6301, %v6685
    %v6687 = vpop.f32.mrf.mxu0
    %6688 = vmatprep.mubr.f32.mxu0 %v5643
    %6689 = vmatmul.mubr.f32.gmra.mxu0 %v5642
    %v6690 = vpop.f32.mrf.mxu0
    %v6691 = vadd.f32 %v6306, %v6690
    %v6692 = vpop.f32.mrf.mxu0
    %6693 = vmatprep.mubr.f32.mxu0 %v5652
    %6694 = vmatmul.mubr.f32.gmra.mxu0 %v5651
    %v6695 = vpop.f32.mrf.mxu0
    %v6696 = vadd.f32 %v6311, %v6695
    %v6697 = vpop.f32.mrf.mxu0
    %6698 = vmatprep.mubr.f32.mxu0 %v5661
    %6699 = vmatmul.mubr.f32.gmra.mxu0 %v5660
    %v6700 = vpop.f32.mrf.mxu0
    %v6701 = vadd.f32 %v6316, %v6700
    %v6702 = vpop.f32.mrf.mxu0
    %6703 = vmatprep.mubr.f32.mxu0 %v5670
    %6704 = vmatmul.mubr.f32.gmra.mxu0 %v5669
    %v6705 = vpop.f32.mrf.mxu0
    %v6706 = vadd.f32 %v6321, %v6705
    %v6707 = vpop.f32.mrf.mxu0
    %6708 = vmatprep.mubr.f32.mxu0 %v5679
    %6709 = vmatmul.mubr.f32.gmra.mxu0 %v5678
    %v6710 = vpop.f32.mrf.mxu0
    %v6711 = vadd.f32 %v6326, %v6710
    %v6712 = vpop.f32.mrf.mxu0
    %6713 = vmatprep.mubr.f32.mxu0 %v5688
    %6714 = vmatmul.mubr.f32.gmra.mxu0 %v5687
    %v6715 = vpop.f32.mrf.mxu0
    %v6716 = vadd.f32 %v6331, %v6715
    %v6717 = vpop.f32.mrf.mxu0
    %6718 = vmatprep.mubr.f32.mxu0 %v5697
    %6719 = vmatmul.mubr.f32.gmra.mxu0 %v5696
    %v6720 = vpop.f32.mrf.mxu0
    %v6721 = vadd.f32 %v6336, %v6720
    %v6722 = vpop.f32.mrf.mxu0
    %6723 = vmatprep.mubr.f32.mxu0 %v5706
    %6724 = vmatmul.mubr.f32.gmra.mxu0 %v5705
    %v6725 = vpop.f32.mrf.mxu0
    %v6726 = vadd.f32 %v6341, %v6725
    %v6727 = vpop.f32.mrf.mxu0
    %6728 = vmatprep.mubr.f32.mxu0 %v5715
    %6729 = vmatmul.mubr.f32.gmra.mxu0 %v5714
    %v6730 = vpop.f32.mrf.mxu0
    %v6731 = vadd.f32 %v6346, %v6730
    %v6732 = vpop.f32.mrf.mxu0
    %6733 = vmatprep.mubr.f32.mxu0 %v5724
    %6734 = vmatmul.mubr.f32.gmra.mxu0 %v5723
    %v6735 = vpop.f32.mrf.mxu0
    %v6736 = vadd.f32 %v6351, %v6735
    %v6737 = vpop.f32.mrf.mxu0
    %6738 = vmatprep.mubr.f32.mxu0 %v5733
    %6739 = vmatmul.mubr.f32.gmra.mxu0 %v5732
    %v6740 = vpop.f32.mrf.mxu0
    %v6741 = vadd.f32 %v6356, %v6740
    %v6742 = vpop.f32.mrf.mxu0
    %6743 = vmatprep.mubr.f32.mxu0 %v5742
    %6744 = vmatmul.mubr.f32.gmra.mxu0 %v5741
    %v6745 = vpop.f32.mrf.mxu0
    %v6746 = vadd.f32 %v6361, %v6745
    %v6747 = vpop.f32.mrf.mxu0
    %6748 = vmatprep.mubr.f32.mxu0 %v5751
    %6749 = vmatmul.mubr.f32.gmra.mxu0 %v5750
    %v6750 = vpop.f32.mrf.mxu0
    %v6751 = vadd.f32 %v6366, %v6750
    %v6752 = vpop.f32.mrf.mxu0
    %6753 = vmatprep.mubr.f32.mxu0 %v5760
    %6754 = vmatmul.mubr.f32.gmra.mxu0 %v5759
    %v6755 = vpop.f32.mrf.mxu0
    %v6756 = vadd.f32 %v6371, %v6755
    %v6757 = vpop.f32.mrf.mxu0
    %6758 = vmatprep.mubr.f32.mxu0 %v5769
    %6759 = vmatmul.mubr.f32.gmra.mxu0 %v5768
    %v6760 = vpop.f32.mrf.mxu0
    %v6761 = vadd.f32 %v6376, %v6760
    %v6762 = vpop.f32.mrf.mxu0
    %6763 = vmatprep.mubr.f32.mxu0 %v5778
    %6764 = vmatmul.mubr.f32.gmra.mxu0 %v5777
    %v6765 = vpop.f32.mrf.mxu0
    %v6766 = vadd.f32 %v6381, %v6765
    %v6767 = vpop.f32.mrf.mxu0
    %6768 = vdwg.mxu0
    %6769 = vmatprep.subr.mxu0 0.0
    %6770 = vmatpush1.msra.mxu0 %v5863
    %6771 = vmatprep.subr.mxu0 0.0
    %6772 = vmatpush1.msra.mxu0 %v5862
    %6773 = vmatprep.subr.mxu0 0.0
    %6774 = vmatpush1.msra.mxu0 %v5861
    %6775 = vmatprep.subr.mxu0 0.0
    %6776 = vmatpush1.msra.mxu0 %v5860
    %6777 = vmatprep.subr.mxu0 0.0
    %6778 = vmatpush1.msra.mxu0 %v5859
    %6779 = vmatprep.subr.mxu0 0.0
    %6780 = vmatpush1.msra.mxu0 %v5858
    %6781 = vmatprep.subr.mxu0 0.0
    %6782 = vmatpush1.msra.mxu0 %v5857
    %6783 = vmatprep.subr.mxu0 0.0
    %6784 = vmatpush1.msra.mxu0 %v5856
    %6785 = vmatprep.subr.mxu0 0.0
    %6786 = vmatpush1.msra.mxu0 %v5855
    %6787 = vmatprep.subr.mxu0 0.0
    %6788 = vmatpush1.msra.mxu0 %v5854
    %6789 = vmatprep.subr.mxu0 0.0
    %6790 = vmatpush1.msra.mxu0 %v5853
    %6791 = vmatprep.subr.mxu0 0.0
    %6792 = vmatpush1.msra.mxu0 %v5852
    %6793 = vmatprep.subr.mxu0 0.0
    %6794 = vmatpush1.msra.mxu0 %v5851
    %6795 = vmatprep.subr.mxu0 0.0
    %6796 = vmatpush1.msra.mxu0 %v5850
    %6797 = vmatprep.subr.mxu0 0.0
    %6798 = vmatpush1.msra.mxu0 %v5849
    %6799 = vmatprep.subr.mxu0 0.0
    %6800 = vmatpush1.msra.mxu0 %v5848
    %6801 = vmatprep.subr.mxu0 0.0
    %6802 = vmatpush2.msra.mxu0 %v5879
    %6803 = vmatprep.subr.mxu0 0.0
    %6804 = vmatpush2.msra.mxu0 %v5878
    %6805 = vmatprep.subr.mxu0 0.0
    %6806 = vmatpush2.msra.mxu0 %v5877
    %6807 = vmatprep.subr.mxu0 0.0
    %6808 = vmatpush2.msra.mxu0 %v5876
    %6809 = vmatprep.subr.mxu0 0.0
    %6810 = vmatpush2.msra.mxu0 %v5875
    %6811 = vmatprep.subr.mxu0 0.0
    %6812 = vmatpush2.msra.mxu0 %v5874
    %6813 = vmatprep.subr.mxu0 0.0
    %6814 = vmatpush2.msra.mxu0 %v5873
    %6815 = vmatprep.subr.mxu0 0.0
    %6816 = vmatpush2.msra.mxu0 %v5872
    %6817 = vmatprep.subr.mxu0 0.0
    %6818 = vmatpush2.msra.mxu0 %v5871
    %6819 = vmatprep.subr.mxu0 0.0
    %6820 = vmatpush2.msra.mxu0 %v5870
    %6821 = vmatprep.subr.mxu0 0.0
    %6822 = vmatpush2.msra.mxu0 %v5869
    %6823 = vmatprep.subr.mxu0 0.0
    %6824 = vmatpush2.msra.mxu0 %v5868
    %6825 = vmatprep.subr.mxu0 0.0
    %6826 = vmatpush2.msra.mxu0 %v5867
    %6827 = vmatprep.subr.mxu0 0.0
    %6828 = vmatpush2.msra.mxu0 %v5866
    %6829 = vmatprep.subr.mxu0 0.0
    %6830 = vmatpush2.msra.mxu0 %v5865
    %6831 = vmatprep.subr.mxu0 0.0
    %6832 = vmatpush2.msra.mxu0 %v5864
    %6833 = vmatprep.mubr.f32.mxu0 %v5213
    %6834 = vmatmul.mubr.f32.gmra.mxu0 %v5212
    %v6835 = vpop.f32.mrf.mxu0
    %v6836 = vadd.f32 %v6451, %v6835
    %v6837 = vpop.f32.mrf.mxu0
    %6838 = vmatprep.mubr.f32.mxu0 %v5222
    %6839 = vmatmul.mubr.f32.gmra.mxu0 %v5221
    %v6840 = vpop.f32.mrf.mxu0
    %v6841 = vadd.f32 %v6456, %v6840
    %v6842 = vpop.f32.mrf.mxu0
    %6843 = vmatprep.mubr.f32.mxu0 %v5231
    %6844 = vmatmul.mubr.f32.gmra.mxu0 %v5230
    %v6845 = vpop.f32.mrf.mxu0
    %v6846 = vadd.f32 %v6461, %v6845
    %v6847 = vpop.f32.mrf.mxu0
    %6848 = vmatprep.mubr.f32.mxu0 %v5240
    %6849 = vmatmul.mubr.f32.gmra.mxu0 %v5239
    %v6850 = vpop.f32.mrf.mxu0
    %v6851 = vadd.f32 %v6466, %v6850
    %v6852 = vpop.f32.mrf.mxu0
    %6853 = vmatprep.mubr.f32.mxu0 %v5249
    %6854 = vmatmul.mubr.f32.gmra.mxu0 %v5248
    %v6855 = vpop.f32.mrf.mxu0
    %v6856 = vadd.f32 %v6471, %v6855
    %v6857 = vpop.f32.mrf.mxu0
    %6858 = vmatprep.mubr.f32.mxu0 %v5258
    %6859 = vmatmul.mubr.f32.gmra.mxu0 %v5257
    %v6860 = vpop.f32.mrf.mxu0
    %v6861 = vadd.f32 %v6476, %v6860
    %v6862 = vpop.f32.mrf.mxu0
    %6863 = vmatprep.mubr.f32.mxu0 %v5267
    %6864 = vmatmul.mubr.f32.gmra.mxu0 %v5266
    %v6865 = vpop.f32.mrf.mxu0
    %v6866 = vadd.f32 %v6481, %v6865
    %v6867 = vpop.f32.mrf.mxu0
    %6868 = vmatprep.mubr.f32.mxu0 %v5276
    %6869 = vmatmul.mubr.f32.gmra.mxu0 %v5275
    %v6870 = vpop.f32.mrf.mxu0
    %v6871 = vadd.f32 %v6486, %v6870
    %v6872 = vpop.f32.mrf.mxu0
    %6873 = vmatprep.mubr.f32.mxu0 %v5285
    %6874 = vmatmul.mubr.f32.gmra.mxu0 %v5284
    %v6875 = vpop.f32.mrf.mxu0
    %v6876 = vadd.f32 %v6491, %v6875
    %v6877 = vpop.f32.mrf.mxu0
    %6878 = vmatprep.mubr.f32.mxu0 %v5294
    %6879 = vmatmul.mubr.f32.gmra.mxu0 %v5293
    %v6880 = vpop.f32.mrf.mxu0
    %v6881 = vadd.f32 %v6496, %v6880
    %v6882 = vpop.f32.mrf.mxu0
    %6883 = vmatprep.mubr.f32.mxu0 %v5303
    %6884 = vmatmul.mubr.f32.gmra.mxu0 %v5302
    %v6885 = vpop.f32.mrf.mxu0
    %v6886 = vadd.f32 %v6501, %v6885
    %v6887 = vpop.f32.mrf.mxu0
    %6888 = vmatprep.mubr.f32.mxu0 %v5312
    %6889 = vmatmul.mubr.f32.gmra.mxu0 %v5311
    %v6890 = vpop.f32.mrf.mxu0
    %v6891 = vadd.f32 %v6506, %v6890
    %v6892 = vpop.f32.mrf.mxu0
    %6893 = vmatprep.mubr.f32.mxu0 %v5321
    %6894 = vmatmul.mubr.f32.gmra.mxu0 %v5320
    %v6895 = vpop.f32.mrf.mxu0
    %v6896 = vadd.f32 %v6511, %v6895
    %v6897 = vpop.f32.mrf.mxu0
    %6898 = vmatprep.mubr.f32.mxu0 %v5330
    %6899 = vmatmul.mubr.f32.gmra.mxu0 %v5329
    %v6900 = vpop.f32.mrf.mxu0
    %v6901 = vadd.f32 %v6516, %v6900
    %v6902 = vpop.f32.mrf.mxu0
    %6903 = vmatprep.mubr.f32.mxu0 %v5339
    %6904 = vmatmul.mubr.f32.gmra.mxu0 %v5338
    %v6905 = vpop.f32.mrf.mxu0
    %v6906 = vadd.f32 %v6521, %v6905
    %v6907 = vpop.f32.mrf.mxu0
    %6908 = vmatprep.mubr.f32.mxu0 %v5348
    %6909 = vmatmul.mubr.f32.gmra.mxu0 %v5347
    %v6910 = vpop.f32.mrf.mxu0
    %v6911 = vadd.f32 %v6526, %v6910
    %v6912 = vpop.f32.mrf.mxu0
    %6913 = vmatprep.mubr.f32.mxu0 %v5357
    %6914 = vmatmul.mubr.f32.gmra.mxu0 %v5356
    %v6915 = vpop.f32.mrf.mxu0
    %v6916 = vadd.f32 %v6531, %v6915
    %v6917 = vpop.f32.mrf.mxu0
    %6918 = vmatprep.mubr.f32.mxu0 %v5366
    %6919 = vmatmul.mubr.f32.gmra.mxu0 %v5365
    %v6920 = vpop.f32.mrf.mxu0
    %v6921 = vadd.f32 %v6536, %v6920
    %v6922 = vpop.f32.mrf.mxu0
    %6923 = vmatprep.mubr.f32.mxu0 %v5375
    %6924 = vmatmul.mubr.f32.gmra.mxu0 %v5374
    %v6925 = vpop.f32.mrf.mxu0
    %v6926 = vadd.f32 %v6541, %v6925
    %v6927 = vpop.f32.mrf.mxu0
    %6928 = vmatprep.mubr.f32.mxu0 %v5384
    %6929 = vmatmul.mubr.f32.gmra.mxu0 %v5383
    %v6930 = vpop.f32.mrf.mxu0
    %v6931 = vadd.f32 %v6546, %v6930
    %v6932 = vpop.f32.mrf.mxu0
    %6933 = vmatprep.mubr.f32.mxu0 %v5393
    %6934 = vmatmul.mubr.f32.gmra.mxu0 %v5392
    %v6935 = vpop.f32.mrf.mxu0
    %v6936 = vadd.f32 %v6551, %v6935
    %v6937 = vpop.f32.mrf.mxu0
    %6938 = vmatprep.mubr.f32.mxu0 %v5402
    %6939 = vmatmul.mubr.f32.gmra.mxu0 %v5401
    %v6940 = vpop.f32.mrf.mxu0
    %v6941 = vadd.f32 %v6556, %v6940
    %v6942 = vpop.f32.mrf.mxu0
    %6943 = vmatprep.mubr.f32.mxu0 %v5411
    %6944 = vmatmul.mubr.f32.gmra.mxu0 %v5410
    %v6945 = vpop.f32.mrf.mxu0
    %v6946 = vadd.f32 %v6561, %v6945
    %v6947 = vpop.f32.mrf.mxu0
    %6948 = vmatprep.mubr.f32.mxu0 %v5420
    %6949 = vmatmul.mubr.f32.gmra.mxu0 %v5419
    %v6950 = vpop.f32.mrf.mxu0
    %v6951 = vadd.f32 %v6566, %v6950
    %v6952 = vpop.f32.mrf.mxu0
    %6953 = vmatprep.mubr.f32.mxu0 %v5429
    %6954 = vmatmul.mubr.f32.gmra.mxu0 %v5428
    %v6955 = vpop.f32.mrf.mxu0
    %v6956 = vadd.f32 %v6571, %v6955
    %v6957 = vpop.f32.mrf.mxu0
    %6958 = vmatprep.mubr.f32.mxu0 %v5438
    %6959 = vmatmul.mubr.f32.gmra.mxu0 %v5437
    %v6960 = vpop.f32.mrf.mxu0
    %v6961 = vadd.f32 %v6576, %v6960
    %v6962 = vpop.f32.mrf.mxu0
    %6963 = vmatprep.mubr.f32.mxu0 %v5447
    %6964 = vmatmul.mubr.f32.gmra.mxu0 %v5446
    %v6965 = vpop.f32.mrf.mxu0
    %v6966 = vadd.f32 %v6581, %v6965
    %v6967 = vpop.f32.mrf.mxu0
    %6968 = vmatprep.mubr.f32.mxu0 %v5456
    %6969 = vmatmul.mubr.f32.gmra.mxu0 %v5455
    %v6970 = vpop.f32.mrf.mxu0
    %v6971 = vadd.f32 %v6586, %v6970
    %v6972 = vpop.f32.mrf.mxu0
    %6973 = vmatprep.mubr.f32.mxu0 %v5465
    %6974 = vmatmul.mubr.f32.gmra.mxu0 %v5464
    %v6975 = vpop.f32.mrf.mxu0
    %v6976 = vadd.f32 %v6591, %v6975
    %v6977 = vpop.f32.mrf.mxu0
    %6978 = vmatprep.mubr.f32.mxu0 %v5474
    %6979 = vmatmul.mubr.f32.gmra.mxu0 %v5473
    %v6980 = vpop.f32.mrf.mxu0
    %v6981 = vadd.f32 %v6596, %v6980
    %v6982 = vpop.f32.mrf.mxu0
    %6983 = vmatprep.mubr.f32.mxu0 %v5483
    %6984 = vmatmul.mubr.f32.gmra.mxu0 %v5482
    %v6985 = vpop.f32.mrf.mxu0
    %v6986 = vadd.f32 %v6601, %v6985
    %v6987 = vpop.f32.mrf.mxu0
    %6988 = vmatprep.mubr.f32.mxu0 %v5492
    %6989 = vmatmul.mubr.f32.gmra.mxu0 %v5491
    %v6990 = vpop.f32.mrf.mxu0
    %v6991 = vadd.f32 %v6606, %v6990
    %v6992 = vpop.f32.mrf.mxu0
    %6993 = vmatprep.mubr.f32.mxu0 %v5501
    %6994 = vmatmul.mubr.f32.gmra.mxu0 %v5500
    %v6995 = vpop.f32.mrf.mxu0
    %v6996 = vadd.f32 %v6611, %v6995
    %v6997 = vpop.f32.mrf.mxu0
    %6998 = vmatprep.mubr.f32.mxu0 %v5510
    %6999 = vmatmul.mubr.f32.gmra.mxu0 %v5509
    %v7000 = vpop.f32.mrf.mxu0
    %v7001 = vadd.f32 %v6616, %v7000
    %v7002 = vpop.f32.mrf.mxu0
    %7003 = vmatprep.mubr.f32.mxu0 %v5519
    %7004 = vmatmul.mubr.f32.gmra.mxu0 %v5518
    %v7005 = vpop.f32.mrf.mxu0
    %v7006 = vadd.f32 %v6621, %v7005
    %v7007 = vpop.f32.mrf.mxu0
    %7008 = vmatprep.mubr.f32.mxu0 %v5528
    %7009 = vmatmul.mubr.f32.gmra.mxu0 %v5527
    %v7010 = vpop.f32.mrf.mxu0
    %v7011 = vadd.f32 %v6626, %v7010
    %v7012 = vpop.f32.mrf.mxu0
    %7013 = vmatprep.mubr.f32.mxu0 %v5537
    %7014 = vmatmul.mubr.f32.gmra.mxu0 %v5536
    %v7015 = vpop.f32.mrf.mxu0
    %v7016 = vadd.f32 %v6631, %v7015
    %v7017 = vpop.f32.mrf.mxu0
    %7018 = vmatprep.mubr.f32.mxu0 %v5546
    %7019 = vmatmul.mubr.f32.gmra.mxu0 %v5545
    %v7020 = vpop.f32.mrf.mxu0
    %v7021 = vadd.f32 %v6636, %v7020
    %v7022 = vpop.f32.mrf.mxu0
    %7023 = vmatprep.mubr.f32.mxu0 %v5555
    %7024 = vmatmul.mubr.f32.gmra.mxu0 %v5554
    %v7025 = vpop.f32.mrf.mxu0
    %v7026 = vadd.f32 %v6641, %v7025
    %v7027 = vpop.f32.mrf.mxu0
    %7028 = vmatprep.mubr.f32.mxu0 %v5564
    %7029 = vmatmul.mubr.f32.gmra.mxu0 %v5563
    %v7030 = vpop.f32.mrf.mxu0
    %v7031 = vadd.f32 %v6646, %v7030
    %v7032 = vpop.f32.mrf.mxu0
    %7033 = vmatprep.mubr.f32.mxu0 %v5573
    %7034 = vmatmul.mubr.f32.gmra.mxu0 %v5572
    %v7035 = vpop.f32.mrf.mxu0
    %v7036 = vadd.f32 %v6651, %v7035
    %v7037 = vpop.f32.mrf.mxu0
    %7038 = vmatprep.mubr.f32.mxu0 %v5582
    %7039 = vmatmul.mubr.f32.gmra.mxu0 %v5581
    %v7040 = vpop.f32.mrf.mxu0
    %v7041 = vadd.f32 %v6656, %v7040
    %v7042 = vpop.f32.mrf.mxu0
    %7043 = vmatprep.mubr.f32.mxu0 %v5591
    %7044 = vmatmul.mubr.f32.gmra.mxu0 %v5590
    %v7045 = vpop.f32.mrf.mxu0
    %v7046 = vadd.f32 %v6661, %v7045
    %v7047 = vpop.f32.mrf.mxu0
    %7048 = vmatprep.mubr.f32.mxu0 %v5600
    %7049 = vmatmul.mubr.f32.gmra.mxu0 %v5599
    %v7050 = vpop.f32.mrf.mxu0
    %v7051 = vadd.f32 %v6666, %v7050
    %v7052 = vpop.f32.mrf.mxu0
    %7053 = vmatprep.mubr.f32.mxu0 %v5609
    %7054 = vmatmul.mubr.f32.gmra.mxu0 %v5608
    %v7055 = vpop.f32.mrf.mxu0
    %v7056 = vadd.f32 %v6671, %v7055
    %v7057 = vpop.f32.mrf.mxu0
    %7058 = vmatprep.mubr.f32.mxu0 %v5618
    %7059 = vmatmul.mubr.f32.gmra.mxu0 %v5617
    %v7060 = vpop.f32.mrf.mxu0
    %v7061 = vadd.f32 %v6676, %v7060
    %v7062 = vpop.f32.mrf.mxu0
    %7063 = vmatprep.mubr.f32.mxu0 %v5627
    %7064 = vmatmul.mubr.f32.gmra.mxu0 %v5626
    %v7065 = vpop.f32.mrf.mxu0
    %v7066 = vadd.f32 %v6681, %v7065
    %v7067 = vpop.f32.mrf.mxu0
    %7068 = vmatprep.mubr.f32.mxu0 %v5636
    %7069 = vmatmul.mubr.f32.gmra.mxu0 %v5635
    %v7070 = vpop.f32.mrf.mxu0
    %v7071 = vadd.f32 %v6686, %v7070
    %v7072 = vpop.f32.mrf.mxu0
    %7073 = vmatprep.mubr.f32.mxu0 %v5645
    %7074 = vmatmul.mubr.f32.gmra.mxu0 %v5644
    %v7075 = vpop.f32.mrf.mxu0
    %v7076 = vadd.f32 %v6691, %v7075
    %v7077 = vpop.f32.mrf.mxu0
    %7078 = vmatprep.mubr.f32.mxu0 %v5654
    %7079 = vmatmul.mubr.f32.gmra.mxu0 %v5653
    %v7080 = vpop.f32.mrf.mxu0
    %v7081 = vadd.f32 %v6696, %v7080
    %v7082 = vpop.f32.mrf.mxu0
    %7083 = vmatprep.mubr.f32.mxu0 %v5663
    %7084 = vmatmul.mubr.f32.gmra.mxu0 %v5662
    %v7085 = vpop.f32.mrf.mxu0
    %v7086 = vadd.f32 %v6701, %v7085
    %v7087 = vpop.f32.mrf.mxu0
    %7088 = vmatprep.mubr.f32.mxu0 %v5672
    %7089 = vmatmul.mubr.f32.gmra.mxu0 %v5671
    %v7090 = vpop.f32.mrf.mxu0
    %v7091 = vadd.f32 %v6706, %v7090
    %v7092 = vpop.f32.mrf.mxu0
    %7093 = vmatprep.mubr.f32.mxu0 %v5681
    %7094 = vmatmul.mubr.f32.gmra.mxu0 %v5680
    %v7095 = vpop.f32.mrf.mxu0
    %v7096 = vadd.f32 %v6711, %v7095
    %v7097 = vpop.f32.mrf.mxu0
    %7098 = vmatprep.mubr.f32.mxu0 %v5690
    %7099 = vmatmul.mubr.f32.gmra.mxu0 %v5689
    %v7100 = vpop.f32.mrf.mxu0
    %v7101 = vadd.f32 %v6716, %v7100
    %v7102 = vpop.f32.mrf.mxu0
    %7103 = vmatprep.mubr.f32.mxu0 %v5699
    %7104 = vmatmul.mubr.f32.gmra.mxu0 %v5698
    %v7105 = vpop.f32.mrf.mxu0
    %v7106 = vadd.f32 %v6721, %v7105
    %v7107 = vpop.f32.mrf.mxu0
    %7108 = vmatprep.mubr.f32.mxu0 %v5708
    %7109 = vmatmul.mubr.f32.gmra.mxu0 %v5707
    %v7110 = vpop.f32.mrf.mxu0
    %v7111 = vadd.f32 %v6726, %v7110
    %v7112 = vpop.f32.mrf.mxu0
    %7113 = vmatprep.mubr.f32.mxu0 %v5717
    %7114 = vmatmul.mubr.f32.gmra.mxu0 %v5716
    %v7115 = vpop.f32.mrf.mxu0
    %v7116 = vadd.f32 %v6731, %v7115
    %v7117 = vpop.f32.mrf.mxu0
    %7118 = vmatprep.mubr.f32.mxu0 %v5726
    %7119 = vmatmul.mubr.f32.gmra.mxu0 %v5725
    %v7120 = vpop.f32.mrf.mxu0
    %v7121 = vadd.f32 %v6736, %v7120
    %v7122 = vpop.f32.mrf.mxu0
    %7123 = vmatprep.mubr.f32.mxu0 %v5735
    %7124 = vmatmul.mubr.f32.gmra.mxu0 %v5734
    %v7125 = vpop.f32.mrf.mxu0
    %v7126 = vadd.f32 %v6741, %v7125
    %v7127 = vpop.f32.mrf.mxu0
    %7128 = vmatprep.mubr.f32.mxu0 %v5744
    %7129 = vmatmul.mubr.f32.gmra.mxu0 %v5743
    %v7130 = vpop.f32.mrf.mxu0
    %v7131 = vadd.f32 %v6746, %v7130
    %v7132 = vpop.f32.mrf.mxu0
    %7133 = vmatprep.mubr.f32.mxu0 %v5753
    %7134 = vmatmul.mubr.f32.gmra.mxu0 %v5752
    %v7135 = vpop.f32.mrf.mxu0
    %v7136 = vadd.f32 %v6751, %v7135
    %v7137 = vpop.f32.mrf.mxu0
    %7138 = vmatprep.mubr.f32.mxu0 %v5762
    %7139 = vmatmul.mubr.f32.gmra.mxu0 %v5761
    %v7140 = vpop.f32.mrf.mxu0
    %v7141 = vadd.f32 %v6756, %v7140
    %v7142 = vpop.f32.mrf.mxu0
    %7143 = vmatprep.mubr.f32.mxu0 %v5771
    %7144 = vmatmul.mubr.f32.gmra.mxu0 %v5770
    %v7145 = vpop.f32.mrf.mxu0
    %v7146 = vadd.f32 %v6761, %v7145
    %v7147 = vpop.f32.mrf.mxu0
    %7148 = vmatprep.mubr.f32.mxu0 %v5780
    %7149 = vmatmul.mubr.f32.gmra.mxu0 %v5779
    %v7150 = vpop.f32.mrf.mxu0
    %v7151 = vadd.f32 %v6766, %v7150
    %v7152 = vpop.f32.mrf.mxu0
    %7153 = vdwg.mxu0
    %7154 = vmatprep.subr.mxu0 0.0
    %7155 = vmatpush1.msra.mxu0 %v5895
    %7156 = vmatprep.subr.mxu0 0.0
    %7157 = vmatpush1.msra.mxu0 %v5894
    %7158 = vmatprep.subr.mxu0 0.0
    %7159 = vmatpush1.msra.mxu0 %v5893
    %7160 = vmatprep.subr.mxu0 0.0
    %7161 = vmatpush1.msra.mxu0 %v5892
    %7162 = vmatprep.subr.mxu0 0.0
    %7163 = vmatpush1.msra.mxu0 %v5891
    %7164 = vmatprep.subr.mxu0 0.0
    %7165 = vmatpush1.msra.mxu0 %v5890
    %7166 = vmatprep.subr.mxu0 0.0
    %7167 = vmatpush1.msra.mxu0 %v5889
    %7168 = vmatprep.subr.mxu0 0.0
    %7169 = vmatpush1.msra.mxu0 %v5888
    %7170 = vmatprep.subr.mxu0 0.0
    %7171 = vmatpush1.msra.mxu0 %v5887
    %7172 = vmatprep.subr.mxu0 0.0
    %7173 = vmatpush1.msra.mxu0 %v5886
    %7174 = vmatprep.subr.mxu0 0.0
    %7175 = vmatpush1.msra.mxu0 %v5885
    %7176 = vmatprep.subr.mxu0 0.0
    %7177 = vmatpush1.msra.mxu0 %v5884
    %7178 = vmatprep.subr.mxu0 0.0
    %7179 = vmatpush1.msra.mxu0 %v5883
    %7180 = vmatprep.subr.mxu0 0.0
    %7181 = vmatpush1.msra.mxu0 %v5882
    %7182 = vmatprep.subr.mxu0 0.0
    %7183 = vmatpush1.msra.mxu0 %v5881
    %7184 = vmatprep.subr.mxu0 0.0
    %7185 = vmatpush1.msra.mxu0 %v5880
    %7186 = vmatprep.subr.mxu0 0.0
    %7187 = vmatpush2.msra.mxu0 %v5911
    %7188 = vmatprep.subr.mxu0 0.0
    %7189 = vmatpush2.msra.mxu0 %v5910
    %7190 = vmatprep.subr.mxu0 0.0
    %7191 = vmatpush2.msra.mxu0 %v5909
    %7192 = vmatprep.subr.mxu0 0.0
    %7193 = vmatpush2.msra.mxu0 %v5908
    %7194 = vmatprep.subr.mxu0 0.0
    %7195 = vmatpush2.msra.mxu0 %v5907
    %7196 = vmatprep.subr.mxu0 0.0
    %7197 = vmatpush2.msra.mxu0 %v5906
    %7198 = vmatprep.subr.mxu0 0.0
    %7199 = vmatpush2.msra.mxu0 %v5905
    %7200 = vmatprep.subr.mxu0 0.0
    %7201 = vmatpush2.msra.mxu0 %v5904
    %7202 = vmatprep.subr.mxu0 0.0
    %7203 = vmatpush2.msra.mxu0 %v5903
    %7204 = vmatprep.subr.mxu0 0.0
    %7205 = vmatpush2.msra.mxu0 %v5902
    %7206 = vmatprep.subr.mxu0 0.0
    %7207 = vmatpush2.msra.mxu0 %v5901
    %7208 = vmatprep.subr.mxu0 0.0
    %7209 = vmatpush2.msra.mxu0 %v5900
    %7210 = vmatprep.subr.mxu0 0.0
    %7211 = vmatpush2.msra.mxu0 %v5899
    %7212 = vmatprep.subr.mxu0 0.0
    %7213 = vmatpush2.msra.mxu0 %v5898
    %7214 = vmatprep.subr.mxu0 0.0
    %7215 = vmatpush2.msra.mxu0 %v5897
    %7216 = vmatprep.subr.mxu0 0.0
    %7217 = vmatpush2.msra.mxu0 %v5896
    %7218 = vmatprep.mubr.f32.mxu0 %v5215
    %7219 = vmatmul.mubr.f32.gmra.mxu0 %v5214
    %v7220 = vpop.f32.mrf.mxu0
    %v7221 = vadd.f32 %v6836, %v7220
    %v7222 = vpop.f32.mrf.mxu0
    %7223 = vmatprep.mubr.f32.mxu0 %v5224
    %7224 = vmatmul.mubr.f32.gmra.mxu0 %v5223
    %v7225 = vpop.f32.mrf.mxu0
    %v7226 = vadd.f32 %v6841, %v7225
    %v7227 = vpop.f32.mrf.mxu0
    %7228 = vmatprep.mubr.f32.mxu0 %v5233
    %7229 = vmatmul.mubr.f32.gmra.mxu0 %v5232
    %v7230 = vpop.f32.mrf.mxu0
    %v7231 = vadd.f32 %v6846, %v7230
    %v7232 = vpop.f32.mrf.mxu0
    %7233 = vmatprep.mubr.f32.mxu0 %v5242
    %7234 = vmatmul.mubr.f32.gmra.mxu0 %v5241
    %v7235 = vpop.f32.mrf.mxu0
    %v7236 = vadd.f32 %v6851, %v7235
    %v7237 = vpop.f32.mrf.mxu0
    %7238 = vmatprep.mubr.f32.mxu0 %v5251
    %7239 = vmatmul.mubr.f32.gmra.mxu0 %v5250
    %v7240 = vpop.f32.mrf.mxu0
    %v7241 = vadd.f32 %v6856, %v7240
    %v7242 = vpop.f32.mrf.mxu0
    %7243 = vmatprep.mubr.f32.mxu0 %v5260
    %7244 = vmatmul.mubr.f32.gmra.mxu0 %v5259
    %v7245 = vpop.f32.mrf.mxu0
    %v7246 = vadd.f32 %v6861, %v7245
    %v7247 = vpop.f32.mrf.mxu0
    %7248 = vmatprep.mubr.f32.mxu0 %v5269
    %7249 = vmatmul.mubr.f32.gmra.mxu0 %v5268
    %v7250 = vpop.f32.mrf.mxu0
    %v7251 = vadd.f32 %v6866, %v7250
    %v7252 = vpop.f32.mrf.mxu0
    %7253 = vmatprep.mubr.f32.mxu0 %v5278
    %7254 = vmatmul.mubr.f32.gmra.mxu0 %v5277
    %v7255 = vpop.f32.mrf.mxu0
    %v7256 = vadd.f32 %v6871, %v7255
    %v7257 = vpop.f32.mrf.mxu0
    %7258 = vmatprep.mubr.f32.mxu0 %v5287
    %7259 = vmatmul.mubr.f32.gmra.mxu0 %v5286
    %v7260 = vpop.f32.mrf.mxu0
    %v7261 = vadd.f32 %v6876, %v7260
    %v7262 = vpop.f32.mrf.mxu0
    %7263 = vmatprep.mubr.f32.mxu0 %v5296
    %7264 = vmatmul.mubr.f32.gmra.mxu0 %v5295
    %v7265 = vpop.f32.mrf.mxu0
    %v7266 = vadd.f32 %v6881, %v7265
    %v7267 = vpop.f32.mrf.mxu0
    %7268 = vmatprep.mubr.f32.mxu0 %v5305
    %7269 = vmatmul.mubr.f32.gmra.mxu0 %v5304
    %v7270 = vpop.f32.mrf.mxu0
    %v7271 = vadd.f32 %v6886, %v7270
    %v7272 = vpop.f32.mrf.mxu0
    %7273 = vmatprep.mubr.f32.mxu0 %v5314
    %7274 = vmatmul.mubr.f32.gmra.mxu0 %v5313
    %v7275 = vpop.f32.mrf.mxu0
    %v7276 = vadd.f32 %v6891, %v7275
    %v7277 = vpop.f32.mrf.mxu0
    %7278 = vmatprep.mubr.f32.mxu0 %v5323
    %7279 = vmatmul.mubr.f32.gmra.mxu0 %v5322
    %v7280 = vpop.f32.mrf.mxu0
    %v7281 = vadd.f32 %v6896, %v7280
    %v7282 = vpop.f32.mrf.mxu0
    %7283 = vmatprep.mubr.f32.mxu0 %v5332
    %7284 = vmatmul.mubr.f32.gmra.mxu0 %v5331
    %v7285 = vpop.f32.mrf.mxu0
    %v7286 = vadd.f32 %v6901, %v7285
    %v7287 = vpop.f32.mrf.mxu0
    %7288 = vmatprep.mubr.f32.mxu0 %v5341
    %7289 = vmatmul.mubr.f32.gmra.mxu0 %v5340
    %v7290 = vpop.f32.mrf.mxu0
    %v7291 = vadd.f32 %v6906, %v7290
    %v7292 = vpop.f32.mrf.mxu0
    %7293 = vmatprep.mubr.f32.mxu0 %v5350
    %7294 = vmatmul.mubr.f32.gmra.mxu0 %v5349
    %v7295 = vpop.f32.mrf.mxu0
    %v7296 = vadd.f32 %v6911, %v7295
    %v7297 = vpop.f32.mrf.mxu0
    %7298 = vmatprep.mubr.f32.mxu0 %v5359
    %7299 = vmatmul.mubr.f32.gmra.mxu0 %v5358
    %v7300 = vpop.f32.mrf.mxu0
    %v7301 = vadd.f32 %v6916, %v7300
    %v7302 = vpop.f32.mrf.mxu0
    %7303 = vmatprep.mubr.f32.mxu0 %v5368
    %7304 = vmatmul.mubr.f32.gmra.mxu0 %v5367
    %v7305 = vpop.f32.mrf.mxu0
    %v7306 = vadd.f32 %v6921, %v7305
    %v7307 = vpop.f32.mrf.mxu0
    %7308 = vmatprep.mubr.f32.mxu0 %v5377
    %7309 = vmatmul.mubr.f32.gmra.mxu0 %v5376
    %v7310 = vpop.f32.mrf.mxu0
    %v7311 = vadd.f32 %v6926, %v7310
    %v7312 = vpop.f32.mrf.mxu0
    %7313 = vmatprep.mubr.f32.mxu0 %v5386
    %7314 = vmatmul.mubr.f32.gmra.mxu0 %v5385
    %v7315 = vpop.f32.mrf.mxu0
    %v7316 = vadd.f32 %v6931, %v7315
    %v7317 = vpop.f32.mrf.mxu0
    %7318 = vmatprep.mubr.f32.mxu0 %v5395
    %7319 = vmatmul.mubr.f32.gmra.mxu0 %v5394
    %v7320 = vpop.f32.mrf.mxu0
    %v7321 = vadd.f32 %v6936, %v7320
    %v7322 = vpop.f32.mrf.mxu0
    %7323 = vmatprep.mubr.f32.mxu0 %v5404
    %7324 = vmatmul.mubr.f32.gmra.mxu0 %v5403
    %v7325 = vpop.f32.mrf.mxu0
    %v7326 = vadd.f32 %v6941, %v7325
    %v7327 = vpop.f32.mrf.mxu0
    %7328 = vmatprep.mubr.f32.mxu0 %v5413
    %7329 = vmatmul.mubr.f32.gmra.mxu0 %v5412
    %v7330 = vpop.f32.mrf.mxu0
    %v7331 = vadd.f32 %v6946, %v7330
    %v7332 = vpop.f32.mrf.mxu0
    %7333 = vmatprep.mubr.f32.mxu0 %v5422
    %7334 = vmatmul.mubr.f32.gmra.mxu0 %v5421
    %v7335 = vpop.f32.mrf.mxu0
    %v7336 = vadd.f32 %v6951, %v7335
    %v7337 = vpop.f32.mrf.mxu0
    %7338 = vmatprep.mubr.f32.mxu0 %v5431
    %7339 = vmatmul.mubr.f32.gmra.mxu0 %v5430
    %v7340 = vpop.f32.mrf.mxu0
    %v7341 = vadd.f32 %v6956, %v7340
    %v7342 = vpop.f32.mrf.mxu0
    %7343 = vmatprep.mubr.f32.mxu0 %v5440
    %7344 = vmatmul.mubr.f32.gmra.mxu0 %v5439
    %v7345 = vpop.f32.mrf.mxu0
    %v7346 = vadd.f32 %v6961, %v7345
    %v7347 = vpop.f32.mrf.mxu0
    %7348 = vmatprep.mubr.f32.mxu0 %v5449
    %7349 = vmatmul.mubr.f32.gmra.mxu0 %v5448
    %v7350 = vpop.f32.mrf.mxu0
    %v7351 = vadd.f32 %v6966, %v7350
    %v7352 = vpop.f32.mrf.mxu0
    %7353 = vmatprep.mubr.f32.mxu0 %v5458
    %7354 = vmatmul.mubr.f32.gmra.mxu0 %v5457
    %v7355 = vpop.f32.mrf.mxu0
    %v7356 = vadd.f32 %v6971, %v7355
    %v7357 = vpop.f32.mrf.mxu0
    %7358 = vmatprep.mubr.f32.mxu0 %v5467
    %7359 = vmatmul.mubr.f32.gmra.mxu0 %v5466
    %v7360 = vpop.f32.mrf.mxu0
    %v7361 = vadd.f32 %v6976, %v7360
    %v7362 = vpop.f32.mrf.mxu0
    %7363 = vmatprep.mubr.f32.mxu0 %v5476
    %7364 = vmatmul.mubr.f32.gmra.mxu0 %v5475
    %v7365 = vpop.f32.mrf.mxu0
    %v7366 = vadd.f32 %v6981, %v7365
    %v7367 = vpop.f32.mrf.mxu0
    %7368 = vmatprep.mubr.f32.mxu0 %v5485
    %7369 = vmatmul.mubr.f32.gmra.mxu0 %v5484
    %v7370 = vpop.f32.mrf.mxu0
    %v7371 = vadd.f32 %v6986, %v7370
    %v7372 = vpop.f32.mrf.mxu0
    %7373 = vmatprep.mubr.f32.mxu0 %v5494
    %7374 = vmatmul.mubr.f32.gmra.mxu0 %v5493
    %v7375 = vpop.f32.mrf.mxu0
    %v7376 = vadd.f32 %v6991, %v7375
    %v7377 = vpop.f32.mrf.mxu0
    %7378 = vmatprep.mubr.f32.mxu0 %v5503
    %7379 = vmatmul.mubr.f32.gmra.mxu0 %v5502
    %v7380 = vpop.f32.mrf.mxu0
    %v7381 = vadd.f32 %v6996, %v7380
    %v7382 = vpop.f32.mrf.mxu0
    %7383 = vmatprep.mubr.f32.mxu0 %v5512
    %7384 = vmatmul.mubr.f32.gmra.mxu0 %v5511
    %v7385 = vpop.f32.mrf.mxu0
    %v7386 = vadd.f32 %v7001, %v7385
    %v7387 = vpop.f32.mrf.mxu0
    %7388 = vmatprep.mubr.f32.mxu0 %v5521
    %7389 = vmatmul.mubr.f32.gmra.mxu0 %v5520
    %v7390 = vpop.f32.mrf.mxu0
    %v7391 = vadd.f32 %v7006, %v7390
    %v7392 = vpop.f32.mrf.mxu0
    %7393 = vmatprep.mubr.f32.mxu0 %v5530
    %7394 = vmatmul.mubr.f32.gmra.mxu0 %v5529
    %v7395 = vpop.f32.mrf.mxu0
    %v7396 = vadd.f32 %v7011, %v7395
    %v7397 = vpop.f32.mrf.mxu0
    %7398 = vmatprep.mubr.f32.mxu0 %v5539
    %7399 = vmatmul.mubr.f32.gmra.mxu0 %v5538
    %v7400 = vpop.f32.mrf.mxu0
    %v7401 = vadd.f32 %v7016, %v7400
    %v7402 = vpop.f32.mrf.mxu0
    %7403 = vmatprep.mubr.f32.mxu0 %v5548
    %7404 = vmatmul.mubr.f32.gmra.mxu0 %v5547
    %v7405 = vpop.f32.mrf.mxu0
    %v7406 = vadd.f32 %v7021, %v7405
    %v7407 = vpop.f32.mrf.mxu0
    %7408 = vmatprep.mubr.f32.mxu0 %v5557
    %7409 = vmatmul.mubr.f32.gmra.mxu0 %v5556
    %v7410 = vpop.f32.mrf.mxu0
    %v7411 = vadd.f32 %v7026, %v7410
    %v7412 = vpop.f32.mrf.mxu0
    %7413 = vmatprep.mubr.f32.mxu0 %v5566
    %7414 = vmatmul.mubr.f32.gmra.mxu0 %v5565
    %v7415 = vpop.f32.mrf.mxu0
    %v7416 = vadd.f32 %v7031, %v7415
    %v7417 = vpop.f32.mrf.mxu0
    %7418 = vmatprep.mubr.f32.mxu0 %v5575
    %7419 = vmatmul.mubr.f32.gmra.mxu0 %v5574
    %v7420 = vpop.f32.mrf.mxu0
    %v7421 = vadd.f32 %v7036, %v7420
    %v7422 = vpop.f32.mrf.mxu0
    %7423 = vmatprep.mubr.f32.mxu0 %v5584
    %7424 = vmatmul.mubr.f32.gmra.mxu0 %v5583
    %v7425 = vpop.f32.mrf.mxu0
    %v7426 = vadd.f32 %v7041, %v7425
    %v7427 = vpop.f32.mrf.mxu0
    %7428 = vmatprep.mubr.f32.mxu0 %v5593
    %7429 = vmatmul.mubr.f32.gmra.mxu0 %v5592
    %v7430 = vpop.f32.mrf.mxu0
    %v7431 = vadd.f32 %v7046, %v7430
    %v7432 = vpop.f32.mrf.mxu0
    %7433 = vmatprep.mubr.f32.mxu0 %v5602
    %7434 = vmatmul.mubr.f32.gmra.mxu0 %v5601
    %v7435 = vpop.f32.mrf.mxu0
    %v7436 = vadd.f32 %v7051, %v7435
    %v7437 = vpop.f32.mrf.mxu0
    %7438 = vmatprep.mubr.f32.mxu0 %v5611
    %7439 = vmatmul.mubr.f32.gmra.mxu0 %v5610
    %v7440 = vpop.f32.mrf.mxu0
    %v7441 = vadd.f32 %v7056, %v7440
    %v7442 = vpop.f32.mrf.mxu0
    %7443 = vmatprep.mubr.f32.mxu0 %v5620
    %7444 = vmatmul.mubr.f32.gmra.mxu0 %v5619
    %v7445 = vpop.f32.mrf.mxu0
    %v7446 = vadd.f32 %v7061, %v7445
    %v7447 = vpop.f32.mrf.mxu0
    %7448 = vmatprep.mubr.f32.mxu0 %v5629
    %7449 = vmatmul.mubr.f32.gmra.mxu0 %v5628
    %v7450 = vpop.f32.mrf.mxu0
    %v7451 = vadd.f32 %v7066, %v7450
    %v7452 = vpop.f32.mrf.mxu0
    %7453 = vmatprep.mubr.f32.mxu0 %v5638
    %7454 = vmatmul.mubr.f32.gmra.mxu0 %v5637
    %v7455 = vpop.f32.mrf.mxu0
    %v7456 = vadd.f32 %v7071, %v7455
    %v7457 = vpop.f32.mrf.mxu0
    %7458 = vmatprep.mubr.f32.mxu0 %v5647
    %7459 = vmatmul.mubr.f32.gmra.mxu0 %v5646
    %v7460 = vpop.f32.mrf.mxu0
    %v7461 = vadd.f32 %v7076, %v7460
    %v7462 = vpop.f32.mrf.mxu0
    %7463 = vmatprep.mubr.f32.mxu0 %v5656
    %7464 = vmatmul.mubr.f32.gmra.mxu0 %v5655
    %v7465 = vpop.f32.mrf.mxu0
    %v7466 = vadd.f32 %v7081, %v7465
    %v7467 = vpop.f32.mrf.mxu0
    %7468 = vmatprep.mubr.f32.mxu0 %v5665
    %7469 = vmatmul.mubr.f32.gmra.mxu0 %v5664
    %v7470 = vpop.f32.mrf.mxu0
    %v7471 = vadd.f32 %v7086, %v7470
    %v7472 = vpop.f32.mrf.mxu0
    %7473 = vmatprep.mubr.f32.mxu0 %v5674
    %7474 = vmatmul.mubr.f32.gmra.mxu0 %v5673
    %v7475 = vpop.f32.mrf.mxu0
    %v7476 = vadd.f32 %v7091, %v7475
    %v7477 = vpop.f32.mrf.mxu0
    %7478 = vmatprep.mubr.f32.mxu0 %v5683
    %7479 = vmatmul.mubr.f32.gmra.mxu0 %v5682
    %v7480 = vpop.f32.mrf.mxu0
    %v7481 = vadd.f32 %v7096, %v7480
    %v7482 = vpop.f32.mrf.mxu0
    %7483 = vmatprep.mubr.f32.mxu0 %v5692
    %7484 = vmatmul.mubr.f32.gmra.mxu0 %v5691
    %v7485 = vpop.f32.mrf.mxu0
    %v7486 = vadd.f32 %v7101, %v7485
    %v7487 = vpop.f32.mrf.mxu0
    %7488 = vmatprep.mubr.f32.mxu0 %v5701
    %7489 = vmatmul.mubr.f32.gmra.mxu0 %v5700
    %v7490 = vpop.f32.mrf.mxu0
    %v7491 = vadd.f32 %v7106, %v7490
    %v7492 = vpop.f32.mrf.mxu0
    %7493 = vmatprep.mubr.f32.mxu0 %v5710
    %7494 = vmatmul.mubr.f32.gmra.mxu0 %v5709
    %v7495 = vpop.f32.mrf.mxu0
    %v7496 = vadd.f32 %v7111, %v7495
    %v7497 = vpop.f32.mrf.mxu0
    %7498 = vmatprep.mubr.f32.mxu0 %v5719
    %7499 = vmatmul.mubr.f32.gmra.mxu0 %v5718
    %v7500 = vpop.f32.mrf.mxu0
    %v7501 = vadd.f32 %v7116, %v7500
    %v7502 = vpop.f32.mrf.mxu0
    %7503 = vmatprep.mubr.f32.mxu0 %v5728
    %7504 = vmatmul.mubr.f32.gmra.mxu0 %v5727
    %v7505 = vpop.f32.mrf.mxu0
    %v7506 = vadd.f32 %v7121, %v7505
    %v7507 = vpop.f32.mrf.mxu0
    %7508 = vmatprep.mubr.f32.mxu0 %v5737
    %7509 = vmatmul.mubr.f32.gmra.mxu0 %v5736
    %v7510 = vpop.f32.mrf.mxu0
    %v7511 = vadd.f32 %v7126, %v7510
    %v7512 = vpop.f32.mrf.mxu0
    %7513 = vmatprep.mubr.f32.mxu0 %v5746
    %7514 = vmatmul.mubr.f32.gmra.mxu0 %v5745
    %v7515 = vpop.f32.mrf.mxu0
    %v7516 = vadd.f32 %v7131, %v7515
    %v7517 = vpop.f32.mrf.mxu0
    %7518 = vmatprep.mubr.f32.mxu0 %v5755
    %7519 = vmatmul.mubr.f32.gmra.mxu0 %v5754
    %v7520 = vpop.f32.mrf.mxu0
    %v7521 = vadd.f32 %v7136, %v7520
    %v7522 = vpop.f32.mrf.mxu0
    %7523 = vmatprep.mubr.f32.mxu0 %v5764
    %7524 = vmatmul.mubr.f32.gmra.mxu0 %v5763
    %v7525 = vpop.f32.mrf.mxu0
    %v7526 = vadd.f32 %v7141, %v7525
    %v7527 = vpop.f32.mrf.mxu0
    %7528 = vmatprep.mubr.f32.mxu0 %v5773
    %7529 = vmatmul.mubr.f32.gmra.mxu0 %v5772
    %v7530 = vpop.f32.mrf.mxu0
    %v7531 = vadd.f32 %v7146, %v7530
    %v7532 = vpop.f32.mrf.mxu0
    %7533 = vmatprep.mubr.f32.mxu0 %v5782
    %7534 = vmatmul.mubr.f32.gmra.mxu0 %v5781
    %v7535 = vpop.f32.mrf.mxu0
    %v7536 = vadd.f32 %v7151, %v7535
    %v7537 = vpop.f32.mrf.mxu0
    %7538 = vdwg.mxu0
    %7539 = vmatprep.subr.mxu0 0.0
    %7540 = vmatpush1.msra.mxu0 %v5927
    %7541 = vmatprep.subr.mxu0 0.0
    %7542 = vmatpush1.msra.mxu0 %v5926
    %7543 = vmatprep.subr.mxu0 0.0
    %7544 = vmatpush1.msra.mxu0 %v5925
    %7545 = vmatprep.subr.mxu0 0.0
    %7546 = vmatpush1.msra.mxu0 %v5924
    %7547 = vmatprep.subr.mxu0 0.0
    %7548 = vmatpush1.msra.mxu0 %v5923
    %7549 = vmatprep.subr.mxu0 0.0
    %7550 = vmatpush1.msra.mxu0 %v5922
    %7551 = vmatprep.subr.mxu0 0.0
    %7552 = vmatpush1.msra.mxu0 %v5921
    %7553 = vmatprep.subr.mxu0 0.0
    %7554 = vmatpush1.msra.mxu0 %v5920
    %7555 = vmatprep.subr.mxu0 0.0
    %7556 = vmatpush1.msra.mxu0 %v5919
    %7557 = vmatprep.subr.mxu0 0.0
    %7558 = vmatpush1.msra.mxu0 %v5918
    %7559 = vmatprep.subr.mxu0 0.0
    %7560 = vmatpush1.msra.mxu0 %v5917
    %7561 = vmatprep.subr.mxu0 0.0
    %7562 = vmatpush1.msra.mxu0 %v5916
    %7563 = vmatprep.subr.mxu0 0.0
    %7564 = vmatpush1.msra.mxu0 %v5915
    %7565 = vmatprep.subr.mxu0 0.0
    %7566 = vmatpush1.msra.mxu0 %v5914
    %7567 = vmatprep.subr.mxu0 0.0
    %7568 = vmatpush1.msra.mxu0 %v5913
    %7569 = vmatprep.subr.mxu0 0.0
    %7570 = vmatpush1.msra.mxu0 %v5912
    %7571 = vmatprep.subr.mxu0 0.0
    %7572 = vmatpush2.msra.mxu0 0.0
    %7573 = vmatprep.subr.mxu0 0.0
    %7574 = vmatpush2.msra.mxu0 0.0
    %7575 = vmatprep.subr.mxu0 0.0
    %7576 = vmatpush2.msra.mxu0 0.0
    %7577 = vmatprep.subr.mxu0 0.0
    %7578 = vmatpush2.msra.mxu0 0.0
    %7579 = vmatprep.subr.mxu0 0.0
    %7580 = vmatpush2.msra.mxu0 0.0
    %7581 = vmatprep.subr.mxu0 0.0
    %7582 = vmatpush2.msra.mxu0 0.0
    %7583 = vmatprep.subr.mxu0 0.0
    %7584 = vmatpush2.msra.mxu0 0.0
    %7585 = vmatprep.subr.mxu0 0.0
    %7586 = vmatpush2.msra.mxu0 0.0
    %7587 = vmatprep.subr.mxu0 0.0
    %7588 = vmatpush2.msra.mxu0 0.0
    %7589 = vmatprep.subr.mxu0 0.0
    %7590 = vmatpush2.msra.mxu0 0.0
    %7591 = vmatprep.subr.mxu0 0.0
    %7592 = vmatpush2.msra.mxu0 0.0
    %7593 = vmatprep.subr.mxu0 0.0
    %7594 = vmatpush2.msra.mxu0 0.0
    %7595 = vmatprep.subr.mxu0 0.0
    %7596 = vmatpush2.msra.mxu0 0.0
    %7597 = vmatprep.subr.mxu0 0.0
    %7598 = vmatpush2.msra.mxu0 0.0
    %7599 = vmatprep.subr.mxu0 0.0
    %7600 = vmatpush2.msra.mxu0 0.0
    %7601 = vmatprep.subr.mxu0 0.0
    %7602 = vmatpush2.msra.mxu0 0.0
    %7603 = vmatprep.mubr.f32.mxu0 0.0
    %7604 = vmatmul.mubr.f32.gmra.mxu0 %v5216
    %v7605 = vpop.f32.mrf.mxu0
    %v7606 = vadd.f32 %v7221, %v7605
    %v7607 = vpop.f32.mrf.mxu0
    %7608 = vmatprep.mubr.f32.mxu0 0.0
    %7609 = vmatmul.mubr.f32.gmra.mxu0 %v5225
    %v7610 = vpop.f32.mrf.mxu0
    %v7611 = vadd.f32 %v7226, %v7610
    %v7612 = vpop.f32.mrf.mxu0
    %7613 = vmatprep.mubr.f32.mxu0 0.0
    %7614 = vmatmul.mubr.f32.gmra.mxu0 %v5234
    %v7615 = vpop.f32.mrf.mxu0
    %v7616 = vadd.f32 %v7231, %v7615
    %v7617 = vpop.f32.mrf.mxu0
    %7618 = vmatprep.mubr.f32.mxu0 0.0
    %7619 = vmatmul.mubr.f32.gmra.mxu0 %v5243
    %v7620 = vpop.f32.mrf.mxu0
    %v7621 = vadd.f32 %v7236, %v7620
    %v7622 = vpop.f32.mrf.mxu0
    %7623 = vmatprep.mubr.f32.mxu0 0.0
    %7624 = vmatmul.mubr.f32.gmra.mxu0 %v5252
    %v7625 = vpop.f32.mrf.mxu0
    %v7626 = vadd.f32 %v7241, %v7625
    %v7627 = vpop.f32.mrf.mxu0
    %7628 = vmatprep.mubr.f32.mxu0 0.0
    %7629 = vmatmul.mubr.f32.gmra.mxu0 %v5261
    %v7630 = vpop.f32.mrf.mxu0
    %v7631 = vadd.f32 %v7246, %v7630
    %v7632 = vpop.f32.mrf.mxu0
    %7633 = vmatprep.mubr.f32.mxu0 0.0
    %7634 = vmatmul.mubr.f32.gmra.mxu0 %v5270
    %v7635 = vpop.f32.mrf.mxu0
    %v7636 = vadd.f32 %v7251, %v7635
    %v7637 = vpop.f32.mrf.mxu0
    %7638 = vmatprep.mubr.f32.mxu0 0.0
    %7639 = vmatmul.mubr.f32.gmra.mxu0 %v5279
    %v7640 = vpop.f32.mrf.mxu0
    %v7641 = vadd.f32 %v7256, %v7640
    %v7642 = vpop.f32.mrf.mxu0
    %7643 = vmatprep.mubr.f32.mxu0 0.0
    %7644 = vmatmul.mubr.f32.gmra.mxu0 %v5288
    %v7645 = vpop.f32.mrf.mxu0
    %v7646 = vadd.f32 %v7261, %v7645
    %v7647 = vpop.f32.mrf.mxu0
    %7648 = vmatprep.mubr.f32.mxu0 0.0
    %7649 = vmatmul.mubr.f32.gmra.mxu0 %v5297
    %v7650 = vpop.f32.mrf.mxu0
    %v7651 = vadd.f32 %v7266, %v7650
    %v7652 = vpop.f32.mrf.mxu0
    %7653 = vmatprep.mubr.f32.mxu0 0.0
    %7654 = vmatmul.mubr.f32.gmra.mxu0 %v5306
    %v7655 = vpop.f32.mrf.mxu0
    %v7656 = vadd.f32 %v7271, %v7655
    %v7657 = vpop.f32.mrf.mxu0
    %7658 = vmatprep.mubr.f32.mxu0 0.0
    %7659 = vmatmul.mubr.f32.gmra.mxu0 %v5315
    %v7660 = vpop.f32.mrf.mxu0
    %v7661 = vadd.f32 %v7276, %v7660
    %v7662 = vpop.f32.mrf.mxu0
    %7663 = vmatprep.mubr.f32.mxu0 0.0
    %7664 = vmatmul.mubr.f32.gmra.mxu0 %v5324
    %v7665 = vpop.f32.mrf.mxu0
    %v7666 = vadd.f32 %v7281, %v7665
    %v7667 = vpop.f32.mrf.mxu0
    %7668 = vmatprep.mubr.f32.mxu0 0.0
    %7669 = vmatmul.mubr.f32.gmra.mxu0 %v5333
    %v7670 = vpop.f32.mrf.mxu0
    %v7671 = vadd.f32 %v7286, %v7670
    %v7672 = vpop.f32.mrf.mxu0
    %7673 = vmatprep.mubr.f32.mxu0 0.0
    %7674 = vmatmul.mubr.f32.gmra.mxu0 %v5342
    %v7675 = vpop.f32.mrf.mxu0
    %v7676 = vadd.f32 %v7291, %v7675
    %v7677 = vpop.f32.mrf.mxu0
    %7678 = vmatprep.mubr.f32.mxu0 0.0
    %7679 = vmatmul.mubr.f32.gmra.mxu0 %v5351
    %v7680 = vpop.f32.mrf.mxu0
    %v7681 = vadd.f32 %v7296, %v7680
    %v7682 = vpop.f32.mrf.mxu0
    %7683 = vmatprep.mubr.f32.mxu0 0.0
    %7684 = vmatmul.mubr.f32.gmra.mxu0 %v5360
    %v7685 = vpop.f32.mrf.mxu0
    %v7686 = vadd.f32 %v7301, %v7685
    %v7687 = vpop.f32.mrf.mxu0
    %7688 = vmatprep.mubr.f32.mxu0 0.0
    %7689 = vmatmul.mubr.f32.gmra.mxu0 %v5369
    %v7690 = vpop.f32.mrf.mxu0
    %v7691 = vadd.f32 %v7306, %v7690
    %v7692 = vpop.f32.mrf.mxu0
    %7693 = vmatprep.mubr.f32.mxu0 0.0
    %7694 = vmatmul.mubr.f32.gmra.mxu0 %v5378
    %v7695 = vpop.f32.mrf.mxu0
    %v7696 = vadd.f32 %v7311, %v7695
    %v7697 = vpop.f32.mrf.mxu0
    %7698 = vmatprep.mubr.f32.mxu0 0.0
    %7699 = vmatmul.mubr.f32.gmra.mxu0 %v5387
    %v7700 = vpop.f32.mrf.mxu0
    %v7701 = vadd.f32 %v7316, %v7700
    %v7702 = vpop.f32.mrf.mxu0
    %7703 = vmatprep.mubr.f32.mxu0 0.0
    %7704 = vmatmul.mubr.f32.gmra.mxu0 %v5396
    %v7705 = vpop.f32.mrf.mxu0
    %v7706 = vadd.f32 %v7321, %v7705
    %v7707 = vpop.f32.mrf.mxu0
    %7708 = vmatprep.mubr.f32.mxu0 0.0
    %7709 = vmatmul.mubr.f32.gmra.mxu0 %v5405
    %v7710 = vpop.f32.mrf.mxu0
    %v7711 = vadd.f32 %v7326, %v7710
    %v7712 = vpop.f32.mrf.mxu0
    %7713 = vmatprep.mubr.f32.mxu0 0.0
    %7714 = vmatmul.mubr.f32.gmra.mxu0 %v5414
    %v7715 = vpop.f32.mrf.mxu0
    %v7716 = vadd.f32 %v7331, %v7715
    %v7717 = vpop.f32.mrf.mxu0
    %7718 = vmatprep.mubr.f32.mxu0 0.0
    %7719 = vmatmul.mubr.f32.gmra.mxu0 %v5423
    %v7720 = vpop.f32.mrf.mxu0
    %v7721 = vadd.f32 %v7336, %v7720
    %v7722 = vpop.f32.mrf.mxu0
    %7723 = vmatprep.mubr.f32.mxu0 0.0
    %7724 = vmatmul.mubr.f32.gmra.mxu0 %v5432
    %v7725 = vpop.f32.mrf.mxu0
    %v7726 = vadd.f32 %v7341, %v7725
    %v7727 = vpop.f32.mrf.mxu0
    %7728 = vmatprep.mubr.f32.mxu0 0.0
    %7729 = vmatmul.mubr.f32.gmra.mxu0 %v5441
    %v7730 = vpop.f32.mrf.mxu0
    %v7731 = vadd.f32 %v7346, %v7730
    %v7732 = vpop.f32.mrf.mxu0
    %7733 = vmatprep.mubr.f32.mxu0 0.0
    %7734 = vmatmul.mubr.f32.gmra.mxu0 %v5450
    %v7735 = vpop.f32.mrf.mxu0
    %v7736 = vadd.f32 %v7351, %v7735
    %v7737 = vpop.f32.mrf.mxu0
    %7738 = vmatprep.mubr.f32.mxu0 0.0
    %7739 = vmatmul.mubr.f32.gmra.mxu0 %v5459
    %v7740 = vpop.f32.mrf.mxu0
    %v7741 = vadd.f32 %v7356, %v7740
    %v7742 = vpop.f32.mrf.mxu0
    %7743 = vmatprep.mubr.f32.mxu0 0.0
    %7744 = vmatmul.mubr.f32.gmra.mxu0 %v5468
    %v7745 = vpop.f32.mrf.mxu0
    %v7746 = vadd.f32 %v7361, %v7745
    %v7747 = vpop.f32.mrf.mxu0
    %7748 = vmatprep.mubr.f32.mxu0 0.0
    %7749 = vmatmul.mubr.f32.gmra.mxu0 %v5477
    %v7750 = vpop.f32.mrf.mxu0
    %v7751 = vadd.f32 %v7366, %v7750
    %v7752 = vpop.f32.mrf.mxu0
    %7753 = vmatprep.mubr.f32.mxu0 0.0
    %7754 = vmatmul.mubr.f32.gmra.mxu0 %v5486
    %v7755 = vpop.f32.mrf.mxu0
    %v7756 = vadd.f32 %v7371, %v7755
    %v7757 = vpop.f32.mrf.mxu0
    %7758 = vmatprep.mubr.f32.mxu0 0.0
    %7759 = vmatmul.mubr.f32.gmra.mxu0 %v5495
    %v7760 = vpop.f32.mrf.mxu0
    %v7761 = vadd.f32 %v7376, %v7760
    %v7762 = vpop.f32.mrf.mxu0
    %7763 = vmatprep.mubr.f32.mxu0 0.0
    %7764 = vmatmul.mubr.f32.gmra.mxu0 %v5504
    %v7765 = vpop.f32.mrf.mxu0
    %v7766 = vadd.f32 %v7381, %v7765
    %v7767 = vpop.f32.mrf.mxu0
    %7768 = vmatprep.mubr.f32.mxu0 0.0
    %7769 = vmatmul.mubr.f32.gmra.mxu0 %v5513
    %v7770 = vpop.f32.mrf.mxu0
    %v7771 = vadd.f32 %v7386, %v7770
    %v7772 = vpop.f32.mrf.mxu0
    %7773 = vmatprep.mubr.f32.mxu0 0.0
    %7774 = vmatmul.mubr.f32.gmra.mxu0 %v5522
    %v7775 = vpop.f32.mrf.mxu0
    %v7776 = vadd.f32 %v7391, %v7775
    %v7777 = vpop.f32.mrf.mxu0
    %7778 = vmatprep.mubr.f32.mxu0 0.0
    %7779 = vmatmul.mubr.f32.gmra.mxu0 %v5531
    %v7780 = vpop.f32.mrf.mxu0
    %v7781 = vadd.f32 %v7396, %v7780
    %v7782 = vpop.f32.mrf.mxu0
    %7783 = vmatprep.mubr.f32.mxu0 0.0
    %7784 = vmatmul.mubr.f32.gmra.mxu0 %v5540
    %v7785 = vpop.f32.mrf.mxu0
    %v7786 = vadd.f32 %v7401, %v7785
    %v7787 = vpop.f32.mrf.mxu0
    %7788 = vmatprep.mubr.f32.mxu0 0.0
    %7789 = vmatmul.mubr.f32.gmra.mxu0 %v5549
    %v7790 = vpop.f32.mrf.mxu0
    %v7791 = vadd.f32 %v7406, %v7790
    %v7792 = vpop.f32.mrf.mxu0
    %7793 = vmatprep.mubr.f32.mxu0 0.0
    %7794 = vmatmul.mubr.f32.gmra.mxu0 %v5558
    %v7795 = vpop.f32.mrf.mxu0
    %v7796 = vadd.f32 %v7411, %v7795
    %v7797 = vpop.f32.mrf.mxu0
    %7798 = vmatprep.mubr.f32.mxu0 0.0
    %7799 = vmatmul.mubr.f32.gmra.mxu0 %v5567
    %v7800 = vpop.f32.mrf.mxu0
    %v7801 = vadd.f32 %v7416, %v7800
    %v7802 = vpop.f32.mrf.mxu0
    %7803 = vmatprep.mubr.f32.mxu0 0.0
    %7804 = vmatmul.mubr.f32.gmra.mxu0 %v5576
    %v7805 = vpop.f32.mrf.mxu0
    %v7806 = vadd.f32 %v7421, %v7805
    %v7807 = vpop.f32.mrf.mxu0
    %7808 = vmatprep.mubr.f32.mxu0 0.0
    %7809 = vmatmul.mubr.f32.gmra.mxu0 %v5585
    %v7810 = vpop.f32.mrf.mxu0
    %v7811 = vadd.f32 %v7426, %v7810
    %v7812 = vpop.f32.mrf.mxu0
    %7813 = vmatprep.mubr.f32.mxu0 0.0
    %7814 = vmatmul.mubr.f32.gmra.mxu0 %v5594
    %v7815 = vpop.f32.mrf.mxu0
    %v7816 = vadd.f32 %v7431, %v7815
    %v7817 = vpop.f32.mrf.mxu0
    %7818 = vmatprep.mubr.f32.mxu0 0.0
    %7819 = vmatmul.mubr.f32.gmra.mxu0 %v5603
    %v7820 = vpop.f32.mrf.mxu0
    %v7821 = vadd.f32 %v7436, %v7820
    %v7822 = vpop.f32.mrf.mxu0
    %7823 = vmatprep.mubr.f32.mxu0 0.0
    %7824 = vmatmul.mubr.f32.gmra.mxu0 %v5612
    %v7825 = vpop.f32.mrf.mxu0
    %v7826 = vadd.f32 %v7441, %v7825
    %v7827 = vpop.f32.mrf.mxu0
    %7828 = vmatprep.mubr.f32.mxu0 0.0
    %7829 = vmatmul.mubr.f32.gmra.mxu0 %v5621
    %v7830 = vpop.f32.mrf.mxu0
    %v7831 = vadd.f32 %v7446, %v7830
    %v7832 = vpop.f32.mrf.mxu0
    %7833 = vmatprep.mubr.f32.mxu0 0.0
    %7834 = vmatmul.mubr.f32.gmra.mxu0 %v5630
    %v7835 = vpop.f32.mrf.mxu0
    %v7836 = vadd.f32 %v7451, %v7835
    %v7837 = vpop.f32.mrf.mxu0
    %7838 = vmatprep.mubr.f32.mxu0 0.0
    %7839 = vmatmul.mubr.f32.gmra.mxu0 %v5639
    %v7840 = vpop.f32.mrf.mxu0
    %v7841 = vadd.f32 %v7456, %v7840
    %v7842 = vpop.f32.mrf.mxu0
    %7843 = vmatprep.mubr.f32.mxu0 0.0
    %7844 = vmatmul.mubr.f32.gmra.mxu0 %v5648
    %v7845 = vpop.f32.mrf.mxu0
    %v7846 = vadd.f32 %v7461, %v7845
    %v7847 = vpop.f32.mrf.mxu0
    %7848 = vmatprep.mubr.f32.mxu0 0.0
    %7849 = vmatmul.mubr.f32.gmra.mxu0 %v5657
    %v7850 = vpop.f32.mrf.mxu0
    %v7851 = vadd.f32 %v7466, %v7850
    %v7852 = vpop.f32.mrf.mxu0
    %7853 = vmatprep.mubr.f32.mxu0 0.0
    %7854 = vmatmul.mubr.f32.gmra.mxu0 %v5666
    %v7855 = vpop.f32.mrf.mxu0
    %v7856 = vadd.f32 %v7471, %v7855
    %v7857 = vpop.f32.mrf.mxu0
    %7858 = vmatprep.mubr.f32.mxu0 0.0
    %7859 = vmatmul.mubr.f32.gmra.mxu0 %v5675
    %v7860 = vpop.f32.mrf.mxu0
    %v7861 = vadd.f32 %v7476, %v7860
    %v7862 = vpop.f32.mrf.mxu0
    %7863 = vmatprep.mubr.f32.mxu0 0.0
    %7864 = vmatmul.mubr.f32.gmra.mxu0 %v5684
    %v7865 = vpop.f32.mrf.mxu0
    %v7866 = vadd.f32 %v7481, %v7865
    %v7867 = vpop.f32.mrf.mxu0
    %7868 = vmatprep.mubr.f32.mxu0 0.0
    %7869 = vmatmul.mubr.f32.gmra.mxu0 %v5693
    %v7870 = vpop.f32.mrf.mxu0
    %v7871 = vadd.f32 %v7486, %v7870
    %v7872 = vpop.f32.mrf.mxu0
    %7873 = vmatprep.mubr.f32.mxu0 0.0
    %7874 = vmatmul.mubr.f32.gmra.mxu0 %v5702
    %v7875 = vpop.f32.mrf.mxu0
    %v7876 = vadd.f32 %v7491, %v7875
    %v7877 = vpop.f32.mrf.mxu0
    %7878 = vmatprep.mubr.f32.mxu0 0.0
    %7879 = vmatmul.mubr.f32.gmra.mxu0 %v5711
    %v7880 = vpop.f32.mrf.mxu0
    %v7881 = vadd.f32 %v7496, %v7880
    %v7882 = vpop.f32.mrf.mxu0
    %7883 = vmatprep.mubr.f32.mxu0 0.0
    %7884 = vmatmul.mubr.f32.gmra.mxu0 %v5720
    %v7885 = vpop.f32.mrf.mxu0
    %v7886 = vadd.f32 %v7501, %v7885
    %v7887 = vpop.f32.mrf.mxu0
    %7888 = vmatprep.mubr.f32.mxu0 0.0
    %7889 = vmatmul.mubr.f32.gmra.mxu0 %v5729
    %v7890 = vpop.f32.mrf.mxu0
    %v7891 = vadd.f32 %v7506, %v7890
    %v7892 = vpop.f32.mrf.mxu0
    %7893 = vmatprep.mubr.f32.mxu0 0.0
    %7894 = vmatmul.mubr.f32.gmra.mxu0 %v5738
    %v7895 = vpop.f32.mrf.mxu0
    %v7896 = vadd.f32 %v7511, %v7895
    %v7897 = vpop.f32.mrf.mxu0
    %7898 = vmatprep.mubr.f32.mxu0 0.0
    %7899 = vmatmul.mubr.f32.gmra.mxu0 %v5747
    %v7900 = vpop.f32.mrf.mxu0
    %v7901 = vadd.f32 %v7516, %v7900
    %v7902 = vpop.f32.mrf.mxu0
    %7903 = vmatprep.mubr.f32.mxu0 0.0
    %7904 = vmatmul.mubr.f32.gmra.mxu0 %v5756
    %v7905 = vpop.f32.mrf.mxu0
    %v7906 = vadd.f32 %v7521, %v7905
    %v7907 = vpop.f32.mrf.mxu0
    %7908 = vmatprep.mubr.f32.mxu0 0.0
    %7909 = vmatmul.mubr.f32.gmra.mxu0 %v5765
    %v7910 = vpop.f32.mrf.mxu0
    %v7911 = vadd.f32 %v7526, %v7910
    %v7912 = vpop.f32.mrf.mxu0
    %7913 = vmatprep.mubr.f32.mxu0 0.0
    %7914 = vmatmul.mubr.f32.gmra.mxu0 %v5774
    %v7915 = vpop.f32.mrf.mxu0
    %v7916 = vadd.f32 %v7531, %v7915
    %v7917 = vpop.f32.mrf.mxu0
    %7918 = vmatprep.mubr.f32.mxu0 0.0
    %7919 = vmatmul.mubr.f32.gmra.mxu0 %v5783
    %v7920 = vpop.f32.mrf.mxu0
    %v7921 = vadd.f32 %v7536, %v7920
    %v7922 = vpop.f32.mrf.mxu0
    %7923 = vdwg.mxu0
    %v7924 = vadd.f32 %v7606, %v5928
    %v7925 = vadd.f32 %v7611, %v5929
    %v7926 = vadd.f32 %v7616, %v5930
    %v7927 = vadd.f32 %v7621, %v5931
    %v7928 = vadd.f32 %v7626, %v5932
    %v7929 = vadd.f32 %v7631, %v5933
    %v7930 = vadd.f32 %v7636, %v5934
    %v7931 = vadd.f32 %v7641, %v5935
    %v7932 = vadd.f32 %v7646, %v5936
    %v7933 = vadd.f32 %v7651, %v5937
    %v7934 = vadd.f32 %v7656, %v5938
    %v7935 = vadd.f32 %v7661, %v5939
    %v7936 = vadd.f32 %v7666, %v5940
    %v7937 = vadd.f32 %v7671, %v5941
    %v7938 = vadd.f32 %v7676, %v5942
    %v7939 = vadd.f32 %v7681, %v5943
    %v7940 = vadd.f32 %v7686, %v5944
    %v7941 = vadd.f32 %v7691, %v5945
    %v7942 = vadd.f32 %v7696, %v5946
    %v7943 = vadd.f32 %v7701, %v5947
    %v7944 = vadd.f32 %v7706, %v5948
    %v7945 = vadd.f32 %v7711, %v5949
    %v7946 = vadd.f32 %v7716, %v5950
    %v7947 = vadd.f32 %v7721, %v5951
    %v7948 = vadd.f32 %v7726, %v5952
    %v7949 = vadd.f32 %v7731, %v5953
    %v7950 = vadd.f32 %v7736, %v5954
    %v7951 = vadd.f32 %v7741, %v5955
    %v7952 = vadd.f32 %v7746, %v5956
    %v7953 = vadd.f32 %v7751, %v5957
    %v7954 = vadd.f32 %v7756, %v5958
    %v7955 = vadd.f32 %v7761, %v5959
    %v7956 = vadd.f32 %v7766, %v5960
    %v7957 = vadd.f32 %v7771, %v5961
    %v7958 = vadd.f32 %v7776, %v5962
    %v7959 = vadd.f32 %v7781, %v5963
    %v7960 = vadd.f32 %v7786, %v5964
    %v7961 = vadd.f32 %v7791, %v5965
    %v7962 = vadd.f32 %v7796, %v5966
    %v7963 = vadd.f32 %v7801, %v5967
    %v7964 = vadd.f32 %v7806, %v5968
    %v7965 = vadd.f32 %v7811, %v5969
    %v7966 = vadd.f32 %v7816, %v5970
    %v7967 = vadd.f32 %v7821, %v5971
    %v7968 = vadd.f32 %v7826, %v5972
    %v7969 = vadd.f32 %v7831, %v5973
    %v7970 = vadd.f32 %v7836, %v5974
    %v7971 = vadd.f32 %v7841, %v5975
    %v7972 = vadd.f32 %v7846, %v5976
    %v7973 = vadd.f32 %v7851, %v5977
    %v7974 = vadd.f32 %v7856, %v5978
    %v7975 = vadd.f32 %v7861, %v5979
    %v7976 = vadd.f32 %v7866, %v5980
    %v7977 = vadd.f32 %v7871, %v5981
    %v7978 = vadd.f32 %v7876, %v5982
    %v7979 = vadd.f32 %v7881, %v5983
    %v7980 = vadd.f32 %v7886, %v5984
    %v7981 = vadd.f32 %v7891, %v5985
    %v7982 = vadd.f32 %v7896, %v5986
    %v7983 = vadd.f32 %v7901, %v5987
    %v7984 = vadd.f32 %v7906, %v5988
    %v7985 = vadd.f32 %v7911, %v5989
    %v7986 = vadd.f32 %v7916, %v5990
    %v7987 = vadd.f32 %v7921, %v5991
    %v7988 = vmax.f32 %v7924, 0.0
    %v7989 = vmax.f32 %v7925, 0.0
    %v7990 = vmax.f32 %v7926, 0.0
    %v7991 = vmax.f32 %v7927, 0.0
    %v7992 = vmax.f32 %v7928, 0.0
    %v7993 = vmax.f32 %v7929, 0.0
    %v7994 = vmax.f32 %v7930, 0.0
    %v7995 = vmax.f32 %v7931, 0.0
    %v7996 = vmax.f32 %v7932, 0.0
    %v7997 = vmax.f32 %v7933, 0.0
    %v7998 = vmax.f32 %v7934, 0.0
    %v7999 = vmax.f32 %v7935, 0.0
    %v8000 = vmax.f32 %v7936, 0.0
    %v8001 = vmax.f32 %v7937, 0.0
    %v8002 = vmax.f32 %v7938, 0.0
    %v8003 = vmax.f32 %v7939, 0.0
    %v8004 = vmax.f32 %v7940, 0.0
    %v8005 = vmax.f32 %v7941, 0.0
    %v8006 = vmax.f32 %v7942, 0.0
    %v8007 = vmax.f32 %v7943, 0.0
    %v8008 = vmax.f32 %v7944, 0.0
    %v8009 = vmax.f32 %v7945, 0.0
    %v8010 = vmax.f32 %v7946, 0.0
    %v8011 = vmax.f32 %v7947, 0.0
    %v8012 = vmax.f32 %v7948, 0.0
    %v8013 = vmax.f32 %v7949, 0.0
    %v8014 = vmax.f32 %v7950, 0.0
    %v8015 = vmax.f32 %v7951, 0.0
    %v8016 = vmax.f32 %v7952, 0.0
    %v8017 = vmax.f32 %v7953, 0.0
    %v8018 = vmax.f32 %v7954, 0.0
    %v8019 = vmax.f32 %v7955, 0.0
    %v8020 = vmax.f32 %v7956, 0.0
    %v8021 = vmax.f32 %v7957, 0.0
    %v8022 = vmax.f32 %v7958, 0.0
    %v8023 = vmax.f32 %v7959, 0.0
    %v8024 = vmax.f32 %v7960, 0.0
    %v8025 = vmax.f32 %v7961, 0.0
    %v8026 = vmax.f32 %v7962, 0.0
    %v8027 = vmax.f32 %v7963, 0.0
    %v8028 = vmax.f32 %v7964, 0.0
    %v8029 = vmax.f32 %v7965, 0.0
    %v8030 = vmax.f32 %v7966, 0.0
    %v8031 = vmax.f32 %v7967, 0.0
    %v8032 = vmax.f32 %v7968, 0.0
    %v8033 = vmax.f32 %v7969, 0.0
    %v8034 = vmax.f32 %v7970, 0.0
    %v8035 = vmax.f32 %v7971, 0.0
    %v8036 = vmax.f32 %v7972, 0.0
    %v8037 = vmax.f32 %v7973, 0.0
    %v8038 = vmax.f32 %v7974, 0.0
    %v8039 = vmax.f32 %v7975, 0.0
    %v8040 = vmax.f32 %v7976, 0.0
    %v8041 = vmax.f32 %v7977, 0.0
    %v8042 = vmax.f32 %v7978, 0.0
    %v8043 = vmax.f32 %v7979, 0.0
    %v8044 = vmax.f32 %v7980, 0.0
    %v8045 = vmax.f32 %v7981, 0.0
    %v8046 = vmax.f32 %v7982, 0.0
    %v8047 = vmax.f32 %v7983, 0.0
    %v8048 = vmax.f32 %v7984, 0.0
    %v8049 = vmax.f32 %v7985, 0.0
    %v8050 = vmax.f32 %v7986, 0.0
    %v8051 = vmax.f32 %v7987, 0.0
    %8052 = vst [vmem:[#allocation7] sm:$0xff] %v7988
    %8053 = vst [vmem:[#allocation7 + $0x8] sm:$0xff] %v7989
    %8054 = vst [vmem:[#allocation7 + $0x10] sm:$0xff] %v7990
    %8055 = vst [vmem:[#allocation7 + $0x18] sm:$0xff] %v7991
    %8056 = vst [vmem:[#allocation7 + $0x20] sm:$0xff] %v7992
    %8057 = vst [vmem:[#allocation7 + $0x28] sm:$0xff] %v7993
    %8058 = vst [vmem:[#allocation7 + $0x30] sm:$0xff] %v7994
    %8059 = vst [vmem:[#allocation7 + $0x38] sm:$0xff] %v7995
    %8060 = vst [vmem:[#allocation7 + $0x40] sm:$0xff] %v7996
    %8061 = vst [vmem:[#allocation7 + $0x48] sm:$0xff] %v7997
    %8062 = vst [vmem:[#allocation7 + $0x50] sm:$0xff] %v7998
    %8063 = vst [vmem:[#allocation7 + $0x58] sm:$0xff] %v7999
    %8064 = vst [vmem:[#allocation7 + $0x60] sm:$0xff] %v8000
    %8065 = vst [vmem:[#allocation7 + $0x68] sm:$0xff] %v8001
    %8066 = vst [vmem:[#allocation7 + $0x70] sm:$0xff] %v8002
    %8067 = vst [vmem:[#allocation7 + $0x78] sm:$0xff] %v8003
    %8068 = vst [vmem:[#allocation7 + $0x80] sm:$0xff] %v8004
    %8069 = vst [vmem:[#allocation7 + $0x88] sm:$0xff] %v8005
    %8070 = vst [vmem:[#allocation7 + $0x90] sm:$0xff] %v8006
    %8071 = vst [vmem:[#allocation7 + $0x98] sm:$0xff] %v8007
    %8072 = vst [vmem:[#allocation7 + $0xa0] sm:$0xff] %v8008
    %8073 = vst [vmem:[#allocation7 + $0xa8] sm:$0xff] %v8009
    %8074 = vst [vmem:[#allocation7 + $0xb0] sm:$0xff] %v8010
    %8075 = vst [vmem:[#allocation7 + $0xb8] sm:$0xff] %v8011
    %8076 = vst [vmem:[#allocation7 + $0xc0] sm:$0xff] %v8012
    %8077 = vst [vmem:[#allocation7 + $0xc8] sm:$0xff] %v8013
    %8078 = vst [vmem:[#allocation7 + $0xd0] sm:$0xff] %v8014
    %8079 = vst [vmem:[#allocation7 + $0xd8] sm:$0xff] %v8015
    %8080 = vst [vmem:[#allocation7 + $0xe0] sm:$0xff] %v8016
    %8081 = vst [vmem:[#allocation7 + $0xe8] sm:$0xff] %v8017
    %8082 = vst [vmem:[#allocation7 + $0xf0] sm:$0xff] %v8018
    %8083 = vst [vmem:[#allocation7 + $0xf8] sm:$0xff] %v8019
    %8084 = vst [vmem:[#allocation7 + $0x100] sm:$0xff] %v8020
    %8085 = vst [vmem:[#allocation7 + $0x108] sm:$0xff] %v8021
    %8086 = vst [vmem:[#allocation7 + $0x110] sm:$0xff] %v8022
    %8087 = vst [vmem:[#allocation7 + $0x118] sm:$0xff] %v8023
    %8088 = vst [vmem:[#allocation7 + $0x120] sm:$0xff] %v8024
    %8089 = vst [vmem:[#allocation7 + $0x128] sm:$0xff] %v8025
    %8090 = vst [vmem:[#allocation7 + $0x130] sm:$0xff] %v8026
    %8091 = vst [vmem:[#allocation7 + $0x138] sm:$0xff] %v8027
    %8092 = vst [vmem:[#allocation7 + $0x140] sm:$0xff] %v8028
    %8093 = vst [vmem:[#allocation7 + $0x148] sm:$0xff] %v8029
    %8094 = vst [vmem:[#allocation7 + $0x150] sm:$0xff] %v8030
    %8095 = vst [vmem:[#allocation7 + $0x158] sm:$0xff] %v8031
    %8096 = vst [vmem:[#allocation7 + $0x160] sm:$0xff] %v8032
    %8097 = vst [vmem:[#allocation7 + $0x168] sm:$0xff] %v8033
    %8098 = vst [vmem:[#allocation7 + $0x170] sm:$0xff] %v8034
    %8099 = vst [vmem:[#allocation7 + $0x178] sm:$0xff] %v8035
    %8100 = vst [vmem:[#allocation7 + $0x180] sm:$0xff] %v8036
    %8101 = vst [vmem:[#allocation7 + $0x188] sm:$0xff] %v8037
    %8102 = vst [vmem:[#allocation7 + $0x190] sm:$0xff] %v8038
    %8103 = vst [vmem:[#allocation7 + $0x198] sm:$0xff] %v8039
    %8104 = vst [vmem:[#allocation7 + $0x1a0] sm:$0xff] %v8040
    %8105 = vst [vmem:[#allocation7 + $0x1a8] sm:$0xff] %v8041
    %8106 = vst [vmem:[#allocation7 + $0x1b0] sm:$0xff] %v8042
    %8107 = vst [vmem:[#allocation7 + $0x1b8] sm:$0xff] %v8043
    %8108 = vst [vmem:[#allocation7 + $0x1c0] sm:$0xff] %v8044
    %8109 = vst [vmem:[#allocation7 + $0x1c8] sm:$0xff] %v8045
    %8110 = vst [vmem:[#allocation7 + $0x1d0] sm:$0xff] %v8046
    %8111 = vst [vmem:[#allocation7 + $0x1d8] sm:$0xff] %v8047
    %8112 = vst [vmem:[#allocation7 + $0x1e0] sm:$0xff] %v8048
    %8113 = vst [vmem:[#allocation7 + $0x1e8] sm:$0xff] %v8049
    %8114 = vst [vmem:[#allocation7 + $0x1f0] sm:$0xff] %v8050
    %8115 = vst [vmem:[#allocation7 + $0x1f8] sm:$0xff] %v8051
    // Predicated region
    $region26: #{tpu_custom_call.1} parent=1 // pred_check
      _
    $region27: #{tpu_custom_call.1} parent=1 // pred_check_branch
      %8117 = sbr.rel (0) target = $region29
    $region28: #{tpu_custom_call.1} parent=1 // pred_region
      %s8119 = ssub.s32 8192, 8192
      %8120 = vsyncadd [#allocation6], %s8119
      %s8121 = sshll.u32 [#allocation7], 4
      %s8122 = int_to_ptr.vmem [resolvable:$true] %s8121
      %8127 = dma.vmem_to_hbm [thread:$0]  %s8122, 8192, %s5, [#allocation6], 128, 128, 8
    $region29: #{tpu_custom_call.1} parent=1 // pred_fallthru
      _
    // Predicated region
    $region30: #{tpu_custom_call.1} parent=1 // pred_check
      _
    $region31: #{tpu_custom_call.1} parent=1 // pred_check_branch
      %8129 = sbr.rel (0) target = $region33
    $region32: #{tpu_custom_call.1} parent=1 // pred_region
      %8130 = dma.done [#allocation6], 8192
    $region33: #{tpu_custom_call.1} parent=1 // pred_fallthru
      _
    %8131 = vsyncpa [#allocation5], 1
    %8132 = vsyncpa [#allocation6], 1

</llo_original>
